<compile_context>
chip_gen: v7x
topology: tpu7x:2x2x1
jax: 0.10.0
libtpu: 0.0.40
codegen_flags: <defaults>
</compile_context>

<pallas_src>
import numpy as np

import jax
import jax.numpy as jnp
from jax import lax
from jax.experimental import pallas as pl
from jax.experimental.pallas import tpu as pltpu


def _round_up(x, m):
    return (x + m - 1) // m * m


# ----------------------------------------------------------------------------
# Fused LeNet-5 kernel (one batch tile per grid step, batch on lanes)
# ----------------------------------------------------------------------------
def _lenet5_kernel(x_ref, w1_ref, b1_ref, w2_ref, b2_ref,
                   fc1w_ref, fc1b_ref, fc2w_ref, fc2b_ref,
                   fc3w_ref, fc3b_ref, out_ref, h1_ref):
    f32 = jnp.float32
    w1 = w1_ref[...]                                   # (288, 168)
    b1 = b1_ref[...]                                   # (288, 1)

    # ---- conv1 + ReLU + 2x2 max-pool: one pooled output row per MXU matmul.
    # Input rows 2p..2p+5 (168 sublanes) produce both conv rows 2p and 2p+1
    # for all 24 output columns and 6 channels in a single (288,168)x(168,tb)
    # matmul; h-pool = max(z[:144], z[144:]), w-pool = max(.[:72], .[72:]).
    for p in range(12):
        xw = x_ref[pl.ds(p * 56, 168), :]                          # (168, tb)
        z = jnp.dot(w1, xw, preferred_element_type=f32) + b1       # (288, tb)
        z = jnp.maximum(z, 0.0)
        z = jnp.maximum(z[:144], z[144:])                          # pool rows
        h1_ref[pl.ds(p * 72, 72), :] = jnp.maximum(z[:72], z[72:]) # pool cols
        # h1 row layout: (p*72 + ci*12 + pw)  <->  pooled (ci, p, pw)

    # ---- conv2 + ReLU + 2x2 max-pool (same scheme, Cin folded into K=432) --
    w2 = w2_ref[...]                                   # (256, 432)
    b2 = b2_ref[...]                                   # (256, 1)
    h2_rows = []
    for p in range(4):
        xw = h1_ref[pl.ds(p * 144, 432), :]                        # (432, tb)
        z = jnp.dot(w2, xw, preferred_element_type=f32) + b2       # (256, tb)
        z = jnp.maximum(z, 0.0)
        z = jnp.maximum(z[:128], z[128:])                          # pool rows
        h2_rows.append(jnp.maximum(z[:64], z[64:]))                # (64, tb)
    h2 = jnp.concatenate(h2_rows, axis=0)                          # (256, tb)

    # ---- FC head: three single MXU matmuls (fc1 weight pre-permuted so the
    # kernel's k = p*64 + co*4 + pw order matches torch.flatten) -------------
    z = jnp.dot(fc1w_ref[...], h2, preferred_element_type=f32) + fc1b_ref[...]
    z = jnp.maximum(z, 0.0)                                        # (120, tb)
    z = jnp.dot(fc2w_ref[...], z, preferred_element_type=f32) + fc2b_ref[...]
    z = jnp.maximum(z, 0.0)                                        # (84, tb)
    out_ref[...] = (jnp.dot(fc3w_ref[...], z, preferred_element_type=f32)
                    + fc3b_ref[...])                               # (10, tb)


# ----------------------------------------------------------------------------
# Host-side wrapper
# ----------------------------------------------------------------------------
@jax.jit
def lenet5_forward(img, p):
    """img: (N, 1, 28, 28) f32 (PyTorch NCHW) -> logits (N, 10) f32."""
    n = img.shape[0]
    tb = 128 if n <= 128 else 256        # lane-dense batch tile (always >=128)
    npad = _round_up(n, tb)

    # Dense (H*W, B) image matrix: row = h*28 + w, batch on lanes.
    # NOTE: this transpose is one small HBM pass; it could be folded into the
    # kernel (in-VMEM transpose of a (tb, 784) block) if it ever dominates.
    x = img.reshape(n, 28 * 28).T                                  # (784, N)
    if npad != n:
        x = jnp.pad(x, ((0, 0), (0, npad - n)))

    out = pl.pallas_call(
        _lenet5_kernel,
        out_shape=jax.ShapeDtypeStruct((10, npad), jnp.float32),
        grid=(npad // tb,),
        in_specs=[
            pl.BlockSpec((784, tb), lambda i: (0, i)),    # image tile
            pl.BlockSpec((288, 168), lambda i: (0, 0)),   # conv1 packed w
            pl.BlockSpec((288, 1), lambda i: (0, 0)),     # conv1 packed b
            pl.BlockSpec((256, 432), lambda i: (0, 0)),   # conv2 packed w
            pl.BlockSpec((256, 1), lambda i: (0, 0)),     # conv2 packed b
            pl.BlockSpec((120, 256), lambda i: (0, 0)),   # fc1 w (permuted)
            pl.BlockSpec((120, 1), lambda i: (0, 0)),     # fc1 b
            pl.BlockSpec((84, 120), lambda i: (0, 0)),    # fc2 w
            pl.BlockSpec((84, 1), lambda i: (0, 0)),      # fc2 b
            pl.BlockSpec((10, 84), lambda i: (0, 0)),     # fc3 w
            pl.BlockSpec((10, 1), lambda i: (0, 0)),      # fc3 b
        ],
        out_specs=pl.BlockSpec((10, tb), lambda i: (0, i)),
        scratch_shapes=[pltpu.VMEM((864, tb), jnp.float32)],   # pool1 output
        compiler_params=pltpu.CompilerParams(
            dimension_semantics=("parallel",)),
    )(x, p["conv1_w"], p["conv1_b"], p["conv2_w"], p["conv2_b"],
      p["fc1_w"], p["fc1_b"], p["fc2_w"], p["fc2_b"], p["fc3_w"], p["fc3_b"])

    return out[:, :n].T                                            # (N, 10)


# ----------------------------------------------------------------------------
# Parameters: PyTorch-style init + one-time packing into the kernel layout
# ----------------------------------------------------------------------------
def init_params(key):
    ks = jax.random.split(key, 10)

    def unif(k, shape, fan_in):
        b = 1.0 / (fan_in ** 0.5)
        return jax.random.uniform(k, shape, jnp.float32, -b, b)

    return {
        "conv1_w": unif(ks[0], (6, 1, 5, 5), 25),
        "conv1_b": unif(ks[1], (6,), 25),
        "conv2_w": unif(ks[2], (16, 6, 5, 5), 150),
        "conv2_b": unif(ks[3], (16,), 150),
        "fc1_w": unif(ks[4], (120, 256), 256),
        "fc1_b": unif(ks[5], (120,), 256),
        "fc2_w": unif(ks[6], (84, 120), 120),
        "fc2_b": unif(ks[7], (84,), 120),
        "fc3_w": unif(ks[8], (10, 84), 84),
        "fc3_b": unif(ks[9], (10,), 84),
    }


def _pack_conv_rowpair(w, b, in_w):
    """Pack a PyTorch OIHW 5x5 VALID conv into a block-Toeplitz row-pair matrix.

    The kernel multiplies W_big @ X where X[k] with k = r*(cin*in_w) + ci*in_w + j
    is input channel ci, row (2p + r), column j of the 6-row window for pooled
    output row p.  Output row index:
        m = hp*cout*out_w + (ow%2)*cout*(out_w//2) + co*(out_w//2) + ow//2
    so that 2x2 max-pooling is max(z[:M/2], z[M/2:]) then max(.[:M/4], .[M/4:]).
    """
    w = np.asarray(w, np.float32)
    b = np.asarray(b, np.float32)
    cout, cin, kh, kw = w.shape
    out_w = in_w - kw + 1
    pw_n = out_w // 2
    M = 2 * cout * out_w
    K = (kh + 1) * cin * in_w
    W = np.zeros((M, K), np.float32)
    B = np.zeros((M, 1), np.float32)
    for hp in range(2):                       # which conv row of the pair
        for parity in range(2):               # ow % 2  (w-pool partner)
            for co in range(cout):
                for pw in range(pw_n):        # ow // 2
                    ow = 2 * pw + parity
                    m = hp * cout * out_w + parity * cout * pw_n + co * pw_n + pw
                    B[m, 0] = b[co]
                    for di in range(kh):
                        for ci in range(cin):
                            base = (hp + di) * cin * in_w + ci * in_w + ow
                            W[m, base:base + kw] = w[co, ci, di, :]
    return jnp.asarray(W), jnp.asarray(B)


def prepare_params(p):
    """One-time repack of PyTorch-layout weights into the kernel layout."""
    w1, b1 = _pack_conv_rowpair(p["conv1_w"], p["conv1_b"], in_w=28)   # (288,168)
    w2, b2 = _pack_conv_rowpair(p["conv2_w"], p["conv2_b"], in_w=12)   # (256,432)

    # fc1: torch.flatten index co*16 + h*4 + w  ->  kernel index h*64 + co*4 + w
    fc1 = np.asarray(p["fc1_w"], np.float32).reshape(120, 16, 4, 4)
    fc1 = np.transpose(fc1, (0, 2, 1, 3)).reshape(120, 256)

    return {
        "conv1_w": w1, "conv1_b": b1,
        "conv2_w": w2, "conv2_b": b2,
        "fc1_w": jnp.asarray(fc1), "fc1_b": p["fc1_b"].reshape(120, 1),
        "fc2_w": p["fc2_w"], "fc2_b": p["fc2_b"].reshape(84, 1),
        "fc3_w": p["fc3_w"], "fc3_b": p["fc3_b"].reshape(10, 1),
    }


# ----------------------------------------------------------------------------
# Pure-JAX reference (mirrors the PyTorch module exactly, f32 highest precision)
# ----------------------------------------------------------------------------
def lenet5_reference(img, p):
    dn = ("NCHW", "OIHW", "NCHW")
    hi = lax.Precision.HIGHEST
    x = lax.conv_general_dilated(img, p["conv1_w"], (1, 1), "VALID",
                                 dimension_numbers=dn, precision=hi)
    x = jax.nn.relu(x + p["conv1_b"][None, :, None, None])
    x = lax.reduce_window(x, -jnp.inf, lax.max, (1, 1, 2, 2), (1, 1, 2, 2), "VALID")
    x = lax.conv_general_dilated(x, p["conv2_w"], (1, 1), "VALID",
                                 dimension_numbers=dn, precision=hi)
    x = jax.nn.relu(x + p["conv2_b"][None, :, None, None])
    x = lax.reduce_window(x, -jnp.inf, lax.max, (1, 1, 2, 2), (1, 1, 2, 2), "VALID")
    x = x.reshape(x.shape[0], -1)                         # torch.flatten(x, 1)
    x = jax.nn.relu(jnp.dot(x, p["fc1_w"].T, precision=hi) + p["fc1_b"])
    x = jax.nn.relu(jnp.dot(x, p["fc2_w"].T, precision=hi) + p["fc2_b"])
    return jnp.dot(x, p["fc3_w"].T, precision=hi) + p["fc3_b"]


# ----------------------------------------------------------------------------
if __name__ == "__main__":
    key = jax.random.PRNGKey(0)
    k_img, k_par = jax.random.split(key)

    # LeNet5 needs 28x28 single-channel input so that fc1 sees 16*4*4 = 256.
    img = jax.random.normal(k_img, (2, 1, 28, 28), dtype=jnp.float32)
    params = init_params(k_par)
    prepped = prepare_params(params)          # one-time weight packing

    logits = lenet5_forward(img, prepped)
    jax.block_until_ready(logits)

    assert logits.shape == (2, 10), logits.shape
    assert bool(jnp.all(jnp.isfinite(logits)))

    # All kernel compute is f32 now (typically ~1e-5 off the reference); the
    # loose bound only guards against backend default-precision differences.
    ref = lenet5_reference(img, params)
    err = float(jnp.max(jnp.abs(logits - ref)))
    assert err < 1e-2, f"mismatch vs reference: max abs err {err}"

    print("KERNEL_OK")
</pallas_src>

<mosaic_0001>
module attributes {stable_mosaic.version = 11 : i64} {
  func.func @_lenet5_kernel(%arg0: i32, %arg1: memref<784x128xf32, #tpu.memory_space<vmem>>, %arg2: memref<288x168xf32, #tpu.memory_space<vmem>>, %arg3: memref<288x1xf32, #tpu.memory_space<vmem>>, %arg4: memref<256x432xf32, #tpu.memory_space<vmem>>, %arg5: memref<256x1xf32, #tpu.memory_space<vmem>>, %arg6: memref<120x256xf32, #tpu.memory_space<vmem>>, %arg7: memref<120x1xf32, #tpu.memory_space<vmem>>, %arg8: memref<84x120xf32, #tpu.memory_space<vmem>>, %arg9: memref<84x1xf32, #tpu.memory_space<vmem>>, %arg10: memref<10x84xf32, #tpu.memory_space<vmem>>, %arg11: memref<10x1xf32, #tpu.memory_space<vmem>>, %arg12: memref<10x128xf32, #tpu.memory_space<vmem>>, %arg13: memref<864x128xf32, #tpu.memory_space<vmem>>) attributes {dimension_semantics = [#tpu.dimension_semantics<parallel>], iteration_bounds = array<i64: 1>, scalar_prefetch = 0 : i64, scratch_operands = 1 : i64, tpu.core_type = #tpu.core_type<tc>, window_params = [{transform_indices = @transform_0, window_bounds = array<i64: 784, 128>}, {pipeline_mode = #tpu.pipeline_mode<synchronous>, transform_indices = @transform_1, window_bounds = array<i64: 288, 168>}, {pipeline_mode = #tpu.pipeline_mode<synchronous>, transform_indices = @transform_2, window_bounds = array<i64: 288, 1>}, {pipeline_mode = #tpu.pipeline_mode<synchronous>, transform_indices = @transform_3, window_bounds = array<i64: 256, 432>}, {pipeline_mode = #tpu.pipeline_mode<synchronous>, transform_indices = @transform_4, window_bounds = array<i64: 256, 1>}, {pipeline_mode = #tpu.pipeline_mode<synchronous>, transform_indices = @transform_5, window_bounds = array<i64: 120, 256>}, {pipeline_mode = #tpu.pipeline_mode<synchronous>, transform_indices = @transform_6, window_bounds = array<i64: 120, 1>}, {pipeline_mode = #tpu.pipeline_mode<synchronous>, transform_indices = @transform_7, window_bounds = array<i64: 84, 120>}, {pipeline_mode = #tpu.pipeline_mode<synchronous>, transform_indices = @transform_8, window_bounds = array<i64: 84, 1>}, {pipeline_mode = #tpu.pipeline_mode<synchronous>, transform_indices = @transform_9, window_bounds = array<i64: 10, 84>}, {pipeline_mode = #tpu.pipeline_mode<synchronous>, transform_indices = @transform_10, window_bounds = array<i64: 10, 1>}, {transform_indices = @transform_11, window_bounds = array<i64: 10, 128>}]} {
    %c0 = arith.constant 0 : index
    %c0_0 = arith.constant 0 : index
    %0 = vector.load %arg2[%c0, %c0_0] : memref<288x168xf32, #tpu.memory_space<vmem>>, vector<288x168xf32>
    %c0_1 = arith.constant 0 : index
    %c0_2 = arith.constant 0 : index
    %1 = vector.load %arg3[%c0_1, %c0_2] : memref<288x1xf32, #tpu.memory_space<vmem>>, vector<288x1xf32>
    %c0_3 = arith.constant 0 : index
    %c0_4 = arith.constant 0 : index
    %2 = vector.load %arg1[%c0_3, %c0_4] : memref<784x128xf32, #tpu.memory_space<vmem>>, vector<168x128xf32>
    %cst = arith.constant dense<0.000000e+00> : vector<288x128xf32>
    %3 = tpu.matmul %0, %2, %cst {dimension_numbers = #tpu.dot_dimension_numbers<[1], [0], [0], [1], [0, 0, 1, 1], [], []>} : vector<288x168xf32>, vector<168x128xf32>, vector<288x128xf32> -> vector<288x128xf32>
    %4 = vector.broadcast %1 : vector<288x1xf32> to vector<288x128xf32>
    %5 = arith.addf %3, %4 : vector<288x128xf32>
    %cst_5 = arith.constant 0.000000e+00 : f32
    %6 = vector.broadcast %cst_5 : f32 to vector<288x128xf32>
    %7 = arith.maximumf %5, %6 : vector<288x128xf32>
    %8 = vector.extract_strided_slice %7 {offsets = [0, 0], sizes = [144, 128], strides = [1, 1]} : vector<288x128xf32> to vector<144x128xf32>
    %9 = vector.extract_strided_slice %7 {offsets = [144, 0], sizes = [144, 128], strides = [1, 1]} : vector<288x128xf32> to vector<144x128xf32>
    %10 = arith.maximumf %8, %9 : vector<144x128xf32>
    %11 = vector.extract_strided_slice %10 {offsets = [0, 0], sizes = [72, 128], strides = [1, 1]} : vector<144x128xf32> to vector<72x128xf32>
    %12 = vector.extract_strided_slice %10 {offsets = [72, 0], sizes = [72, 128], strides = [1, 1]} : vector<144x128xf32> to vector<72x128xf32>
    %13 = arith.maximumf %11, %12 : vector<72x128xf32>
    %c0_6 = arith.constant 0 : index
    %c0_7 = arith.constant 0 : index
    %14 = vector.load %arg13[%c0_6, %c0_7] : memref<864x128xf32, #tpu.memory_space<vmem>>, vector<72x128xf32>
    tpu.vector_store %arg13[%c0_6, %c0_7], %13 {strides = array<i32>} : memref<864x128xf32, #tpu.memory_space<vmem>>, vector<72x128xf32>,
    %c56 = arith.constant 56 : index
    %c0_8 = arith.constant 0 : index
    %15 = vector.load %arg1[%c56, %c0_8] : memref<784x128xf32, #tpu.memory_space<vmem>>, vector<168x128xf32>
    %cst_9 = arith.constant dense<0.000000e+00> : vector<288x128xf32>
    %16 = tpu.matmul %0, %15, %cst_9 {dimension_numbers = #tpu.dot_dimension_numbers<[1], [0], [0], [1], [0, 0, 1, 1], [], []>} : vector<288x168xf32>, vector<168x128xf32>, vector<288x128xf32> -> vector<288x128xf32>
    %17 = vector.broadcast %1 : vector<288x1xf32> to vector<288x128xf32>
    %18 = arith.addf %16, %17 : vector<288x128xf32>
    %cst_10 = arith.constant 0.000000e+00 : f32
    %19 = vector.broadcast %cst_10 : f32 to vector<288x128xf32>
    %20 = arith.maximumf %18, %19 : vector<288x128xf32>
    %21 = vector.extract_strided_slice %20 {offsets = [0, 0], sizes = [144, 128], strides = [1, 1]} : vector<288x128xf32> to vector<144x128xf32>
    %22 = vector.extract_strided_slice %20 {offsets = [144, 0], sizes = [144, 128], strides = [1, 1]} : vector<288x128xf32> to vector<144x128xf32>
    %23 = arith.maximumf %21, %22 : vector<144x128xf32>
    %24 = vector.extract_strided_slice %23 {offsets = [0, 0], sizes = [72, 128], strides = [1, 1]} : vector<144x128xf32> to vector<72x128xf32>
    %25 = vector.extract_strided_slice %23 {offsets = [72, 0], sizes = [72, 128], strides = [1, 1]} : vector<144x128xf32> to vector<72x128xf32>
    %26 = arith.maximumf %24, %25 : vector<72x128xf32>
    %c72 = arith.constant 72 : index
    %c0_11 = arith.constant 0 : index
    %27 = vector.load %arg13[%c72, %c0_11] : memref<864x128xf32, #tpu.memory_space<vmem>>, vector<72x128xf32>
    tpu.vector_store %arg13[%c72, %c0_11], %26 {strides = array<i32>} : memref<864x128xf32, #tpu.memory_space<vmem>>, vector<72x128xf32>,
    %c112 = arith.constant 112 : index
    %c0_12 = arith.constant 0 : index
    %28 = vector.load %arg1[%c112, %c0_12] : memref<784x128xf32, #tpu.memory_space<vmem>>, vector<168x128xf32>
    %cst_13 = arith.constant dense<0.000000e+00> : vector<288x128xf32>
    %29 = tpu.matmul %0, %28, %cst_13 {dimension_numbers = #tpu.dot_dimension_numbers<[1], [0], [0], [1], [0, 0, 1, 1], [], []>} : vector<288x168xf32>, vector<168x128xf32>, vector<288x128xf32> -> vector<288x128xf32>
    %30 = vector.broadcast %1 : vector<288x1xf32> to vector<288x128xf32>
    %31 = arith.addf %29, %30 : vector<288x128xf32>
    %cst_14 = arith.constant 0.000000e+00 : f32
    %32 = vector.broadcast %cst_14 : f32 to vector<288x128xf32>
    %33 = arith.maximumf %31, %32 : vector<288x128xf32>
    %34 = vector.extract_strided_slice %33 {offsets = [0, 0], sizes = [144, 128], strides = [1, 1]} : vector<288x128xf32> to vector<144x128xf32>
    %35 = vector.extract_strided_slice %33 {offsets = [144, 0], sizes = [144, 128], strides = [1, 1]} : vector<288x128xf32> to vector<144x128xf32>
    %36 = arith.maximumf %34, %35 : vector<144x128xf32>
    %37 = vector.extract_strided_slice %36 {offsets = [0, 0], sizes = [72, 128], strides = [1, 1]} : vector<144x128xf32> to vector<72x128xf32>
    %38 = vector.extract_strided_slice %36 {offsets = [72, 0], sizes = [72, 128], strides = [1, 1]} : vector<144x128xf32> to vector<72x128xf32>
    %39 = arith.maximumf %37, %38 : vector<72x128xf32>
    %c144 = arith.constant 144 : index
    %c0_15 = arith.constant 0 : index
    %40 = vector.load %arg13[%c144, %c0_15] : memref<864x128xf32, #tpu.memory_space<vmem>>, vector<72x128xf32>
    tpu.vector_store %arg13[%c144, %c0_15], %39 {strides = array<i32>} : memref<864x128xf32, #tpu.memory_space<vmem>>, vector<72x128xf32>,
    %c168 = arith.constant 168 : index
    %c0_16 = arith.constant 0 : index
    %41 = vector.load %arg1[%c168, %c0_16] : memref<784x128xf32, #tpu.memory_space<vmem>>, vector<168x128xf32>
    %cst_17 = arith.constant dense<0.000000e+00> : vector<288x128xf32>
    %42 = tpu.matmul %0, %41, %cst_17 {dimension_numbers = #tpu.dot_dimension_numbers<[1], [0], [0], [1], [0, 0, 1, 1], [], []>} : vector<288x168xf32>, vector<168x128xf32>, vector<288x128xf32> -> vector<288x128xf32>
    %43 = vector.broadcast %1 : vector<288x1xf32> to vector<288x128xf32>
    %44 = arith.addf %42, %43 : vector<288x128xf32>
    %cst_18 = arith.constant 0.000000e+00 : f32
    %45 = vector.broadcast %cst_18 : f32 to vector<288x128xf32>
    %46 = arith.maximumf %44, %45 : vector<288x128xf32>
    %47 = vector.extract_strided_slice %46 {offsets = [0, 0], sizes = [144, 128], strides = [1, 1]} : vector<288x128xf32> to vector<144x128xf32>
    %48 = vector.extract_strided_slice %46 {offsets = [144, 0], sizes = [144, 128], strides = [1, 1]} : vector<288x128xf32> to vector<144x128xf32>
    %49 = arith.maximumf %47, %48 : vector<144x128xf32>
    %50 = vector.extract_strided_slice %49 {offsets = [0, 0], sizes = [72, 128], strides = [1, 1]} : vector<144x128xf32> to vector<72x128xf32>
    %51 = vector.extract_strided_slice %49 {offsets = [72, 0], sizes = [72, 128], strides = [1, 1]} : vector<144x128xf32> to vector<72x128xf32>
    %52 = arith.maximumf %50, %51 : vector<72x128xf32>
    %c216 = arith.constant 216 : index
    %c0_19 = arith.constant 0 : index
    %53 = vector.load %arg13[%c216, %c0_19] : memref<864x128xf32, #tpu.memory_space<vmem>>, vector<72x128xf32>
    tpu.vector_store %arg13[%c216, %c0_19], %52 {strides = array<i32>} : memref<864x128xf32, #tpu.memory_space<vmem>>, vector<72x128xf32>,
    %c224 = arith.constant 224 : index
    %c0_20 = arith.constant 0 : index
    %54 = vector.load %arg1[%c224, %c0_20] : memref<784x128xf32, #tpu.memory_space<vmem>>, vector<168x128xf32>
    %cst_21 = arith.constant dense<0.000000e+00> : vector<288x128xf32>
    %55 = tpu.matmul %0, %54, %cst_21 {dimension_numbers = #tpu.dot_dimension_numbers<[1], [0], [0], [1], [0, 0, 1, 1], [], []>} : vector<288x168xf32>, vector<168x128xf32>, vector<288x128xf32> -> vector<288x128xf32>
    %56 = vector.broadcast %1 : vector<288x1xf32> to vector<288x128xf32>
    %57 = arith.addf %55, %56 : vector<288x128xf32>
    %cst_22 = arith.constant 0.000000e+00 : f32
    %58 = vector.broadcast %cst_22 : f32 to vector<288x128xf32>
    %59 = arith.maximumf %57, %58 : vector<288x128xf32>
    %60 = vector.extract_strided_slice %59 {offsets = [0, 0], sizes = [144, 128], strides = [1, 1]} : vector<288x128xf32> to vector<144x128xf32>
    %61 = vector.extract_strided_slice %59 {offsets = [144, 0], sizes = [144, 128], strides = [1, 1]} : vector<288x128xf32> to vector<144x128xf32>
    %62 = arith.maximumf %60, %61 : vector<144x128xf32>
    %63 = vector.extract_strided_slice %62 {offsets = [0, 0], sizes = [72, 128], strides = [1, 1]} : vector<144x128xf32> to vector<72x128xf32>
    %64 = vector.extract_strided_slice %62 {offsets = [72, 0], sizes = [72, 128], strides = [1, 1]} : vector<144x128xf32> to vector<72x128xf32>
    %65 = arith.maximumf %63, %64 : vector<72x128xf32>
    %c288 = arith.constant 288 : index
    %c0_23 = arith.constant 0 : index
    %66 = vector.load %arg13[%c288, %c0_23] : memref<864x128xf32, #tpu.memory_space<vmem>>, vector<72x128xf32>
    tpu.vector_store %arg13[%c288, %c0_23], %65 {strides = array<i32>} : memref<864x128xf32, #tpu.memory_space<vmem>>, vector<72x128xf32>,
    %c280 = arith.constant 280 : index
    %c0_24 = arith.constant 0 : index
    %67 = vector.load %arg1[%c280, %c0_24] : memref<784x128xf32, #tpu.memory_space<vmem>>, vector<168x128xf32>
    %cst_25 = arith.constant dense<0.000000e+00> : vector<288x128xf32>
    %68 = tpu.matmul %0, %67, %cst_25 {dimension_numbers = #tpu.dot_dimension_numbers<[1], [0], [0], [1], [0, 0, 1, 1], [], []>} : vector<288x168xf32>, vector<168x128xf32>, vector<288x128xf32> -> vector<288x128xf32>
    %69 = vector.broadcast %1 : vector<288x1xf32> to vector<288x128xf32>
    %70 = arith.addf %68, %69 : vector<288x128xf32>
    %cst_26 = arith.constant 0.000000e+00 : f32
    %71 = vector.broadcast %cst_26 : f32 to vector<288x128xf32>
    %72 = arith.maximumf %70, %71 : vector<288x128xf32>
    %73 = vector.extract_strided_slice %72 {offsets = [0, 0], sizes = [144, 128], strides = [1, 1]} : vector<288x128xf32> to vector<144x128xf32>
    %74 = vector.extract_strided_slice %72 {offsets = [144, 0], sizes = [144, 128], strides = [1, 1]} : vector<288x128xf32> to vector<144x128xf32>
    %75 = arith.maximumf %73, %74 : vector<144x128xf32>
    %76 = vector.extract_strided_slice %75 {offsets = [0, 0], sizes = [72, 128], strides = [1, 1]} : vector<144x128xf32> to vector<72x128xf32>
    %77 = vector.extract_strided_slice %75 {offsets = [72, 0], sizes = [72, 128], strides = [1, 1]} : vector<144x128xf32> to vector<72x128xf32>
    %78 = arith.maximumf %76, %77 : vector<72x128xf32>
    %c360 = arith.constant 360 : index
    %c0_27 = arith.constant 0 : index
    %79 = vector.load %arg13[%c360, %c0_27] : memref<864x128xf32, #tpu.memory_space<vmem>>, vector<72x128xf32>
    tpu.vector_store %arg13[%c360, %c0_27], %78 {strides = array<i32>} : memref<864x128xf32, #tpu.memory_space<vmem>>, vector<72x128xf32>,
    %c336 = arith.constant 336 : index
    %c0_28 = arith.constant 0 : index
    %80 = vector.load %arg1[%c336, %c0_28] : memref<784x128xf32, #tpu.memory_space<vmem>>, vector<168x128xf32>
    %cst_29 = arith.constant dense<0.000000e+00> : vector<288x128xf32>
    %81 = tpu.matmul %0, %80, %cst_29 {dimension_numbers = #tpu.dot_dimension_numbers<[1], [0], [0], [1], [0, 0, 1, 1], [], []>} : vector<288x168xf32>, vector<168x128xf32>, vector<288x128xf32> -> vector<288x128xf32>
    %82 = vector.broadcast %1 : vector<288x1xf32> to vector<288x128xf32>
    %83 = arith.addf %81, %82 : vector<288x128xf32>
    %cst_30 = arith.constant 0.000000e+00 : f32
    %84 = vector.broadcast %cst_30 : f32 to vector<288x128xf32>
    %85 = arith.maximumf %83, %84 : vector<288x128xf32>
    %86 = vector.extract_strided_slice %85 {offsets = [0, 0], sizes = [144, 128], strides = [1, 1]} : vector<288x128xf32> to vector<144x128xf32>
    %87 = vector.extract_strided_slice %85 {offsets = [144, 0], sizes = [144, 128], strides = [1, 1]} : vector<288x128xf32> to vector<144x128xf32>
    %88 = arith.maximumf %86, %87 : vector<144x128xf32>
    %89 = vector.extract_strided_slice %88 {offsets = [0, 0], sizes = [72, 128], strides = [1, 1]} : vector<144x128xf32> to vector<72x128xf32>
    %90 = vector.extract_strided_slice %88 {offsets = [72, 0], sizes = [72, 128], strides = [1, 1]} : vector<144x128xf32> to vector<72x128xf32>
    %91 = arith.maximumf %89, %90 : vector<72x128xf32>
    %c432 = arith.constant 432 : index
    %c0_31 = arith.constant 0 : index
    %92 = vector.load %arg13[%c432, %c0_31] : memref<864x128xf32, #tpu.memory_space<vmem>>, vector<72x128xf32>
    tpu.vector_store %arg13[%c432, %c0_31], %91 {strides = array<i32>} : memref<864x128xf32, #tpu.memory_space<vmem>>, vector<72x128xf32>,
    %c392 = arith.constant 392 : index
    %c0_32 = arith.constant 0 : index
    %93 = vector.load %arg1[%c392, %c0_32] : memref<784x128xf32, #tpu.memory_space<vmem>>, vector<168x128xf32>
    %cst_33 = arith.constant dense<0.000000e+00> : vector<288x128xf32>
    %94 = tpu.matmul %0, %93, %cst_33 {dimension_numbers = #tpu.dot_dimension_numbers<[1], [0], [0], [1], [0, 0, 1, 1], [], []>} : vector<288x168xf32>, vector<168x128xf32>, vector<288x128xf32> -> vector<288x128xf32>
    %95 = vector.broadcast %1 : vector<288x1xf32> to vector<288x128xf32>
    %96 = arith.addf %94, %95 : vector<288x128xf32>
    %cst_34 = arith.constant 0.000000e+00 : f32
    %97 = vector.broadcast %cst_34 : f32 to vector<288x128xf32>
    %98 = arith.maximumf %96, %97 : vector<288x128xf32>
    %99 = vector.extract_strided_slice %98 {offsets = [0, 0], sizes = [144, 128], strides = [1, 1]} : vector<288x128xf32> to vector<144x128xf32>
    %100 = vector.extract_strided_slice %98 {offsets = [144, 0], sizes = [144, 128], strides = [1, 1]} : vector<288x128xf32> to vector<144x128xf32>
    %101 = arith.maximumf %99, %100 : vector<144x128xf32>
    %102 = vector.extract_strided_slice %101 {offsets = [0, 0], sizes = [72, 128], strides = [1, 1]} : vector<144x128xf32> to vector<72x128xf32>
    %103 = vector.extract_strided_slice %101 {offsets = [72, 0], sizes = [72, 128], strides = [1, 1]} : vector<144x128xf32> to vector<72x128xf32>
    %104 = arith.maximumf %102, %103 : vector<72x128xf32>
    %c504 = arith.constant 504 : index
    %c0_35 = arith.constant 0 : index
    %105 = vector.load %arg13[%c504, %c0_35] : memref<864x128xf32, #tpu.memory_space<vmem>>, vector<72x128xf32>
    tpu.vector_store %arg13[%c504, %c0_35], %104 {strides = array<i32>} : memref<864x128xf32, #tpu.memory_space<vmem>>, vector<72x128xf32>,
    %c448 = arith.constant 448 : index
    %c0_36 = arith.constant 0 : index
    %106 = vector.load %arg1[%c448, %c0_36] : memref<784x128xf32, #tpu.memory_space<vmem>>, vector<168x128xf32>
    %cst_37 = arith.constant dense<0.000000e+00> : vector<288x128xf32>
    %107 = tpu.matmul %0, %106, %cst_37 {dimension_numbers = #tpu.dot_dimension_numbers<[1], [0], [0], [1], [0, 0, 1, 1], [], []>} : vector<288x168xf32>, vector<168x128xf32>, vector<288x128xf32> -> vector<288x128xf32>
    %108 = vector.broadcast %1 : vector<288x1xf32> to vector<288x128xf32>
    %109 = arith.addf %107, %108 : vector<288x128xf32>
    %cst_38 = arith.constant 0.000000e+00 : f32
    %110 = vector.broadcast %cst_38 : f32 to vector<288x128xf32>
    %111 = arith.maximumf %109, %110 : vector<288x128xf32>
    %112 = vector.extract_strided_slice %111 {offsets = [0, 0], sizes = [144, 128], strides = [1, 1]} : vector<288x128xf32> to vector<144x128xf32>
    %113 = vector.extract_strided_slice %111 {offsets = [144, 0], sizes = [144, 128], strides = [1, 1]} : vector<288x128xf32> to vector<144x128xf32>
    %114 = arith.maximumf %112, %113 : vector<144x128xf32>
    %115 = vector.extract_strided_slice %114 {offsets = [0, 0], sizes = [72, 128], strides = [1, 1]} : vector<144x128xf32> to vector<72x128xf32>
    %116 = vector.extract_strided_slice %114 {offsets = [72, 0], sizes = [72, 128], strides = [1, 1]} : vector<144x128xf32> to vector<72x128xf32>
    %117 = arith.maximumf %115, %116 : vector<72x128xf32>
    %c576 = arith.constant 576 : index
    %c0_39 = arith.constant 0 : index
    %118 = vector.load %arg13[%c576, %c0_39] : memref<864x128xf32, #tpu.memory_space<vmem>>, vector<72x128xf32>
    tpu.vector_store %arg13[%c576, %c0_39], %117 {strides = array<i32>} : memref<864x128xf32, #tpu.memory_space<vmem>>, vector<72x128xf32>,
    %c504_40 = arith.constant 504 : index
    %c0_41 = arith.constant 0 : index
    %119 = vector.load %arg1[%c504_40, %c0_41] : memref<784x128xf32, #tpu.memory_space<vmem>>, vector<168x128xf32>
    %cst_42 = arith.constant dense<0.000000e+00> : vector<288x128xf32>
    %120 = tpu.matmul %0, %119, %cst_42 {dimension_numbers = #tpu.dot_dimension_numbers<[1], [0], [0], [1], [0, 0, 1, 1], [], []>} : vector<288x168xf32>, vector<168x128xf32>, vector<288x128xf32> -> vector<288x128xf32>
    %121 = vector.broadcast %1 : vector<288x1xf32> to vector<288x128xf32>
    %122 = arith.addf %120, %121 : vector<288x128xf32>
    %cst_43 = arith.constant 0.000000e+00 : f32
    %123 = vector.broadcast %cst_43 : f32 to vector<288x128xf32>
    %124 = arith.maximumf %122, %123 : vector<288x128xf32>
    %125 = vector.extract_strided_slice %124 {offsets = [0, 0], sizes = [144, 128], strides = [1, 1]} : vector<288x128xf32> to vector<144x128xf32>
    %126 = vector.extract_strided_slice %124 {offsets = [144, 0], sizes = [144, 128], strides = [1, 1]} : vector<288x128xf32> to vector<144x128xf32>
    %127 = arith.maximumf %125, %126 : vector<144x128xf32>
    %128 = vector.extract_strided_slice %127 {offsets = [0, 0], sizes = [72, 128], strides = [1, 1]} : vector<144x128xf32> to vector<72x128xf32>
    %129 = vector.extract_strided_slice %127 {offsets = [72, 0], sizes = [72, 128], strides = [1, 1]} : vector<144x128xf32> to vector<72x128xf32>
    %130 = arith.maximumf %128, %129 : vector<72x128xf32>
    %c648 = arith.constant 648 : index
    %c0_44 = arith.constant 0 : index
    %131 = vector.load %arg13[%c648, %c0_44] : memref<864x128xf32, #tpu.memory_space<vmem>>, vector<72x128xf32>
    tpu.vector_store %arg13[%c648, %c0_44], %130 {strides = array<i32>} : memref<864x128xf32, #tpu.memory_space<vmem>>, vector<72x128xf32>,
    %c560 = arith.constant 560 : index
    %c0_45 = arith.constant 0 : index
    %132 = vector.load %arg1[%c560, %c0_45] : memref<784x128xf32, #tpu.memory_space<vmem>>, vector<168x128xf32>
    %cst_46 = arith.constant dense<0.000000e+00> : vector<288x128xf32>
    %133 = tpu.matmul %0, %132, %cst_46 {dimension_numbers = #tpu.dot_dimension_numbers<[1], [0], [0], [1], [0, 0, 1, 1], [], []>} : vector<288x168xf32>, vector<168x128xf32>, vector<288x128xf32> -> vector<288x128xf32>
    %134 = vector.broadcast %1 : vector<288x1xf32> to vector<288x128xf32>
    %135 = arith.addf %133, %134 : vector<288x128xf32>
    %cst_47 = arith.constant 0.000000e+00 : f32
    %136 = vector.broadcast %cst_47 : f32 to vector<288x128xf32>
    %137 = arith.maximumf %135, %136 : vector<288x128xf32>
    %138 = vector.extract_strided_slice %137 {offsets = [0, 0], sizes = [144, 128], strides = [1, 1]} : vector<288x128xf32> to vector<144x128xf32>
    %139 = vector.extract_strided_slice %137 {offsets = [144, 0], sizes = [144, 128], strides = [1, 1]} : vector<288x128xf32> to vector<144x128xf32>
    %140 = arith.maximumf %138, %139 : vector<144x128xf32>
    %141 = vector.extract_strided_slice %140 {offsets = [0, 0], sizes = [72, 128], strides = [1, 1]} : vector<144x128xf32> to vector<72x128xf32>
    %142 = vector.extract_strided_slice %140 {offsets = [72, 0], sizes = [72, 128], strides = [1, 1]} : vector<144x128xf32> to vector<72x128xf32>
    %143 = arith.maximumf %141, %142 : vector<72x128xf32>
    %c720 = arith.constant 720 : index
    %c0_48 = arith.constant 0 : index
    %144 = vector.load %arg13[%c720, %c0_48] : memref<864x128xf32, #tpu.memory_space<vmem>>, vector<72x128xf32>
    tpu.vector_store %arg13[%c720, %c0_48], %143 {strides = array<i32>} : memref<864x128xf32, #tpu.memory_space<vmem>>, vector<72x128xf32>,
    %c616 = arith.constant 616 : index
    %c0_49 = arith.constant 0 : index
    %145 = vector.load %arg1[%c616, %c0_49] : memref<784x128xf32, #tpu.memory_space<vmem>>, vector<168x128xf32>
    %cst_50 = arith.constant dense<0.000000e+00> : vector<288x128xf32>
    %146 = tpu.matmul %0, %145, %cst_50 {dimension_numbers = #tpu.dot_dimension_numbers<[1], [0], [0], [1], [0, 0, 1, 1], [], []>} : vector<288x168xf32>, vector<168x128xf32>, vector<288x128xf32> -> vector<288x128xf32>
    %147 = vector.broadcast %1 : vector<288x1xf32> to vector<288x128xf32>
    %148 = arith.addf %146, %147 : vector<288x128xf32>
    %cst_51 = arith.constant 0.000000e+00 : f32
    %149 = vector.broadcast %cst_51 : f32 to vector<288x128xf32>
    %150 = arith.maximumf %148, %149 : vector<288x128xf32>
    %151 = vector.extract_strided_slice %150 {offsets = [0, 0], sizes = [144, 128], strides = [1, 1]} : vector<288x128xf32> to vector<144x128xf32>
    %152 = vector.extract_strided_slice %150 {offsets = [144, 0], sizes = [144, 128], strides = [1, 1]} : vector<288x128xf32> to vector<144x128xf32>
    %153 = arith.maximumf %151, %152 : vector<144x128xf32>
    %154 = vector.extract_strided_slice %153 {offsets = [0, 0], sizes = [72, 128], strides = [1, 1]} : vector<144x128xf32> to vector<72x128xf32>
    %155 = vector.extract_strided_slice %153 {offsets = [72, 0], sizes = [72, 128], strides = [1, 1]} : vector<144x128xf32> to vector<72x128xf32>
    %156 = arith.maximumf %154, %155 : vector<72x128xf32>
    %c792 = arith.constant 792 : index
    %c0_52 = arith.constant 0 : index
    %157 = vector.load %arg13[%c792, %c0_52] : memref<864x128xf32, #tpu.memory_space<vmem>>, vector<72x128xf32>
    tpu.vector_store %arg13[%c792, %c0_52], %156 {strides = array<i32>} : memref<864x128xf32, #tpu.memory_space<vmem>>, vector<72x128xf32>,
    %c0_53 = arith.constant 0 : index
    %c0_54 = arith.constant 0 : index
    %158 = vector.load %arg4[%c0_53, %c0_54] : memref<256x432xf32, #tpu.memory_space<vmem>>, vector<256x432xf32>
    %c0_55 = arith.constant 0 : index
    %c0_56 = arith.constant 0 : index
    %159 = vector.load %arg5[%c0_55, %c0_56] : memref<256x1xf32, #tpu.memory_space<vmem>>, vector<256x1xf32>
    %c0_57 = arith.constant 0 : index
    %c0_58 = arith.constant 0 : index
    %160 = vector.load %arg13[%c0_57, %c0_58] : memref<864x128xf32, #tpu.memory_space<vmem>>, vector<432x128xf32>
    %cst_59 = arith.constant dense<0.000000e+00> : vector<256x128xf32>
    %161 = tpu.matmul %158, %160, %cst_59 {dimension_numbers = #tpu.dot_dimension_numbers<[1], [0], [0], [1], [0, 0, 1, 1], [], []>} : vector<256x432xf32>, vector<432x128xf32>, vector<256x128xf32> -> vector<256x128xf32>
    %162 = vector.broadcast %159 : vector<256x1xf32> to vector<256x128xf32>
    %163 = arith.addf %161, %162 : vector<256x128xf32>
    %cst_60 = arith.constant 0.000000e+00 : f32
    %164 = vector.broadcast %cst_60 : f32 to vector<256x128xf32>
    %165 = arith.maximumf %163, %164 : vector<256x128xf32>
    %166 = vector.extract_strided_slice %165 {offsets = [0, 0], sizes = [128, 128], strides = [1, 1]} : vector<256x128xf32> to vector<128x128xf32>
    %167 = vector.extract_strided_slice %165 {offsets = [128, 0], sizes = [128, 128], strides = [1, 1]} : vector<256x128xf32> to vector<128x128xf32>
    %168 = arith.maximumf %166, %167 : vector<128x128xf32>
    %169 = vector.extract_strided_slice %168 {offsets = [0, 0], sizes = [64, 128], strides = [1, 1]} : vector<128x128xf32> to vector<64x128xf32>
    %170 = vector.extract_strided_slice %168 {offsets = [64, 0], sizes = [64, 128], strides = [1, 1]} : vector<128x128xf32> to vector<64x128xf32>
    %171 = arith.maximumf %169, %170 : vector<64x128xf32>
    %c144_61 = arith.constant 144 : index
    %c0_62 = arith.constant 0 : index
    %172 = vector.load %arg13[%c144_61, %c0_62] : memref<864x128xf32, #tpu.memory_space<vmem>>, vector<432x128xf32>
    %cst_63 = arith.constant dense<0.000000e+00> : vector<256x128xf32>
    %173 = tpu.matmul %158, %172, %cst_63 {dimension_numbers = #tpu.dot_dimension_numbers<[1], [0], [0], [1], [0, 0, 1, 1], [], []>} : vector<256x432xf32>, vector<432x128xf32>, vector<256x128xf32> -> vector<256x128xf32>
    %174 = vector.broadcast %159 : vector<256x1xf32> to vector<256x128xf32>
    %175 = arith.addf %173, %174 : vector<256x128xf32>
    %cst_64 = arith.constant 0.000000e+00 : f32
    %176 = vector.broadcast %cst_64 : f32 to vector<256x128xf32>
    %177 = arith.maximumf %175, %176 : vector<256x128xf32>
    %178 = vector.extract_strided_slice %177 {offsets = [0, 0], sizes = [128, 128], strides = [1, 1]} : vector<256x128xf32> to vector<128x128xf32>
    %179 = vector.extract_strided_slice %177 {offsets = [128, 0], sizes = [128, 128], strides = [1, 1]} : vector<256x128xf32> to vector<128x128xf32>
    %180 = arith.maximumf %178, %179 : vector<128x128xf32>
    %181 = vector.extract_strided_slice %180 {offsets = [0, 0], sizes = [64, 128], strides = [1, 1]} : vector<128x128xf32> to vector<64x128xf32>
    %182 = vector.extract_strided_slice %180 {offsets = [64, 0], sizes = [64, 128], strides = [1, 1]} : vector<128x128xf32> to vector<64x128xf32>
    %183 = arith.maximumf %181, %182 : vector<64x128xf32>
    %c288_65 = arith.constant 288 : index
    %c0_66 = arith.constant 0 : index
    %184 = vector.load %arg13[%c288_65, %c0_66] : memref<864x128xf32, #tpu.memory_space<vmem>>, vector<432x128xf32>
    %cst_67 = arith.constant dense<0.000000e+00> : vector<256x128xf32>
    %185 = tpu.matmul %158, %184, %cst_67 {dimension_numbers = #tpu.dot_dimension_numbers<[1], [0], [0], [1], [0, 0, 1, 1], [], []>} : vector<256x432xf32>, vector<432x128xf32>, vector<256x128xf32> -> vector<256x128xf32>
    %186 = vector.broadcast %159 : vector<256x1xf32> to vector<256x128xf32>
    %187 = arith.addf %185, %186 : vector<256x128xf32>
    %cst_68 = arith.constant 0.000000e+00 : f32
    %188 = vector.broadcast %cst_68 : f32 to vector<256x128xf32>
    %189 = arith.maximumf %187, %188 : vector<256x128xf32>
    %190 = vector.extract_strided_slice %189 {offsets = [0, 0], sizes = [128, 128], strides = [1, 1]} : vector<256x128xf32> to vector<128x128xf32>
    %191 = vector.extract_strided_slice %189 {offsets = [128, 0], sizes = [128, 128], strides = [1, 1]} : vector<256x128xf32> to vector<128x128xf32>
    %192 = arith.maximumf %190, %191 : vector<128x128xf32>
    %193 = vector.extract_strided_slice %192 {offsets = [0, 0], sizes = [64, 128], strides = [1, 1]} : vector<128x128xf32> to vector<64x128xf32>
    %194 = vector.extract_strided_slice %192 {offsets = [64, 0], sizes = [64, 128], strides = [1, 1]} : vector<128x128xf32> to vector<64x128xf32>
    %195 = arith.maximumf %193, %194 : vector<64x128xf32>
    %c432_69 = arith.constant 432 : index
    %c0_70 = arith.constant 0 : index
    %196 = vector.load %arg13[%c432_69, %c0_70] : memref<864x128xf32, #tpu.memory_space<vmem>>, vector<432x128xf32>
    %cst_71 = arith.constant dense<0.000000e+00> : vector<256x128xf32>
    %197 = tpu.matmul %158, %196, %cst_71 {dimension_numbers = #tpu.dot_dimension_numbers<[1], [0], [0], [1], [0, 0, 1, 1], [], []>} : vector<256x432xf32>, vector<432x128xf32>, vector<256x128xf32> -> vector<256x128xf32>
    %198 = vector.broadcast %159 : vector<256x1xf32> to vector<256x128xf32>
    %199 = arith.addf %197, %198 : vector<256x128xf32>
    %cst_72 = arith.constant 0.000000e+00 : f32
    %200 = vector.broadcast %cst_72 : f32 to vector<256x128xf32>
    %201 = arith.maximumf %199, %200 : vector<256x128xf32>
    %202 = vector.extract_strided_slice %201 {offsets = [0, 0], sizes = [128, 128], strides = [1, 1]} : vector<256x128xf32> to vector<128x128xf32>
    %203 = vector.extract_strided_slice %201 {offsets = [128, 0], sizes = [128, 128], strides = [1, 1]} : vector<256x128xf32> to vector<128x128xf32>
    %204 = arith.maximumf %202, %203 : vector<128x128xf32>
    %205 = vector.extract_strided_slice %204 {offsets = [0, 0], sizes = [64, 128], strides = [1, 1]} : vector<128x128xf32> to vector<64x128xf32>
    %206 = vector.extract_strided_slice %204 {offsets = [64, 0], sizes = [64, 128], strides = [1, 1]} : vector<128x128xf32> to vector<64x128xf32>
    %207 = arith.maximumf %205, %206 : vector<64x128xf32>
    %208 = tpu.concatenate %171, %183, %195, %207 in 0 : vector<64x128xf32>, vector<64x128xf32>, vector<64x128xf32>, vector<64x128xf32> -> vector<256x128xf32>
    %c0_73 = arith.constant 0 : index
    %c0_74 = arith.constant 0 : index
    %209 = vector.load %arg6[%c0_73, %c0_74] : memref<120x256xf32, #tpu.memory_space<vmem>>, vector<120x256xf32>
    %cst_75 = arith.constant dense<0.000000e+00> : vector<120x128xf32>
    %210 = tpu.matmul %209, %208, %cst_75 {dimension_numbers = #tpu.dot_dimension_numbers<[1], [0], [0], [1], [0, 0, 1, 1], [], []>} : vector<120x256xf32>, vector<256x128xf32>, vector<120x128xf32> -> vector<120x128xf32>
    %c0_76 = arith.constant 0 : index
    %c0_77 = arith.constant 0 : index
    %211 = vector.load %arg7[%c0_76, %c0_77] : memref<120x1xf32, #tpu.memory_space<vmem>>, vector<120x1xf32>
    %212 = vector.broadcast %211 : vector<120x1xf32> to vector<120x128xf32>
    %213 = arith.addf %210, %212 : vector<120x128xf32>
    %cst_78 = arith.constant 0.000000e+00 : f32
    %214 = vector.broadcast %cst_78 : f32 to vector<120x128xf32>
    %215 = arith.maximumf %213, %214 : vector<120x128xf32>
    %c0_79 = arith.constant 0 : index
    %c0_80 = arith.constant 0 : index
    %216 = vector.load %arg8[%c0_79, %c0_80] : memref<84x120xf32, #tpu.memory_space<vmem>>, vector<84x120xf32>
    %cst_81 = arith.constant dense<0.000000e+00> : vector<84x128xf32>
    %217 = tpu.matmul %216, %215, %cst_81 {dimension_numbers = #tpu.dot_dimension_numbers<[1], [0], [0], [1], [0, 0, 1, 1], [], []>} : vector<84x120xf32>, vector<120x128xf32>, vector<84x128xf32> -> vector<84x128xf32>
    %c0_82 = arith.constant 0 : index
    %c0_83 = arith.constant 0 : index
    %218 = vector.load %arg9[%c0_82, %c0_83] : memref<84x1xf32, #tpu.memory_space<vmem>>, vector<84x1xf32>
    %219 = vector.broadcast %218 : vector<84x1xf32> to vector<84x128xf32>
    %220 = arith.addf %217, %219 : vector<84x128xf32>
    %cst_84 = arith.constant 0.000000e+00 : f32
    %221 = vector.broadcast %cst_84 : f32 to vector<84x128xf32>
    %222 = arith.maximumf %220, %221 : vector<84x128xf32>
    %c0_85 = arith.constant 0 : index
    %c0_86 = arith.constant 0 : index
    %223 = vector.load %arg10[%c0_85, %c0_86] : memref<10x84xf32, #tpu.memory_space<vmem>>, vector<10x84xf32>
    %cst_87 = arith.constant dense<0.000000e+00> : vector<10x128xf32>
    %224 = tpu.matmul %223, %222, %cst_87 {dimension_numbers = #tpu.dot_dimension_numbers<[1], [0], [0], [1], [0, 0, 1, 1], [], []>} : vector<10x84xf32>, vector<84x128xf32>, vector<10x128xf32> -> vector<10x128xf32>
    %c0_88 = arith.constant 0 : index
    %c0_89 = arith.constant 0 : index
    %225 = vector.load %arg11[%c0_88, %c0_89] : memref<10x1xf32, #tpu.memory_space<vmem>>, vector<10x1xf32>
    %226 = vector.broadcast %225 : vector<10x1xf32> to vector<10x128xf32>
    %227 = arith.addf %224, %226 : vector<10x128xf32>
    %c0_90 = arith.constant 0 : index
    %c0_91 = arith.constant 0 : index
    %228 = vector.load %arg12[%c0_90, %c0_91] : memref<10x128xf32, #tpu.memory_space<vmem>>, vector<10x128xf32>
    tpu.vector_store %arg12[%c0_90, %c0_91], %227 {strides = array<i32>} : memref<10x128xf32, #tpu.memory_space<vmem>>, vector<10x128xf32>,
    return
  }
  func.func @transform_0(%arg0: i32) -> (i32, i32) {
    %c0_i32 = arith.constant 0 : i32
    %c0_i32_0 = arith.constant 0 : i32
    return %c0_i32, %arg0 : i32, i32
  }
  func.func @transform_1(%arg0: i32) -> (i32, i32) {
    %c0_i32 = arith.constant 0 : i32
    %c0_i32_0 = arith.constant 0 : i32
    %c0_i32_1 = arith.constant 0 : i32
    return %c0_i32, %c0_i32_0 : i32, i32
  }
  func.func @transform_2(%arg0: i32) -> (i32, i32) {
    %c0_i32 = arith.constant 0 : i32
    %c0_i32_0 = arith.constant 0 : i32
    %c0_i32_1 = arith.constant 0 : i32
    return %c0_i32, %c0_i32_0 : i32, i32
  }
  func.func @transform_3(%arg0: i32) -> (i32, i32) {
    %c0_i32 = arith.constant 0 : i32
    %c0_i32_0 = arith.constant 0 : i32
    %c0_i32_1 = arith.constant 0 : i32
    return %c0_i32, %c0_i32_0 : i32, i32
  }
  func.func @transform_4(%arg0: i32) -> (i32, i32) {
    %c0_i32 = arith.constant 0 : i32
    %c0_i32_0 = arith.constant 0 : i32
    %c0_i32_1 = arith.constant 0 : i32
    return %c0_i32, %c0_i32_0 : i32, i32
  }
  func.func @transform_5(%arg0: i32) -> (i32, i32) {
    %c0_i32 = arith.constant 0 : i32
    %c0_i32_0 = arith.constant 0 : i32
    %c0_i32_1 = arith.constant 0 : i32
    return %c0_i32, %c0_i32_0 : i32, i32
  }
  func.func @transform_6(%arg0: i32) -> (i32, i32) {
    %c0_i32 = arith.constant 0 : i32
    %c0_i32_0 = arith.constant 0 : i32
    %c0_i32_1 = arith.constant 0 : i32
    return %c0_i32, %c0_i32_0 : i32, i32
  }
  func.func @transform_7(%arg0: i32) -> (i32, i32) {
    %c0_i32 = arith.constant 0 : i32
    %c0_i32_0 = arith.constant 0 : i32
    %c0_i32_1 = arith.constant 0 : i32
    return %c0_i32, %c0_i32_0 : i32, i32
  }
  func.func @transform_8(%arg0: i32) -> (i32, i32) {
    %c0_i32 = arith.constant 0 : i32
    %c0_i32_0 = arith.constant 0 : i32
    %c0_i32_1 = arith.constant 0 : i32
    return %c0_i32, %c0_i32_0 : i32, i32
  }
  func.func @transform_9(%arg0: i32) -> (i32, i32) {
    %c0_i32 = arith.constant 0 : i32
    %c0_i32_0 = arith.constant 0 : i32
    %c0_i32_1 = arith.constant 0 : i32
    return %c0_i32, %c0_i32_0 : i32, i32
  }
  func.func @transform_10(%arg0: i32) -> (i32, i32) {
    %c0_i32 = arith.constant 0 : i32
    %c0_i32_0 = arith.constant 0 : i32
    %c0_i32_1 = arith.constant 0 : i32
    return %c0_i32, %c0_i32_0 : i32, i32
  }
  func.func @transform_11(%arg0: i32) -> (i32, i32) {
    %c0_i32 = arith.constant 0 : i32
    %c0_i32_0 = arith.constant 0 : i32
    return %c0_i32, %arg0 : i32, i32
  }
}

</mosaic_0001>

<llo_original>
// kernel: lenet5_forward.1
$region0: #{lenet5_forward.1}
  #allocation0 [shape = 'u32[]', space=smem, size = 0x4, offset = 0x4, fixed_abs, tag = 'smem constant byte address 0x4 - core index']
  #allocation1 [shape = 'u32[144,128]{1,0:T(1,128)}', space=vmem, size = 0x12000, scoped, tag = 'internal scratch']
  #allocation2 [shape = 'f32[864,128]{1,0:T(8,128)}', space=vmem, size = 0x6c000, scoped, tag = 'scratch operand']
  %s0 = inlined_call_operand.vmem [shape: f32[784,128], index: 0, kind: input, shape index: {}]
  %s1 = inlined_call_operand.vmem [shape: f32[288,168], index: 1, kind: input, shape index: {}]
  %s2 = inlined_call_operand.vmem [shape: f32[288,1], index: 2, kind: input, shape index: {}]
  %s3 = inlined_call_operand.vmem [shape: f32[256,432], index: 3, kind: input, shape index: {}]
  %s4 = inlined_call_operand.vmem [shape: f32[256,1], index: 4, kind: input, shape index: {}]
  %s5 = inlined_call_operand.vmem [shape: f32[120,256], index: 5, kind: input, shape index: {}]
  %s6 = inlined_call_operand.vmem [shape: f32[120,1], index: 6, kind: input, shape index: {}]
  %s7 = inlined_call_operand.vmem [shape: f32[84,120], index: 7, kind: input, shape index: {}]
  %s8 = inlined_call_operand.vmem [shape: f32[84,1], index: 8, kind: input, shape index: {}]
  %s9 = inlined_call_operand.vmem [shape: f32[10,84], index: 9, kind: input, shape index: {}]
  %s10 = inlined_call_operand.vmem [shape: f32[10,1], index: 10, kind: input, shape index: {}]
  %s11 = inlined_call_operand.vmem [shape: f32[10,128], index: 11, kind: output, shape index: {}]
  %s12 = sld [smem:[#allocation0]]
  $region54: #{lenet5_forward.1} parent=0
    _
  %s14 = ssub.s32 1, %s12
  %s15 = scalar_select 0, %s14, %s12
  // Predicated region
  $region2: #{lenet5_forward.1} parent=0 // pred_check
    _
  $region3: #{lenet5_forward.1} parent=0 // pred_check_branch
    %17 = sbr.rel (0) target = $region5
  $region4: #{lenet5_forward.1} parent=0 // pred_region
    _
  $region5: #{lenet5_forward.1} parent=0 // pred_fallthru
    _
  // Predicated region
  $region6: #{lenet5_forward.1} parent=0 // pred_check
    _
  $region7: #{lenet5_forward.1} parent=0 // pred_check_branch
    %19 = sbr.rel (0) target = $region9
  $region8: #{lenet5_forward.1} parent=0 // pred_region
    _
  $region9: #{lenet5_forward.1} parent=0 // pred_fallthru
    _
  // Predicated region
  $region10: #{lenet5_forward.1} parent=0 // pred_check
    _
  $region11: #{lenet5_forward.1} parent=0 // pred_check_branch
    %21 = sbr.rel (0) target = $region13
  $region12: #{lenet5_forward.1} parent=0 // pred_region
    _
  $region13: #{lenet5_forward.1} parent=0 // pred_fallthru
    _
  // Predicated region
  $region14: #{lenet5_forward.1} parent=0 // pred_check
    _
  $region15: #{lenet5_forward.1} parent=0 // pred_check_branch
    %23 = sbr.rel (0) target = $region17
  $region16: #{lenet5_forward.1} parent=0 // pred_region
    _
  $region17: #{lenet5_forward.1} parent=0 // pred_fallthru
    _
  // Predicated region
  $region18: #{lenet5_forward.1} parent=0 // pred_check
    _
  $region19: #{lenet5_forward.1} parent=0 // pred_check_branch
    %25 = sbr.rel (0) target = $region21
  $region20: #{lenet5_forward.1} parent=0 // pred_region
    _
  $region21: #{lenet5_forward.1} parent=0 // pred_fallthru
    _
  // Predicated region
  $region22: #{lenet5_forward.1} parent=0 // pred_check
    _
  $region23: #{lenet5_forward.1} parent=0 // pred_check_branch
    %27 = sbr.rel (0) target = $region25
  $region24: #{lenet5_forward.1} parent=0 // pred_region
    _
  $region25: #{lenet5_forward.1} parent=0 // pred_fallthru
    _
  // Predicated region
  $region26: #{lenet5_forward.1} parent=0 // pred_check
    _
  $region27: #{lenet5_forward.1} parent=0 // pred_check_branch
    %29 = sbr.rel (0) target = $region29
  $region28: #{lenet5_forward.1} parent=0 // pred_region
    _
  $region29: #{lenet5_forward.1} parent=0 // pred_fallthru
    _
  // Predicated region
  $region30: #{lenet5_forward.1} parent=0 // pred_check
    _
  $region31: #{lenet5_forward.1} parent=0 // pred_check_branch
    %31 = sbr.rel (0) target = $region33
  $region32: #{lenet5_forward.1} parent=0 // pred_region
    _
  $region33: #{lenet5_forward.1} parent=0 // pred_fallthru
    _
  // Predicated region
  $region34: #{lenet5_forward.1} parent=0 // pred_check
    _
  $region35: #{lenet5_forward.1} parent=0 // pred_check_branch
    %33 = sbr.rel (0) target = $region37
  $region36: #{lenet5_forward.1} parent=0 // pred_region
    _
  $region37: #{lenet5_forward.1} parent=0 // pred_fallthru
    _
  // Predicated region
  $region38: #{lenet5_forward.1} parent=0 // pred_check
    _
  $region39: #{lenet5_forward.1} parent=0 // pred_check_branch
    %35 = sbr.rel (0) target = $region41
  $region40: #{lenet5_forward.1} parent=0 // pred_region
    _
  $region41: #{lenet5_forward.1} parent=0 // pred_fallthru
    _
  // Predicated region
  $region42: #{lenet5_forward.1} parent=0 // pred_check
    _
  $region43: #{lenet5_forward.1} parent=0 // pred_check_branch
    %37 = sbr.rel (0) target = $region45
  $region44: #{lenet5_forward.1} parent=0 // pred_region
    _
  $region45: #{lenet5_forward.1} parent=0 // pred_fallthru
    _
  %v38 = vld [vmem:[%s1] sm:$0xff]
  %v39 = vld [vmem:[%s1 + $0x8] sm:$0xff]
  %v40 = vld [vmem:[%s1 + $0x10] sm:$0xff]
  %v41 = vld [vmem:[%s1 + $0x18] sm:$0xff]
  %v42 = vld [vmem:[%s1 + $0x20] sm:$0xff]
  %v43 = vld [vmem:[%s1 + $0x28] sm:$0xff]
  %v44 = vld [vmem:[%s1 + $0x30] sm:$0xff]
  %v45 = vld [vmem:[%s1 + $0x38] sm:$0xff]
  %v46 = vld [vmem:[%s1 + $0x40] sm:$0xff]
  %v47 = vld [vmem:[%s1 + $0x48] sm:$0xff]
  %v48 = vld [vmem:[%s1 + $0x50] sm:$0xff]
  %v49 = vld [vmem:[%s1 + $0x58] sm:$0xff]
  %v50 = vld [vmem:[%s1 + $0x60] sm:$0xff]
  %v51 = vld [vmem:[%s1 + $0x68] sm:$0xff]
  %v52 = vld [vmem:[%s1 + $0x70] sm:$0xff]
  %v53 = vld [vmem:[%s1 + $0x78] sm:$0xff]
  %v54 = vld [vmem:[%s1 + $0x80] sm:$0xff]
  %v55 = vld [vmem:[%s1 + $0x88] sm:$0xff]
  %v56 = vld [vmem:[%s1 + $0x90] sm:$0xff]
  %v57 = vld [vmem:[%s1 + $0x98] sm:$0xff]
  %v58 = vld [vmem:[%s1 + $0xa0] sm:$0xff]
  %v59 = vld [vmem:[%s1 + $0xa8] sm:$0xff]
  %v60 = vld [vmem:[%s1 + $0xb0] sm:$0xff]
  %v61 = vld [vmem:[%s1 + $0xb8] sm:$0xff]
  %v62 = vld [vmem:[%s1 + $0xc0] sm:$0xff]
  %v63 = vld [vmem:[%s1 + $0xc8] sm:$0xff]
  %v64 = vld [vmem:[%s1 + $0xd0] sm:$0xff]
  %v65 = vld [vmem:[%s1 + $0xd8] sm:$0xff]
  %v66 = vld [vmem:[%s1 + $0xe0] sm:$0xff]
  %v67 = vld [vmem:[%s1 + $0xe8] sm:$0xff]
  %v68 = vld [vmem:[%s1 + $0xf0] sm:$0xff]
  %v69 = vld [vmem:[%s1 + $0xf8] sm:$0xff]
  %v70 = vld [vmem:[%s1 + $0x100] sm:$0xff]
  %v71 = vld [vmem:[%s1 + $0x108] sm:$0xff]
  %v72 = vld [vmem:[%s1 + $0x110] sm:$0xff]
  %v73 = vld [vmem:[%s1 + $0x118] sm:$0xff]
  %v74 = vld [vmem:[%s1 + $0x120] sm:$0xff]
  %v75 = vld [vmem:[%s1 + $0x128] sm:$0xff]
  %v76 = vld [vmem:[%s1 + $0x130] sm:$0xff]
  %v77 = vld [vmem:[%s1 + $0x138] sm:$0xff]
  %v78 = vld [vmem:[%s1 + $0x140] sm:$0xff]
  %v79 = vld [vmem:[%s1 + $0x148] sm:$0xff]
  %v80 = vld [vmem:[%s1 + $0x150] sm:$0xff]
  %v81 = vld [vmem:[%s1 + $0x158] sm:$0xff]
  %v82 = vld [vmem:[%s1 + $0x160] sm:$0xff]
  %v83 = vld [vmem:[%s1 + $0x168] sm:$0xff]
  %v84 = vld [vmem:[%s1 + $0x170] sm:$0xff]
  %v85 = vld [vmem:[%s1 + $0x178] sm:$0xff]
  %v86 = vld [vmem:[%s1 + $0x180] sm:$0xff]
  %v87 = vld [vmem:[%s1 + $0x188] sm:$0xff]
  %v88 = vld [vmem:[%s1 + $0x190] sm:$0xff]
  %v89 = vld [vmem:[%s1 + $0x198] sm:$0xff]
  %v90 = vld [vmem:[%s1 + $0x1a0] sm:$0xff]
  %v91 = vld [vmem:[%s1 + $0x1a8] sm:$0xff]
  %v92 = vld [vmem:[%s1 + $0x1b0] sm:$0xff]
  %v93 = vld [vmem:[%s1 + $0x1b8] sm:$0xff]
  %v94 = vld [vmem:[%s1 + $0x1c0] sm:$0xff]
  %v95 = vld [vmem:[%s1 + $0x1c8] sm:$0xff]
  %v96 = vld [vmem:[%s1 + $0x1d0] sm:$0xff]
  %v97 = vld [vmem:[%s1 + $0x1d8] sm:$0xff]
  %v98 = vld [vmem:[%s1 + $0x1e0] sm:$0xff]
  %v99 = vld [vmem:[%s1 + $0x1e8] sm:$0xff]
  %v100 = vld [vmem:[%s1 + $0x1f0] sm:$0xff]
  %v101 = vld [vmem:[%s1 + $0x1f8] sm:$0xff]
  %v102 = vld [vmem:[%s1 + $0x200] sm:$0xff]
  %v103 = vld [vmem:[%s1 + $0x208] sm:$0xff]
  %v104 = vld [vmem:[%s1 + $0x210] sm:$0xff]
  %v105 = vld [vmem:[%s1 + $0x218] sm:$0xff]
  %v106 = vld [vmem:[%s1 + $0x220] sm:$0xff]
  %v107 = vld [vmem:[%s1 + $0x228] sm:$0xff]
  %v108 = vld [vmem:[%s1 + $0x230] sm:$0xff]
  %v109 = vld [vmem:[%s1 + $0x238] sm:$0xff]
  %v110 = vld [vmem:[%s2] sm:$0xff]
  %v111 = vld [vmem:[%s2 + $0x8] sm:$0xff]
  %v112 = vld [vmem:[%s2 + $0x10] sm:$0xff]
  %v113 = vld [vmem:[%s2 + $0x18] sm:$0xff]
  %v114 = vld [vmem:[%s2 + $0x20] sm:$0xff]
  %v115 = vld [vmem:[%s2 + $0x28] sm:$0xff]
  %v116 = vld [vmem:[%s2 + $0x30] sm:$0xff]
  %v117 = vld [vmem:[%s2 + $0x38] sm:$0xff]
  %v118 = vld [vmem:[%s2 + $0x40] sm:$0xff]
  %v119 = vld [vmem:[%s2 + $0x48] sm:$0xff]
  %v120 = vld [vmem:[%s2 + $0x50] sm:$0xff]
  %v121 = vld [vmem:[%s2 + $0x58] sm:$0xff]
  %v122 = vld [vmem:[%s2 + $0x60] sm:$0xff]
  %v123 = vld [vmem:[%s2 + $0x68] sm:$0xff]
  %v124 = vld [vmem:[%s2 + $0x70] sm:$0xff]
  %v125 = vld [vmem:[%s2 + $0x78] sm:$0xff]
  %v126 = vld [vmem:[%s2 + $0x80] sm:$0xff]
  %v127 = vld [vmem:[%s2 + $0x88] sm:$0xff]
  %v128 = vld [vmem:[%s2 + $0x90] sm:$0xff]
  %v129 = vld [vmem:[%s2 + $0x98] sm:$0xff]
  %v130 = vld [vmem:[%s2 + $0xa0] sm:$0xff]
  %v131 = vld [vmem:[%s2 + $0xa8] sm:$0xff]
  %v132 = vld [vmem:[%s2 + $0xb0] sm:$0xff]
  %v133 = vld [vmem:[%s2 + $0xb8] sm:$0xff]
  %v134 = vld [vmem:[%s2 + $0xc0] sm:$0xff]
  %v135 = vld [vmem:[%s2 + $0xc8] sm:$0xff]
  %v136 = vld [vmem:[%s2 + $0xd0] sm:$0xff]
  %v137 = vld [vmem:[%s2 + $0xd8] sm:$0xff]
  %v138 = vld [vmem:[%s2 + $0xe0] sm:$0xff]
  %v139 = vld [vmem:[%s2 + $0xe8] sm:$0xff]
  %v140 = vld [vmem:[%s2 + $0xf0] sm:$0xff]
  %v141 = vld [vmem:[%s2 + $0xf8] sm:$0xff]
  %v142 = vld [vmem:[%s2 + $0x100] sm:$0xff]
  %v143 = vld [vmem:[%s2 + $0x108] sm:$0xff]
  %v144 = vld [vmem:[%s2 + $0x110] sm:$0xff]
  %v145 = vld [vmem:[%s2 + $0x118] sm:$0xff]
  %v146 = vld [vmem:[%s0] sm:$0xff]
  %v147 = vld [vmem:[%s0 + $0x8] sm:$0xff]
  %v148 = vld [vmem:[%s0 + $0x10] sm:$0xff]
  %v149 = vld [vmem:[%s0 + $0x18] sm:$0xff]
  %v150 = vld [vmem:[%s0 + $0x20] sm:$0xff]
  %v151 = vld [vmem:[%s0 + $0x28] sm:$0xff]
  %v152 = vld [vmem:[%s0 + $0x30] sm:$0xff]
  %v153 = vld [vmem:[%s0 + $0x38] sm:$0xff]
  %v154 = vld [vmem:[%s0 + $0x40] sm:$0xff]
  %v155 = vld [vmem:[%s0 + $0x48] sm:$0xff]
  %v156 = vld [vmem:[%s0 + $0x50] sm:$0xff]
  %v157 = vld [vmem:[%s0 + $0x58] sm:$0xff]
  %v158 = vld [vmem:[%s0 + $0x60] sm:$0xff]
  %v159 = vld [vmem:[%s0 + $0x68] sm:$0xff]
  %v160 = vld [vmem:[%s0 + $0x70] sm:$0xff]
  %v161 = vld [vmem:[%s0 + $0x78] sm:$0xff]
  %v162 = vld [vmem:[%s0 + $0x80] sm:$0xff]
  %v163 = vld [vmem:[%s0 + $0x88] sm:$0xff]
  %v164 = vld [vmem:[%s0 + $0x90] sm:$0xff]
  %v165 = vld [vmem:[%s0 + $0x98] sm:$0xff]
  %v166 = vld [vmem:[%s0 + $0xa0] sm:$0xff]
  %168 = vset.pattern.permute.xlu0 0
  %169 = vperm.xlu0 %168, %v110
  %v170 = vpop.permute.xlu0 %169
  %173 = vset.pattern.permute.xlu0 0
  %174 = vperm.xlu0 %173, %v111
  %v175 = vpop.permute.xlu0 %174
  %178 = vset.pattern.permute.xlu0 0
  %179 = vperm.xlu0 %178, %v112
  %v180 = vpop.permute.xlu0 %179
  %183 = vset.pattern.permute.xlu0 0
  %184 = vperm.xlu0 %183, %v113
  %v185 = vpop.permute.xlu0 %184
  %188 = vset.pattern.permute.xlu0 0
  %189 = vperm.xlu0 %188, %v114
  %v190 = vpop.permute.xlu0 %189
  %193 = vset.pattern.permute.xlu0 0
  %194 = vperm.xlu0 %193, %v115
  %v195 = vpop.permute.xlu0 %194
  %198 = vset.pattern.permute.xlu0 0
  %199 = vperm.xlu0 %198, %v116
  %v200 = vpop.permute.xlu0 %199
  %203 = vset.pattern.permute.xlu0 0
  %204 = vperm.xlu0 %203, %v117
  %v205 = vpop.permute.xlu0 %204
  %208 = vset.pattern.permute.xlu0 0
  %209 = vperm.xlu0 %208, %v118
  %v210 = vpop.permute.xlu0 %209
  %213 = vset.pattern.permute.xlu0 0
  %214 = vperm.xlu0 %213, %v119
  %v215 = vpop.permute.xlu0 %214
  %218 = vset.pattern.permute.xlu0 0
  %219 = vperm.xlu0 %218, %v120
  %v220 = vpop.permute.xlu0 %219
  %223 = vset.pattern.permute.xlu0 0
  %224 = vperm.xlu0 %223, %v121
  %v225 = vpop.permute.xlu0 %224
  %228 = vset.pattern.permute.xlu0 0
  %229 = vperm.xlu0 %228, %v122
  %v230 = vpop.permute.xlu0 %229
  %233 = vset.pattern.permute.xlu0 0
  %234 = vperm.xlu0 %233, %v123
  %v235 = vpop.permute.xlu0 %234
  %238 = vset.pattern.permute.xlu0 0
  %239 = vperm.xlu0 %238, %v124
  %v240 = vpop.permute.xlu0 %239
  %243 = vset.pattern.permute.xlu0 0
  %244 = vperm.xlu0 %243, %v125
  %v245 = vpop.permute.xlu0 %244
  %248 = vset.pattern.permute.xlu0 0
  %249 = vperm.xlu0 %248, %v126
  %v250 = vpop.permute.xlu0 %249
  %253 = vset.pattern.permute.xlu0 0
  %254 = vperm.xlu0 %253, %v127
  %v255 = vpop.permute.xlu0 %254
  %258 = vset.pattern.permute.xlu0 0
  %259 = vperm.xlu0 %258, %v128
  %v260 = vpop.permute.xlu0 %259
  %263 = vset.pattern.permute.xlu0 0
  %264 = vperm.xlu0 %263, %v129
  %v265 = vpop.permute.xlu0 %264
  %268 = vset.pattern.permute.xlu0 0
  %269 = vperm.xlu0 %268, %v130
  %v270 = vpop.permute.xlu0 %269
  %273 = vset.pattern.permute.xlu0 0
  %274 = vperm.xlu0 %273, %v131
  %v275 = vpop.permute.xlu0 %274
  %278 = vset.pattern.permute.xlu0 0
  %279 = vperm.xlu0 %278, %v132
  %v280 = vpop.permute.xlu0 %279
  %283 = vset.pattern.permute.xlu0 0
  %284 = vperm.xlu0 %283, %v133
  %v285 = vpop.permute.xlu0 %284
  %288 = vset.pattern.permute.xlu0 0
  %289 = vperm.xlu0 %288, %v134
  %v290 = vpop.permute.xlu0 %289
  %293 = vset.pattern.permute.xlu0 0
  %294 = vperm.xlu0 %293, %v135
  %v295 = vpop.permute.xlu0 %294
  %298 = vset.pattern.permute.xlu0 0
  %299 = vperm.xlu0 %298, %v136
  %v300 = vpop.permute.xlu0 %299
  %303 = vset.pattern.permute.xlu0 0
  %304 = vperm.xlu0 %303, %v137
  %v305 = vpop.permute.xlu0 %304
  %308 = vset.pattern.permute.xlu0 0
  %309 = vperm.xlu0 %308, %v138
  %v310 = vpop.permute.xlu0 %309
  %313 = vset.pattern.permute.xlu0 0
  %314 = vperm.xlu0 %313, %v139
  %v315 = vpop.permute.xlu0 %314
  %318 = vset.pattern.permute.xlu0 0
  %319 = vperm.xlu0 %318, %v140
  %v320 = vpop.permute.xlu0 %319
  %323 = vset.pattern.permute.xlu0 0
  %324 = vperm.xlu0 %323, %v141
  %v325 = vpop.permute.xlu0 %324
  %328 = vset.pattern.permute.xlu0 0
  %329 = vperm.xlu0 %328, %v142
  %v330 = vpop.permute.xlu0 %329
  %333 = vset.pattern.permute.xlu0 0
  %334 = vperm.xlu0 %333, %v143
  %v335 = vpop.permute.xlu0 %334
  %338 = vset.pattern.permute.xlu0 0
  %339 = vperm.xlu0 %338, %v144
  %v340 = vpop.permute.xlu0 %339
  %343 = vset.pattern.permute.xlu0 0
  %344 = vperm.xlu0 %343, %v145
  %v345 = vpop.permute.xlu0 %344
  %vm347 = vcmask 326656
  %v349 = vsel %vm347, %v39, 0
  %v352 = vsel %vm347, %v41, 0
  %v355 = vsel %vm347, %v43, 0
  %v358 = vsel %vm347, %v45, 0
  %v361 = vsel %vm347, %v47, 0
  %v364 = vsel %vm347, %v49, 0
  %v367 = vsel %vm347, %v51, 0
  %v370 = vsel %vm347, %v53, 0
  %v373 = vsel %vm347, %v55, 0
  %v376 = vsel %vm347, %v57, 0
  %v379 = vsel %vm347, %v59, 0
  %v382 = vsel %vm347, %v61, 0
  %v385 = vsel %vm347, %v63, 0
  %v388 = vsel %vm347, %v65, 0
  %v391 = vsel %vm347, %v67, 0
  %v394 = vsel %vm347, %v69, 0
  %v397 = vsel %vm347, %v71, 0
  %v400 = vsel %vm347, %v73, 0
  %v403 = vsel %vm347, %v75, 0
  %v406 = vsel %vm347, %v77, 0
  %v409 = vsel %vm347, %v79, 0
  %v412 = vsel %vm347, %v81, 0
  %v415 = vsel %vm347, %v83, 0
  %v418 = vsel %vm347, %v85, 0
  %v421 = vsel %vm347, %v87, 0
  %v424 = vsel %vm347, %v89, 0
  %v427 = vsel %vm347, %v91, 0
  %v430 = vsel %vm347, %v93, 0
  %v433 = vsel %vm347, %v95, 0
  %v436 = vsel %vm347, %v97, 0
  %v439 = vsel %vm347, %v99, 0
  %v442 = vsel %vm347, %v101, 0
  %v445 = vsel %vm347, %v103, 0
  %v448 = vsel %vm347, %v105, 0
  %v451 = vsel %vm347, %v107, 0
  %v454 = vsel %vm347, %v109, 0
  %456 = vmatprep.subr.mxu0 0.0
  %457 = vmatpush1.msra.mxu0 %v146
  %458 = vmatprep.subr.mxu0 0.0
  %459 = vmatpush1.msra.mxu0 %v147
  %460 = vmatprep.subr.mxu0 0.0
  %461 = vmatpush1.msra.mxu0 %v148
  %462 = vmatprep.subr.mxu0 0.0
  %463 = vmatpush1.msra.mxu0 %v149
  %464 = vmatprep.subr.mxu0 0.0
  %465 = vmatpush1.msra.mxu0 %v150
  %466 = vmatprep.subr.mxu0 0.0
  %467 = vmatpush1.msra.mxu0 %v151
  %468 = vmatprep.subr.mxu0 0.0
  %469 = vmatpush1.msra.mxu0 %v152
  %470 = vmatprep.subr.mxu0 0.0
  %471 = vmatpush1.msra.mxu0 %v153
  %472 = vmatprep.subr.mxu0 0.0
  %473 = vmatpush1.msra.mxu0 %v154
  %474 = vmatprep.subr.mxu0 0.0
  %475 = vmatpush1.msra.mxu0 %v155
  %476 = vmatprep.subr.mxu0 0.0
  %477 = vmatpush1.msra.mxu0 %v156
  %478 = vmatprep.subr.mxu0 0.0
  %479 = vmatpush1.msra.mxu0 %v157
  %480 = vmatprep.subr.mxu0 0.0
  %481 = vmatpush1.msra.mxu0 %v158
  %482 = vmatprep.subr.mxu0 0.0
  %483 = vmatpush1.msra.mxu0 %v159
  %484 = vmatprep.subr.mxu0 0.0
  %485 = vmatpush1.msra.mxu0 %v160
  %486 = vmatprep.subr.mxu0 0.0
  %487 = vmatpush1.msra.mxu0 %v161
  %488 = vmatprep.subr.mxu0 0.0
  %489 = vmatpush1.msra.mxu0 %v162
  %490 = vmatprep.subr.mxu0 0.0
  %491 = vmatpush1.msra.mxu0 %v163
  %492 = vmatprep.subr.mxu0 0.0
  %493 = vmatpush1.msra.mxu0 %v164
  %494 = vmatprep.subr.mxu0 0.0
  %495 = vmatpush1.msra.mxu0 %v165
  %496 = vmatprep.subr.mxu0 0.0
  %497 = vmatpush1.msra.mxu0 %v166
  %498 = vmatprep.subr.mxu0 0.0
  %499 = vmatpush1.msra.mxu0 0.0
  %500 = vmatprep.subr.mxu0 0.0
  %501 = vmatpush1.msra.mxu0 0.0
  %502 = vmatprep.subr.mxu0 0.0
  %503 = vmatpush1.msra.mxu0 0.0
  %504 = vmatprep.subr.mxu0 0.0
  %505 = vmatpush1.msra.mxu0 0.0
  %506 = vmatprep.subr.mxu0 0.0
  %507 = vmatpush1.msra.mxu0 0.0
  %508 = vmatprep.subr.mxu0 0.0
  %509 = vmatpush1.msra.mxu0 0.0
  %510 = vmatprep.subr.mxu0 0.0
  %511 = vmatpush1.msra.mxu0 0.0
  %512 = vmatprep.subr.mxu0 0.0
  %513 = vmatpush1.msra.mxu0 0.0
  %514 = vmatprep.subr.mxu0 0.0
  %515 = vmatpush1.msra.mxu0 0.0
  %516 = vmatprep.subr.mxu0 0.0
  %517 = vmatpush1.msra.mxu0 0.0
  %518 = vmatprep.subr.mxu0 0.0
  %519 = vmatpush1.msra.mxu0 0.0
  %520 = vmatprep.mubr.f32.mxu0 %v349
  %521 = vmatmul.mubr.f32.gmra.mrb[0].mxu0 %v38
  %v522 = vpop.f32.mrb[0].mxu0
  %v523 = vadd.f32 %v170, %v522
  %v524 = vpop.f32.mrb[0].mxu0
  %525 = vmatprep.mubr.f32.mxu0 %v352
  %526 = vmatmul.mubr.f32.gmra.mrb[0].mxu0 %v40
  %v527 = vpop.f32.mrb[0].mxu0
  %v528 = vadd.f32 %v175, %v527
  %v529 = vpop.f32.mrb[0].mxu0
  %530 = vmatprep.mubr.f32.mxu0 %v355
  %531 = vmatmul.mubr.f32.gmra.mrb[0].mxu0 %v42
  %v532 = vpop.f32.mrb[0].mxu0
  %v533 = vadd.f32 %v180, %v532
  %v534 = vpop.f32.mrb[0].mxu0
  %535 = vmatprep.mubr.f32.mxu0 %v358
  %536 = vmatmul.mubr.f32.gmra.mrb[0].mxu0 %v44
  %v537 = vpop.f32.mrb[0].mxu0
  %v538 = vadd.f32 %v185, %v537
  %v539 = vpop.f32.mrb[0].mxu0
  %540 = vmatprep.mubr.f32.mxu0 %v361
  %541 = vmatmul.mubr.f32.gmra.mrb[0].mxu0 %v46
  %v542 = vpop.f32.mrb[0].mxu0
  %v543 = vadd.f32 %v190, %v542
  %v544 = vpop.f32.mrb[0].mxu0
  %545 = vmatprep.mubr.f32.mxu0 %v364
  %546 = vmatmul.mubr.f32.gmra.mrb[0].mxu0 %v48
  %v547 = vpop.f32.mrb[0].mxu0
  %v548 = vadd.f32 %v195, %v547
  %v549 = vpop.f32.mrb[0].mxu0
  %550 = vmatprep.mubr.f32.mxu0 %v367
  %551 = vmatmul.mubr.f32.gmra.mrb[0].mxu0 %v50
  %v552 = vpop.f32.mrb[0].mxu0
  %v553 = vadd.f32 %v200, %v552
  %v554 = vpop.f32.mrb[0].mxu0
  %555 = vmatprep.mubr.f32.mxu0 %v370
  %556 = vmatmul.mubr.f32.gmra.mrb[0].mxu0 %v52
  %v557 = vpop.f32.mrb[0].mxu0
  %v558 = vadd.f32 %v205, %v557
  %v559 = vpop.f32.mrb[0].mxu0
  %560 = vmatprep.mubr.f32.mxu0 %v373
  %561 = vmatmul.mubr.f32.gmra.mrb[0].mxu0 %v54
  %v562 = vpop.f32.mrb[0].mxu0
  %v563 = vadd.f32 %v210, %v562
  %v564 = vpop.f32.mrb[0].mxu0
  %565 = vmatprep.mubr.f32.mxu0 %v376
  %566 = vmatmul.mubr.f32.gmra.mrb[0].mxu0 %v56
  %v567 = vpop.f32.mrb[0].mxu0
  %v568 = vadd.f32 %v215, %v567
  %v569 = vpop.f32.mrb[0].mxu0
  %570 = vmatprep.mubr.f32.mxu0 %v379
  %571 = vmatmul.mubr.f32.gmra.mrb[0].mxu0 %v58
  %v572 = vpop.f32.mrb[0].mxu0
  %v573 = vadd.f32 %v220, %v572
  %v574 = vpop.f32.mrb[0].mxu0
  %575 = vmatprep.mubr.f32.mxu0 %v382
  %576 = vmatmul.mubr.f32.gmra.mrb[0].mxu0 %v60
  %v577 = vpop.f32.mrb[0].mxu0
  %v578 = vadd.f32 %v225, %v577
  %v579 = vpop.f32.mrb[0].mxu0
  %580 = vmatprep.mubr.f32.mxu0 %v385
  %581 = vmatmul.mubr.f32.gmra.mrb[0].mxu0 %v62
  %v582 = vpop.f32.mrb[0].mxu0
  %v583 = vadd.f32 %v230, %v582
  %v584 = vpop.f32.mrb[0].mxu0
  %585 = vmatprep.mubr.f32.mxu0 %v388
  %586 = vmatmul.mubr.f32.gmra.mrb[0].mxu0 %v64
  %v587 = vpop.f32.mrb[0].mxu0
  %v588 = vadd.f32 %v235, %v587
  %v589 = vpop.f32.mrb[0].mxu0
  %590 = vmatprep.mubr.f32.mxu0 %v391
  %591 = vmatmul.mubr.f32.gmra.mrb[0].mxu0 %v66
  %v592 = vpop.f32.mrb[0].mxu0
  %v593 = vadd.f32 %v240, %v592
  %v594 = vpop.f32.mrb[0].mxu0
  %595 = vmatprep.mubr.f32.mxu0 %v394
  %596 = vmatmul.mubr.f32.gmra.mrb[0].mxu0 %v68
  %v597 = vpop.f32.mrb[0].mxu0
  %v598 = vadd.f32 %v245, %v597
  %v599 = vpop.f32.mrb[0].mxu0
  %600 = vmatprep.mubr.f32.mxu0 %v397
  %601 = vmatmul.mubr.f32.gmra.mrb[0].mxu0 %v70
  %v602 = vpop.f32.mrb[0].mxu0
  %v603 = vadd.f32 %v250, %v602
  %v604 = vpop.f32.mrb[0].mxu0
  %605 = vmatprep.mubr.f32.mxu0 %v400
  %606 = vmatmul.mubr.f32.gmra.mrb[0].mxu0 %v72
  %v607 = vpop.f32.mrb[0].mxu0
  %v608 = vadd.f32 %v255, %v607
  %v609 = vpop.f32.mrb[0].mxu0
  %610 = vmatprep.mubr.f32.mxu0 %v403
  %611 = vmatmul.mubr.f32.gmra.mrb[0].mxu0 %v74
  %v612 = vpop.f32.mrb[0].mxu0
  %v613 = vadd.f32 %v260, %v612
  %v614 = vpop.f32.mrb[0].mxu0
  %615 = vmatprep.mubr.f32.mxu0 %v406
  %616 = vmatmul.mubr.f32.gmra.mrb[0].mxu0 %v76
  %v617 = vpop.f32.mrb[0].mxu0
  %v618 = vadd.f32 %v265, %v617
  %v619 = vpop.f32.mrb[0].mxu0
  %620 = vmatprep.mubr.f32.mxu0 %v409
  %621 = vmatmul.mubr.f32.gmra.mrb[0].mxu0 %v78
  %v622 = vpop.f32.mrb[0].mxu0
  %v623 = vadd.f32 %v270, %v622
  %v624 = vpop.f32.mrb[0].mxu0
  %625 = vmatprep.mubr.f32.mxu0 %v412
  %626 = vmatmul.mubr.f32.gmra.mrb[0].mxu0 %v80
  %v627 = vpop.f32.mrb[0].mxu0
  %v628 = vadd.f32 %v275, %v627
  %v629 = vpop.f32.mrb[0].mxu0
  %630 = vmatprep.mubr.f32.mxu0 %v415
  %631 = vmatmul.mubr.f32.gmra.mrb[0].mxu0 %v82
  %v632 = vpop.f32.mrb[0].mxu0
  %v633 = vadd.f32 %v280, %v632
  %v634 = vpop.f32.mrb[0].mxu0
  %635 = vmatprep.mubr.f32.mxu0 %v418
  %636 = vmatmul.mubr.f32.gmra.mrb[0].mxu0 %v84
  %v637 = vpop.f32.mrb[0].mxu0
  %v638 = vadd.f32 %v285, %v637
  %v639 = vpop.f32.mrb[0].mxu0
  %640 = vmatprep.mubr.f32.mxu0 %v421
  %641 = vmatmul.mubr.f32.gmra.mrb[0].mxu0 %v86
  %v642 = vpop.f32.mrb[0].mxu0
  %v643 = vadd.f32 %v290, %v642
  %v644 = vpop.f32.mrb[0].mxu0
  %645 = vmatprep.mubr.f32.mxu0 %v424
  %646 = vmatmul.mubr.f32.gmra.mrb[0].mxu0 %v88
  %v647 = vpop.f32.mrb[0].mxu0
  %v648 = vadd.f32 %v295, %v647
  %v649 = vpop.f32.mrb[0].mxu0
  %650 = vmatprep.mubr.f32.mxu0 %v427
  %651 = vmatmul.mubr.f32.gmra.mrb[0].mxu0 %v90
  %v652 = vpop.f32.mrb[0].mxu0
  %v653 = vadd.f32 %v300, %v652
  %v654 = vpop.f32.mrb[0].mxu0
  %655 = vmatprep.mubr.f32.mxu0 %v430
  %656 = vmatmul.mubr.f32.gmra.mrb[0].mxu0 %v92
  %v657 = vpop.f32.mrb[0].mxu0
  %v658 = vadd.f32 %v305, %v657
  %v659 = vpop.f32.mrb[0].mxu0
  %660 = vmatprep.mubr.f32.mxu0 %v433
  %661 = vmatmul.mubr.f32.gmra.mrb[0].mxu0 %v94
  %v662 = vpop.f32.mrb[0].mxu0
  %v663 = vadd.f32 %v310, %v662
  %v664 = vpop.f32.mrb[0].mxu0
  %665 = vmatprep.mubr.f32.mxu0 %v436
  %666 = vmatmul.mubr.f32.gmra.mrb[0].mxu0 %v96
  %v667 = vpop.f32.mrb[0].mxu0
  %v668 = vadd.f32 %v315, %v667
  %v669 = vpop.f32.mrb[0].mxu0
  %670 = vmatprep.mubr.f32.mxu0 %v439
  %671 = vmatmul.mubr.f32.gmra.mrb[0].mxu0 %v98
  %v672 = vpop.f32.mrb[0].mxu0
  %v673 = vadd.f32 %v320, %v672
  %v674 = vpop.f32.mrb[0].mxu0
  %675 = vmatprep.mubr.f32.mxu0 %v442
  %676 = vmatmul.mubr.f32.gmra.mrb[0].mxu0 %v100
  %v677 = vpop.f32.mrb[0].mxu0
  %v678 = vadd.f32 %v325, %v677
  %v679 = vpop.f32.mrb[0].mxu0
  %680 = vmatprep.mubr.f32.mxu0 %v445
  %681 = vmatmul.mubr.f32.gmra.mrb[0].mxu0 %v102
  %v682 = vpop.f32.mrb[0].mxu0
  %v683 = vadd.f32 %v330, %v682
  %v684 = vpop.f32.mrb[0].mxu0
  %685 = vmatprep.mubr.f32.mxu0 %v448
  %686 = vmatmul.mubr.f32.gmra.mrb[0].mxu0 %v104
  %v687 = vpop.f32.mrb[0].mxu0
  %v688 = vadd.f32 %v335, %v687
  %v689 = vpop.f32.mrb[0].mxu0
  %690 = vmatprep.mubr.f32.mxu0 %v451
  %691 = vmatmul.mubr.f32.gmra.mrb[0].mxu0 %v106
  %v692 = vpop.f32.mrb[0].mxu0
  %v693 = vadd.f32 %v340, %v692
  %v694 = vpop.f32.mrb[0].mxu0
  %695 = vmatprep.mubr.f32.mxu0 %v454
  %696 = vmatmul.mubr.f32.gmra.mrb[0].mxu0 %v108
  %v697 = vpop.f32.mrb[0].mxu0
  %v698 = vadd.f32 %v345, %v697
  %v699 = vpop.f32.mrb[0].mxu0
  %700 = vdwg.mxu0
  %v701 = vmax.f32 %v523, 0.0
  %v702 = vmax.f32 %v528, 0.0
  %v703 = vmax.f32 %v533, 0.0
  %v704 = vmax.f32 %v538, 0.0
  %v705 = vmax.f32 %v543, 0.0
  %v706 = vmax.f32 %v548, 0.0
  %v707 = vmax.f32 %v553, 0.0
  %v708 = vmax.f32 %v558, 0.0
  %v709 = vmax.f32 %v563, 0.0
  %v710 = vmax.f32 %v568, 0.0
  %v711 = vmax.f32 %v573, 0.0
  %v712 = vmax.f32 %v578, 0.0
  %v713 = vmax.f32 %v583, 0.0
  %v714 = vmax.f32 %v588, 0.0
  %v715 = vmax.f32 %v593, 0.0
  %v716 = vmax.f32 %v598, 0.0
  %v717 = vmax.f32 %v603, 0.0
  %v718 = vmax.f32 %v608, 0.0
  %v719 = vmax.f32 %v613, 0.0
  %v720 = vmax.f32 %v618, 0.0
  %v721 = vmax.f32 %v623, 0.0
  %v722 = vmax.f32 %v628, 0.0
  %v723 = vmax.f32 %v633, 0.0
  %v724 = vmax.f32 %v638, 0.0
  %v725 = vmax.f32 %v643, 0.0
  %v726 = vmax.f32 %v648, 0.0
  %v727 = vmax.f32 %v653, 0.0
  %v728 = vmax.f32 %v658, 0.0
  %v729 = vmax.f32 %v663, 0.0
  %v730 = vmax.f32 %v668, 0.0
  %v731 = vmax.f32 %v673, 0.0
  %v732 = vmax.f32 %v678, 0.0
  %v733 = vmax.f32 %v683, 0.0
  %v734 = vmax.f32 %v688, 0.0
  %v735 = vmax.f32 %v693, 0.0
  %v736 = vmax.f32 %v698, 0.0
  %v737 = vmax.f32 %v701, %v719
  %v738 = vmax.f32 %v702, %v720
  %v739 = vmax.f32 %v703, %v721
  %v740 = vmax.f32 %v704, %v722
  %v741 = vmax.f32 %v705, %v723
  %v742 = vmax.f32 %v706, %v724
  %v743 = vmax.f32 %v707, %v725
  %v744 = vmax.f32 %v708, %v726
  %v745 = vmax.f32 %v709, %v727
  %v746 = vmax.f32 %v710, %v728
  %v747 = vmax.f32 %v711, %v729
  %v748 = vmax.f32 %v712, %v730
  %v749 = vmax.f32 %v713, %v731
  %v750 = vmax.f32 %v714, %v732
  %v751 = vmax.f32 %v715, %v733
  %v752 = vmax.f32 %v716, %v734
  %v753 = vmax.f32 %v717, %v735
  %v754 = vmax.f32 %v718, %v736
  %v755 = vmax.f32 %v737, %v746
  %v756 = vmax.f32 %v738, %v747
  %v757 = vmax.f32 %v739, %v748
  %v758 = vmax.f32 %v740, %v749
  %v759 = vmax.f32 %v741, %v750
  %v760 = vmax.f32 %v742, %v751
  %v761 = vmax.f32 %v743, %v752
  %v762 = vmax.f32 %v744, %v753
  %v763 = vmax.f32 %v745, %v754
  %764 = vst [vmem:[#allocation2] sm:$0xff] %v755
  %765 = vst [vmem:[#allocation2 + $0x8] sm:$0xff] %v756
  %766 = vst [vmem:[#allocation2 + $0x10] sm:$0xff] %v757
  %767 = vst [vmem:[#allocation2 + $0x18] sm:$0xff] %v758
  %768 = vst [vmem:[#allocation2 + $0x20] sm:$0xff] %v759
  %769 = vst [vmem:[#allocation2 + $0x28] sm:$0xff] %v760
  %770 = vst [vmem:[#allocation2 + $0x30] sm:$0xff] %v761
  %771 = vst [vmem:[#allocation2 + $0x38] sm:$0xff] %v762
  %772 = vst [vmem:[#allocation2 + $0x40] sm:$0xff] %v763
  %v773 = vld [vmem:[%s0 + $0x38] sm:$0xff]
  %v774 = vld [vmem:[%s0 + $0x40] sm:$0xff]
  %v775 = vld [vmem:[%s0 + $0x48] sm:$0xff]
  %v776 = vld [vmem:[%s0 + $0x50] sm:$0xff]
  %v777 = vld [vmem:[%s0 + $0x58] sm:$0xff]
  %v778 = vld [vmem:[%s0 + $0x60] sm:$0xff]
  %v779 = vld [vmem:[%s0 + $0x68] sm:$0xff]
  %v780 = vld [vmem:[%s0 + $0x70] sm:$0xff]
  %v781 = vld [vmem:[%s0 + $0x78] sm:$0xff]
  %v782 = vld [vmem:[%s0 + $0x80] sm:$0xff]
  %v783 = vld [vmem:[%s0 + $0x88] sm:$0xff]
  %v784 = vld [vmem:[%s0 + $0x90] sm:$0xff]
  %v785 = vld [vmem:[%s0 + $0x98] sm:$0xff]
  %v786 = vld [vmem:[%s0 + $0xa0] sm:$0xff]
  %v787 = vld [vmem:[%s0 + $0xa8] sm:$0xff]
  %v788 = vld [vmem:[%s0 + $0xb0] sm:$0xff]
  %v789 = vld [vmem:[%s0 + $0xb8] sm:$0xff]
  %v790 = vld [vmem:[%s0 + $0xc0] sm:$0xff]
  %v791 = vld [vmem:[%s0 + $0xc8] sm:$0xff]
  %v792 = vld [vmem:[%s0 + $0xd0] sm:$0xff]
  %v793 = vld [vmem:[%s0 + $0xd8] sm:$0xff]
  %794 = vmatprep.subr.mxu0 0.0
  %795 = vmatpush1.msra.mxu0 %v773
  %796 = vmatprep.subr.mxu0 0.0
  %797 = vmatpush1.msra.mxu0 %v774
  %798 = vmatprep.subr.mxu0 0.0
  %799 = vmatpush1.msra.mxu0 %v775
  %800 = vmatprep.subr.mxu0 0.0
  %801 = vmatpush1.msra.mxu0 %v776
  %802 = vmatprep.subr.mxu0 0.0
  %803 = vmatpush1.msra.mxu0 %v777
  %804 = vmatprep.subr.mxu0 0.0
  %805 = vmatpush1.msra.mxu0 %v778
  %806 = vmatprep.subr.mxu0 0.0
  %807 = vmatpush1.msra.mxu0 %v779
  %808 = vmatprep.subr.mxu0 0.0
  %809 = vmatpush1.msra.mxu0 %v780
  %810 = vmatprep.subr.mxu0 0.0
  %811 = vmatpush1.msra.mxu0 %v781
  %812 = vmatprep.subr.mxu0 0.0
  %813 = vmatpush1.msra.mxu0 %v782
  %814 = vmatprep.subr.mxu0 0.0
  %815 = vmatpush1.msra.mxu0 %v783
  %816 = vmatprep.subr.mxu0 0.0
  %817 = vmatpush1.msra.mxu0 %v784
  %818 = vmatprep.subr.mxu0 0.0
  %819 = vmatpush1.msra.mxu0 %v785
  %820 = vmatprep.subr.mxu0 0.0
  %821 = vmatpush1.msra.mxu0 %v786
  %822 = vmatprep.subr.mxu0 0.0
  %823 = vmatpush1.msra.mxu0 %v787
  %824 = vmatprep.subr.mxu0 0.0
  %825 = vmatpush1.msra.mxu0 %v788
  %826 = vmatprep.subr.mxu0 0.0
  %827 = vmatpush1.msra.mxu0 %v789
  %828 = vmatprep.subr.mxu0 0.0
  %829 = vmatpush1.msra.mxu0 %v790
  %830 = vmatprep.subr.mxu0 0.0
  %831 = vmatpush1.msra.mxu0 %v791
  %832 = vmatprep.subr.mxu0 0.0
  %833 = vmatpush1.msra.mxu0 %v792
  %834 = vmatprep.subr.mxu0 0.0
  %835 = vmatpush1.msra.mxu0 %v793
  %836 = vmatprep.subr.mxu0 0.0
  %837 = vmatpush1.msra.mxu0 0.0
  %838 = vmatprep.subr.mxu0 0.0
  %839 = vmatpush1.msra.mxu0 0.0
  %840 = vmatprep.subr.mxu0 0.0
  %841 = vmatpush1.msra.mxu0 0.0
  %842 = vmatprep.subr.mxu0 0.0
  %843 = vmatpush1.msra.mxu0 0.0
  %844 = vmatprep.subr.mxu0 0.0
  %845 = vmatpush1.msra.mxu0 0.0
  %846 = vmatprep.subr.mxu0 0.0
  %847 = vmatpush1.msra.mxu0 0.0
  %848 = vmatprep.subr.mxu0 0.0
  %849 = vmatpush1.msra.mxu0 0.0
  %850 = vmatprep.subr.mxu0 0.0
  %851 = vmatpush1.msra.mxu0 0.0
  %852 = vmatprep.subr.mxu0 0.0
  %853 = vmatpush1.msra.mxu0 0.0
  %854 = vmatprep.subr.mxu0 0.0
  %855 = vmatpush1.msra.mxu0 0.0
  %856 = vmatprep.subr.mxu0 0.0
  %857 = vmatpush1.msra.mxu0 0.0
  %858 = vmatprep.mubr.f32.mxu0 %v349
  %859 = vmatmul.mubr.f32.gmra.mrb[0].mxu0 %v38
  %v860 = vpop.f32.mrb[0].mxu0
  %v861 = vadd.f32 %v170, %v860
  %v862 = vpop.f32.mrb[0].mxu0
  %863 = vmatprep.mubr.f32.mxu0 %v352
  %864 = vmatmul.mubr.f32.gmra.mrb[0].mxu0 %v40
  %v865 = vpop.f32.mrb[0].mxu0
  %v866 = vadd.f32 %v175, %v865
  %v867 = vpop.f32.mrb[0].mxu0
  %868 = vmatprep.mubr.f32.mxu0 %v355
  %869 = vmatmul.mubr.f32.gmra.mrb[0].mxu0 %v42
  %v870 = vpop.f32.mrb[0].mxu0
  %v871 = vadd.f32 %v180, %v870
  %v872 = vpop.f32.mrb[0].mxu0
  %873 = vmatprep.mubr.f32.mxu0 %v358
  %874 = vmatmul.mubr.f32.gmra.mrb[0].mxu0 %v44
  %v875 = vpop.f32.mrb[0].mxu0
  %v876 = vadd.f32 %v185, %v875
  %v877 = vpop.f32.mrb[0].mxu0
  %878 = vmatprep.mubr.f32.mxu0 %v361
  %879 = vmatmul.mubr.f32.gmra.mrb[0].mxu0 %v46
  %v880 = vpop.f32.mrb[0].mxu0
  %v881 = vadd.f32 %v190, %v880
  %v882 = vpop.f32.mrb[0].mxu0
  %883 = vmatprep.mubr.f32.mxu0 %v364
  %884 = vmatmul.mubr.f32.gmra.mrb[0].mxu0 %v48
  %v885 = vpop.f32.mrb[0].mxu0
  %v886 = vadd.f32 %v195, %v885
  %v887 = vpop.f32.mrb[0].mxu0
  %888 = vmatprep.mubr.f32.mxu0 %v367
  %889 = vmatmul.mubr.f32.gmra.mrb[0].mxu0 %v50
  %v890 = vpop.f32.mrb[0].mxu0
  %v891 = vadd.f32 %v200, %v890
  %v892 = vpop.f32.mrb[0].mxu0
  %893 = vmatprep.mubr.f32.mxu0 %v370
  %894 = vmatmul.mubr.f32.gmra.mrb[0].mxu0 %v52
  %v895 = vpop.f32.mrb[0].mxu0
  %v896 = vadd.f32 %v205, %v895
  %v897 = vpop.f32.mrb[0].mxu0
  %898 = vmatprep.mubr.f32.mxu0 %v373
  %899 = vmatmul.mubr.f32.gmra.mrb[0].mxu0 %v54
  %v900 = vpop.f32.mrb[0].mxu0
  %v901 = vadd.f32 %v210, %v900
  %v902 = vpop.f32.mrb[0].mxu0
  %903 = vmatprep.mubr.f32.mxu0 %v376
  %904 = vmatmul.mubr.f32.gmra.mrb[0].mxu0 %v56
  %v905 = vpop.f32.mrb[0].mxu0
  %v906 = vadd.f32 %v215, %v905
  %v907 = vpop.f32.mrb[0].mxu0
  %908 = vmatprep.mubr.f32.mxu0 %v379
  %909 = vmatmul.mubr.f32.gmra.mrb[0].mxu0 %v58
  %v910 = vpop.f32.mrb[0].mxu0
  %v911 = vadd.f32 %v220, %v910
  %v912 = vpop.f32.mrb[0].mxu0
  %913 = vmatprep.mubr.f32.mxu0 %v382
  %914 = vmatmul.mubr.f32.gmra.mrb[0].mxu0 %v60
  %v915 = vpop.f32.mrb[0].mxu0
  %v916 = vadd.f32 %v225, %v915
  %v917 = vpop.f32.mrb[0].mxu0
  %918 = vmatprep.mubr.f32.mxu0 %v385
  %919 = vmatmul.mubr.f32.gmra.mrb[0].mxu0 %v62
  %v920 = vpop.f32.mrb[0].mxu0
  %v921 = vadd.f32 %v230, %v920
  %v922 = vpop.f32.mrb[0].mxu0
  %923 = vmatprep.mubr.f32.mxu0 %v388
  %924 = vmatmul.mubr.f32.gmra.mrb[0].mxu0 %v64
  %v925 = vpop.f32.mrb[0].mxu0
  %v926 = vadd.f32 %v235, %v925
  %v927 = vpop.f32.mrb[0].mxu0
  %928 = vmatprep.mubr.f32.mxu0 %v391
  %929 = vmatmul.mubr.f32.gmra.mrb[0].mxu0 %v66
  %v930 = vpop.f32.mrb[0].mxu0
  %v931 = vadd.f32 %v240, %v930
  %v932 = vpop.f32.mrb[0].mxu0
  %933 = vmatprep.mubr.f32.mxu0 %v394
  %934 = vmatmul.mubr.f32.gmra.mrb[0].mxu0 %v68
  %v935 = vpop.f32.mrb[0].mxu0
  %v936 = vadd.f32 %v245, %v935
  %v937 = vpop.f32.mrb[0].mxu0
  %938 = vmatprep.mubr.f32.mxu0 %v397
  %939 = vmatmul.mubr.f32.gmra.mrb[0].mxu0 %v70
  %v940 = vpop.f32.mrb[0].mxu0
  %v941 = vadd.f32 %v250, %v940
  %v942 = vpop.f32.mrb[0].mxu0
  %943 = vmatprep.mubr.f32.mxu0 %v400
  %944 = vmatmul.mubr.f32.gmra.mrb[0].mxu0 %v72
  %v945 = vpop.f32.mrb[0].mxu0
  %v946 = vadd.f32 %v255, %v945
  %v947 = vpop.f32.mrb[0].mxu0
  %948 = vmatprep.mubr.f32.mxu0 %v403
  %949 = vmatmul.mubr.f32.gmra.mrb[0].mxu0 %v74
  %v950 = vpop.f32.mrb[0].mxu0
  %v951 = vadd.f32 %v260, %v950
  %v952 = vpop.f32.mrb[0].mxu0
  %953 = vmatprep.mubr.f32.mxu0 %v406
  %954 = vmatmul.mubr.f32.gmra.mrb[0].mxu0 %v76
  %v955 = vpop.f32.mrb[0].mxu0
  %v956 = vadd.f32 %v265, %v955
  %v957 = vpop.f32.mrb[0].mxu0
  %958 = vmatprep.mubr.f32.mxu0 %v409
  %959 = vmatmul.mubr.f32.gmra.mrb[0].mxu0 %v78
  %v960 = vpop.f32.mrb[0].mxu0
  %v961 = vadd.f32 %v270, %v960
  %v962 = vpop.f32.mrb[0].mxu0
  %963 = vmatprep.mubr.f32.mxu0 %v412
  %964 = vmatmul.mubr.f32.gmra.mrb[0].mxu0 %v80
  %v965 = vpop.f32.mrb[0].mxu0
  %v966 = vadd.f32 %v275, %v965
  %v967 = vpop.f32.mrb[0].mxu0
  %968 = vmatprep.mubr.f32.mxu0 %v415
  %969 = vmatmul.mubr.f32.gmra.mrb[0].mxu0 %v82
  %v970 = vpop.f32.mrb[0].mxu0
  %v971 = vadd.f32 %v280, %v970
  %v972 = vpop.f32.mrb[0].mxu0
  %973 = vmatprep.mubr.f32.mxu0 %v418
  %974 = vmatmul.mubr.f32.gmra.mrb[0].mxu0 %v84
  %v975 = vpop.f32.mrb[0].mxu0
  %v976 = vadd.f32 %v285, %v975
  %v977 = vpop.f32.mrb[0].mxu0
  %978 = vmatprep.mubr.f32.mxu0 %v421
  %979 = vmatmul.mubr.f32.gmra.mrb[0].mxu0 %v86
  %v980 = vpop.f32.mrb[0].mxu0
  %v981 = vadd.f32 %v290, %v980
  %v982 = vpop.f32.mrb[0].mxu0
  %983 = vmatprep.mubr.f32.mxu0 %v424
  %984 = vmatmul.mubr.f32.gmra.mrb[0].mxu0 %v88
  %v985 = vpop.f32.mrb[0].mxu0
  %v986 = vadd.f32 %v295, %v985
  %v987 = vpop.f32.mrb[0].mxu0
  %988 = vmatprep.mubr.f32.mxu0 %v427
  %989 = vmatmul.mubr.f32.gmra.mrb[0].mxu0 %v90
  %v990 = vpop.f32.mrb[0].mxu0
  %v991 = vadd.f32 %v300, %v990
  %v992 = vpop.f32.mrb[0].mxu0
  %993 = vmatprep.mubr.f32.mxu0 %v430
  %994 = vmatmul.mubr.f32.gmra.mrb[0].mxu0 %v92
  %v995 = vpop.f32.mrb[0].mxu0
  %v996 = vadd.f32 %v305, %v995
  %v997 = vpop.f32.mrb[0].mxu0
  %998 = vmatprep.mubr.f32.mxu0 %v433
  %999 = vmatmul.mubr.f32.gmra.mrb[0].mxu0 %v94
  %v1000 = vpop.f32.mrb[0].mxu0
  %v1001 = vadd.f32 %v310, %v1000
  %v1002 = vpop.f32.mrb[0].mxu0
  %1003 = vmatprep.mubr.f32.mxu0 %v436
  %1004 = vmatmul.mubr.f32.gmra.mrb[0].mxu0 %v96
  %v1005 = vpop.f32.mrb[0].mxu0
  %v1006 = vadd.f32 %v315, %v1005
  %v1007 = vpop.f32.mrb[0].mxu0
  %1008 = vmatprep.mubr.f32.mxu0 %v439
  %1009 = vmatmul.mubr.f32.gmra.mrb[0].mxu0 %v98
  %v1010 = vpop.f32.mrb[0].mxu0
  %v1011 = vadd.f32 %v320, %v1010
  %v1012 = vpop.f32.mrb[0].mxu0
  %1013 = vmatprep.mubr.f32.mxu0 %v442
  %1014 = vmatmul.mubr.f32.gmra.mrb[0].mxu0 %v100
  %v1015 = vpop.f32.mrb[0].mxu0
  %v1016 = vadd.f32 %v325, %v1015
  %v1017 = vpop.f32.mrb[0].mxu0
  %1018 = vmatprep.mubr.f32.mxu0 %v445
  %1019 = vmatmul.mubr.f32.gmra.mrb[0].mxu0 %v102
  %v1020 = vpop.f32.mrb[0].mxu0
  %v1021 = vadd.f32 %v330, %v1020
  %v1022 = vpop.f32.mrb[0].mxu0
  %1023 = vmatprep.mubr.f32.mxu0 %v448
  %1024 = vmatmul.mubr.f32.gmra.mrb[0].mxu0 %v104
  %v1025 = vpop.f32.mrb[0].mxu0
  %v1026 = vadd.f32 %v335, %v1025
  %v1027 = vpop.f32.mrb[0].mxu0
  %1028 = vmatprep.mubr.f32.mxu0 %v451
  %1029 = vmatmul.mubr.f32.gmra.mrb[0].mxu0 %v106
  %v1030 = vpop.f32.mrb[0].mxu0
  %v1031 = vadd.f32 %v340, %v1030
  %v1032 = vpop.f32.mrb[0].mxu0
  %1033 = vmatprep.mubr.f32.mxu0 %v454
  %1034 = vmatmul.mubr.f32.gmra.mrb[0].mxu0 %v108
  %v1035 = vpop.f32.mrb[0].mxu0
  %v1036 = vadd.f32 %v345, %v1035
  %v1037 = vpop.f32.mrb[0].mxu0
  %1038 = vdwg.mxu0
  %v1039 = vmax.f32 %v861, 0.0
  %v1040 = vmax.f32 %v866, 0.0
  %v1041 = vmax.f32 %v871, 0.0
  %v1042 = vmax.f32 %v876, 0.0
  %v1043 = vmax.f32 %v881, 0.0
  %v1044 = vmax.f32 %v886, 0.0
  %v1045 = vmax.f32 %v891, 0.0
  %v1046 = vmax.f32 %v896, 0.0
  %v1047 = vmax.f32 %v901, 0.0
  %v1048 = vmax.f32 %v906, 0.0
  %v1049 = vmax.f32 %v911, 0.0
  %v1050 = vmax.f32 %v916, 0.0
  %v1051 = vmax.f32 %v921, 0.0
  %v1052 = vmax.f32 %v926, 0.0
  %v1053 = vmax.f32 %v931, 0.0
  %v1054 = vmax.f32 %v936, 0.0
  %v1055 = vmax.f32 %v941, 0.0
  %v1056 = vmax.f32 %v946, 0.0
  %v1057 = vmax.f32 %v951, 0.0
  %v1058 = vmax.f32 %v956, 0.0
  %v1059 = vmax.f32 %v961, 0.0
  %v1060 = vmax.f32 %v966, 0.0
  %v1061 = vmax.f32 %v971, 0.0
  %v1062 = vmax.f32 %v976, 0.0
  %v1063 = vmax.f32 %v981, 0.0
  %v1064 = vmax.f32 %v986, 0.0
  %v1065 = vmax.f32 %v991, 0.0
  %v1066 = vmax.f32 %v996, 0.0
  %v1067 = vmax.f32 %v1001, 0.0
  %v1068 = vmax.f32 %v1006, 0.0
  %v1069 = vmax.f32 %v1011, 0.0
  %v1070 = vmax.f32 %v1016, 0.0
  %v1071 = vmax.f32 %v1021, 0.0
  %v1072 = vmax.f32 %v1026, 0.0
  %v1073 = vmax.f32 %v1031, 0.0
  %v1074 = vmax.f32 %v1036, 0.0
  %v1075 = vmax.f32 %v1039, %v1057
  %v1076 = vmax.f32 %v1040, %v1058
  %v1077 = vmax.f32 %v1041, %v1059
  %v1078 = vmax.f32 %v1042, %v1060
  %v1079 = vmax.f32 %v1043, %v1061
  %v1080 = vmax.f32 %v1044, %v1062
  %v1081 = vmax.f32 %v1045, %v1063
  %v1082 = vmax.f32 %v1046, %v1064
  %v1083 = vmax.f32 %v1047, %v1065
  %v1084 = vmax.f32 %v1048, %v1066
  %v1085 = vmax.f32 %v1049, %v1067
  %v1086 = vmax.f32 %v1050, %v1068
  %v1087 = vmax.f32 %v1051, %v1069
  %v1088 = vmax.f32 %v1052, %v1070
  %v1089 = vmax.f32 %v1053, %v1071
  %v1090 = vmax.f32 %v1054, %v1072
  %v1091 = vmax.f32 %v1055, %v1073
  %v1092 = vmax.f32 %v1056, %v1074
  %v1093 = vmax.f32 %v1075, %v1084
  %v1094 = vmax.f32 %v1076, %v1085
  %v1095 = vmax.f32 %v1077, %v1086
  %v1096 = vmax.f32 %v1078, %v1087
  %v1097 = vmax.f32 %v1079, %v1088
  %v1098 = vmax.f32 %v1080, %v1089
  %v1099 = vmax.f32 %v1081, %v1090
  %v1100 = vmax.f32 %v1082, %v1091
  %v1101 = vmax.f32 %v1083, %v1092
  %1102 = vst [vmem:[#allocation2 + $0x48] sm:$0xff] %v1093
  %1103 = vst [vmem:[#allocation2 + $0x50] sm:$0xff] %v1094
  %1104 = vst [vmem:[#allocation2 + $0x58] sm:$0xff] %v1095
  %1105 = vst [vmem:[#allocation2 + $0x60] sm:$0xff] %v1096
  %1106 = vst [vmem:[#allocation2 + $0x68] sm:$0xff] %v1097
  %1107 = vst [vmem:[#allocation2 + $0x70] sm:$0xff] %v1098
  %1108 = vst [vmem:[#allocation2 + $0x78] sm:$0xff] %v1099
  %1109 = vst [vmem:[#allocation2 + $0x80] sm:$0xff] %v1100
  %1110 = vst [vmem:[#allocation2 + $0x88] sm:$0xff] %v1101
  %v1111 = vld [vmem:[%s0 + $0x70] sm:$0xff]
  %v1112 = vld [vmem:[%s0 + $0x78] sm:$0xff]
  %v1113 = vld [vmem:[%s0 + $0x80] sm:$0xff]
  %v1114 = vld [vmem:[%s0 + $0x88] sm:$0xff]
  %v1115 = vld [vmem:[%s0 + $0x90] sm:$0xff]
  %v1116 = vld [vmem:[%s0 + $0x98] sm:$0xff]
  %v1117 = vld [vmem:[%s0 + $0xa0] sm:$0xff]
  %v1118 = vld [vmem:[%s0 + $0xa8] sm:$0xff]
  %v1119 = vld [vmem:[%s0 + $0xb0] sm:$0xff]
  %v1120 = vld [vmem:[%s0 + $0xb8] sm:$0xff]
  %v1121 = vld [vmem:[%s0 + $0xc0] sm:$0xff]
  %v1122 = vld [vmem:[%s0 + $0xc8] sm:$0xff]
  %v1123 = vld [vmem:[%s0 + $0xd0] sm:$0xff]
  %v1124 = vld [vmem:[%s0 + $0xd8] sm:$0xff]
  %v1125 = vld [vmem:[%s0 + $0xe0] sm:$0xff]
  %v1126 = vld [vmem:[%s0 + $0xe8] sm:$0xff]
  %v1127 = vld [vmem:[%s0 + $0xf0] sm:$0xff]
  %v1128 = vld [vmem:[%s0 + $0xf8] sm:$0xff]
  %v1129 = vld [vmem:[%s0 + $0x100] sm:$0xff]
  %v1130 = vld [vmem:[%s0 + $0x108] sm:$0xff]
  %v1131 = vld [vmem:[%s0 + $0x110] sm:$0xff]
  %1132 = vmatprep.subr.mxu0 0.0
  %1133 = vmatpush1.msra.mxu0 %v1111
  %1134 = vmatprep.subr.mxu0 0.0
  %1135 = vmatpush1.msra.mxu0 %v1112
  %1136 = vmatprep.subr.mxu0 0.0
  %1137 = vmatpush1.msra.mxu0 %v1113
  %1138 = vmatprep.subr.mxu0 0.0
  %1139 = vmatpush1.msra.mxu0 %v1114
  %1140 = vmatprep.subr.mxu0 0.0
  %1141 = vmatpush1.msra.mxu0 %v1115
  %1142 = vmatprep.subr.mxu0 0.0
  %1143 = vmatpush1.msra.mxu0 %v1116
  %1144 = vmatprep.subr.mxu0 0.0
  %1145 = vmatpush1.msra.mxu0 %v1117
  %1146 = vmatprep.subr.mxu0 0.0
  %1147 = vmatpush1.msra.mxu0 %v1118
  %1148 = vmatprep.subr.mxu0 0.0
  %1149 = vmatpush1.msra.mxu0 %v1119
  %1150 = vmatprep.subr.mxu0 0.0
  %1151 = vmatpush1.msra.mxu0 %v1120
  %1152 = vmatprep.subr.mxu0 0.0
  %1153 = vmatpush1.msra.mxu0 %v1121
  %1154 = vmatprep.subr.mxu0 0.0
  %1155 = vmatpush1.msra.mxu0 %v1122
  %1156 = vmatprep.subr.mxu0 0.0
  %1157 = vmatpush1.msra.mxu0 %v1123
  %1158 = vmatprep.subr.mxu0 0.0
  %1159 = vmatpush1.msra.mxu0 %v1124
  %1160 = vmatprep.subr.mxu0 0.0
  %1161 = vmatpush1.msra.mxu0 %v1125
  %1162 = vmatprep.subr.mxu0 0.0
  %1163 = vmatpush1.msra.mxu0 %v1126
  %1164 = vmatprep.subr.mxu0 0.0
  %1165 = vmatpush1.msra.mxu0 %v1127
  %1166 = vmatprep.subr.mxu0 0.0
  %1167 = vmatpush1.msra.mxu0 %v1128
  %1168 = vmatprep.subr.mxu0 0.0
  %1169 = vmatpush1.msra.mxu0 %v1129
  %1170 = vmatprep.subr.mxu0 0.0
  %1171 = vmatpush1.msra.mxu0 %v1130
  %1172 = vmatprep.subr.mxu0 0.0
  %1173 = vmatpush1.msra.mxu0 %v1131
  %1174 = vmatprep.subr.mxu0 0.0
  %1175 = vmatpush1.msra.mxu0 0.0
  %1176 = vmatprep.subr.mxu0 0.0
  %1177 = vmatpush1.msra.mxu0 0.0
  %1178 = vmatprep.subr.mxu0 0.0
  %1179 = vmatpush1.msra.mxu0 0.0
  %1180 = vmatprep.subr.mxu0 0.0
  %1181 = vmatpush1.msra.mxu0 0.0
  %1182 = vmatprep.subr.mxu0 0.0
  %1183 = vmatpush1.msra.mxu0 0.0
  %1184 = vmatprep.subr.mxu0 0.0
  %1185 = vmatpush1.msra.mxu0 0.0
  %1186 = vmatprep.subr.mxu0 0.0
  %1187 = vmatpush1.msra.mxu0 0.0
  %1188 = vmatprep.subr.mxu0 0.0
  %1189 = vmatpush1.msra.mxu0 0.0
  %1190 = vmatprep.subr.mxu0 0.0
  %1191 = vmatpush1.msra.mxu0 0.0
  %1192 = vmatprep.subr.mxu0 0.0
  %1193 = vmatpush1.msra.mxu0 0.0
  %1194 = vmatprep.subr.mxu0 0.0
  %1195 = vmatpush1.msra.mxu0 0.0
  %1196 = vmatprep.mubr.f32.mxu0 %v349
  %1197 = vmatmul.mubr.f32.gmra.mrb[0].mxu0 %v38
  %v1198 = vpop.f32.mrb[0].mxu0
  %v1199 = vadd.f32 %v170, %v1198
  %v1200 = vpop.f32.mrb[0].mxu0
  %1201 = vmatprep.mubr.f32.mxu0 %v352
  %1202 = vmatmul.mubr.f32.gmra.mrb[0].mxu0 %v40
  %v1203 = vpop.f32.mrb[0].mxu0
  %v1204 = vadd.f32 %v175, %v1203
  %v1205 = vpop.f32.mrb[0].mxu0
  %1206 = vmatprep.mubr.f32.mxu0 %v355
  %1207 = vmatmul.mubr.f32.gmra.mrb[0].mxu0 %v42
  %v1208 = vpop.f32.mrb[0].mxu0
  %v1209 = vadd.f32 %v180, %v1208
  %v1210 = vpop.f32.mrb[0].mxu0
  %1211 = vmatprep.mubr.f32.mxu0 %v358
  %1212 = vmatmul.mubr.f32.gmra.mrb[0].mxu0 %v44
  %v1213 = vpop.f32.mrb[0].mxu0
  %v1214 = vadd.f32 %v185, %v1213
  %v1215 = vpop.f32.mrb[0].mxu0
  %1216 = vmatprep.mubr.f32.mxu0 %v361
  %1217 = vmatmul.mubr.f32.gmra.mrb[0].mxu0 %v46
  %v1218 = vpop.f32.mrb[0].mxu0
  %v1219 = vadd.f32 %v190, %v1218
  %v1220 = vpop.f32.mrb[0].mxu0
  %1221 = vmatprep.mubr.f32.mxu0 %v364
  %1222 = vmatmul.mubr.f32.gmra.mrb[0].mxu0 %v48
  %v1223 = vpop.f32.mrb[0].mxu0
  %v1224 = vadd.f32 %v195, %v1223
  %v1225 = vpop.f32.mrb[0].mxu0
  %1226 = vmatprep.mubr.f32.mxu0 %v367
  %1227 = vmatmul.mubr.f32.gmra.mrb[0].mxu0 %v50
  %v1228 = vpop.f32.mrb[0].mxu0
  %v1229 = vadd.f32 %v200, %v1228
  %v1230 = vpop.f32.mrb[0].mxu0
  %1231 = vmatprep.mubr.f32.mxu0 %v370
  %1232 = vmatmul.mubr.f32.gmra.mrb[0].mxu0 %v52
  %v1233 = vpop.f32.mrb[0].mxu0
  %v1234 = vadd.f32 %v205, %v1233
  %v1235 = vpop.f32.mrb[0].mxu0
  %1236 = vmatprep.mubr.f32.mxu0 %v373
  %1237 = vmatmul.mubr.f32.gmra.mrb[0].mxu0 %v54
  %v1238 = vpop.f32.mrb[0].mxu0
  %v1239 = vadd.f32 %v210, %v1238
  %v1240 = vpop.f32.mrb[0].mxu0
  %1241 = vmatprep.mubr.f32.mxu0 %v376
  %1242 = vmatmul.mubr.f32.gmra.mrb[0].mxu0 %v56
  %v1243 = vpop.f32.mrb[0].mxu0
  %v1244 = vadd.f32 %v215, %v1243
  %v1245 = vpop.f32.mrb[0].mxu0
  %1246 = vmatprep.mubr.f32.mxu0 %v379
  %1247 = vmatmul.mubr.f32.gmra.mrb[0].mxu0 %v58
  %v1248 = vpop.f32.mrb[0].mxu0
  %v1249 = vadd.f32 %v220, %v1248
  %v1250 = vpop.f32.mrb[0].mxu0
  %1251 = vmatprep.mubr.f32.mxu0 %v382
  %1252 = vmatmul.mubr.f32.gmra.mrb[0].mxu0 %v60
  %v1253 = vpop.f32.mrb[0].mxu0
  %v1254 = vadd.f32 %v225, %v1253
  %v1255 = vpop.f32.mrb[0].mxu0
  %1256 = vmatprep.mubr.f32.mxu0 %v385
  %1257 = vmatmul.mubr.f32.gmra.mrb[0].mxu0 %v62
  %v1258 = vpop.f32.mrb[0].mxu0
  %v1259 = vadd.f32 %v230, %v1258
  %v1260 = vpop.f32.mrb[0].mxu0
  %1261 = vmatprep.mubr.f32.mxu0 %v388
  %1262 = vmatmul.mubr.f32.gmra.mrb[0].mxu0 %v64
  %v1263 = vpop.f32.mrb[0].mxu0
  %v1264 = vadd.f32 %v235, %v1263
  %v1265 = vpop.f32.mrb[0].mxu0
  %1266 = vmatprep.mubr.f32.mxu0 %v391
  %1267 = vmatmul.mubr.f32.gmra.mrb[0].mxu0 %v66
  %v1268 = vpop.f32.mrb[0].mxu0
  %v1269 = vadd.f32 %v240, %v1268
  %v1270 = vpop.f32.mrb[0].mxu0
  %1271 = vmatprep.mubr.f32.mxu0 %v394
  %1272 = vmatmul.mubr.f32.gmra.mrb[0].mxu0 %v68
  %v1273 = vpop.f32.mrb[0].mxu0
  %v1274 = vadd.f32 %v245, %v1273
  %v1275 = vpop.f32.mrb[0].mxu0
  %1276 = vmatprep.mubr.f32.mxu0 %v397
  %1277 = vmatmul.mubr.f32.gmra.mrb[0].mxu0 %v70
  %v1278 = vpop.f32.mrb[0].mxu0
  %v1279 = vadd.f32 %v250, %v1278
  %v1280 = vpop.f32.mrb[0].mxu0
  %1281 = vmatprep.mubr.f32.mxu0 %v400
  %1282 = vmatmul.mubr.f32.gmra.mrb[0].mxu0 %v72
  %v1283 = vpop.f32.mrb[0].mxu0
  %v1284 = vadd.f32 %v255, %v1283
  %v1285 = vpop.f32.mrb[0].mxu0
  %1286 = vmatprep.mubr.f32.mxu0 %v403
  %1287 = vmatmul.mubr.f32.gmra.mrb[0].mxu0 %v74
  %v1288 = vpop.f32.mrb[0].mxu0
  %v1289 = vadd.f32 %v260, %v1288
  %v1290 = vpop.f32.mrb[0].mxu0
  %1291 = vmatprep.mubr.f32.mxu0 %v406
  %1292 = vmatmul.mubr.f32.gmra.mrb[0].mxu0 %v76
  %v1293 = vpop.f32.mrb[0].mxu0
  %v1294 = vadd.f32 %v265, %v1293
  %v1295 = vpop.f32.mrb[0].mxu0
  %1296 = vmatprep.mubr.f32.mxu0 %v409
  %1297 = vmatmul.mubr.f32.gmra.mrb[0].mxu0 %v78
  %v1298 = vpop.f32.mrb[0].mxu0
  %v1299 = vadd.f32 %v270, %v1298
  %v1300 = vpop.f32.mrb[0].mxu0
  %1301 = vmatprep.mubr.f32.mxu0 %v412
  %1302 = vmatmul.mubr.f32.gmra.mrb[0].mxu0 %v80
  %v1303 = vpop.f32.mrb[0].mxu0
  %v1304 = vadd.f32 %v275, %v1303
  %v1305 = vpop.f32.mrb[0].mxu0
  %1306 = vmatprep.mubr.f32.mxu0 %v415
  %1307 = vmatmul.mubr.f32.gmra.mrb[0].mxu0 %v82
  %v1308 = vpop.f32.mrb[0].mxu0
  %v1309 = vadd.f32 %v280, %v1308
  %v1310 = vpop.f32.mrb[0].mxu0
  %1311 = vmatprep.mubr.f32.mxu0 %v418
  %1312 = vmatmul.mubr.f32.gmra.mrb[0].mxu0 %v84
  %v1313 = vpop.f32.mrb[0].mxu0
  %v1314 = vadd.f32 %v285, %v1313
  %v1315 = vpop.f32.mrb[0].mxu0
  %1316 = vmatprep.mubr.f32.mxu0 %v421
  %1317 = vmatmul.mubr.f32.gmra.mrb[0].mxu0 %v86
  %v1318 = vpop.f32.mrb[0].mxu0
  %v1319 = vadd.f32 %v290, %v1318
  %v1320 = vpop.f32.mrb[0].mxu0
  %1321 = vmatprep.mubr.f32.mxu0 %v424
  %1322 = vmatmul.mubr.f32.gmra.mrb[0].mxu0 %v88
  %v1323 = vpop.f32.mrb[0].mxu0
  %v1324 = vadd.f32 %v295, %v1323
  %v1325 = vpop.f32.mrb[0].mxu0
  %1326 = vmatprep.mubr.f32.mxu0 %v427
  %1327 = vmatmul.mubr.f32.gmra.mrb[0].mxu0 %v90
  %v1328 = vpop.f32.mrb[0].mxu0
  %v1329 = vadd.f32 %v300, %v1328
  %v1330 = vpop.f32.mrb[0].mxu0
  %1331 = vmatprep.mubr.f32.mxu0 %v430
  %1332 = vmatmul.mubr.f32.gmra.mrb[0].mxu0 %v92
  %v1333 = vpop.f32.mrb[0].mxu0
  %v1334 = vadd.f32 %v305, %v1333
  %v1335 = vpop.f32.mrb[0].mxu0
  %1336 = vmatprep.mubr.f32.mxu0 %v433
  %1337 = vmatmul.mubr.f32.gmra.mrb[0].mxu0 %v94
  %v1338 = vpop.f32.mrb[0].mxu0
  %v1339 = vadd.f32 %v310, %v1338
  %v1340 = vpop.f32.mrb[0].mxu0
  %1341 = vmatprep.mubr.f32.mxu0 %v436
  %1342 = vmatmul.mubr.f32.gmra.mrb[0].mxu0 %v96
  %v1343 = vpop.f32.mrb[0].mxu0
  %v1344 = vadd.f32 %v315, %v1343
  %v1345 = vpop.f32.mrb[0].mxu0
  %1346 = vmatprep.mubr.f32.mxu0 %v439
  %1347 = vmatmul.mubr.f32.gmra.mrb[0].mxu0 %v98
  %v1348 = vpop.f32.mrb[0].mxu0
  %v1349 = vadd.f32 %v320, %v1348
  %v1350 = vpop.f32.mrb[0].mxu0
  %1351 = vmatprep.mubr.f32.mxu0 %v442
  %1352 = vmatmul.mubr.f32.gmra.mrb[0].mxu0 %v100
  %v1353 = vpop.f32.mrb[0].mxu0
  %v1354 = vadd.f32 %v325, %v1353
  %v1355 = vpop.f32.mrb[0].mxu0
  %1356 = vmatprep.mubr.f32.mxu0 %v445
  %1357 = vmatmul.mubr.f32.gmra.mrb[0].mxu0 %v102
  %v1358 = vpop.f32.mrb[0].mxu0
  %v1359 = vadd.f32 %v330, %v1358
  %v1360 = vpop.f32.mrb[0].mxu0
  %1361 = vmatprep.mubr.f32.mxu0 %v448
  %1362 = vmatmul.mubr.f32.gmra.mrb[0].mxu0 %v104
  %v1363 = vpop.f32.mrb[0].mxu0
  %v1364 = vadd.f32 %v335, %v1363
  %v1365 = vpop.f32.mrb[0].mxu0
  %1366 = vmatprep.mubr.f32.mxu0 %v451
  %1367 = vmatmul.mubr.f32.gmra.mrb[0].mxu0 %v106
  %v1368 = vpop.f32.mrb[0].mxu0
  %v1369 = vadd.f32 %v340, %v1368
  %v1370 = vpop.f32.mrb[0].mxu0
  %1371 = vmatprep.mubr.f32.mxu0 %v454
  %1372 = vmatmul.mubr.f32.gmra.mrb[0].mxu0 %v108
  %v1373 = vpop.f32.mrb[0].mxu0
  %v1374 = vadd.f32 %v345, %v1373
  %v1375 = vpop.f32.mrb[0].mxu0
  %1376 = vdwg.mxu0
  %v1377 = vmax.f32 %v1199, 0.0
  %v1378 = vmax.f32 %v1204, 0.0
  %v1379 = vmax.f32 %v1209, 0.0
  %v1380 = vmax.f32 %v1214, 0.0
  %v1381 = vmax.f32 %v1219, 0.0
  %v1382 = vmax.f32 %v1224, 0.0
  %v1383 = vmax.f32 %v1229, 0.0
  %v1384 = vmax.f32 %v1234, 0.0
  %v1385 = vmax.f32 %v1239, 0.0
  %v1386 = vmax.f32 %v1244, 0.0
  %v1387 = vmax.f32 %v1249, 0.0
  %v1388 = vmax.f32 %v1254, 0.0
  %v1389 = vmax.f32 %v1259, 0.0
  %v1390 = vmax.f32 %v1264, 0.0
  %v1391 = vmax.f32 %v1269, 0.0
  %v1392 = vmax.f32 %v1274, 0.0
  %v1393 = vmax.f32 %v1279, 0.0
  %v1394 = vmax.f32 %v1284, 0.0
  %v1395 = vmax.f32 %v1289, 0.0
  %v1396 = vmax.f32 %v1294, 0.0
  %v1397 = vmax.f32 %v1299, 0.0
  %v1398 = vmax.f32 %v1304, 0.0
  %v1399 = vmax.f32 %v1309, 0.0
  %v1400 = vmax.f32 %v1314, 0.0
  %v1401 = vmax.f32 %v1319, 0.0
  %v1402 = vmax.f32 %v1324, 0.0
  %v1403 = vmax.f32 %v1329, 0.0
  %v1404 = vmax.f32 %v1334, 0.0
  %v1405 = vmax.f32 %v1339, 0.0
  %v1406 = vmax.f32 %v1344, 0.0
  %v1407 = vmax.f32 %v1349, 0.0
  %v1408 = vmax.f32 %v1354, 0.0
  %v1409 = vmax.f32 %v1359, 0.0
  %v1410 = vmax.f32 %v1364, 0.0
  %v1411 = vmax.f32 %v1369, 0.0
  %v1412 = vmax.f32 %v1374, 0.0
  %v1413 = vmax.f32 %v1377, %v1395
  %v1414 = vmax.f32 %v1378, %v1396
  %v1415 = vmax.f32 %v1379, %v1397
  %v1416 = vmax.f32 %v1380, %v1398
  %v1417 = vmax.f32 %v1381, %v1399
  %v1418 = vmax.f32 %v1382, %v1400
  %v1419 = vmax.f32 %v1383, %v1401
  %v1420 = vmax.f32 %v1384, %v1402
  %v1421 = vmax.f32 %v1385, %v1403
  %v1422 = vmax.f32 %v1386, %v1404
  %v1423 = vmax.f32 %v1387, %v1405
  %v1424 = vmax.f32 %v1388, %v1406
  %v1425 = vmax.f32 %v1389, %v1407
  %v1426 = vmax.f32 %v1390, %v1408
  %v1427 = vmax.f32 %v1391, %v1409
  %v1428 = vmax.f32 %v1392, %v1410
  %v1429 = vmax.f32 %v1393, %v1411
  %v1430 = vmax.f32 %v1394, %v1412
  %v1431 = vmax.f32 %v1413, %v1422
  %v1432 = vmax.f32 %v1414, %v1423
  %v1433 = vmax.f32 %v1415, %v1424
  %v1434 = vmax.f32 %v1416, %v1425
  %v1435 = vmax.f32 %v1417, %v1426
  %v1436 = vmax.f32 %v1418, %v1427
  %v1437 = vmax.f32 %v1419, %v1428
  %v1438 = vmax.f32 %v1420, %v1429
  %v1439 = vmax.f32 %v1421, %v1430
  %1440 = vst [vmem:[#allocation2 + $0x90] sm:$0xff] %v1431
  %1441 = vst [vmem:[#allocation2 + $0x98] sm:$0xff] %v1432
  %1442 = vst [vmem:[#allocation2 + $0xa0] sm:$0xff] %v1433
  %1443 = vst [vmem:[#allocation2 + $0xa8] sm:$0xff] %v1434
  %1444 = vst [vmem:[#allocation2 + $0xb0] sm:$0xff] %v1435
  %1445 = vst [vmem:[#allocation2 + $0xb8] sm:$0xff] %v1436
  %1446 = vst [vmem:[#allocation2 + $0xc0] sm:$0xff] %v1437
  %1447 = vst [vmem:[#allocation2 + $0xc8] sm:$0xff] %v1438
  %1448 = vst [vmem:[#allocation2 + $0xd0] sm:$0xff] %v1439
  %v1449 = vld [vmem:[%s0 + $0xa8] sm:$0xff]
  %v1450 = vld [vmem:[%s0 + $0xb0] sm:$0xff]
  %v1451 = vld [vmem:[%s0 + $0xb8] sm:$0xff]
  %v1452 = vld [vmem:[%s0 + $0xc0] sm:$0xff]
  %v1453 = vld [vmem:[%s0 + $0xc8] sm:$0xff]
  %v1454 = vld [vmem:[%s0 + $0xd0] sm:$0xff]
  %v1455 = vld [vmem:[%s0 + $0xd8] sm:$0xff]
  %v1456 = vld [vmem:[%s0 + $0xe0] sm:$0xff]
  %v1457 = vld [vmem:[%s0 + $0xe8] sm:$0xff]
  %v1458 = vld [vmem:[%s0 + $0xf0] sm:$0xff]
  %v1459 = vld [vmem:[%s0 + $0xf8] sm:$0xff]
  %v1460 = vld [vmem:[%s0 + $0x100] sm:$0xff]
  %v1461 = vld [vmem:[%s0 + $0x108] sm:$0xff]
  %v1462 = vld [vmem:[%s0 + $0x110] sm:$0xff]
  %v1463 = vld [vmem:[%s0 + $0x118] sm:$0xff]
  %v1464 = vld [vmem:[%s0 + $0x120] sm:$0xff]
  %v1465 = vld [vmem:[%s0 + $0x128] sm:$0xff]
  %v1466 = vld [vmem:[%s0 + $0x130] sm:$0xff]
  %v1467 = vld [vmem:[%s0 + $0x138] sm:$0xff]
  %v1468 = vld [vmem:[%s0 + $0x140] sm:$0xff]
  %v1469 = vld [vmem:[%s0 + $0x148] sm:$0xff]
  %1470 = vmatprep.subr.mxu0 0.0
  %1471 = vmatpush1.msra.mxu0 %v1449
  %1472 = vmatprep.subr.mxu0 0.0
  %1473 = vmatpush1.msra.mxu0 %v1450
  %1474 = vmatprep.subr.mxu0 0.0
  %1475 = vmatpush1.msra.mxu0 %v1451
  %1476 = vmatprep.subr.mxu0 0.0
  %1477 = vmatpush1.msra.mxu0 %v1452
  %1478 = vmatprep.subr.mxu0 0.0
  %1479 = vmatpush1.msra.mxu0 %v1453
  %1480 = vmatprep.subr.mxu0 0.0
  %1481 = vmatpush1.msra.mxu0 %v1454
  %1482 = vmatprep.subr.mxu0 0.0
  %1483 = vmatpush1.msra.mxu0 %v1455
  %1484 = vmatprep.subr.mxu0 0.0
  %1485 = vmatpush1.msra.mxu0 %v1456
  %1486 = vmatprep.subr.mxu0 0.0
  %1487 = vmatpush1.msra.mxu0 %v1457
  %1488 = vmatprep.subr.mxu0 0.0
  %1489 = vmatpush1.msra.mxu0 %v1458
  %1490 = vmatprep.subr.mxu0 0.0
  %1491 = vmatpush1.msra.mxu0 %v1459
  %1492 = vmatprep.subr.mxu0 0.0
  %1493 = vmatpush1.msra.mxu0 %v1460
  %1494 = vmatprep.subr.mxu0 0.0
  %1495 = vmatpush1.msra.mxu0 %v1461
  %1496 = vmatprep.subr.mxu0 0.0
  %1497 = vmatpush1.msra.mxu0 %v1462
  %1498 = vmatprep.subr.mxu0 0.0
  %1499 = vmatpush1.msra.mxu0 %v1463
  %1500 = vmatprep.subr.mxu0 0.0
  %1501 = vmatpush1.msra.mxu0 %v1464
  %1502 = vmatprep.subr.mxu0 0.0
  %1503 = vmatpush1.msra.mxu0 %v1465
  %1504 = vmatprep.subr.mxu0 0.0
  %1505 = vmatpush1.msra.mxu0 %v1466
  %1506 = vmatprep.subr.mxu0 0.0
  %1507 = vmatpush1.msra.mxu0 %v1467
  %1508 = vmatprep.subr.mxu0 0.0
  %1509 = vmatpush1.msra.mxu0 %v1468
  %1510 = vmatprep.subr.mxu0 0.0
  %1511 = vmatpush1.msra.mxu0 %v1469
  %1512 = vmatprep.subr.mxu0 0.0
  %1513 = vmatpush1.msra.mxu0 0.0
  %1514 = vmatprep.subr.mxu0 0.0
  %1515 = vmatpush1.msra.mxu0 0.0
  %1516 = vmatprep.subr.mxu0 0.0
  %1517 = vmatpush1.msra.mxu0 0.0
  %1518 = vmatprep.subr.mxu0 0.0
  %1519 = vmatpush1.msra.mxu0 0.0
  %1520 = vmatprep.subr.mxu0 0.0
  %1521 = vmatpush1.msra.mxu0 0.0
  %1522 = vmatprep.subr.mxu0 0.0
  %1523 = vmatpush1.msra.mxu0 0.0
  %1524 = vmatprep.subr.mxu0 0.0
  %1525 = vmatpush1.msra.mxu0 0.0
  %1526 = vmatprep.subr.mxu0 0.0
  %1527 = vmatpush1.msra.mxu0 0.0
  %1528 = vmatprep.subr.mxu0 0.0
  %1529 = vmatpush1.msra.mxu0 0.0
  %1530 = vmatprep.subr.mxu0 0.0
  %1531 = vmatpush1.msra.mxu0 0.0
  %1532 = vmatprep.subr.mxu0 0.0
  %1533 = vmatpush1.msra.mxu0 0.0
  %1534 = vmatprep.mubr.f32.mxu0 %v349
  %1535 = vmatmul.mubr.f32.gmra.mrb[0].mxu0 %v38
  %v1536 = vpop.f32.mrb[0].mxu0
  %v1537 = vadd.f32 %v170, %v1536
  %v1538 = vpop.f32.mrb[0].mxu0
  %1539 = vmatprep.mubr.f32.mxu0 %v352
  %1540 = vmatmul.mubr.f32.gmra.mrb[0].mxu0 %v40
  %v1541 = vpop.f32.mrb[0].mxu0
  %v1542 = vadd.f32 %v175, %v1541
  %v1543 = vpop.f32.mrb[0].mxu0
  %1544 = vmatprep.mubr.f32.mxu0 %v355
  %1545 = vmatmul.mubr.f32.gmra.mrb[0].mxu0 %v42
  %v1546 = vpop.f32.mrb[0].mxu0
  %v1547 = vadd.f32 %v180, %v1546
  %v1548 = vpop.f32.mrb[0].mxu0
  %1549 = vmatprep.mubr.f32.mxu0 %v358
  %1550 = vmatmul.mubr.f32.gmra.mrb[0].mxu0 %v44
  %v1551 = vpop.f32.mrb[0].mxu0
  %v1552 = vadd.f32 %v185, %v1551
  %v1553 = vpop.f32.mrb[0].mxu0
  %1554 = vmatprep.mubr.f32.mxu0 %v361
  %1555 = vmatmul.mubr.f32.gmra.mrb[0].mxu0 %v46
  %v1556 = vpop.f32.mrb[0].mxu0
  %v1557 = vadd.f32 %v190, %v1556
  %v1558 = vpop.f32.mrb[0].mxu0
  %1559 = vmatprep.mubr.f32.mxu0 %v364
  %1560 = vmatmul.mubr.f32.gmra.mrb[0].mxu0 %v48
  %v1561 = vpop.f32.mrb[0].mxu0
  %v1562 = vadd.f32 %v195, %v1561
  %v1563 = vpop.f32.mrb[0].mxu0
  %1564 = vmatprep.mubr.f32.mxu0 %v367
  %1565 = vmatmul.mubr.f32.gmra.mrb[0].mxu0 %v50
  %v1566 = vpop.f32.mrb[0].mxu0
  %v1567 = vadd.f32 %v200, %v1566
  %v1568 = vpop.f32.mrb[0].mxu0
  %1569 = vmatprep.mubr.f32.mxu0 %v370
  %1570 = vmatmul.mubr.f32.gmra.mrb[0].mxu0 %v52
  %v1571 = vpop.f32.mrb[0].mxu0
  %v1572 = vadd.f32 %v205, %v1571
  %v1573 = vpop.f32.mrb[0].mxu0
  %1574 = vmatprep.mubr.f32.mxu0 %v373
  %1575 = vmatmul.mubr.f32.gmra.mrb[0].mxu0 %v54
  %v1576 = vpop.f32.mrb[0].mxu0
  %v1577 = vadd.f32 %v210, %v1576
  %v1578 = vpop.f32.mrb[0].mxu0
  %1579 = vmatprep.mubr.f32.mxu0 %v376
  %1580 = vmatmul.mubr.f32.gmra.mrb[0].mxu0 %v56
  %v1581 = vpop.f32.mrb[0].mxu0
  %v1582 = vadd.f32 %v215, %v1581
  %v1583 = vpop.f32.mrb[0].mxu0
  %1584 = vmatprep.mubr.f32.mxu0 %v379
  %1585 = vmatmul.mubr.f32.gmra.mrb[0].mxu0 %v58
  %v1586 = vpop.f32.mrb[0].mxu0
  %v1587 = vadd.f32 %v220, %v1586
  %v1588 = vpop.f32.mrb[0].mxu0
  %1589 = vmatprep.mubr.f32.mxu0 %v382
  %1590 = vmatmul.mubr.f32.gmra.mrb[0].mxu0 %v60
  %v1591 = vpop.f32.mrb[0].mxu0
  %v1592 = vadd.f32 %v225, %v1591
  %v1593 = vpop.f32.mrb[0].mxu0
  %1594 = vmatprep.mubr.f32.mxu0 %v385
  %1595 = vmatmul.mubr.f32.gmra.mrb[0].mxu0 %v62
  %v1596 = vpop.f32.mrb[0].mxu0
  %v1597 = vadd.f32 %v230, %v1596
  %v1598 = vpop.f32.mrb[0].mxu0
  %1599 = vmatprep.mubr.f32.mxu0 %v388
  %1600 = vmatmul.mubr.f32.gmra.mrb[0].mxu0 %v64
  %v1601 = vpop.f32.mrb[0].mxu0
  %v1602 = vadd.f32 %v235, %v1601
  %v1603 = vpop.f32.mrb[0].mxu0
  %1604 = vmatprep.mubr.f32.mxu0 %v391
  %1605 = vmatmul.mubr.f32.gmra.mrb[0].mxu0 %v66
  %v1606 = vpop.f32.mrb[0].mxu0
  %v1607 = vadd.f32 %v240, %v1606
  %v1608 = vpop.f32.mrb[0].mxu0
  %1609 = vmatprep.mubr.f32.mxu0 %v394
  %1610 = vmatmul.mubr.f32.gmra.mrb[0].mxu0 %v68
  %v1611 = vpop.f32.mrb[0].mxu0
  %v1612 = vadd.f32 %v245, %v1611
  %v1613 = vpop.f32.mrb[0].mxu0
  %1614 = vmatprep.mubr.f32.mxu0 %v397
  %1615 = vmatmul.mubr.f32.gmra.mrb[0].mxu0 %v70
  %v1616 = vpop.f32.mrb[0].mxu0
  %v1617 = vadd.f32 %v250, %v1616
  %v1618 = vpop.f32.mrb[0].mxu0
  %1619 = vmatprep.mubr.f32.mxu0 %v400
  %1620 = vmatmul.mubr.f32.gmra.mrb[0].mxu0 %v72
  %v1621 = vpop.f32.mrb[0].mxu0
  %v1622 = vadd.f32 %v255, %v1621
  %v1623 = vpop.f32.mrb[0].mxu0
  %1624 = vmatprep.mubr.f32.mxu0 %v403
  %1625 = vmatmul.mubr.f32.gmra.mrb[0].mxu0 %v74
  %v1626 = vpop.f32.mrb[0].mxu0
  %v1627 = vadd.f32 %v260, %v1626
  %v1628 = vpop.f32.mrb[0].mxu0
  %1629 = vmatprep.mubr.f32.mxu0 %v406
  %1630 = vmatmul.mubr.f32.gmra.mrb[0].mxu0 %v76
  %v1631 = vpop.f32.mrb[0].mxu0
  %v1632 = vadd.f32 %v265, %v1631
  %v1633 = vpop.f32.mrb[0].mxu0
  %1634 = vmatprep.mubr.f32.mxu0 %v409
  %1635 = vmatmul.mubr.f32.gmra.mrb[0].mxu0 %v78
  %v1636 = vpop.f32.mrb[0].mxu0
  %v1637 = vadd.f32 %v270, %v1636
  %v1638 = vpop.f32.mrb[0].mxu0
  %1639 = vmatprep.mubr.f32.mxu0 %v412
  %1640 = vmatmul.mubr.f32.gmra.mrb[0].mxu0 %v80
  %v1641 = vpop.f32.mrb[0].mxu0
  %v1642 = vadd.f32 %v275, %v1641
  %v1643 = vpop.f32.mrb[0].mxu0
  %1644 = vmatprep.mubr.f32.mxu0 %v415
  %1645 = vmatmul.mubr.f32.gmra.mrb[0].mxu0 %v82
  %v1646 = vpop.f32.mrb[0].mxu0
  %v1647 = vadd.f32 %v280, %v1646
  %v1648 = vpop.f32.mrb[0].mxu0
  %1649 = vmatprep.mubr.f32.mxu0 %v418
  %1650 = vmatmul.mubr.f32.gmra.mrb[0].mxu0 %v84
  %v1651 = vpop.f32.mrb[0].mxu0
  %v1652 = vadd.f32 %v285, %v1651
  %v1653 = vpop.f32.mrb[0].mxu0
  %1654 = vmatprep.mubr.f32.mxu0 %v421
  %1655 = vmatmul.mubr.f32.gmra.mrb[0].mxu0 %v86
  %v1656 = vpop.f32.mrb[0].mxu0
  %v1657 = vadd.f32 %v290, %v1656
  %v1658 = vpop.f32.mrb[0].mxu0
  %1659 = vmatprep.mubr.f32.mxu0 %v424
  %1660 = vmatmul.mubr.f32.gmra.mrb[0].mxu0 %v88
  %v1661 = vpop.f32.mrb[0].mxu0
  %v1662 = vadd.f32 %v295, %v1661
  %v1663 = vpop.f32.mrb[0].mxu0
  %1664 = vmatprep.mubr.f32.mxu0 %v427
  %1665 = vmatmul.mubr.f32.gmra.mrb[0].mxu0 %v90
  %v1666 = vpop.f32.mrb[0].mxu0
  %v1667 = vadd.f32 %v300, %v1666
  %v1668 = vpop.f32.mrb[0].mxu0
  %1669 = vmatprep.mubr.f32.mxu0 %v430
  %1670 = vmatmul.mubr.f32.gmra.mrb[0].mxu0 %v92
  %v1671 = vpop.f32.mrb[0].mxu0
  %v1672 = vadd.f32 %v305, %v1671
  %v1673 = vpop.f32.mrb[0].mxu0
  %1674 = vmatprep.mubr.f32.mxu0 %v433
  %1675 = vmatmul.mubr.f32.gmra.mrb[0].mxu0 %v94
  %v1676 = vpop.f32.mrb[0].mxu0
  %v1677 = vadd.f32 %v310, %v1676
  %v1678 = vpop.f32.mrb[0].mxu0
  %1679 = vmatprep.mubr.f32.mxu0 %v436
  %1680 = vmatmul.mubr.f32.gmra.mrb[0].mxu0 %v96
  %v1681 = vpop.f32.mrb[0].mxu0
  %v1682 = vadd.f32 %v315, %v1681
  %v1683 = vpop.f32.mrb[0].mxu0
  %1684 = vmatprep.mubr.f32.mxu0 %v439
  %1685 = vmatmul.mubr.f32.gmra.mrb[0].mxu0 %v98
  %v1686 = vpop.f32.mrb[0].mxu0
  %v1687 = vadd.f32 %v320, %v1686
  %v1688 = vpop.f32.mrb[0].mxu0
  %1689 = vmatprep.mubr.f32.mxu0 %v442
  %1690 = vmatmul.mubr.f32.gmra.mrb[0].mxu0 %v100
  %v1691 = vpop.f32.mrb[0].mxu0
  %v1692 = vadd.f32 %v325, %v1691
  %v1693 = vpop.f32.mrb[0].mxu0
  %1694 = vmatprep.mubr.f32.mxu0 %v445
  %1695 = vmatmul.mubr.f32.gmra.mrb[0].mxu0 %v102
  %v1696 = vpop.f32.mrb[0].mxu0
  %v1697 = vadd.f32 %v330, %v1696
  %v1698 = vpop.f32.mrb[0].mxu0
  %1699 = vmatprep.mubr.f32.mxu0 %v448
  %1700 = vmatmul.mubr.f32.gmra.mrb[0].mxu0 %v104
  %v1701 = vpop.f32.mrb[0].mxu0
  %v1702 = vadd.f32 %v335, %v1701
  %v1703 = vpop.f32.mrb[0].mxu0
  %1704 = vmatprep.mubr.f32.mxu0 %v451
  %1705 = vmatmul.mubr.f32.gmra.mrb[0].mxu0 %v106
  %v1706 = vpop.f32.mrb[0].mxu0
  %v1707 = vadd.f32 %v340, %v1706
  %v1708 = vpop.f32.mrb[0].mxu0
  %1709 = vmatprep.mubr.f32.mxu0 %v454
  %1710 = vmatmul.mubr.f32.gmra.mrb[0].mxu0 %v108
  %v1711 = vpop.f32.mrb[0].mxu0
  %v1712 = vadd.f32 %v345, %v1711
  %v1713 = vpop.f32.mrb[0].mxu0
  %1714 = vdwg.mxu0
  %v1715 = vmax.f32 %v1537, 0.0
  %v1716 = vmax.f32 %v1542, 0.0
  %v1717 = vmax.f32 %v1547, 0.0
  %v1718 = vmax.f32 %v1552, 0.0
  %v1719 = vmax.f32 %v1557, 0.0
  %v1720 = vmax.f32 %v1562, 0.0
  %v1721 = vmax.f32 %v1567, 0.0
  %v1722 = vmax.f32 %v1572, 0.0
  %v1723 = vmax.f32 %v1577, 0.0
  %v1724 = vmax.f32 %v1582, 0.0
  %v1725 = vmax.f32 %v1587, 0.0
  %v1726 = vmax.f32 %v1592, 0.0
  %v1727 = vmax.f32 %v1597, 0.0
  %v1728 = vmax.f32 %v1602, 0.0
  %v1729 = vmax.f32 %v1607, 0.0
  %v1730 = vmax.f32 %v1612, 0.0
  %v1731 = vmax.f32 %v1617, 0.0
  %v1732 = vmax.f32 %v1622, 0.0
  %v1733 = vmax.f32 %v1627, 0.0
  %v1734 = vmax.f32 %v1632, 0.0
  %v1735 = vmax.f32 %v1637, 0.0
  %v1736 = vmax.f32 %v1642, 0.0
  %v1737 = vmax.f32 %v1647, 0.0
  %v1738 = vmax.f32 %v1652, 0.0
  %v1739 = vmax.f32 %v1657, 0.0
  %v1740 = vmax.f32 %v1662, 0.0
  %v1741 = vmax.f32 %v1667, 0.0
  %v1742 = vmax.f32 %v1672, 0.0
  %v1743 = vmax.f32 %v1677, 0.0
  %v1744 = vmax.f32 %v1682, 0.0
  %v1745 = vmax.f32 %v1687, 0.0
  %v1746 = vmax.f32 %v1692, 0.0
  %v1747 = vmax.f32 %v1697, 0.0
  %v1748 = vmax.f32 %v1702, 0.0
  %v1749 = vmax.f32 %v1707, 0.0
  %v1750 = vmax.f32 %v1712, 0.0
  %v1751 = vmax.f32 %v1715, %v1733
  %v1752 = vmax.f32 %v1716, %v1734
  %v1753 = vmax.f32 %v1717, %v1735
  %v1754 = vmax.f32 %v1718, %v1736
  %v1755 = vmax.f32 %v1719, %v1737
  %v1756 = vmax.f32 %v1720, %v1738
  %v1757 = vmax.f32 %v1721, %v1739
  %v1758 = vmax.f32 %v1722, %v1740
  %v1759 = vmax.f32 %v1723, %v1741
  %v1760 = vmax.f32 %v1724, %v1742
  %v1761 = vmax.f32 %v1725, %v1743
  %v1762 = vmax.f32 %v1726, %v1744
  %v1763 = vmax.f32 %v1727, %v1745
  %v1764 = vmax.f32 %v1728, %v1746
  %v1765 = vmax.f32 %v1729, %v1747
  %v1766 = vmax.f32 %v1730, %v1748
  %v1767 = vmax.f32 %v1731, %v1749
  %v1768 = vmax.f32 %v1732, %v1750
  %v1769 = vmax.f32 %v1751, %v1760
  %v1770 = vmax.f32 %v1752, %v1761
  %v1771 = vmax.f32 %v1753, %v1762
  %v1772 = vmax.f32 %v1754, %v1763
  %v1773 = vmax.f32 %v1755, %v1764
  %v1774 = vmax.f32 %v1756, %v1765
  %v1775 = vmax.f32 %v1757, %v1766
  %v1776 = vmax.f32 %v1758, %v1767
  %v1777 = vmax.f32 %v1759, %v1768
  %1778 = vst [vmem:[#allocation2 + $0xd8] sm:$0xff] %v1769
  %1779 = vst [vmem:[#allocation2 + $0xe0] sm:$0xff] %v1770
  %1780 = vst [vmem:[#allocation2 + $0xe8] sm:$0xff] %v1771
  %1781 = vst [vmem:[#allocation2 + $0xf0] sm:$0xff] %v1772
  %1782 = vst [vmem:[#allocation2 + $0xf8] sm:$0xff] %v1773
  %1783 = vst [vmem:[#allocation2 + $0x100] sm:$0xff] %v1774
  %1784 = vst [vmem:[#allocation2 + $0x108] sm:$0xff] %v1775
  %1785 = vst [vmem:[#allocation2 + $0x110] sm:$0xff] %v1776
  %1786 = vst [vmem:[#allocation2 + $0x118] sm:$0xff] %v1777
  %v1787 = vld [vmem:[%s0 + $0xe0] sm:$0xff]
  %v1788 = vld [vmem:[%s0 + $0xe8] sm:$0xff]
  %v1789 = vld [vmem:[%s0 + $0xf0] sm:$0xff]
  %v1790 = vld [vmem:[%s0 + $0xf8] sm:$0xff]
  %v1791 = vld [vmem:[%s0 + $0x100] sm:$0xff]
  %v1792 = vld [vmem:[%s0 + $0x108] sm:$0xff]
  %v1793 = vld [vmem:[%s0 + $0x110] sm:$0xff]
  %v1794 = vld [vmem:[%s0 + $0x118] sm:$0xff]
  %v1795 = vld [vmem:[%s0 + $0x120] sm:$0xff]
  %v1796 = vld [vmem:[%s0 + $0x128] sm:$0xff]
  %v1797 = vld [vmem:[%s0 + $0x130] sm:$0xff]
  %v1798 = vld [vmem:[%s0 + $0x138] sm:$0xff]
  %v1799 = vld [vmem:[%s0 + $0x140] sm:$0xff]
  %v1800 = vld [vmem:[%s0 + $0x148] sm:$0xff]
  %v1801 = vld [vmem:[%s0 + $0x150] sm:$0xff]
  %v1802 = vld [vmem:[%s0 + $0x158] sm:$0xff]
  %v1803 = vld [vmem:[%s0 + $0x160] sm:$0xff]
  %v1804 = vld [vmem:[%s0 + $0x168] sm:$0xff]
  %v1805 = vld [vmem:[%s0 + $0x170] sm:$0xff]
  %v1806 = vld [vmem:[%s0 + $0x178] sm:$0xff]
  %v1807 = vld [vmem:[%s0 + $0x180] sm:$0xff]
  %1808 = vmatprep.subr.mxu0 0.0
  %1809 = vmatpush1.msra.mxu0 %v1787
  %1810 = vmatprep.subr.mxu0 0.0
  %1811 = vmatpush1.msra.mxu0 %v1788
  %1812 = vmatprep.subr.mxu0 0.0
  %1813 = vmatpush1.msra.mxu0 %v1789
  %1814 = vmatprep.subr.mxu0 0.0
  %1815 = vmatpush1.msra.mxu0 %v1790
  %1816 = vmatprep.subr.mxu0 0.0
  %1817 = vmatpush1.msra.mxu0 %v1791
  %1818 = vmatprep.subr.mxu0 0.0
  %1819 = vmatpush1.msra.mxu0 %v1792
  %1820 = vmatprep.subr.mxu0 0.0
  %1821 = vmatpush1.msra.mxu0 %v1793
  %1822 = vmatprep.subr.mxu0 0.0
  %1823 = vmatpush1.msra.mxu0 %v1794
  %1824 = vmatprep.subr.mxu0 0.0
  %1825 = vmatpush1.msra.mxu0 %v1795
  %1826 = vmatprep.subr.mxu0 0.0
  %1827 = vmatpush1.msra.mxu0 %v1796
  %1828 = vmatprep.subr.mxu0 0.0
  %1829 = vmatpush1.msra.mxu0 %v1797
  %1830 = vmatprep.subr.mxu0 0.0
  %1831 = vmatpush1.msra.mxu0 %v1798
  %1832 = vmatprep.subr.mxu0 0.0
  %1833 = vmatpush1.msra.mxu0 %v1799
  %1834 = vmatprep.subr.mxu0 0.0
  %1835 = vmatpush1.msra.mxu0 %v1800
  %1836 = vmatprep.subr.mxu0 0.0
  %1837 = vmatpush1.msra.mxu0 %v1801
  %1838 = vmatprep.subr.mxu0 0.0
  %1839 = vmatpush1.msra.mxu0 %v1802
  %1840 = vmatprep.subr.mxu0 0.0
  %1841 = vmatpush1.msra.mxu0 %v1803
  %1842 = vmatprep.subr.mxu0 0.0
  %1843 = vmatpush1.msra.mxu0 %v1804
  %1844 = vmatprep.subr.mxu0 0.0
  %1845 = vmatpush1.msra.mxu0 %v1805
  %1846 = vmatprep.subr.mxu0 0.0
  %1847 = vmatpush1.msra.mxu0 %v1806
  %1848 = vmatprep.subr.mxu0 0.0
  %1849 = vmatpush1.msra.mxu0 %v1807
  %1850 = vmatprep.subr.mxu0 0.0
  %1851 = vmatpush1.msra.mxu0 0.0
  %1852 = vmatprep.subr.mxu0 0.0
  %1853 = vmatpush1.msra.mxu0 0.0
  %1854 = vmatprep.subr.mxu0 0.0
  %1855 = vmatpush1.msra.mxu0 0.0
  %1856 = vmatprep.subr.mxu0 0.0
  %1857 = vmatpush1.msra.mxu0 0.0
  %1858 = vmatprep.subr.mxu0 0.0
  %1859 = vmatpush1.msra.mxu0 0.0
  %1860 = vmatprep.subr.mxu0 0.0
  %1861 = vmatpush1.msra.mxu0 0.0
  %1862 = vmatprep.subr.mxu0 0.0
  %1863 = vmatpush1.msra.mxu0 0.0
  %1864 = vmatprep.subr.mxu0 0.0
  %1865 = vmatpush1.msra.mxu0 0.0
  %1866 = vmatprep.subr.mxu0 0.0
  %1867 = vmatpush1.msra.mxu0 0.0
  %1868 = vmatprep.subr.mxu0 0.0
  %1869 = vmatpush1.msra.mxu0 0.0
  %1870 = vmatprep.subr.mxu0 0.0
  %1871 = vmatpush1.msra.mxu0 0.0
  %1872 = vmatprep.mubr.f32.mxu0 %v349
  %1873 = vmatmul.mubr.f32.gmra.mrb[0].mxu0 %v38
  %v1874 = vpop.f32.mrb[0].mxu0
  %v1875 = vadd.f32 %v170, %v1874
  %v1876 = vpop.f32.mrb[0].mxu0
  %1877 = vmatprep.mubr.f32.mxu0 %v352
  %1878 = vmatmul.mubr.f32.gmra.mrb[0].mxu0 %v40
  %v1879 = vpop.f32.mrb[0].mxu0
  %v1880 = vadd.f32 %v175, %v1879
  %v1881 = vpop.f32.mrb[0].mxu0
  %1882 = vmatprep.mubr.f32.mxu0 %v355
  %1883 = vmatmul.mubr.f32.gmra.mrb[0].mxu0 %v42
  %v1884 = vpop.f32.mrb[0].mxu0
  %v1885 = vadd.f32 %v180, %v1884
  %v1886 = vpop.f32.mrb[0].mxu0
  %1887 = vmatprep.mubr.f32.mxu0 %v358
  %1888 = vmatmul.mubr.f32.gmra.mrb[0].mxu0 %v44
  %v1889 = vpop.f32.mrb[0].mxu0
  %v1890 = vadd.f32 %v185, %v1889
  %v1891 = vpop.f32.mrb[0].mxu0
  %1892 = vmatprep.mubr.f32.mxu0 %v361
  %1893 = vmatmul.mubr.f32.gmra.mrb[0].mxu0 %v46
  %v1894 = vpop.f32.mrb[0].mxu0
  %v1895 = vadd.f32 %v190, %v1894
  %v1896 = vpop.f32.mrb[0].mxu0
  %1897 = vmatprep.mubr.f32.mxu0 %v364
  %1898 = vmatmul.mubr.f32.gmra.mrb[0].mxu0 %v48
  %v1899 = vpop.f32.mrb[0].mxu0
  %v1900 = vadd.f32 %v195, %v1899
  %v1901 = vpop.f32.mrb[0].mxu0
  %1902 = vmatprep.mubr.f32.mxu0 %v367
  %1903 = vmatmul.mubr.f32.gmra.mrb[0].mxu0 %v50
  %v1904 = vpop.f32.mrb[0].mxu0
  %v1905 = vadd.f32 %v200, %v1904
  %v1906 = vpop.f32.mrb[0].mxu0
  %1907 = vmatprep.mubr.f32.mxu0 %v370
  %1908 = vmatmul.mubr.f32.gmra.mrb[0].mxu0 %v52
  %v1909 = vpop.f32.mrb[0].mxu0
  %v1910 = vadd.f32 %v205, %v1909
  %v1911 = vpop.f32.mrb[0].mxu0
  %1912 = vmatprep.mubr.f32.mxu0 %v373
  %1913 = vmatmul.mubr.f32.gmra.mrb[0].mxu0 %v54
  %v1914 = vpop.f32.mrb[0].mxu0
  %v1915 = vadd.f32 %v210, %v1914
  %v1916 = vpop.f32.mrb[0].mxu0
  %1917 = vmatprep.mubr.f32.mxu0 %v376
  %1918 = vmatmul.mubr.f32.gmra.mrb[0].mxu0 %v56
  %v1919 = vpop.f32.mrb[0].mxu0
  %v1920 = vadd.f32 %v215, %v1919
  %v1921 = vpop.f32.mrb[0].mxu0
  %1922 = vmatprep.mubr.f32.mxu0 %v379
  %1923 = vmatmul.mubr.f32.gmra.mrb[0].mxu0 %v58
  %v1924 = vpop.f32.mrb[0].mxu0
  %v1925 = vadd.f32 %v220, %v1924
  %v1926 = vpop.f32.mrb[0].mxu0
  %1927 = vmatprep.mubr.f32.mxu0 %v382
  %1928 = vmatmul.mubr.f32.gmra.mrb[0].mxu0 %v60
  %v1929 = vpop.f32.mrb[0].mxu0
  %v1930 = vadd.f32 %v225, %v1929
  %v1931 = vpop.f32.mrb[0].mxu0
  %1932 = vmatprep.mubr.f32.mxu0 %v385
  %1933 = vmatmul.mubr.f32.gmra.mrb[0].mxu0 %v62
  %v1934 = vpop.f32.mrb[0].mxu0
  %v1935 = vadd.f32 %v230, %v1934
  %v1936 = vpop.f32.mrb[0].mxu0
  %1937 = vmatprep.mubr.f32.mxu0 %v388
  %1938 = vmatmul.mubr.f32.gmra.mrb[0].mxu0 %v64
  %v1939 = vpop.f32.mrb[0].mxu0
  %v1940 = vadd.f32 %v235, %v1939
  %v1941 = vpop.f32.mrb[0].mxu0
  %1942 = vmatprep.mubr.f32.mxu0 %v391
  %1943 = vmatmul.mubr.f32.gmra.mrb[0].mxu0 %v66
  %v1944 = vpop.f32.mrb[0].mxu0
  %v1945 = vadd.f32 %v240, %v1944
  %v1946 = vpop.f32.mrb[0].mxu0
  %1947 = vmatprep.mubr.f32.mxu0 %v394
  %1948 = vmatmul.mubr.f32.gmra.mrb[0].mxu0 %v68
  %v1949 = vpop.f32.mrb[0].mxu0
  %v1950 = vadd.f32 %v245, %v1949
  %v1951 = vpop.f32.mrb[0].mxu0
  %1952 = vmatprep.mubr.f32.mxu0 %v397
  %1953 = vmatmul.mubr.f32.gmra.mrb[0].mxu0 %v70
  %v1954 = vpop.f32.mrb[0].mxu0
  %v1955 = vadd.f32 %v250, %v1954
  %v1956 = vpop.f32.mrb[0].mxu0
  %1957 = vmatprep.mubr.f32.mxu0 %v400
  %1958 = vmatmul.mubr.f32.gmra.mrb[0].mxu0 %v72
  %v1959 = vpop.f32.mrb[0].mxu0
  %v1960 = vadd.f32 %v255, %v1959
  %v1961 = vpop.f32.mrb[0].mxu0
  %1962 = vmatprep.mubr.f32.mxu0 %v403
  %1963 = vmatmul.mubr.f32.gmra.mrb[0].mxu0 %v74
  %v1964 = vpop.f32.mrb[0].mxu0
  %v1965 = vadd.f32 %v260, %v1964
  %v1966 = vpop.f32.mrb[0].mxu0
  %1967 = vmatprep.mubr.f32.mxu0 %v406
  %1968 = vmatmul.mubr.f32.gmra.mrb[0].mxu0 %v76
  %v1969 = vpop.f32.mrb[0].mxu0
  %v1970 = vadd.f32 %v265, %v1969
  %v1971 = vpop.f32.mrb[0].mxu0
  %1972 = vmatprep.mubr.f32.mxu0 %v409
  %1973 = vmatmul.mubr.f32.gmra.mrb[0].mxu0 %v78
  %v1974 = vpop.f32.mrb[0].mxu0
  %v1975 = vadd.f32 %v270, %v1974
  %v1976 = vpop.f32.mrb[0].mxu0
  %1977 = vmatprep.mubr.f32.mxu0 %v412
  %1978 = vmatmul.mubr.f32.gmra.mrb[0].mxu0 %v80
  %v1979 = vpop.f32.mrb[0].mxu0
  %v1980 = vadd.f32 %v275, %v1979
  %v1981 = vpop.f32.mrb[0].mxu0
  %1982 = vmatprep.mubr.f32.mxu0 %v415
  %1983 = vmatmul.mubr.f32.gmra.mrb[0].mxu0 %v82
  %v1984 = vpop.f32.mrb[0].mxu0
  %v1985 = vadd.f32 %v280, %v1984
  %v1986 = vpop.f32.mrb[0].mxu0
  %1987 = vmatprep.mubr.f32.mxu0 %v418
  %1988 = vmatmul.mubr.f32.gmra.mrb[0].mxu0 %v84
  %v1989 = vpop.f32.mrb[0].mxu0
  %v1990 = vadd.f32 %v285, %v1989
  %v1991 = vpop.f32.mrb[0].mxu0
  %1992 = vmatprep.mubr.f32.mxu0 %v421
  %1993 = vmatmul.mubr.f32.gmra.mrb[0].mxu0 %v86
  %v1994 = vpop.f32.mrb[0].mxu0
  %v1995 = vadd.f32 %v290, %v1994
  %v1996 = vpop.f32.mrb[0].mxu0
  %1997 = vmatprep.mubr.f32.mxu0 %v424
  %1998 = vmatmul.mubr.f32.gmra.mrb[0].mxu0 %v88
  %v1999 = vpop.f32.mrb[0].mxu0
  %v2000 = vadd.f32 %v295, %v1999
  %v2001 = vpop.f32.mrb[0].mxu0
  %2002 = vmatprep.mubr.f32.mxu0 %v427
  %2003 = vmatmul.mubr.f32.gmra.mrb[0].mxu0 %v90
  %v2004 = vpop.f32.mrb[0].mxu0
  %v2005 = vadd.f32 %v300, %v2004
  %v2006 = vpop.f32.mrb[0].mxu0
  %2007 = vmatprep.mubr.f32.mxu0 %v430
  %2008 = vmatmul.mubr.f32.gmra.mrb[0].mxu0 %v92
  %v2009 = vpop.f32.mrb[0].mxu0
  %v2010 = vadd.f32 %v305, %v2009
  %v2011 = vpop.f32.mrb[0].mxu0
  %2012 = vmatprep.mubr.f32.mxu0 %v433
  %2013 = vmatmul.mubr.f32.gmra.mrb[0].mxu0 %v94
  %v2014 = vpop.f32.mrb[0].mxu0
  %v2015 = vadd.f32 %v310, %v2014
  %v2016 = vpop.f32.mrb[0].mxu0
  %2017 = vmatprep.mubr.f32.mxu0 %v436
  %2018 = vmatmul.mubr.f32.gmra.mrb[0].mxu0 %v96
  %v2019 = vpop.f32.mrb[0].mxu0
  %v2020 = vadd.f32 %v315, %v2019
  %v2021 = vpop.f32.mrb[0].mxu0
  %2022 = vmatprep.mubr.f32.mxu0 %v439
  %2023 = vmatmul.mubr.f32.gmra.mrb[0].mxu0 %v98
  %v2024 = vpop.f32.mrb[0].mxu0
  %v2025 = vadd.f32 %v320, %v2024
  %v2026 = vpop.f32.mrb[0].mxu0
  %2027 = vmatprep.mubr.f32.mxu0 %v442
  %2028 = vmatmul.mubr.f32.gmra.mrb[0].mxu0 %v100
  %v2029 = vpop.f32.mrb[0].mxu0
  %v2030 = vadd.f32 %v325, %v2029
  %v2031 = vpop.f32.mrb[0].mxu0
  %2032 = vmatprep.mubr.f32.mxu0 %v445
  %2033 = vmatmul.mubr.f32.gmra.mrb[0].mxu0 %v102
  %v2034 = vpop.f32.mrb[0].mxu0
  %v2035 = vadd.f32 %v330, %v2034
  %v2036 = vpop.f32.mrb[0].mxu0
  %2037 = vmatprep.mubr.f32.mxu0 %v448
  %2038 = vmatmul.mubr.f32.gmra.mrb[0].mxu0 %v104
  %v2039 = vpop.f32.mrb[0].mxu0
  %v2040 = vadd.f32 %v335, %v2039
  %v2041 = vpop.f32.mrb[0].mxu0
  %2042 = vmatprep.mubr.f32.mxu0 %v451
  %2043 = vmatmul.mubr.f32.gmra.mrb[0].mxu0 %v106
  %v2044 = vpop.f32.mrb[0].mxu0
  %v2045 = vadd.f32 %v340, %v2044
  %v2046 = vpop.f32.mrb[0].mxu0
  %2047 = vmatprep.mubr.f32.mxu0 %v454
  %2048 = vmatmul.mubr.f32.gmra.mrb[0].mxu0 %v108
  %v2049 = vpop.f32.mrb[0].mxu0
  %v2050 = vadd.f32 %v345, %v2049
  %v2051 = vpop.f32.mrb[0].mxu0
  %2052 = vdwg.mxu0
  %v2053 = vmax.f32 %v1875, 0.0
  %v2054 = vmax.f32 %v1880, 0.0
  %v2055 = vmax.f32 %v1885, 0.0
  %v2056 = vmax.f32 %v1890, 0.0
  %v2057 = vmax.f32 %v1895, 0.0
  %v2058 = vmax.f32 %v1900, 0.0
  %v2059 = vmax.f32 %v1905, 0.0
  %v2060 = vmax.f32 %v1910, 0.0
  %v2061 = vmax.f32 %v1915, 0.0
  %v2062 = vmax.f32 %v1920, 0.0
  %v2063 = vmax.f32 %v1925, 0.0
  %v2064 = vmax.f32 %v1930, 0.0
  %v2065 = vmax.f32 %v1935, 0.0
  %v2066 = vmax.f32 %v1940, 0.0
  %v2067 = vmax.f32 %v1945, 0.0
  %v2068 = vmax.f32 %v1950, 0.0
  %v2069 = vmax.f32 %v1955, 0.0
  %v2070 = vmax.f32 %v1960, 0.0
  %v2071 = vmax.f32 %v1965, 0.0
  %v2072 = vmax.f32 %v1970, 0.0
  %v2073 = vmax.f32 %v1975, 0.0
  %v2074 = vmax.f32 %v1980, 0.0
  %v2075 = vmax.f32 %v1985, 0.0
  %v2076 = vmax.f32 %v1990, 0.0
  %v2077 = vmax.f32 %v1995, 0.0
  %v2078 = vmax.f32 %v2000, 0.0
  %v2079 = vmax.f32 %v2005, 0.0
  %v2080 = vmax.f32 %v2010, 0.0
  %v2081 = vmax.f32 %v2015, 0.0
  %v2082 = vmax.f32 %v2020, 0.0
  %v2083 = vmax.f32 %v2025, 0.0
  %v2084 = vmax.f32 %v2030, 0.0
  %v2085 = vmax.f32 %v2035, 0.0
  %v2086 = vmax.f32 %v2040, 0.0
  %v2087 = vmax.f32 %v2045, 0.0
  %v2088 = vmax.f32 %v2050, 0.0
  %v2089 = vmax.f32 %v2053, %v2071
  %v2090 = vmax.f32 %v2054, %v2072
  %v2091 = vmax.f32 %v2055, %v2073
  %v2092 = vmax.f32 %v2056, %v2074
  %v2093 = vmax.f32 %v2057, %v2075
  %v2094 = vmax.f32 %v2058, %v2076
  %v2095 = vmax.f32 %v2059, %v2077
  %v2096 = vmax.f32 %v2060, %v2078
  %v2097 = vmax.f32 %v2061, %v2079
  %v2098 = vmax.f32 %v2062, %v2080
  %v2099 = vmax.f32 %v2063, %v2081
  %v2100 = vmax.f32 %v2064, %v2082
  %v2101 = vmax.f32 %v2065, %v2083
  %v2102 = vmax.f32 %v2066, %v2084
  %v2103 = vmax.f32 %v2067, %v2085
  %v2104 = vmax.f32 %v2068, %v2086
  %v2105 = vmax.f32 %v2069, %v2087
  %v2106 = vmax.f32 %v2070, %v2088
  %v2107 = vmax.f32 %v2089, %v2098
  %v2108 = vmax.f32 %v2090, %v2099
  %v2109 = vmax.f32 %v2091, %v2100
  %v2110 = vmax.f32 %v2092, %v2101
  %v2111 = vmax.f32 %v2093, %v2102
  %v2112 = vmax.f32 %v2094, %v2103
  %v2113 = vmax.f32 %v2095, %v2104
  %v2114 = vmax.f32 %v2096, %v2105
  %v2115 = vmax.f32 %v2097, %v2106
  %2116 = vst [vmem:[#allocation2 + $0x120] sm:$0xff] %v2107
  %2117 = vst [vmem:[#allocation2 + $0x128] sm:$0xff] %v2108
  %2118 = vst [vmem:[#allocation2 + $0x130] sm:$0xff] %v2109
  %2119 = vst [vmem:[#allocation2 + $0x138] sm:$0xff] %v2110
  %2120 = vst [vmem:[#allocation2 + $0x140] sm:$0xff] %v2111
  %2121 = vst [vmem:[#allocation2 + $0x148] sm:$0xff] %v2112
  %2122 = vst [vmem:[#allocation2 + $0x150] sm:$0xff] %v2113
  %2123 = vst [vmem:[#allocation2 + $0x158] sm:$0xff] %v2114
  %2124 = vst [vmem:[#allocation2 + $0x160] sm:$0xff] %v2115
  %v2125 = vld [vmem:[%s0 + $0x118] sm:$0xff]
  %v2126 = vld [vmem:[%s0 + $0x120] sm:$0xff]
  %v2127 = vld [vmem:[%s0 + $0x128] sm:$0xff]
  %v2128 = vld [vmem:[%s0 + $0x130] sm:$0xff]
  %v2129 = vld [vmem:[%s0 + $0x138] sm:$0xff]
  %v2130 = vld [vmem:[%s0 + $0x140] sm:$0xff]
  %v2131 = vld [vmem:[%s0 + $0x148] sm:$0xff]
  %v2132 = vld [vmem:[%s0 + $0x150] sm:$0xff]
  %v2133 = vld [vmem:[%s0 + $0x158] sm:$0xff]
  %v2134 = vld [vmem:[%s0 + $0x160] sm:$0xff]
  %v2135 = vld [vmem:[%s0 + $0x168] sm:$0xff]
  %v2136 = vld [vmem:[%s0 + $0x170] sm:$0xff]
  %v2137 = vld [vmem:[%s0 + $0x178] sm:$0xff]
  %v2138 = vld [vmem:[%s0 + $0x180] sm:$0xff]
  %v2139 = vld [vmem:[%s0 + $0x188] sm:$0xff]
  %v2140 = vld [vmem:[%s0 + $0x190] sm:$0xff]
  %v2141 = vld [vmem:[%s0 + $0x198] sm:$0xff]
  %v2142 = vld [vmem:[%s0 + $0x1a0] sm:$0xff]
  %v2143 = vld [vmem:[%s0 + $0x1a8] sm:$0xff]
  %v2144 = vld [vmem:[%s0 + $0x1b0] sm:$0xff]
  %v2145 = vld [vmem:[%s0 + $0x1b8] sm:$0xff]
  %2146 = vmatprep.subr.mxu0 0.0
  %2147 = vmatpush1.msra.mxu0 %v2125
  %2148 = vmatprep.subr.mxu0 0.0
  %2149 = vmatpush1.msra.mxu0 %v2126
  %2150 = vmatprep.subr.mxu0 0.0
  %2151 = vmatpush1.msra.mxu0 %v2127
  %2152 = vmatprep.subr.mxu0 0.0
  %2153 = vmatpush1.msra.mxu0 %v2128
  %2154 = vmatprep.subr.mxu0 0.0
  %2155 = vmatpush1.msra.mxu0 %v2129
  %2156 = vmatprep.subr.mxu0 0.0
  %2157 = vmatpush1.msra.mxu0 %v2130
  %2158 = vmatprep.subr.mxu0 0.0
  %2159 = vmatpush1.msra.mxu0 %v2131
  %2160 = vmatprep.subr.mxu0 0.0
  %2161 = vmatpush1.msra.mxu0 %v2132
  %2162 = vmatprep.subr.mxu0 0.0
  %2163 = vmatpush1.msra.mxu0 %v2133
  %2164 = vmatprep.subr.mxu0 0.0
  %2165 = vmatpush1.msra.mxu0 %v2134
  %2166 = vmatprep.subr.mxu0 0.0
  %2167 = vmatpush1.msra.mxu0 %v2135
  %2168 = vmatprep.subr.mxu0 0.0
  %2169 = vmatpush1.msra.mxu0 %v2136
  %2170 = vmatprep.subr.mxu0 0.0
  %2171 = vmatpush1.msra.mxu0 %v2137
  %2172 = vmatprep.subr.mxu0 0.0
  %2173 = vmatpush1.msra.mxu0 %v2138
  %2174 = vmatprep.subr.mxu0 0.0
  %2175 = vmatpush1.msra.mxu0 %v2139
  %2176 = vmatprep.subr.mxu0 0.0
  %2177 = vmatpush1.msra.mxu0 %v2140
  %2178 = vmatprep.subr.mxu0 0.0
  %2179 = vmatpush1.msra.mxu0 %v2141
  %2180 = vmatprep.subr.mxu0 0.0
  %2181 = vmatpush1.msra.mxu0 %v2142
  %2182 = vmatprep.subr.mxu0 0.0
  %2183 = vmatpush1.msra.mxu0 %v2143
  %2184 = vmatprep.subr.mxu0 0.0
  %2185 = vmatpush1.msra.mxu0 %v2144
  %2186 = vmatprep.subr.mxu0 0.0
  %2187 = vmatpush1.msra.mxu0 %v2145
  %2188 = vmatprep.subr.mxu0 0.0
  %2189 = vmatpush1.msra.mxu0 0.0
  %2190 = vmatprep.subr.mxu0 0.0
  %2191 = vmatpush1.msra.mxu0 0.0
  %2192 = vmatprep.subr.mxu0 0.0
  %2193 = vmatpush1.msra.mxu0 0.0
  %2194 = vmatprep.subr.mxu0 0.0
  %2195 = vmatpush1.msra.mxu0 0.0
  %2196 = vmatprep.subr.mxu0 0.0
  %2197 = vmatpush1.msra.mxu0 0.0
  %2198 = vmatprep.subr.mxu0 0.0
  %2199 = vmatpush1.msra.mxu0 0.0
  %2200 = vmatprep.subr.mxu0 0.0
  %2201 = vmatpush1.msra.mxu0 0.0
  %2202 = vmatprep.subr.mxu0 0.0
  %2203 = vmatpush1.msra.mxu0 0.0
  %2204 = vmatprep.subr.mxu0 0.0
  %2205 = vmatpush1.msra.mxu0 0.0
  %2206 = vmatprep.subr.mxu0 0.0
  %2207 = vmatpush1.msra.mxu0 0.0
  %2208 = vmatprep.subr.mxu0 0.0
  %2209 = vmatpush1.msra.mxu0 0.0
  %2210 = vmatprep.mubr.f32.mxu0 %v349
  %2211 = vmatmul.mubr.f32.gmra.mrb[0].mxu0 %v38
  %v2212 = vpop.f32.mrb[0].mxu0
  %v2213 = vadd.f32 %v170, %v2212
  %v2214 = vpop.f32.mrb[0].mxu0
  %2215 = vmatprep.mubr.f32.mxu0 %v352
  %2216 = vmatmul.mubr.f32.gmra.mrb[0].mxu0 %v40
  %v2217 = vpop.f32.mrb[0].mxu0
  %v2218 = vadd.f32 %v175, %v2217
  %v2219 = vpop.f32.mrb[0].mxu0
  %2220 = vmatprep.mubr.f32.mxu0 %v355
  %2221 = vmatmul.mubr.f32.gmra.mrb[0].mxu0 %v42
  %v2222 = vpop.f32.mrb[0].mxu0
  %v2223 = vadd.f32 %v180, %v2222
  %v2224 = vpop.f32.mrb[0].mxu0
  %2225 = vmatprep.mubr.f32.mxu0 %v358
  %2226 = vmatmul.mubr.f32.gmra.mrb[0].mxu0 %v44
  %v2227 = vpop.f32.mrb[0].mxu0
  %v2228 = vadd.f32 %v185, %v2227
  %v2229 = vpop.f32.mrb[0].mxu0
  %2230 = vmatprep.mubr.f32.mxu0 %v361
  %2231 = vmatmul.mubr.f32.gmra.mrb[0].mxu0 %v46
  %v2232 = vpop.f32.mrb[0].mxu0
  %v2233 = vadd.f32 %v190, %v2232
  %v2234 = vpop.f32.mrb[0].mxu0
  %2235 = vmatprep.mubr.f32.mxu0 %v364
  %2236 = vmatmul.mubr.f32.gmra.mrb[0].mxu0 %v48
  %v2237 = vpop.f32.mrb[0].mxu0
  %v2238 = vadd.f32 %v195, %v2237
  %v2239 = vpop.f32.mrb[0].mxu0
  %2240 = vmatprep.mubr.f32.mxu0 %v367
  %2241 = vmatmul.mubr.f32.gmra.mrb[0].mxu0 %v50
  %v2242 = vpop.f32.mrb[0].mxu0
  %v2243 = vadd.f32 %v200, %v2242
  %v2244 = vpop.f32.mrb[0].mxu0
  %2245 = vmatprep.mubr.f32.mxu0 %v370
  %2246 = vmatmul.mubr.f32.gmra.mrb[0].mxu0 %v52
  %v2247 = vpop.f32.mrb[0].mxu0
  %v2248 = vadd.f32 %v205, %v2247
  %v2249 = vpop.f32.mrb[0].mxu0
  %2250 = vmatprep.mubr.f32.mxu0 %v373
  %2251 = vmatmul.mubr.f32.gmra.mrb[0].mxu0 %v54
  %v2252 = vpop.f32.mrb[0].mxu0
  %v2253 = vadd.f32 %v210, %v2252
  %v2254 = vpop.f32.mrb[0].mxu0
  %2255 = vmatprep.mubr.f32.mxu0 %v376
  %2256 = vmatmul.mubr.f32.gmra.mrb[0].mxu0 %v56
  %v2257 = vpop.f32.mrb[0].mxu0
  %v2258 = vadd.f32 %v215, %v2257
  %v2259 = vpop.f32.mrb[0].mxu0
  %2260 = vmatprep.mubr.f32.mxu0 %v379
  %2261 = vmatmul.mubr.f32.gmra.mrb[0].mxu0 %v58
  %v2262 = vpop.f32.mrb[0].mxu0
  %v2263 = vadd.f32 %v220, %v2262
  %v2264 = vpop.f32.mrb[0].mxu0
  %2265 = vmatprep.mubr.f32.mxu0 %v382
  %2266 = vmatmul.mubr.f32.gmra.mrb[0].mxu0 %v60
  %v2267 = vpop.f32.mrb[0].mxu0
  %v2268 = vadd.f32 %v225, %v2267
  %v2269 = vpop.f32.mrb[0].mxu0
  %2270 = vmatprep.mubr.f32.mxu0 %v385
  %2271 = vmatmul.mubr.f32.gmra.mrb[0].mxu0 %v62
  %v2272 = vpop.f32.mrb[0].mxu0
  %v2273 = vadd.f32 %v230, %v2272
  %v2274 = vpop.f32.mrb[0].mxu0
  %2275 = vmatprep.mubr.f32.mxu0 %v388
  %2276 = vmatmul.mubr.f32.gmra.mrb[0].mxu0 %v64
  %v2277 = vpop.f32.mrb[0].mxu0
  %v2278 = vadd.f32 %v235, %v2277
  %v2279 = vpop.f32.mrb[0].mxu0
  %2280 = vmatprep.mubr.f32.mxu0 %v391
  %2281 = vmatmul.mubr.f32.gmra.mrb[0].mxu0 %v66
  %v2282 = vpop.f32.mrb[0].mxu0
  %v2283 = vadd.f32 %v240, %v2282
  %v2284 = vpop.f32.mrb[0].mxu0
  %2285 = vmatprep.mubr.f32.mxu0 %v394
  %2286 = vmatmul.mubr.f32.gmra.mrb[0].mxu0 %v68
  %v2287 = vpop.f32.mrb[0].mxu0
  %v2288 = vadd.f32 %v245, %v2287
  %v2289 = vpop.f32.mrb[0].mxu0
  %2290 = vmatprep.mubr.f32.mxu0 %v397
  %2291 = vmatmul.mubr.f32.gmra.mrb[0].mxu0 %v70
  %v2292 = vpop.f32.mrb[0].mxu0
  %v2293 = vadd.f32 %v250, %v2292
  %v2294 = vpop.f32.mrb[0].mxu0
  %2295 = vmatprep.mubr.f32.mxu0 %v400
  %2296 = vmatmul.mubr.f32.gmra.mrb[0].mxu0 %v72
  %v2297 = vpop.f32.mrb[0].mxu0
  %v2298 = vadd.f32 %v255, %v2297
  %v2299 = vpop.f32.mrb[0].mxu0
  %2300 = vmatprep.mubr.f32.mxu0 %v403
  %2301 = vmatmul.mubr.f32.gmra.mrb[0].mxu0 %v74
  %v2302 = vpop.f32.mrb[0].mxu0
  %v2303 = vadd.f32 %v260, %v2302
  %v2304 = vpop.f32.mrb[0].mxu0
  %2305 = vmatprep.mubr.f32.mxu0 %v406
  %2306 = vmatmul.mubr.f32.gmra.mrb[0].mxu0 %v76
  %v2307 = vpop.f32.mrb[0].mxu0
  %v2308 = vadd.f32 %v265, %v2307
  %v2309 = vpop.f32.mrb[0].mxu0
  %2310 = vmatprep.mubr.f32.mxu0 %v409
  %2311 = vmatmul.mubr.f32.gmra.mrb[0].mxu0 %v78
  %v2312 = vpop.f32.mrb[0].mxu0
  %v2313 = vadd.f32 %v270, %v2312
  %v2314 = vpop.f32.mrb[0].mxu0
  %2315 = vmatprep.mubr.f32.mxu0 %v412
  %2316 = vmatmul.mubr.f32.gmra.mrb[0].mxu0 %v80
  %v2317 = vpop.f32.mrb[0].mxu0
  %v2318 = vadd.f32 %v275, %v2317
  %v2319 = vpop.f32.mrb[0].mxu0
  %2320 = vmatprep.mubr.f32.mxu0 %v415
  %2321 = vmatmul.mubr.f32.gmra.mrb[0].mxu0 %v82
  %v2322 = vpop.f32.mrb[0].mxu0
  %v2323 = vadd.f32 %v280, %v2322
  %v2324 = vpop.f32.mrb[0].mxu0
  %2325 = vmatprep.mubr.f32.mxu0 %v418
  %2326 = vmatmul.mubr.f32.gmra.mrb[0].mxu0 %v84
  %v2327 = vpop.f32.mrb[0].mxu0
  %v2328 = vadd.f32 %v285, %v2327
  %v2329 = vpop.f32.mrb[0].mxu0
  %2330 = vmatprep.mubr.f32.mxu0 %v421
  %2331 = vmatmul.mubr.f32.gmra.mrb[0].mxu0 %v86
  %v2332 = vpop.f32.mrb[0].mxu0
  %v2333 = vadd.f32 %v290, %v2332
  %v2334 = vpop.f32.mrb[0].mxu0
  %2335 = vmatprep.mubr.f32.mxu0 %v424
  %2336 = vmatmul.mubr.f32.gmra.mrb[0].mxu0 %v88
  %v2337 = vpop.f32.mrb[0].mxu0
  %v2338 = vadd.f32 %v295, %v2337
  %v2339 = vpop.f32.mrb[0].mxu0
  %2340 = vmatprep.mubr.f32.mxu0 %v427
  %2341 = vmatmul.mubr.f32.gmra.mrb[0].mxu0 %v90
  %v2342 = vpop.f32.mrb[0].mxu0
  %v2343 = vadd.f32 %v300, %v2342
  %v2344 = vpop.f32.mrb[0].mxu0
  %2345 = vmatprep.mubr.f32.mxu0 %v430
  %2346 = vmatmul.mubr.f32.gmra.mrb[0].mxu0 %v92
  %v2347 = vpop.f32.mrb[0].mxu0
  %v2348 = vadd.f32 %v305, %v2347
  %v2349 = vpop.f32.mrb[0].mxu0
  %2350 = vmatprep.mubr.f32.mxu0 %v433
  %2351 = vmatmul.mubr.f32.gmra.mrb[0].mxu0 %v94
  %v2352 = vpop.f32.mrb[0].mxu0
  %v2353 = vadd.f32 %v310, %v2352
  %v2354 = vpop.f32.mrb[0].mxu0
  %2355 = vmatprep.mubr.f32.mxu0 %v436
  %2356 = vmatmul.mubr.f32.gmra.mrb[0].mxu0 %v96
  %v2357 = vpop.f32.mrb[0].mxu0
  %v2358 = vadd.f32 %v315, %v2357
  %v2359 = vpop.f32.mrb[0].mxu0
  %2360 = vmatprep.mubr.f32.mxu0 %v439
  %2361 = vmatmul.mubr.f32.gmra.mrb[0].mxu0 %v98
  %v2362 = vpop.f32.mrb[0].mxu0
  %v2363 = vadd.f32 %v320, %v2362
  %v2364 = vpop.f32.mrb[0].mxu0
  %2365 = vmatprep.mubr.f32.mxu0 %v442
  %2366 = vmatmul.mubr.f32.gmra.mrb[0].mxu0 %v100
  %v2367 = vpop.f32.mrb[0].mxu0
  %v2368 = vadd.f32 %v325, %v2367
  %v2369 = vpop.f32.mrb[0].mxu0
  %2370 = vmatprep.mubr.f32.mxu0 %v445
  %2371 = vmatmul.mubr.f32.gmra.mrb[0].mxu0 %v102
  %v2372 = vpop.f32.mrb[0].mxu0
  %v2373 = vadd.f32 %v330, %v2372
  %v2374 = vpop.f32.mrb[0].mxu0
  %2375 = vmatprep.mubr.f32.mxu0 %v448
  %2376 = vmatmul.mubr.f32.gmra.mrb[0].mxu0 %v104
  %v2377 = vpop.f32.mrb[0].mxu0
  %v2378 = vadd.f32 %v335, %v2377
  %v2379 = vpop.f32.mrb[0].mxu0
  %2380 = vmatprep.mubr.f32.mxu0 %v451
  %2381 = vmatmul.mubr.f32.gmra.mrb[0].mxu0 %v106
  %v2382 = vpop.f32.mrb[0].mxu0
  %v2383 = vadd.f32 %v340, %v2382
  %v2384 = vpop.f32.mrb[0].mxu0
  %2385 = vmatprep.mubr.f32.mxu0 %v454
  %2386 = vmatmul.mubr.f32.gmra.mrb[0].mxu0 %v108
  %v2387 = vpop.f32.mrb[0].mxu0
  %v2388 = vadd.f32 %v345, %v2387
  %v2389 = vpop.f32.mrb[0].mxu0
  %2390 = vdwg.mxu0
  %v2391 = vmax.f32 %v2213, 0.0
  %v2392 = vmax.f32 %v2218, 0.0
  %v2393 = vmax.f32 %v2223, 0.0
  %v2394 = vmax.f32 %v2228, 0.0
  %v2395 = vmax.f32 %v2233, 0.0
  %v2396 = vmax.f32 %v2238, 0.0
  %v2397 = vmax.f32 %v2243, 0.0
  %v2398 = vmax.f32 %v2248, 0.0
  %v2399 = vmax.f32 %v2253, 0.0
  %v2400 = vmax.f32 %v2258, 0.0
  %v2401 = vmax.f32 %v2263, 0.0
  %v2402 = vmax.f32 %v2268, 0.0
  %v2403 = vmax.f32 %v2273, 0.0
  %v2404 = vmax.f32 %v2278, 0.0
  %v2405 = vmax.f32 %v2283, 0.0
  %v2406 = vmax.f32 %v2288, 0.0
  %v2407 = vmax.f32 %v2293, 0.0
  %v2408 = vmax.f32 %v2298, 0.0
  %v2409 = vmax.f32 %v2303, 0.0
  %v2410 = vmax.f32 %v2308, 0.0
  %v2411 = vmax.f32 %v2313, 0.0
  %v2412 = vmax.f32 %v2318, 0.0
  %v2413 = vmax.f32 %v2323, 0.0
  %v2414 = vmax.f32 %v2328, 0.0
  %v2415 = vmax.f32 %v2333, 0.0
  %v2416 = vmax.f32 %v2338, 0.0
  %v2417 = vmax.f32 %v2343, 0.0
  %v2418 = vmax.f32 %v2348, 0.0
  %v2419 = vmax.f32 %v2353, 0.0
  %v2420 = vmax.f32 %v2358, 0.0
  %v2421 = vmax.f32 %v2363, 0.0
  %v2422 = vmax.f32 %v2368, 0.0
  %v2423 = vmax.f32 %v2373, 0.0
  %v2424 = vmax.f32 %v2378, 0.0
  %v2425 = vmax.f32 %v2383, 0.0
  %v2426 = vmax.f32 %v2388, 0.0
  %v2427 = vmax.f32 %v2391, %v2409
  %v2428 = vmax.f32 %v2392, %v2410
  %v2429 = vmax.f32 %v2393, %v2411
  %v2430 = vmax.f32 %v2394, %v2412
  %v2431 = vmax.f32 %v2395, %v2413
  %v2432 = vmax.f32 %v2396, %v2414
  %v2433 = vmax.f32 %v2397, %v2415
  %v2434 = vmax.f32 %v2398, %v2416
  %v2435 = vmax.f32 %v2399, %v2417
  %v2436 = vmax.f32 %v2400, %v2418
  %v2437 = vmax.f32 %v2401, %v2419
  %v2438 = vmax.f32 %v2402, %v2420
  %v2439 = vmax.f32 %v2403, %v2421
  %v2440 = vmax.f32 %v2404, %v2422
  %v2441 = vmax.f32 %v2405, %v2423
  %v2442 = vmax.f32 %v2406, %v2424
  %v2443 = vmax.f32 %v2407, %v2425
  %v2444 = vmax.f32 %v2408, %v2426
  %v2445 = vmax.f32 %v2427, %v2436
  %v2446 = vmax.f32 %v2428, %v2437
  %v2447 = vmax.f32 %v2429, %v2438
  %v2448 = vmax.f32 %v2430, %v2439
  %v2449 = vmax.f32 %v2431, %v2440
  %v2450 = vmax.f32 %v2432, %v2441
  %v2451 = vmax.f32 %v2433, %v2442
  %v2452 = vmax.f32 %v2434, %v2443
  %v2453 = vmax.f32 %v2435, %v2444
  %2454 = vst [vmem:[#allocation2 + $0x168] sm:$0xff] %v2445
  %2455 = vst [vmem:[#allocation2 + $0x170] sm:$0xff] %v2446
  %2456 = vst [vmem:[#allocation2 + $0x178] sm:$0xff] %v2447
  %2457 = vst [vmem:[#allocation2 + $0x180] sm:$0xff] %v2448
  %2458 = vst [vmem:[#allocation2 + $0x188] sm:$0xff] %v2449
  %2459 = vst [vmem:[#allocation2 + $0x190] sm:$0xff] %v2450
  %2460 = vst [vmem:[#allocation2 + $0x198] sm:$0xff] %v2451
  %2461 = vst [vmem:[#allocation2 + $0x1a0] sm:$0xff] %v2452
  %2462 = vst [vmem:[#allocation2 + $0x1a8] sm:$0xff] %v2453
  %v2463 = vld [vmem:[%s0 + $0x150] sm:$0xff]
  %v2464 = vld [vmem:[%s0 + $0x158] sm:$0xff]
  %v2465 = vld [vmem:[%s0 + $0x160] sm:$0xff]
  %v2466 = vld [vmem:[%s0 + $0x168] sm:$0xff]
  %v2467 = vld [vmem:[%s0 + $0x170] sm:$0xff]
  %v2468 = vld [vmem:[%s0 + $0x178] sm:$0xff]
  %v2469 = vld [vmem:[%s0 + $0x180] sm:$0xff]
  %v2470 = vld [vmem:[%s0 + $0x188] sm:$0xff]
  %v2471 = vld [vmem:[%s0 + $0x190] sm:$0xff]
  %v2472 = vld [vmem:[%s0 + $0x198] sm:$0xff]
  %v2473 = vld [vmem:[%s0 + $0x1a0] sm:$0xff]
  %v2474 = vld [vmem:[%s0 + $0x1a8] sm:$0xff]
  %v2475 = vld [vmem:[%s0 + $0x1b0] sm:$0xff]
  %v2476 = vld [vmem:[%s0 + $0x1b8] sm:$0xff]
  %v2477 = vld [vmem:[%s0 + $0x1c0] sm:$0xff]
  %v2478 = vld [vmem:[%s0 + $0x1c8] sm:$0xff]
  %v2479 = vld [vmem:[%s0 + $0x1d0] sm:$0xff]
  %v2480 = vld [vmem:[%s0 + $0x1d8] sm:$0xff]
  %v2481 = vld [vmem:[%s0 + $0x1e0] sm:$0xff]
  %v2482 = vld [vmem:[%s0 + $0x1e8] sm:$0xff]
  %v2483 = vld [vmem:[%s0 + $0x1f0] sm:$0xff]
  %2484 = vmatprep.subr.mxu0 0.0
  %2485 = vmatpush1.msra.mxu0 %v2463
  %2486 = vmatprep.subr.mxu0 0.0
  %2487 = vmatpush1.msra.mxu0 %v2464
  %2488 = vmatprep.subr.mxu0 0.0
  %2489 = vmatpush1.msra.mxu0 %v2465
  %2490 = vmatprep.subr.mxu0 0.0
  %2491 = vmatpush1.msra.mxu0 %v2466
  %2492 = vmatprep.subr.mxu0 0.0
  %2493 = vmatpush1.msra.mxu0 %v2467
  %2494 = vmatprep.subr.mxu0 0.0
  %2495 = vmatpush1.msra.mxu0 %v2468
  %2496 = vmatprep.subr.mxu0 0.0
  %2497 = vmatpush1.msra.mxu0 %v2469
  %2498 = vmatprep.subr.mxu0 0.0
  %2499 = vmatpush1.msra.mxu0 %v2470
  %2500 = vmatprep.subr.mxu0 0.0
  %2501 = vmatpush1.msra.mxu0 %v2471
  %2502 = vmatprep.subr.mxu0 0.0
  %2503 = vmatpush1.msra.mxu0 %v2472
  %2504 = vmatprep.subr.mxu0 0.0
  %2505 = vmatpush1.msra.mxu0 %v2473
  %2506 = vmatprep.subr.mxu0 0.0
  %2507 = vmatpush1.msra.mxu0 %v2474
  %2508 = vmatprep.subr.mxu0 0.0
  %2509 = vmatpush1.msra.mxu0 %v2475
  %2510 = vmatprep.subr.mxu0 0.0
  %2511 = vmatpush1.msra.mxu0 %v2476
  %2512 = vmatprep.subr.mxu0 0.0
  %2513 = vmatpush1.msra.mxu0 %v2477
  %2514 = vmatprep.subr.mxu0 0.0
  %2515 = vmatpush1.msra.mxu0 %v2478
  %2516 = vmatprep.subr.mxu0 0.0
  %2517 = vmatpush1.msra.mxu0 %v2479
  %2518 = vmatprep.subr.mxu0 0.0
  %2519 = vmatpush1.msra.mxu0 %v2480
  %2520 = vmatprep.subr.mxu0 0.0
  %2521 = vmatpush1.msra.mxu0 %v2481
  %2522 = vmatprep.subr.mxu0 0.0
  %2523 = vmatpush1.msra.mxu0 %v2482
  %2524 = vmatprep.subr.mxu0 0.0
  %2525 = vmatpush1.msra.mxu0 %v2483
  %2526 = vmatprep.subr.mxu0 0.0
  %2527 = vmatpush1.msra.mxu0 0.0
  %2528 = vmatprep.subr.mxu0 0.0
  %2529 = vmatpush1.msra.mxu0 0.0
  %2530 = vmatprep.subr.mxu0 0.0
  %2531 = vmatpush1.msra.mxu0 0.0
  %2532 = vmatprep.subr.mxu0 0.0
  %2533 = vmatpush1.msra.mxu0 0.0
  %2534 = vmatprep.subr.mxu0 0.0
  %2535 = vmatpush1.msra.mxu0 0.0
  %2536 = vmatprep.subr.mxu0 0.0
  %2537 = vmatpush1.msra.mxu0 0.0
  %2538 = vmatprep.subr.mxu0 0.0
  %2539 = vmatpush1.msra.mxu0 0.0
  %2540 = vmatprep.subr.mxu0 0.0
  %2541 = vmatpush1.msra.mxu0 0.0
  %2542 = vmatprep.subr.mxu0 0.0
  %2543 = vmatpush1.msra.mxu0 0.0
  %2544 = vmatprep.subr.mxu0 0.0
  %2545 = vmatpush1.msra.mxu0 0.0
  %2546 = vmatprep.subr.mxu0 0.0
  %2547 = vmatpush1.msra.mxu0 0.0
  %2548 = vmatprep.mubr.f32.mxu0 %v349
  %2549 = vmatmul.mubr.f32.gmra.mrb[0].mxu0 %v38
  %v2550 = vpop.f32.mrb[0].mxu0
  %v2551 = vadd.f32 %v170, %v2550
  %v2552 = vpop.f32.mrb[0].mxu0
  %2553 = vmatprep.mubr.f32.mxu0 %v352
  %2554 = vmatmul.mubr.f32.gmra.mrb[0].mxu0 %v40
  %v2555 = vpop.f32.mrb[0].mxu0
  %v2556 = vadd.f32 %v175, %v2555
  %v2557 = vpop.f32.mrb[0].mxu0
  %2558 = vmatprep.mubr.f32.mxu0 %v355
  %2559 = vmatmul.mubr.f32.gmra.mrb[0].mxu0 %v42
  %v2560 = vpop.f32.mrb[0].mxu0
  %v2561 = vadd.f32 %v180, %v2560
  %v2562 = vpop.f32.mrb[0].mxu0
  %2563 = vmatprep.mubr.f32.mxu0 %v358
  %2564 = vmatmul.mubr.f32.gmra.mrb[0].mxu0 %v44
  %v2565 = vpop.f32.mrb[0].mxu0
  %v2566 = vadd.f32 %v185, %v2565
  %v2567 = vpop.f32.mrb[0].mxu0
  %2568 = vmatprep.mubr.f32.mxu0 %v361
  %2569 = vmatmul.mubr.f32.gmra.mrb[0].mxu0 %v46
  %v2570 = vpop.f32.mrb[0].mxu0
  %v2571 = vadd.f32 %v190, %v2570
  %v2572 = vpop.f32.mrb[0].mxu0
  %2573 = vmatprep.mubr.f32.mxu0 %v364
  %2574 = vmatmul.mubr.f32.gmra.mrb[0].mxu0 %v48
  %v2575 = vpop.f32.mrb[0].mxu0
  %v2576 = vadd.f32 %v195, %v2575
  %v2577 = vpop.f32.mrb[0].mxu0
  %2578 = vmatprep.mubr.f32.mxu0 %v367
  %2579 = vmatmul.mubr.f32.gmra.mrb[0].mxu0 %v50
  %v2580 = vpop.f32.mrb[0].mxu0
  %v2581 = vadd.f32 %v200, %v2580
  %v2582 = vpop.f32.mrb[0].mxu0
  %2583 = vmatprep.mubr.f32.mxu0 %v370
  %2584 = vmatmul.mubr.f32.gmra.mrb[0].mxu0 %v52
  %v2585 = vpop.f32.mrb[0].mxu0
  %v2586 = vadd.f32 %v205, %v2585
  %v2587 = vpop.f32.mrb[0].mxu0
  %2588 = vmatprep.mubr.f32.mxu0 %v373
  %2589 = vmatmul.mubr.f32.gmra.mrb[0].mxu0 %v54
  %v2590 = vpop.f32.mrb[0].mxu0
  %v2591 = vadd.f32 %v210, %v2590
  %v2592 = vpop.f32.mrb[0].mxu0
  %2593 = vmatprep.mubr.f32.mxu0 %v376
  %2594 = vmatmul.mubr.f32.gmra.mrb[0].mxu0 %v56
  %v2595 = vpop.f32.mrb[0].mxu0
  %v2596 = vadd.f32 %v215, %v2595
  %v2597 = vpop.f32.mrb[0].mxu0
  %2598 = vmatprep.mubr.f32.mxu0 %v379
  %2599 = vmatmul.mubr.f32.gmra.mrb[0].mxu0 %v58
  %v2600 = vpop.f32.mrb[0].mxu0
  %v2601 = vadd.f32 %v220, %v2600
  %v2602 = vpop.f32.mrb[0].mxu0
  %2603 = vmatprep.mubr.f32.mxu0 %v382
  %2604 = vmatmul.mubr.f32.gmra.mrb[0].mxu0 %v60
  %v2605 = vpop.f32.mrb[0].mxu0
  %v2606 = vadd.f32 %v225, %v2605
  %v2607 = vpop.f32.mrb[0].mxu0
  %2608 = vmatprep.mubr.f32.mxu0 %v385
  %2609 = vmatmul.mubr.f32.gmra.mrb[0].mxu0 %v62
  %v2610 = vpop.f32.mrb[0].mxu0
  %v2611 = vadd.f32 %v230, %v2610
  %v2612 = vpop.f32.mrb[0].mxu0
  %2613 = vmatprep.mubr.f32.mxu0 %v388
  %2614 = vmatmul.mubr.f32.gmra.mrb[0].mxu0 %v64
  %v2615 = vpop.f32.mrb[0].mxu0
  %v2616 = vadd.f32 %v235, %v2615
  %v2617 = vpop.f32.mrb[0].mxu0
  %2618 = vmatprep.mubr.f32.mxu0 %v391
  %2619 = vmatmul.mubr.f32.gmra.mrb[0].mxu0 %v66
  %v2620 = vpop.f32.mrb[0].mxu0
  %v2621 = vadd.f32 %v240, %v2620
  %v2622 = vpop.f32.mrb[0].mxu0
  %2623 = vmatprep.mubr.f32.mxu0 %v394
  %2624 = vmatmul.mubr.f32.gmra.mrb[0].mxu0 %v68
  %v2625 = vpop.f32.mrb[0].mxu0
  %v2626 = vadd.f32 %v245, %v2625
  %v2627 = vpop.f32.mrb[0].mxu0
  %2628 = vmatprep.mubr.f32.mxu0 %v397
  %2629 = vmatmul.mubr.f32.gmra.mrb[0].mxu0 %v70
  %v2630 = vpop.f32.mrb[0].mxu0
  %v2631 = vadd.f32 %v250, %v2630
  %v2632 = vpop.f32.mrb[0].mxu0
  %2633 = vmatprep.mubr.f32.mxu0 %v400
  %2634 = vmatmul.mubr.f32.gmra.mrb[0].mxu0 %v72
  %v2635 = vpop.f32.mrb[0].mxu0
  %v2636 = vadd.f32 %v255, %v2635
  %v2637 = vpop.f32.mrb[0].mxu0
  %2638 = vmatprep.mubr.f32.mxu0 %v403
  %2639 = vmatmul.mubr.f32.gmra.mrb[0].mxu0 %v74
  %v2640 = vpop.f32.mrb[0].mxu0
  %v2641 = vadd.f32 %v260, %v2640
  %v2642 = vpop.f32.mrb[0].mxu0
  %2643 = vmatprep.mubr.f32.mxu0 %v406
  %2644 = vmatmul.mubr.f32.gmra.mrb[0].mxu0 %v76
  %v2645 = vpop.f32.mrb[0].mxu0
  %v2646 = vadd.f32 %v265, %v2645
  %v2647 = vpop.f32.mrb[0].mxu0
  %2648 = vmatprep.mubr.f32.mxu0 %v409
  %2649 = vmatmul.mubr.f32.gmra.mrb[0].mxu0 %v78
  %v2650 = vpop.f32.mrb[0].mxu0
  %v2651 = vadd.f32 %v270, %v2650
  %v2652 = vpop.f32.mrb[0].mxu0
  %2653 = vmatprep.mubr.f32.mxu0 %v412
  %2654 = vmatmul.mubr.f32.gmra.mrb[0].mxu0 %v80
  %v2655 = vpop.f32.mrb[0].mxu0
  %v2656 = vadd.f32 %v275, %v2655
  %v2657 = vpop.f32.mrb[0].mxu0
  %2658 = vmatprep.mubr.f32.mxu0 %v415
  %2659 = vmatmul.mubr.f32.gmra.mrb[0].mxu0 %v82
  %v2660 = vpop.f32.mrb[0].mxu0
  %v2661 = vadd.f32 %v280, %v2660
  %v2662 = vpop.f32.mrb[0].mxu0
  %2663 = vmatprep.mubr.f32.mxu0 %v418
  %2664 = vmatmul.mubr.f32.gmra.mrb[0].mxu0 %v84
  %v2665 = vpop.f32.mrb[0].mxu0
  %v2666 = vadd.f32 %v285, %v2665
  %v2667 = vpop.f32.mrb[0].mxu0
  %2668 = vmatprep.mubr.f32.mxu0 %v421
  %2669 = vmatmul.mubr.f32.gmra.mrb[0].mxu0 %v86
  %v2670 = vpop.f32.mrb[0].mxu0
  %v2671 = vadd.f32 %v290, %v2670
  %v2672 = vpop.f32.mrb[0].mxu0
  %2673 = vmatprep.mubr.f32.mxu0 %v424
  %2674 = vmatmul.mubr.f32.gmra.mrb[0].mxu0 %v88
  %v2675 = vpop.f32.mrb[0].mxu0
  %v2676 = vadd.f32 %v295, %v2675
  %v2677 = vpop.f32.mrb[0].mxu0
  %2678 = vmatprep.mubr.f32.mxu0 %v427
  %2679 = vmatmul.mubr.f32.gmra.mrb[0].mxu0 %v90
  %v2680 = vpop.f32.mrb[0].mxu0
  %v2681 = vadd.f32 %v300, %v2680
  %v2682 = vpop.f32.mrb[0].mxu0
  %2683 = vmatprep.mubr.f32.mxu0 %v430
  %2684 = vmatmul.mubr.f32.gmra.mrb[0].mxu0 %v92
  %v2685 = vpop.f32.mrb[0].mxu0
  %v2686 = vadd.f32 %v305, %v2685
  %v2687 = vpop.f32.mrb[0].mxu0
  %2688 = vmatprep.mubr.f32.mxu0 %v433
  %2689 = vmatmul.mubr.f32.gmra.mrb[0].mxu0 %v94
  %v2690 = vpop.f32.mrb[0].mxu0
  %v2691 = vadd.f32 %v310, %v2690
  %v2692 = vpop.f32.mrb[0].mxu0
  %2693 = vmatprep.mubr.f32.mxu0 %v436
  %2694 = vmatmul.mubr.f32.gmra.mrb[0].mxu0 %v96
  %v2695 = vpop.f32.mrb[0].mxu0
  %v2696 = vadd.f32 %v315, %v2695
  %v2697 = vpop.f32.mrb[0].mxu0
  %2698 = vmatprep.mubr.f32.mxu0 %v439
  %2699 = vmatmul.mubr.f32.gmra.mrb[0].mxu0 %v98
  %v2700 = vpop.f32.mrb[0].mxu0
  %v2701 = vadd.f32 %v320, %v2700
  %v2702 = vpop.f32.mrb[0].mxu0
  %2703 = vmatprep.mubr.f32.mxu0 %v442
  %2704 = vmatmul.mubr.f32.gmra.mrb[0].mxu0 %v100
  %v2705 = vpop.f32.mrb[0].mxu0
  %v2706 = vadd.f32 %v325, %v2705
  %v2707 = vpop.f32.mrb[0].mxu0
  %2708 = vmatprep.mubr.f32.mxu0 %v445
  %2709 = vmatmul.mubr.f32.gmra.mrb[0].mxu0 %v102
  %v2710 = vpop.f32.mrb[0].mxu0
  %v2711 = vadd.f32 %v330, %v2710
  %v2712 = vpop.f32.mrb[0].mxu0
  %2713 = vmatprep.mubr.f32.mxu0 %v448
  %2714 = vmatmul.mubr.f32.gmra.mrb[0].mxu0 %v104
  %v2715 = vpop.f32.mrb[0].mxu0
  %v2716 = vadd.f32 %v335, %v2715
  %v2717 = vpop.f32.mrb[0].mxu0
  %2718 = vmatprep.mubr.f32.mxu0 %v451
  %2719 = vmatmul.mubr.f32.gmra.mrb[0].mxu0 %v106
  %v2720 = vpop.f32.mrb[0].mxu0
  %v2721 = vadd.f32 %v340, %v2720
  %v2722 = vpop.f32.mrb[0].mxu0
  %2723 = vmatprep.mubr.f32.mxu0 %v454
  %2724 = vmatmul.mubr.f32.gmra.mrb[0].mxu0 %v108
  %v2725 = vpop.f32.mrb[0].mxu0
  %v2726 = vadd.f32 %v345, %v2725
  %v2727 = vpop.f32.mrb[0].mxu0
  %2728 = vdwg.mxu0
  %v2729 = vmax.f32 %v2551, 0.0
  %v2730 = vmax.f32 %v2556, 0.0
  %v2731 = vmax.f32 %v2561, 0.0
  %v2732 = vmax.f32 %v2566, 0.0
  %v2733 = vmax.f32 %v2571, 0.0
  %v2734 = vmax.f32 %v2576, 0.0
  %v2735 = vmax.f32 %v2581, 0.0
  %v2736 = vmax.f32 %v2586, 0.0
  %v2737 = vmax.f32 %v2591, 0.0
  %v2738 = vmax.f32 %v2596, 0.0
  %v2739 = vmax.f32 %v2601, 0.0
  %v2740 = vmax.f32 %v2606, 0.0
  %v2741 = vmax.f32 %v2611, 0.0
  %v2742 = vmax.f32 %v2616, 0.0
  %v2743 = vmax.f32 %v2621, 0.0
  %v2744 = vmax.f32 %v2626, 0.0
  %v2745 = vmax.f32 %v2631, 0.0
  %v2746 = vmax.f32 %v2636, 0.0
  %v2747 = vmax.f32 %v2641, 0.0
  %v2748 = vmax.f32 %v2646, 0.0
  %v2749 = vmax.f32 %v2651, 0.0
  %v2750 = vmax.f32 %v2656, 0.0
  %v2751 = vmax.f32 %v2661, 0.0
  %v2752 = vmax.f32 %v2666, 0.0
  %v2753 = vmax.f32 %v2671, 0.0
  %v2754 = vmax.f32 %v2676, 0.0
  %v2755 = vmax.f32 %v2681, 0.0
  %v2756 = vmax.f32 %v2686, 0.0
  %v2757 = vmax.f32 %v2691, 0.0
  %v2758 = vmax.f32 %v2696, 0.0
  %v2759 = vmax.f32 %v2701, 0.0
  %v2760 = vmax.f32 %v2706, 0.0
  %v2761 = vmax.f32 %v2711, 0.0
  %v2762 = vmax.f32 %v2716, 0.0
  %v2763 = vmax.f32 %v2721, 0.0
  %v2764 = vmax.f32 %v2726, 0.0
  %v2765 = vmax.f32 %v2729, %v2747
  %v2766 = vmax.f32 %v2730, %v2748
  %v2767 = vmax.f32 %v2731, %v2749
  %v2768 = vmax.f32 %v2732, %v2750
  %v2769 = vmax.f32 %v2733, %v2751
  %v2770 = vmax.f32 %v2734, %v2752
  %v2771 = vmax.f32 %v2735, %v2753
  %v2772 = vmax.f32 %v2736, %v2754
  %v2773 = vmax.f32 %v2737, %v2755
  %v2774 = vmax.f32 %v2738, %v2756
  %v2775 = vmax.f32 %v2739, %v2757
  %v2776 = vmax.f32 %v2740, %v2758
  %v2777 = vmax.f32 %v2741, %v2759
  %v2778 = vmax.f32 %v2742, %v2760
  %v2779 = vmax.f32 %v2743, %v2761
  %v2780 = vmax.f32 %v2744, %v2762
  %v2781 = vmax.f32 %v2745, %v2763
  %v2782 = vmax.f32 %v2746, %v2764
  %v2783 = vmax.f32 %v2765, %v2774
  %v2784 = vmax.f32 %v2766, %v2775
  %v2785 = vmax.f32 %v2767, %v2776
  %v2786 = vmax.f32 %v2768, %v2777
  %v2787 = vmax.f32 %v2769, %v2778
  %v2788 = vmax.f32 %v2770, %v2779
  %v2789 = vmax.f32 %v2771, %v2780
  %v2790 = vmax.f32 %v2772, %v2781
  %v2791 = vmax.f32 %v2773, %v2782
  %2792 = vst [vmem:[#allocation2 + $0x1b0] sm:$0xff] %v2783
  %2793 = vst [vmem:[#allocation2 + $0x1b8] sm:$0xff] %v2784
  %2794 = vst [vmem:[#allocation2 + $0x1c0] sm:$0xff] %v2785
  %2795 = vst [vmem:[#allocation2 + $0x1c8] sm:$0xff] %v2786
  %2796 = vst [vmem:[#allocation2 + $0x1d0] sm:$0xff] %v2787
  %2797 = vst [vmem:[#allocation2 + $0x1d8] sm:$0xff] %v2788
  %2798 = vst [vmem:[#allocation2 + $0x1e0] sm:$0xff] %v2789
  %2799 = vst [vmem:[#allocation2 + $0x1e8] sm:$0xff] %v2790
  %2800 = vst [vmem:[#allocation2 + $0x1f0] sm:$0xff] %v2791
  %v2801 = vld [vmem:[%s0 + $0x188] sm:$0xff]
  %v2802 = vld [vmem:[%s0 + $0x190] sm:$0xff]
  %v2803 = vld [vmem:[%s0 + $0x198] sm:$0xff]
  %v2804 = vld [vmem:[%s0 + $0x1a0] sm:$0xff]
  %v2805 = vld [vmem:[%s0 + $0x1a8] sm:$0xff]
  %v2806 = vld [vmem:[%s0 + $0x1b0] sm:$0xff]
  %v2807 = vld [vmem:[%s0 + $0x1b8] sm:$0xff]
  %v2808 = vld [vmem:[%s0 + $0x1c0] sm:$0xff]
  %v2809 = vld [vmem:[%s0 + $0x1c8] sm:$0xff]
  %v2810 = vld [vmem:[%s0 + $0x1d0] sm:$0xff]
  %v2811 = vld [vmem:[%s0 + $0x1d8] sm:$0xff]
  %v2812 = vld [vmem:[%s0 + $0x1e0] sm:$0xff]
  %v2813 = vld [vmem:[%s0 + $0x1e8] sm:$0xff]
  %v2814 = vld [vmem:[%s0 + $0x1f0] sm:$0xff]
  %v2815 = vld [vmem:[%s0 + $0x1f8] sm:$0xff]
  %v2816 = vld [vmem:[%s0 + $0x200] sm:$0xff]
  %v2817 = vld [vmem:[%s0 + $0x208] sm:$0xff]
  %v2818 = vld [vmem:[%s0 + $0x210] sm:$0xff]
  %v2819 = vld [vmem:[%s0 + $0x218] sm:$0xff]
  %v2820 = vld [vmem:[%s0 + $0x220] sm:$0xff]
  %v2821 = vld [vmem:[%s0 + $0x228] sm:$0xff]
  %2822 = vmatprep.subr.mxu0 0.0
  %2823 = vmatpush1.msra.mxu0 %v2801
  %2824 = vmatprep.subr.mxu0 0.0
  %2825 = vmatpush1.msra.mxu0 %v2802
  %2826 = vmatprep.subr.mxu0 0.0
  %2827 = vmatpush1.msra.mxu0 %v2803
  %2828 = vmatprep.subr.mxu0 0.0
  %2829 = vmatpush1.msra.mxu0 %v2804
  %2830 = vmatprep.subr.mxu0 0.0
  %2831 = vmatpush1.msra.mxu0 %v2805
  %2832 = vmatprep.subr.mxu0 0.0
  %2833 = vmatpush1.msra.mxu0 %v2806
  %2834 = vmatprep.subr.mxu0 0.0
  %2835 = vmatpush1.msra.mxu0 %v2807
  %2836 = vmatprep.subr.mxu0 0.0
  %2837 = vmatpush1.msra.mxu0 %v2808
  %2838 = vmatprep.subr.mxu0 0.0
  %2839 = vmatpush1.msra.mxu0 %v2809
  %2840 = vmatprep.subr.mxu0 0.0
  %2841 = vmatpush1.msra.mxu0 %v2810
  %2842 = vmatprep.subr.mxu0 0.0
  %2843 = vmatpush1.msra.mxu0 %v2811
  %2844 = vmatprep.subr.mxu0 0.0
  %2845 = vmatpush1.msra.mxu0 %v2812
  %2846 = vmatprep.subr.mxu0 0.0
  %2847 = vmatpush1.msra.mxu0 %v2813
  %2848 = vmatprep.subr.mxu0 0.0
  %2849 = vmatpush1.msra.mxu0 %v2814
  %2850 = vmatprep.subr.mxu0 0.0
  %2851 = vmatpush1.msra.mxu0 %v2815
  %2852 = vmatprep.subr.mxu0 0.0
  %2853 = vmatpush1.msra.mxu0 %v2816
  %2854 = vmatprep.subr.mxu0 0.0
  %2855 = vmatpush1.msra.mxu0 %v2817
  %2856 = vmatprep.subr.mxu0 0.0
  %2857 = vmatpush1.msra.mxu0 %v2818
  %2858 = vmatprep.subr.mxu0 0.0
  %2859 = vmatpush1.msra.mxu0 %v2819
  %2860 = vmatprep.subr.mxu0 0.0
  %2861 = vmatpush1.msra.mxu0 %v2820
  %2862 = vmatprep.subr.mxu0 0.0
  %2863 = vmatpush1.msra.mxu0 %v2821
  %2864 = vmatprep.subr.mxu0 0.0
  %2865 = vmatpush1.msra.mxu0 0.0
  %2866 = vmatprep.subr.mxu0 0.0
  %2867 = vmatpush1.msra.mxu0 0.0
  %2868 = vmatprep.subr.mxu0 0.0
  %2869 = vmatpush1.msra.mxu0 0.0
  %2870 = vmatprep.subr.mxu0 0.0
  %2871 = vmatpush1.msra.mxu0 0.0
  %2872 = vmatprep.subr.mxu0 0.0
  %2873 = vmatpush1.msra.mxu0 0.0
  %2874 = vmatprep.subr.mxu0 0.0
  %2875 = vmatpush1.msra.mxu0 0.0
  %2876 = vmatprep.subr.mxu0 0.0
  %2877 = vmatpush1.msra.mxu0 0.0
  %2878 = vmatprep.subr.mxu0 0.0
  %2879 = vmatpush1.msra.mxu0 0.0
  %2880 = vmatprep.subr.mxu0 0.0
  %2881 = vmatpush1.msra.mxu0 0.0
  %2882 = vmatprep.subr.mxu0 0.0
  %2883 = vmatpush1.msra.mxu0 0.0
  %2884 = vmatprep.subr.mxu0 0.0
  %2885 = vmatpush1.msra.mxu0 0.0
  %2886 = vmatprep.mubr.f32.mxu0 %v349
  %2887 = vmatmul.mubr.f32.gmra.mrb[0].mxu0 %v38
  %v2888 = vpop.f32.mrb[0].mxu0
  %v2889 = vadd.f32 %v170, %v2888
  %v2890 = vpop.f32.mrb[0].mxu0
  %2891 = vmatprep.mubr.f32.mxu0 %v352
  %2892 = vmatmul.mubr.f32.gmra.mrb[0].mxu0 %v40
  %v2893 = vpop.f32.mrb[0].mxu0
  %v2894 = vadd.f32 %v175, %v2893
  %v2895 = vpop.f32.mrb[0].mxu0
  %2896 = vmatprep.mubr.f32.mxu0 %v355
  %2897 = vmatmul.mubr.f32.gmra.mrb[0].mxu0 %v42
  %v2898 = vpop.f32.mrb[0].mxu0
  %v2899 = vadd.f32 %v180, %v2898
  %v2900 = vpop.f32.mrb[0].mxu0
  %2901 = vmatprep.mubr.f32.mxu0 %v358
  %2902 = vmatmul.mubr.f32.gmra.mrb[0].mxu0 %v44
  %v2903 = vpop.f32.mrb[0].mxu0
  %v2904 = vadd.f32 %v185, %v2903
  %v2905 = vpop.f32.mrb[0].mxu0
  %2906 = vmatprep.mubr.f32.mxu0 %v361
  %2907 = vmatmul.mubr.f32.gmra.mrb[0].mxu0 %v46
  %v2908 = vpop.f32.mrb[0].mxu0
  %v2909 = vadd.f32 %v190, %v2908
  %v2910 = vpop.f32.mrb[0].mxu0
  %2911 = vmatprep.mubr.f32.mxu0 %v364
  %2912 = vmatmul.mubr.f32.gmra.mrb[0].mxu0 %v48
  %v2913 = vpop.f32.mrb[0].mxu0
  %v2914 = vadd.f32 %v195, %v2913
  %v2915 = vpop.f32.mrb[0].mxu0
  %2916 = vmatprep.mubr.f32.mxu0 %v367
  %2917 = vmatmul.mubr.f32.gmra.mrb[0].mxu0 %v50
  %v2918 = vpop.f32.mrb[0].mxu0
  %v2919 = vadd.f32 %v200, %v2918
  %v2920 = vpop.f32.mrb[0].mxu0
  %2921 = vmatprep.mubr.f32.mxu0 %v370
  %2922 = vmatmul.mubr.f32.gmra.mrb[0].mxu0 %v52
  %v2923 = vpop.f32.mrb[0].mxu0
  %v2924 = vadd.f32 %v205, %v2923
  %v2925 = vpop.f32.mrb[0].mxu0
  %2926 = vmatprep.mubr.f32.mxu0 %v373
  %2927 = vmatmul.mubr.f32.gmra.mrb[0].mxu0 %v54
  %v2928 = vpop.f32.mrb[0].mxu0
  %v2929 = vadd.f32 %v210, %v2928
  %v2930 = vpop.f32.mrb[0].mxu0
  %2931 = vmatprep.mubr.f32.mxu0 %v376
  %2932 = vmatmul.mubr.f32.gmra.mrb[0].mxu0 %v56
  %v2933 = vpop.f32.mrb[0].mxu0
  %v2934 = vadd.f32 %v215, %v2933
  %v2935 = vpop.f32.mrb[0].mxu0
  %2936 = vmatprep.mubr.f32.mxu0 %v379
  %2937 = vmatmul.mubr.f32.gmra.mrb[0].mxu0 %v58
  %v2938 = vpop.f32.mrb[0].mxu0
  %v2939 = vadd.f32 %v220, %v2938
  %v2940 = vpop.f32.mrb[0].mxu0
  %2941 = vmatprep.mubr.f32.mxu0 %v382
  %2942 = vmatmul.mubr.f32.gmra.mrb[0].mxu0 %v60
  %v2943 = vpop.f32.mrb[0].mxu0
  %v2944 = vadd.f32 %v225, %v2943
  %v2945 = vpop.f32.mrb[0].mxu0
  %2946 = vmatprep.mubr.f32.mxu0 %v385
  %2947 = vmatmul.mubr.f32.gmra.mrb[0].mxu0 %v62
  %v2948 = vpop.f32.mrb[0].mxu0
  %v2949 = vadd.f32 %v230, %v2948
  %v2950 = vpop.f32.mrb[0].mxu0
  %2951 = vmatprep.mubr.f32.mxu0 %v388
  %2952 = vmatmul.mubr.f32.gmra.mrb[0].mxu0 %v64
  %v2953 = vpop.f32.mrb[0].mxu0
  %v2954 = vadd.f32 %v235, %v2953
  %v2955 = vpop.f32.mrb[0].mxu0
  %2956 = vmatprep.mubr.f32.mxu0 %v391
  %2957 = vmatmul.mubr.f32.gmra.mrb[0].mxu0 %v66
  %v2958 = vpop.f32.mrb[0].mxu0
  %v2959 = vadd.f32 %v240, %v2958
  %v2960 = vpop.f32.mrb[0].mxu0
  %2961 = vmatprep.mubr.f32.mxu0 %v394
  %2962 = vmatmul.mubr.f32.gmra.mrb[0].mxu0 %v68
  %v2963 = vpop.f32.mrb[0].mxu0
  %v2964 = vadd.f32 %v245, %v2963
  %v2965 = vpop.f32.mrb[0].mxu0
  %2966 = vmatprep.mubr.f32.mxu0 %v397
  %2967 = vmatmul.mubr.f32.gmra.mrb[0].mxu0 %v70
  %v2968 = vpop.f32.mrb[0].mxu0
  %v2969 = vadd.f32 %v250, %v2968
  %v2970 = vpop.f32.mrb[0].mxu0
  %2971 = vmatprep.mubr.f32.mxu0 %v400
  %2972 = vmatmul.mubr.f32.gmra.mrb[0].mxu0 %v72
  %v2973 = vpop.f32.mrb[0].mxu0
  %v2974 = vadd.f32 %v255, %v2973
  %v2975 = vpop.f32.mrb[0].mxu0
  %2976 = vmatprep.mubr.f32.mxu0 %v403
  %2977 = vmatmul.mubr.f32.gmra.mrb[0].mxu0 %v74
  %v2978 = vpop.f32.mrb[0].mxu0
  %v2979 = vadd.f32 %v260, %v2978
  %v2980 = vpop.f32.mrb[0].mxu0
  %2981 = vmatprep.mubr.f32.mxu0 %v406
  %2982 = vmatmul.mubr.f32.gmra.mrb[0].mxu0 %v76
  %v2983 = vpop.f32.mrb[0].mxu0
  %v2984 = vadd.f32 %v265, %v2983
  %v2985 = vpop.f32.mrb[0].mxu0
  %2986 = vmatprep.mubr.f32.mxu0 %v409
  %2987 = vmatmul.mubr.f32.gmra.mrb[0].mxu0 %v78
  %v2988 = vpop.f32.mrb[0].mxu0
  %v2989 = vadd.f32 %v270, %v2988
  %v2990 = vpop.f32.mrb[0].mxu0
  %2991 = vmatprep.mubr.f32.mxu0 %v412
  %2992 = vmatmul.mubr.f32.gmra.mrb[0].mxu0 %v80
  %v2993 = vpop.f32.mrb[0].mxu0
  %v2994 = vadd.f32 %v275, %v2993
  %v2995 = vpop.f32.mrb[0].mxu0
  %2996 = vmatprep.mubr.f32.mxu0 %v415
  %2997 = vmatmul.mubr.f32.gmra.mrb[0].mxu0 %v82
  %v2998 = vpop.f32.mrb[0].mxu0
  %v2999 = vadd.f32 %v280, %v2998
  %v3000 = vpop.f32.mrb[0].mxu0
  %3001 = vmatprep.mubr.f32.mxu0 %v418
  %3002 = vmatmul.mubr.f32.gmra.mrb[0].mxu0 %v84
  %v3003 = vpop.f32.mrb[0].mxu0
  %v3004 = vadd.f32 %v285, %v3003
  %v3005 = vpop.f32.mrb[0].mxu0
  %3006 = vmatprep.mubr.f32.mxu0 %v421
  %3007 = vmatmul.mubr.f32.gmra.mrb[0].mxu0 %v86
  %v3008 = vpop.f32.mrb[0].mxu0
  %v3009 = vadd.f32 %v290, %v3008
  %v3010 = vpop.f32.mrb[0].mxu0
  %3011 = vmatprep.mubr.f32.mxu0 %v424
  %3012 = vmatmul.mubr.f32.gmra.mrb[0].mxu0 %v88
  %v3013 = vpop.f32.mrb[0].mxu0
  %v3014 = vadd.f32 %v295, %v3013
  %v3015 = vpop.f32.mrb[0].mxu0
  %3016 = vmatprep.mubr.f32.mxu0 %v427
  %3017 = vmatmul.mubr.f32.gmra.mrb[0].mxu0 %v90
  %v3018 = vpop.f32.mrb[0].mxu0
  %v3019 = vadd.f32 %v300, %v3018
  %v3020 = vpop.f32.mrb[0].mxu0
  %3021 = vmatprep.mubr.f32.mxu0 %v430
  %3022 = vmatmul.mubr.f32.gmra.mrb[0].mxu0 %v92
  %v3023 = vpop.f32.mrb[0].mxu0
  %v3024 = vadd.f32 %v305, %v3023
  %v3025 = vpop.f32.mrb[0].mxu0
  %3026 = vmatprep.mubr.f32.mxu0 %v433
  %3027 = vmatmul.mubr.f32.gmra.mrb[0].mxu0 %v94
  %v3028 = vpop.f32.mrb[0].mxu0
  %v3029 = vadd.f32 %v310, %v3028
  %v3030 = vpop.f32.mrb[0].mxu0
  %3031 = vmatprep.mubr.f32.mxu0 %v436
  %3032 = vmatmul.mubr.f32.gmra.mrb[0].mxu0 %v96
  %v3033 = vpop.f32.mrb[0].mxu0
  %v3034 = vadd.f32 %v315, %v3033
  %v3035 = vpop.f32.mrb[0].mxu0
  %3036 = vmatprep.mubr.f32.mxu0 %v439
  %3037 = vmatmul.mubr.f32.gmra.mrb[0].mxu0 %v98
  %v3038 = vpop.f32.mrb[0].mxu0
  %v3039 = vadd.f32 %v320, %v3038
  %v3040 = vpop.f32.mrb[0].mxu0
  %3041 = vmatprep.mubr.f32.mxu0 %v442
  %3042 = vmatmul.mubr.f32.gmra.mrb[0].mxu0 %v100
  %v3043 = vpop.f32.mrb[0].mxu0
  %v3044 = vadd.f32 %v325, %v3043
  %v3045 = vpop.f32.mrb[0].mxu0
  %3046 = vmatprep.mubr.f32.mxu0 %v445
  %3047 = vmatmul.mubr.f32.gmra.mrb[0].mxu0 %v102
  %v3048 = vpop.f32.mrb[0].mxu0
  %v3049 = vadd.f32 %v330, %v3048
  %v3050 = vpop.f32.mrb[0].mxu0
  %3051 = vmatprep.mubr.f32.mxu0 %v448
  %3052 = vmatmul.mubr.f32.gmra.mrb[0].mxu0 %v104
  %v3053 = vpop.f32.mrb[0].mxu0
  %v3054 = vadd.f32 %v335, %v3053
  %v3055 = vpop.f32.mrb[0].mxu0
  %3056 = vmatprep.mubr.f32.mxu0 %v451
  %3057 = vmatmul.mubr.f32.gmra.mrb[0].mxu0 %v106
  %v3058 = vpop.f32.mrb[0].mxu0
  %v3059 = vadd.f32 %v340, %v3058
  %v3060 = vpop.f32.mrb[0].mxu0
  %3061 = vmatprep.mubr.f32.mxu0 %v454
  %3062 = vmatmul.mubr.f32.gmra.mrb[0].mxu0 %v108
  %v3063 = vpop.f32.mrb[0].mxu0
  %v3064 = vadd.f32 %v345, %v3063
  %v3065 = vpop.f32.mrb[0].mxu0
  %3066 = vdwg.mxu0
  %v3067 = vmax.f32 %v2889, 0.0
  %v3068 = vmax.f32 %v2894, 0.0
  %v3069 = vmax.f32 %v2899, 0.0
  %v3070 = vmax.f32 %v2904, 0.0
  %v3071 = vmax.f32 %v2909, 0.0
  %v3072 = vmax.f32 %v2914, 0.0
  %v3073 = vmax.f32 %v2919, 0.0
  %v3074 = vmax.f32 %v2924, 0.0
  %v3075 = vmax.f32 %v2929, 0.0
  %v3076 = vmax.f32 %v2934, 0.0
  %v3077 = vmax.f32 %v2939, 0.0
  %v3078 = vmax.f32 %v2944, 0.0
  %v3079 = vmax.f32 %v2949, 0.0
  %v3080 = vmax.f32 %v2954, 0.0
  %v3081 = vmax.f32 %v2959, 0.0
  %v3082 = vmax.f32 %v2964, 0.0
  %v3083 = vmax.f32 %v2969, 0.0
  %v3084 = vmax.f32 %v2974, 0.0
  %v3085 = vmax.f32 %v2979, 0.0
  %v3086 = vmax.f32 %v2984, 0.0
  %v3087 = vmax.f32 %v2989, 0.0
  %v3088 = vmax.f32 %v2994, 0.0
  %v3089 = vmax.f32 %v2999, 0.0
  %v3090 = vmax.f32 %v3004, 0.0
  %v3091 = vmax.f32 %v3009, 0.0
  %v3092 = vmax.f32 %v3014, 0.0
  %v3093 = vmax.f32 %v3019, 0.0
  %v3094 = vmax.f32 %v3024, 0.0
  %v3095 = vmax.f32 %v3029, 0.0
  %v3096 = vmax.f32 %v3034, 0.0
  %v3097 = vmax.f32 %v3039, 0.0
  %v3098 = vmax.f32 %v3044, 0.0
  %v3099 = vmax.f32 %v3049, 0.0
  %v3100 = vmax.f32 %v3054, 0.0
  %v3101 = vmax.f32 %v3059, 0.0
  %v3102 = vmax.f32 %v3064, 0.0
  %v3103 = vmax.f32 %v3067, %v3085
  %v3104 = vmax.f32 %v3068, %v3086
  %v3105 = vmax.f32 %v3069, %v3087
  %v3106 = vmax.f32 %v3070, %v3088
  %v3107 = vmax.f32 %v3071, %v3089
  %v3108 = vmax.f32 %v3072, %v3090
  %v3109 = vmax.f32 %v3073, %v3091
  %v3110 = vmax.f32 %v3074, %v3092
  %v3111 = vmax.f32 %v3075, %v3093
  %v3112 = vmax.f32 %v3076, %v3094
  %v3113 = vmax.f32 %v3077, %v3095
  %v3114 = vmax.f32 %v3078, %v3096
  %v3115 = vmax.f32 %v3079, %v3097
  %v3116 = vmax.f32 %v3080, %v3098
  %v3117 = vmax.f32 %v3081, %v3099
  %v3118 = vmax.f32 %v3082, %v3100
  %v3119 = vmax.f32 %v3083, %v3101
  %v3120 = vmax.f32 %v3084, %v3102
  %v3121 = vmax.f32 %v3103, %v3112
  %v3122 = vmax.f32 %v3104, %v3113
  %v3123 = vmax.f32 %v3105, %v3114
  %v3124 = vmax.f32 %v3106, %v3115
  %v3125 = vmax.f32 %v3107, %v3116
  %v3126 = vmax.f32 %v3108, %v3117
  %v3127 = vmax.f32 %v3109, %v3118
  %v3128 = vmax.f32 %v3110, %v3119
  %v3129 = vmax.f32 %v3111, %v3120
  %3130 = vst [vmem:[#allocation2 + $0x1f8] sm:$0xff] %v3121
  %3131 = vst [vmem:[#allocation2 + $0x200] sm:$0xff] %v3122
  %3132 = vst [vmem:[#allocation2 + $0x208] sm:$0xff] %v3123
  %3133 = vst [vmem:[#allocation2 + $0x210] sm:$0xff] %v3124
  %3134 = vst [vmem:[#allocation2 + $0x218] sm:$0xff] %v3125
  %3135 = vst [vmem:[#allocation2 + $0x220] sm:$0xff] %v3126
  %3136 = vst [vmem:[#allocation2 + $0x228] sm:$0xff] %v3127
  %3137 = vst [vmem:[#allocation2 + $0x230] sm:$0xff] %v3128
  %3138 = vst [vmem:[#allocation2 + $0x238] sm:$0xff] %v3129
  %v3139 = vld [vmem:[%s0 + $0x1c0] sm:$0xff]
  %v3140 = vld [vmem:[%s0 + $0x1c8] sm:$0xff]
  %v3141 = vld [vmem:[%s0 + $0x1d0] sm:$0xff]
  %v3142 = vld [vmem:[%s0 + $0x1d8] sm:$0xff]
  %v3143 = vld [vmem:[%s0 + $0x1e0] sm:$0xff]
  %v3144 = vld [vmem:[%s0 + $0x1e8] sm:$0xff]
  %v3145 = vld [vmem:[%s0 + $0x1f0] sm:$0xff]
  %v3146 = vld [vmem:[%s0 + $0x1f8] sm:$0xff]
  %v3147 = vld [vmem:[%s0 + $0x200] sm:$0xff]
  %v3148 = vld [vmem:[%s0 + $0x208] sm:$0xff]
  %v3149 = vld [vmem:[%s0 + $0x210] sm:$0xff]
  %v3150 = vld [vmem:[%s0 + $0x218] sm:$0xff]
  %v3151 = vld [vmem:[%s0 + $0x220] sm:$0xff]
  %v3152 = vld [vmem:[%s0 + $0x228] sm:$0xff]
  %v3153 = vld [vmem:[%s0 + $0x230] sm:$0xff]
  %v3154 = vld [vmem:[%s0 + $0x238] sm:$0xff]
  %v3155 = vld [vmem:[%s0 + $0x240] sm:$0xff]
  %v3156 = vld [vmem:[%s0 + $0x248] sm:$0xff]
  %v3157 = vld [vmem:[%s0 + $0x250] sm:$0xff]
  %v3158 = vld [vmem:[%s0 + $0x258] sm:$0xff]
  %v3159 = vld [vmem:[%s0 + $0x260] sm:$0xff]
  %3160 = vmatprep.subr.mxu0 0.0
  %3161 = vmatpush1.msra.mxu0 %v3139
  %3162 = vmatprep.subr.mxu0 0.0
  %3163 = vmatpush1.msra.mxu0 %v3140
  %3164 = vmatprep.subr.mxu0 0.0
  %3165 = vmatpush1.msra.mxu0 %v3141
  %3166 = vmatprep.subr.mxu0 0.0
  %3167 = vmatpush1.msra.mxu0 %v3142
  %3168 = vmatprep.subr.mxu0 0.0
  %3169 = vmatpush1.msra.mxu0 %v3143
  %3170 = vmatprep.subr.mxu0 0.0
  %3171 = vmatpush1.msra.mxu0 %v3144
  %3172 = vmatprep.subr.mxu0 0.0
  %3173 = vmatpush1.msra.mxu0 %v3145
  %3174 = vmatprep.subr.mxu0 0.0
  %3175 = vmatpush1.msra.mxu0 %v3146
  %3176 = vmatprep.subr.mxu0 0.0
  %3177 = vmatpush1.msra.mxu0 %v3147
  %3178 = vmatprep.subr.mxu0 0.0
  %3179 = vmatpush1.msra.mxu0 %v3148
  %3180 = vmatprep.subr.mxu0 0.0
  %3181 = vmatpush1.msra.mxu0 %v3149
  %3182 = vmatprep.subr.mxu0 0.0
  %3183 = vmatpush1.msra.mxu0 %v3150
  %3184 = vmatprep.subr.mxu0 0.0
  %3185 = vmatpush1.msra.mxu0 %v3151
  %3186 = vmatprep.subr.mxu0 0.0
  %3187 = vmatpush1.msra.mxu0 %v3152
  %3188 = vmatprep.subr.mxu0 0.0
  %3189 = vmatpush1.msra.mxu0 %v3153
  %3190 = vmatprep.subr.mxu0 0.0
  %3191 = vmatpush1.msra.mxu0 %v3154
  %3192 = vmatprep.subr.mxu0 0.0
  %3193 = vmatpush1.msra.mxu0 %v3155
  %3194 = vmatprep.subr.mxu0 0.0
  %3195 = vmatpush1.msra.mxu0 %v3156
  %3196 = vmatprep.subr.mxu0 0.0
  %3197 = vmatpush1.msra.mxu0 %v3157
  %3198 = vmatprep.subr.mxu0 0.0
  %3199 = vmatpush1.msra.mxu0 %v3158
  %3200 = vmatprep.subr.mxu0 0.0
  %3201 = vmatpush1.msra.mxu0 %v3159
  %3202 = vmatprep.subr.mxu0 0.0
  %3203 = vmatpush1.msra.mxu0 0.0
  %3204 = vmatprep.subr.mxu0 0.0
  %3205 = vmatpush1.msra.mxu0 0.0
  %3206 = vmatprep.subr.mxu0 0.0
  %3207 = vmatpush1.msra.mxu0 0.0
  %3208 = vmatprep.subr.mxu0 0.0
  %3209 = vmatpush1.msra.mxu0 0.0
  %3210 = vmatprep.subr.mxu0 0.0
  %3211 = vmatpush1.msra.mxu0 0.0
  %3212 = vmatprep.subr.mxu0 0.0
  %3213 = vmatpush1.msra.mxu0 0.0
  %3214 = vmatprep.subr.mxu0 0.0
  %3215 = vmatpush1.msra.mxu0 0.0
  %3216 = vmatprep.subr.mxu0 0.0
  %3217 = vmatpush1.msra.mxu0 0.0
  %3218 = vmatprep.subr.mxu0 0.0
  %3219 = vmatpush1.msra.mxu0 0.0
  %3220 = vmatprep.subr.mxu0 0.0
  %3221 = vmatpush1.msra.mxu0 0.0
  %3222 = vmatprep.subr.mxu0 0.0
  %3223 = vmatpush1.msra.mxu0 0.0
  %3224 = vmatprep.mubr.f32.mxu0 %v349
  %3225 = vmatmul.mubr.f32.gmra.mrb[0].mxu0 %v38
  %v3226 = vpop.f32.mrb[0].mxu0
  %v3227 = vadd.f32 %v170, %v3226
  %v3228 = vpop.f32.mrb[0].mxu0
  %3229 = vmatprep.mubr.f32.mxu0 %v352
  %3230 = vmatmul.mubr.f32.gmra.mrb[0].mxu0 %v40
  %v3231 = vpop.f32.mrb[0].mxu0
  %v3232 = vadd.f32 %v175, %v3231
  %v3233 = vpop.f32.mrb[0].mxu0
  %3234 = vmatprep.mubr.f32.mxu0 %v355
  %3235 = vmatmul.mubr.f32.gmra.mrb[0].mxu0 %v42
  %v3236 = vpop.f32.mrb[0].mxu0
  %v3237 = vadd.f32 %v180, %v3236
  %v3238 = vpop.f32.mrb[0].mxu0
  %3239 = vmatprep.mubr.f32.mxu0 %v358
  %3240 = vmatmul.mubr.f32.gmra.mrb[0].mxu0 %v44
  %v3241 = vpop.f32.mrb[0].mxu0
  %v3242 = vadd.f32 %v185, %v3241
  %v3243 = vpop.f32.mrb[0].mxu0
  %3244 = vmatprep.mubr.f32.mxu0 %v361
  %3245 = vmatmul.mubr.f32.gmra.mrb[0].mxu0 %v46
  %v3246 = vpop.f32.mrb[0].mxu0
  %v3247 = vadd.f32 %v190, %v3246
  %v3248 = vpop.f32.mrb[0].mxu0
  %3249 = vmatprep.mubr.f32.mxu0 %v364
  %3250 = vmatmul.mubr.f32.gmra.mrb[0].mxu0 %v48
  %v3251 = vpop.f32.mrb[0].mxu0
  %v3252 = vadd.f32 %v195, %v3251
  %v3253 = vpop.f32.mrb[0].mxu0
  %3254 = vmatprep.mubr.f32.mxu0 %v367
  %3255 = vmatmul.mubr.f32.gmra.mrb[0].mxu0 %v50
  %v3256 = vpop.f32.mrb[0].mxu0
  %v3257 = vadd.f32 %v200, %v3256
  %v3258 = vpop.f32.mrb[0].mxu0
  %3259 = vmatprep.mubr.f32.mxu0 %v370
  %3260 = vmatmul.mubr.f32.gmra.mrb[0].mxu0 %v52
  %v3261 = vpop.f32.mrb[0].mxu0
  %v3262 = vadd.f32 %v205, %v3261
  %v3263 = vpop.f32.mrb[0].mxu0
  %3264 = vmatprep.mubr.f32.mxu0 %v373
  %3265 = vmatmul.mubr.f32.gmra.mrb[0].mxu0 %v54
  %v3266 = vpop.f32.mrb[0].mxu0
  %v3267 = vadd.f32 %v210, %v3266
  %v3268 = vpop.f32.mrb[0].mxu0
  %3269 = vmatprep.mubr.f32.mxu0 %v376
  %3270 = vmatmul.mubr.f32.gmra.mrb[0].mxu0 %v56
  %v3271 = vpop.f32.mrb[0].mxu0
  %v3272 = vadd.f32 %v215, %v3271
  %v3273 = vpop.f32.mrb[0].mxu0
  %3274 = vmatprep.mubr.f32.mxu0 %v379
  %3275 = vmatmul.mubr.f32.gmra.mrb[0].mxu0 %v58
  %v3276 = vpop.f32.mrb[0].mxu0
  %v3277 = vadd.f32 %v220, %v3276
  %v3278 = vpop.f32.mrb[0].mxu0
  %3279 = vmatprep.mubr.f32.mxu0 %v382
  %3280 = vmatmul.mubr.f32.gmra.mrb[0].mxu0 %v60
  %v3281 = vpop.f32.mrb[0].mxu0
  %v3282 = vadd.f32 %v225, %v3281
  %v3283 = vpop.f32.mrb[0].mxu0
  %3284 = vmatprep.mubr.f32.mxu0 %v385
  %3285 = vmatmul.mubr.f32.gmra.mrb[0].mxu0 %v62
  %v3286 = vpop.f32.mrb[0].mxu0
  %v3287 = vadd.f32 %v230, %v3286
  %v3288 = vpop.f32.mrb[0].mxu0
  %3289 = vmatprep.mubr.f32.mxu0 %v388
  %3290 = vmatmul.mubr.f32.gmra.mrb[0].mxu0 %v64
  %v3291 = vpop.f32.mrb[0].mxu0
  %v3292 = vadd.f32 %v235, %v3291
  %v3293 = vpop.f32.mrb[0].mxu0
  %3294 = vmatprep.mubr.f32.mxu0 %v391
  %3295 = vmatmul.mubr.f32.gmra.mrb[0].mxu0 %v66
  %v3296 = vpop.f32.mrb[0].mxu0
  %v3297 = vadd.f32 %v240, %v3296
  %v3298 = vpop.f32.mrb[0].mxu0
  %3299 = vmatprep.mubr.f32.mxu0 %v394
  %3300 = vmatmul.mubr.f32.gmra.mrb[0].mxu0 %v68
  %v3301 = vpop.f32.mrb[0].mxu0
  %v3302 = vadd.f32 %v245, %v3301
  %v3303 = vpop.f32.mrb[0].mxu0
  %3304 = vmatprep.mubr.f32.mxu0 %v397
  %3305 = vmatmul.mubr.f32.gmra.mrb[0].mxu0 %v70
  %v3306 = vpop.f32.mrb[0].mxu0
  %v3307 = vadd.f32 %v250, %v3306
  %v3308 = vpop.f32.mrb[0].mxu0
  %3309 = vmatprep.mubr.f32.mxu0 %v400
  %3310 = vmatmul.mubr.f32.gmra.mrb[0].mxu0 %v72
  %v3311 = vpop.f32.mrb[0].mxu0
  %v3312 = vadd.f32 %v255, %v3311
  %v3313 = vpop.f32.mrb[0].mxu0
  %3314 = vmatprep.mubr.f32.mxu0 %v403
  %3315 = vmatmul.mubr.f32.gmra.mrb[0].mxu0 %v74
  %v3316 = vpop.f32.mrb[0].mxu0
  %v3317 = vadd.f32 %v260, %v3316
  %v3318 = vpop.f32.mrb[0].mxu0
  %3319 = vmatprep.mubr.f32.mxu0 %v406
  %3320 = vmatmul.mubr.f32.gmra.mrb[0].mxu0 %v76
  %v3321 = vpop.f32.mrb[0].mxu0
  %v3322 = vadd.f32 %v265, %v3321
  %v3323 = vpop.f32.mrb[0].mxu0
  %3324 = vmatprep.mubr.f32.mxu0 %v409
  %3325 = vmatmul.mubr.f32.gmra.mrb[0].mxu0 %v78
  %v3326 = vpop.f32.mrb[0].mxu0
  %v3327 = vadd.f32 %v270, %v3326
  %v3328 = vpop.f32.mrb[0].mxu0
  %3329 = vmatprep.mubr.f32.mxu0 %v412
  %3330 = vmatmul.mubr.f32.gmra.mrb[0].mxu0 %v80
  %v3331 = vpop.f32.mrb[0].mxu0
  %v3332 = vadd.f32 %v275, %v3331
  %v3333 = vpop.f32.mrb[0].mxu0
  %3334 = vmatprep.mubr.f32.mxu0 %v415
  %3335 = vmatmul.mubr.f32.gmra.mrb[0].mxu0 %v82
  %v3336 = vpop.f32.mrb[0].mxu0
  %v3337 = vadd.f32 %v280, %v3336
  %v3338 = vpop.f32.mrb[0].mxu0
  %3339 = vmatprep.mubr.f32.mxu0 %v418
  %3340 = vmatmul.mubr.f32.gmra.mrb[0].mxu0 %v84
  %v3341 = vpop.f32.mrb[0].mxu0
  %v3342 = vadd.f32 %v285, %v3341
  %v3343 = vpop.f32.mrb[0].mxu0
  %3344 = vmatprep.mubr.f32.mxu0 %v421
  %3345 = vmatmul.mubr.f32.gmra.mrb[0].mxu0 %v86
  %v3346 = vpop.f32.mrb[0].mxu0
  %v3347 = vadd.f32 %v290, %v3346
  %v3348 = vpop.f32.mrb[0].mxu0
  %3349 = vmatprep.mubr.f32.mxu0 %v424
  %3350 = vmatmul.mubr.f32.gmra.mrb[0].mxu0 %v88
  %v3351 = vpop.f32.mrb[0].mxu0
  %v3352 = vadd.f32 %v295, %v3351
  %v3353 = vpop.f32.mrb[0].mxu0
  %3354 = vmatprep.mubr.f32.mxu0 %v427
  %3355 = vmatmul.mubr.f32.gmra.mrb[0].mxu0 %v90
  %v3356 = vpop.f32.mrb[0].mxu0
  %v3357 = vadd.f32 %v300, %v3356
  %v3358 = vpop.f32.mrb[0].mxu0
  %3359 = vmatprep.mubr.f32.mxu0 %v430
  %3360 = vmatmul.mubr.f32.gmra.mrb[0].mxu0 %v92
  %v3361 = vpop.f32.mrb[0].mxu0
  %v3362 = vadd.f32 %v305, %v3361
  %v3363 = vpop.f32.mrb[0].mxu0
  %3364 = vmatprep.mubr.f32.mxu0 %v433
  %3365 = vmatmul.mubr.f32.gmra.mrb[0].mxu0 %v94
  %v3366 = vpop.f32.mrb[0].mxu0
  %v3367 = vadd.f32 %v310, %v3366
  %v3368 = vpop.f32.mrb[0].mxu0
  %3369 = vmatprep.mubr.f32.mxu0 %v436
  %3370 = vmatmul.mubr.f32.gmra.mrb[0].mxu0 %v96
  %v3371 = vpop.f32.mrb[0].mxu0
  %v3372 = vadd.f32 %v315, %v3371
  %v3373 = vpop.f32.mrb[0].mxu0
  %3374 = vmatprep.mubr.f32.mxu0 %v439
  %3375 = vmatmul.mubr.f32.gmra.mrb[0].mxu0 %v98
  %v3376 = vpop.f32.mrb[0].mxu0
  %v3377 = vadd.f32 %v320, %v3376
  %v3378 = vpop.f32.mrb[0].mxu0
  %3379 = vmatprep.mubr.f32.mxu0 %v442
  %3380 = vmatmul.mubr.f32.gmra.mrb[0].mxu0 %v100
  %v3381 = vpop.f32.mrb[0].mxu0
  %v3382 = vadd.f32 %v325, %v3381
  %v3383 = vpop.f32.mrb[0].mxu0
  %3384 = vmatprep.mubr.f32.mxu0 %v445
  %3385 = vmatmul.mubr.f32.gmra.mrb[0].mxu0 %v102
  %v3386 = vpop.f32.mrb[0].mxu0
  %v3387 = vadd.f32 %v330, %v3386
  %v3388 = vpop.f32.mrb[0].mxu0
  %3389 = vmatprep.mubr.f32.mxu0 %v448
  %3390 = vmatmul.mubr.f32.gmra.mrb[0].mxu0 %v104
  %v3391 = vpop.f32.mrb[0].mxu0
  %v3392 = vadd.f32 %v335, %v3391
  %v3393 = vpop.f32.mrb[0].mxu0
  %3394 = vmatprep.mubr.f32.mxu0 %v451
  %3395 = vmatmul.mubr.f32.gmra.mrb[0].mxu0 %v106
  %v3396 = vpop.f32.mrb[0].mxu0
  %v3397 = vadd.f32 %v340, %v3396
  %v3398 = vpop.f32.mrb[0].mxu0
  %3399 = vmatprep.mubr.f32.mxu0 %v454
  %3400 = vmatmul.mubr.f32.gmra.mrb[0].mxu0 %v108
  %v3401 = vpop.f32.mrb[0].mxu0
  %v3402 = vadd.f32 %v345, %v3401
  %v3403 = vpop.f32.mrb[0].mxu0
  %3404 = vdwg.mxu0
  %v3405 = vmax.f32 %v3227, 0.0
  %v3406 = vmax.f32 %v3232, 0.0
  %v3407 = vmax.f32 %v3237, 0.0
  %v3408 = vmax.f32 %v3242, 0.0
  %v3409 = vmax.f32 %v3247, 0.0
  %v3410 = vmax.f32 %v3252, 0.0
  %v3411 = vmax.f32 %v3257, 0.0
  %v3412 = vmax.f32 %v3262, 0.0
  %v3413 = vmax.f32 %v3267, 0.0
  %v3414 = vmax.f32 %v3272, 0.0
  %v3415 = vmax.f32 %v3277, 0.0
  %v3416 = vmax.f32 %v3282, 0.0
  %v3417 = vmax.f32 %v3287, 0.0
  %v3418 = vmax.f32 %v3292, 0.0
  %v3419 = vmax.f32 %v3297, 0.0
  %v3420 = vmax.f32 %v3302, 0.0
  %v3421 = vmax.f32 %v3307, 0.0
  %v3422 = vmax.f32 %v3312, 0.0
  %v3423 = vmax.f32 %v3317, 0.0
  %v3424 = vmax.f32 %v3322, 0.0
  %v3425 = vmax.f32 %v3327, 0.0
  %v3426 = vmax.f32 %v3332, 0.0
  %v3427 = vmax.f32 %v3337, 0.0
  %v3428 = vmax.f32 %v3342, 0.0
  %v3429 = vmax.f32 %v3347, 0.0
  %v3430 = vmax.f32 %v3352, 0.0
  %v3431 = vmax.f32 %v3357, 0.0
  %v3432 = vmax.f32 %v3362, 0.0
  %v3433 = vmax.f32 %v3367, 0.0
  %v3434 = vmax.f32 %v3372, 0.0
  %v3435 = vmax.f32 %v3377, 0.0
  %v3436 = vmax.f32 %v3382, 0.0
  %v3437 = vmax.f32 %v3387, 0.0
  %v3438 = vmax.f32 %v3392, 0.0
  %v3439 = vmax.f32 %v3397, 0.0
  %v3440 = vmax.f32 %v3402, 0.0
  %v3441 = vmax.f32 %v3405, %v3423
  %v3442 = vmax.f32 %v3406, %v3424
  %v3443 = vmax.f32 %v3407, %v3425
  %v3444 = vmax.f32 %v3408, %v3426
  %v3445 = vmax.f32 %v3409, %v3427
  %v3446 = vmax.f32 %v3410, %v3428
  %v3447 = vmax.f32 %v3411, %v3429
  %v3448 = vmax.f32 %v3412, %v3430
  %v3449 = vmax.f32 %v3413, %v3431
  %v3450 = vmax.f32 %v3414, %v3432
  %v3451 = vmax.f32 %v3415, %v3433
  %v3452 = vmax.f32 %v3416, %v3434
  %v3453 = vmax.f32 %v3417, %v3435
  %v3454 = vmax.f32 %v3418, %v3436
  %v3455 = vmax.f32 %v3419, %v3437
  %v3456 = vmax.f32 %v3420, %v3438
  %v3457 = vmax.f32 %v3421, %v3439
  %v3458 = vmax.f32 %v3422, %v3440
  %v3459 = vmax.f32 %v3441, %v3450
  %v3460 = vmax.f32 %v3442, %v3451
  %v3461 = vmax.f32 %v3443, %v3452
  %v3462 = vmax.f32 %v3444, %v3453
  %v3463 = vmax.f32 %v3445, %v3454
  %v3464 = vmax.f32 %v3446, %v3455
  %v3465 = vmax.f32 %v3447, %v3456
  %v3466 = vmax.f32 %v3448, %v3457
  %v3467 = vmax.f32 %v3449, %v3458
  %3468 = vst [vmem:[#allocation2 + $0x240] sm:$0xff] %v3459
  %3469 = vst [vmem:[#allocation2 + $0x248] sm:$0xff] %v3460
  %3470 = vst [vmem:[#allocation2 + $0x250] sm:$0xff] %v3461
  %3471 = vst [vmem:[#allocation2 + $0x258] sm:$0xff] %v3462
  %3472 = vst [vmem:[#allocation2 + $0x260] sm:$0xff] %v3463
  %3473 = vst [vmem:[#allocation2 + $0x268] sm:$0xff] %v3464
  %3474 = vst [vmem:[#allocation2 + $0x270] sm:$0xff] %v3465
  %3475 = vst [vmem:[#allocation2 + $0x278] sm:$0xff] %v3466
  %3476 = vst [vmem:[#allocation2 + $0x280] sm:$0xff] %v3467
  %v3477 = vld [vmem:[%s0 + $0x1f8] sm:$0xff]
  %v3478 = vld [vmem:[%s0 + $0x200] sm:$0xff]
  %v3479 = vld [vmem:[%s0 + $0x208] sm:$0xff]
  %v3480 = vld [vmem:[%s0 + $0x210] sm:$0xff]
  %v3481 = vld [vmem:[%s0 + $0x218] sm:$0xff]
  %v3482 = vld [vmem:[%s0 + $0x220] sm:$0xff]
  %v3483 = vld [vmem:[%s0 + $0x228] sm:$0xff]
  %v3484 = vld [vmem:[%s0 + $0x230] sm:$0xff]
  %v3485 = vld [vmem:[%s0 + $0x238] sm:$0xff]
  %v3486 = vld [vmem:[%s0 + $0x240] sm:$0xff]
  %v3487 = vld [vmem:[%s0 + $0x248] sm:$0xff]
  %v3488 = vld [vmem:[%s0 + $0x250] sm:$0xff]
  %v3489 = vld [vmem:[%s0 + $0x258] sm:$0xff]
  %v3490 = vld [vmem:[%s0 + $0x260] sm:$0xff]
  %v3491 = vld [vmem:[%s0 + $0x268] sm:$0xff]
  %v3492 = vld [vmem:[%s0 + $0x270] sm:$0xff]
  %v3493 = vld [vmem:[%s0 + $0x278] sm:$0xff]
  %v3494 = vld [vmem:[%s0 + $0x280] sm:$0xff]
  %v3495 = vld [vmem:[%s0 + $0x288] sm:$0xff]
  %v3496 = vld [vmem:[%s0 + $0x290] sm:$0xff]
  %v3497 = vld [vmem:[%s0 + $0x298] sm:$0xff]
  %3498 = vmatprep.subr.mxu0 0.0
  %3499 = vmatpush1.msra.mxu0 %v3477
  %3500 = vmatprep.subr.mxu0 0.0
  %3501 = vmatpush1.msra.mxu0 %v3478
  %3502 = vmatprep.subr.mxu0 0.0
  %3503 = vmatpush1.msra.mxu0 %v3479
  %3504 = vmatprep.subr.mxu0 0.0
  %3505 = vmatpush1.msra.mxu0 %v3480
  %3506 = vmatprep.subr.mxu0 0.0
  %3507 = vmatpush1.msra.mxu0 %v3481
  %3508 = vmatprep.subr.mxu0 0.0
  %3509 = vmatpush1.msra.mxu0 %v3482
  %3510 = vmatprep.subr.mxu0 0.0
  %3511 = vmatpush1.msra.mxu0 %v3483
  %3512 = vmatprep.subr.mxu0 0.0
  %3513 = vmatpush1.msra.mxu0 %v3484
  %3514 = vmatprep.subr.mxu0 0.0
  %3515 = vmatpush1.msra.mxu0 %v3485
  %3516 = vmatprep.subr.mxu0 0.0
  %3517 = vmatpush1.msra.mxu0 %v3486
  %3518 = vmatprep.subr.mxu0 0.0
  %3519 = vmatpush1.msra.mxu0 %v3487
  %3520 = vmatprep.subr.mxu0 0.0
  %3521 = vmatpush1.msra.mxu0 %v3488
  %3522 = vmatprep.subr.mxu0 0.0
  %3523 = vmatpush1.msra.mxu0 %v3489
  %3524 = vmatprep.subr.mxu0 0.0
  %3525 = vmatpush1.msra.mxu0 %v3490
  %3526 = vmatprep.subr.mxu0 0.0
  %3527 = vmatpush1.msra.mxu0 %v3491
  %3528 = vmatprep.subr.mxu0 0.0
  %3529 = vmatpush1.msra.mxu0 %v3492
  %3530 = vmatprep.subr.mxu0 0.0
  %3531 = vmatpush1.msra.mxu0 %v3493
  %3532 = vmatprep.subr.mxu0 0.0
  %3533 = vmatpush1.msra.mxu0 %v3494
  %3534 = vmatprep.subr.mxu0 0.0
  %3535 = vmatpush1.msra.mxu0 %v3495
  %3536 = vmatprep.subr.mxu0 0.0
  %3537 = vmatpush1.msra.mxu0 %v3496
  %3538 = vmatprep.subr.mxu0 0.0
  %3539 = vmatpush1.msra.mxu0 %v3497
  %3540 = vmatprep.subr.mxu0 0.0
  %3541 = vmatpush1.msra.mxu0 0.0
  %3542 = vmatprep.subr.mxu0 0.0
  %3543 = vmatpush1.msra.mxu0 0.0
  %3544 = vmatprep.subr.mxu0 0.0
  %3545 = vmatpush1.msra.mxu0 0.0
  %3546 = vmatprep.subr.mxu0 0.0
  %3547 = vmatpush1.msra.mxu0 0.0
  %3548 = vmatprep.subr.mxu0 0.0
  %3549 = vmatpush1.msra.mxu0 0.0
  %3550 = vmatprep.subr.mxu0 0.0
  %3551 = vmatpush1.msra.mxu0 0.0
  %3552 = vmatprep.subr.mxu0 0.0
  %3553 = vmatpush1.msra.mxu0 0.0
  %3554 = vmatprep.subr.mxu0 0.0
  %3555 = vmatpush1.msra.mxu0 0.0
  %3556 = vmatprep.subr.mxu0 0.0
  %3557 = vmatpush1.msra.mxu0 0.0
  %3558 = vmatprep.subr.mxu0 0.0
  %3559 = vmatpush1.msra.mxu0 0.0
  %3560 = vmatprep.subr.mxu0 0.0
  %3561 = vmatpush1.msra.mxu0 0.0
  %3562 = vmatprep.mubr.f32.mxu0 %v349
  %3563 = vmatmul.mubr.f32.gmra.mrb[0].mxu0 %v38
  %v3564 = vpop.f32.mrb[0].mxu0
  %v3565 = vadd.f32 %v170, %v3564
  %v3566 = vpop.f32.mrb[0].mxu0
  %3567 = vmatprep.mubr.f32.mxu0 %v352
  %3568 = vmatmul.mubr.f32.gmra.mrb[0].mxu0 %v40
  %v3569 = vpop.f32.mrb[0].mxu0
  %v3570 = vadd.f32 %v175, %v3569
  %v3571 = vpop.f32.mrb[0].mxu0
  %3572 = vmatprep.mubr.f32.mxu0 %v355
  %3573 = vmatmul.mubr.f32.gmra.mrb[0].mxu0 %v42
  %v3574 = vpop.f32.mrb[0].mxu0
  %v3575 = vadd.f32 %v180, %v3574
  %v3576 = vpop.f32.mrb[0].mxu0
  %3577 = vmatprep.mubr.f32.mxu0 %v358
  %3578 = vmatmul.mubr.f32.gmra.mrb[0].mxu0 %v44
  %v3579 = vpop.f32.mrb[0].mxu0
  %v3580 = vadd.f32 %v185, %v3579
  %v3581 = vpop.f32.mrb[0].mxu0
  %3582 = vmatprep.mubr.f32.mxu0 %v361
  %3583 = vmatmul.mubr.f32.gmra.mrb[0].mxu0 %v46
  %v3584 = vpop.f32.mrb[0].mxu0
  %v3585 = vadd.f32 %v190, %v3584
  %v3586 = vpop.f32.mrb[0].mxu0
  %3587 = vmatprep.mubr.f32.mxu0 %v364
  %3588 = vmatmul.mubr.f32.gmra.mrb[0].mxu0 %v48
  %v3589 = vpop.f32.mrb[0].mxu0
  %v3590 = vadd.f32 %v195, %v3589
  %v3591 = vpop.f32.mrb[0].mxu0
  %3592 = vmatprep.mubr.f32.mxu0 %v367
  %3593 = vmatmul.mubr.f32.gmra.mrb[0].mxu0 %v50
  %v3594 = vpop.f32.mrb[0].mxu0
  %v3595 = vadd.f32 %v200, %v3594
  %v3596 = vpop.f32.mrb[0].mxu0
  %3597 = vmatprep.mubr.f32.mxu0 %v370
  %3598 = vmatmul.mubr.f32.gmra.mrb[0].mxu0 %v52
  %v3599 = vpop.f32.mrb[0].mxu0
  %v3600 = vadd.f32 %v205, %v3599
  %v3601 = vpop.f32.mrb[0].mxu0
  %3602 = vmatprep.mubr.f32.mxu0 %v373
  %3603 = vmatmul.mubr.f32.gmra.mrb[0].mxu0 %v54
  %v3604 = vpop.f32.mrb[0].mxu0
  %v3605 = vadd.f32 %v210, %v3604
  %v3606 = vpop.f32.mrb[0].mxu0
  %3607 = vmatprep.mubr.f32.mxu0 %v376
  %3608 = vmatmul.mubr.f32.gmra.mrb[0].mxu0 %v56
  %v3609 = vpop.f32.mrb[0].mxu0
  %v3610 = vadd.f32 %v215, %v3609
  %v3611 = vpop.f32.mrb[0].mxu0
  %3612 = vmatprep.mubr.f32.mxu0 %v379
  %3613 = vmatmul.mubr.f32.gmra.mrb[0].mxu0 %v58
  %v3614 = vpop.f32.mrb[0].mxu0
  %v3615 = vadd.f32 %v220, %v3614
  %v3616 = vpop.f32.mrb[0].mxu0
  %3617 = vmatprep.mubr.f32.mxu0 %v382
  %3618 = vmatmul.mubr.f32.gmra.mrb[0].mxu0 %v60
  %v3619 = vpop.f32.mrb[0].mxu0
  %v3620 = vadd.f32 %v225, %v3619
  %v3621 = vpop.f32.mrb[0].mxu0
  %3622 = vmatprep.mubr.f32.mxu0 %v385
  %3623 = vmatmul.mubr.f32.gmra.mrb[0].mxu0 %v62
  %v3624 = vpop.f32.mrb[0].mxu0
  %v3625 = vadd.f32 %v230, %v3624
  %v3626 = vpop.f32.mrb[0].mxu0
  %3627 = vmatprep.mubr.f32.mxu0 %v388
  %3628 = vmatmul.mubr.f32.gmra.mrb[0].mxu0 %v64
  %v3629 = vpop.f32.mrb[0].mxu0
  %v3630 = vadd.f32 %v235, %v3629
  %v3631 = vpop.f32.mrb[0].mxu0
  %3632 = vmatprep.mubr.f32.mxu0 %v391
  %3633 = vmatmul.mubr.f32.gmra.mrb[0].mxu0 %v66
  %v3634 = vpop.f32.mrb[0].mxu0
  %v3635 = vadd.f32 %v240, %v3634
  %v3636 = vpop.f32.mrb[0].mxu0
  %3637 = vmatprep.mubr.f32.mxu0 %v394
  %3638 = vmatmul.mubr.f32.gmra.mrb[0].mxu0 %v68
  %v3639 = vpop.f32.mrb[0].mxu0
  %v3640 = vadd.f32 %v245, %v3639
  %v3641 = vpop.f32.mrb[0].mxu0
  %3642 = vmatprep.mubr.f32.mxu0 %v397
  %3643 = vmatmul.mubr.f32.gmra.mrb[0].mxu0 %v70
  %v3644 = vpop.f32.mrb[0].mxu0
  %v3645 = vadd.f32 %v250, %v3644
  %v3646 = vpop.f32.mrb[0].mxu0
  %3647 = vmatprep.mubr.f32.mxu0 %v400
  %3648 = vmatmul.mubr.f32.gmra.mrb[0].mxu0 %v72
  %v3649 = vpop.f32.mrb[0].mxu0
  %v3650 = vadd.f32 %v255, %v3649
  %v3651 = vpop.f32.mrb[0].mxu0
  %3652 = vmatprep.mubr.f32.mxu0 %v403
  %3653 = vmatmul.mubr.f32.gmra.mrb[0].mxu0 %v74
  %v3654 = vpop.f32.mrb[0].mxu0
  %v3655 = vadd.f32 %v260, %v3654
  %v3656 = vpop.f32.mrb[0].mxu0
  %3657 = vmatprep.mubr.f32.mxu0 %v406
  %3658 = vmatmul.mubr.f32.gmra.mrb[0].mxu0 %v76
  %v3659 = vpop.f32.mrb[0].mxu0
  %v3660 = vadd.f32 %v265, %v3659
  %v3661 = vpop.f32.mrb[0].mxu0
  %3662 = vmatprep.mubr.f32.mxu0 %v409
  %3663 = vmatmul.mubr.f32.gmra.mrb[0].mxu0 %v78
  %v3664 = vpop.f32.mrb[0].mxu0
  %v3665 = vadd.f32 %v270, %v3664
  %v3666 = vpop.f32.mrb[0].mxu0
  %3667 = vmatprep.mubr.f32.mxu0 %v412
  %3668 = vmatmul.mubr.f32.gmra.mrb[0].mxu0 %v80
  %v3669 = vpop.f32.mrb[0].mxu0
  %v3670 = vadd.f32 %v275, %v3669
  %v3671 = vpop.f32.mrb[0].mxu0
  %3672 = vmatprep.mubr.f32.mxu0 %v415
  %3673 = vmatmul.mubr.f32.gmra.mrb[0].mxu0 %v82
  %v3674 = vpop.f32.mrb[0].mxu0
  %v3675 = vadd.f32 %v280, %v3674
  %v3676 = vpop.f32.mrb[0].mxu0
  %3677 = vmatprep.mubr.f32.mxu0 %v418
  %3678 = vmatmul.mubr.f32.gmra.mrb[0].mxu0 %v84
  %v3679 = vpop.f32.mrb[0].mxu0
  %v3680 = vadd.f32 %v285, %v3679
  %v3681 = vpop.f32.mrb[0].mxu0
  %3682 = vmatprep.mubr.f32.mxu0 %v421
  %3683 = vmatmul.mubr.f32.gmra.mrb[0].mxu0 %v86
  %v3684 = vpop.f32.mrb[0].mxu0
  %v3685 = vadd.f32 %v290, %v3684
  %v3686 = vpop.f32.mrb[0].mxu0
  %3687 = vmatprep.mubr.f32.mxu0 %v424
  %3688 = vmatmul.mubr.f32.gmra.mrb[0].mxu0 %v88
  %v3689 = vpop.f32.mrb[0].mxu0
  %v3690 = vadd.f32 %v295, %v3689
  %v3691 = vpop.f32.mrb[0].mxu0
  %3692 = vmatprep.mubr.f32.mxu0 %v427
  %3693 = vmatmul.mubr.f32.gmra.mrb[0].mxu0 %v90
  %v3694 = vpop.f32.mrb[0].mxu0
  %v3695 = vadd.f32 %v300, %v3694
  %v3696 = vpop.f32.mrb[0].mxu0
  %3697 = vmatprep.mubr.f32.mxu0 %v430
  %3698 = vmatmul.mubr.f32.gmra.mrb[0].mxu0 %v92
  %v3699 = vpop.f32.mrb[0].mxu0
  %v3700 = vadd.f32 %v305, %v3699
  %v3701 = vpop.f32.mrb[0].mxu0
  %3702 = vmatprep.mubr.f32.mxu0 %v433
  %3703 = vmatmul.mubr.f32.gmra.mrb[0].mxu0 %v94
  %v3704 = vpop.f32.mrb[0].mxu0
  %v3705 = vadd.f32 %v310, %v3704
  %v3706 = vpop.f32.mrb[0].mxu0
  %3707 = vmatprep.mubr.f32.mxu0 %v436
  %3708 = vmatmul.mubr.f32.gmra.mrb[0].mxu0 %v96
  %v3709 = vpop.f32.mrb[0].mxu0
  %v3710 = vadd.f32 %v315, %v3709
  %v3711 = vpop.f32.mrb[0].mxu0
  %3712 = vmatprep.mubr.f32.mxu0 %v439
  %3713 = vmatmul.mubr.f32.gmra.mrb[0].mxu0 %v98
  %v3714 = vpop.f32.mrb[0].mxu0
  %v3715 = vadd.f32 %v320, %v3714
  %v3716 = vpop.f32.mrb[0].mxu0
  %3717 = vmatprep.mubr.f32.mxu0 %v442
  %3718 = vmatmul.mubr.f32.gmra.mrb[0].mxu0 %v100
  %v3719 = vpop.f32.mrb[0].mxu0
  %v3720 = vadd.f32 %v325, %v3719
  %v3721 = vpop.f32.mrb[0].mxu0
  %3722 = vmatprep.mubr.f32.mxu0 %v445
  %3723 = vmatmul.mubr.f32.gmra.mrb[0].mxu0 %v102
  %v3724 = vpop.f32.mrb[0].mxu0
  %v3725 = vadd.f32 %v330, %v3724
  %v3726 = vpop.f32.mrb[0].mxu0
  %3727 = vmatprep.mubr.f32.mxu0 %v448
  %3728 = vmatmul.mubr.f32.gmra.mrb[0].mxu0 %v104
  %v3729 = vpop.f32.mrb[0].mxu0
  %v3730 = vadd.f32 %v335, %v3729
  %v3731 = vpop.f32.mrb[0].mxu0
  %3732 = vmatprep.mubr.f32.mxu0 %v451
  %3733 = vmatmul.mubr.f32.gmra.mrb[0].mxu0 %v106
  %v3734 = vpop.f32.mrb[0].mxu0
  %v3735 = vadd.f32 %v340, %v3734
  %v3736 = vpop.f32.mrb[0].mxu0
  %3737 = vmatprep.mubr.f32.mxu0 %v454
  %3738 = vmatmul.mubr.f32.gmra.mrb[0].mxu0 %v108
  %v3739 = vpop.f32.mrb[0].mxu0
  %v3740 = vadd.f32 %v345, %v3739
  %v3741 = vpop.f32.mrb[0].mxu0
  %3742 = vdwg.mxu0
  %v3743 = vmax.f32 %v3565, 0.0
  %v3744 = vmax.f32 %v3570, 0.0
  %v3745 = vmax.f32 %v3575, 0.0
  %v3746 = vmax.f32 %v3580, 0.0
  %v3747 = vmax.f32 %v3585, 0.0
  %v3748 = vmax.f32 %v3590, 0.0
  %v3749 = vmax.f32 %v3595, 0.0
  %v3750 = vmax.f32 %v3600, 0.0
  %v3751 = vmax.f32 %v3605, 0.0
  %v3752 = vmax.f32 %v3610, 0.0
  %v3753 = vmax.f32 %v3615, 0.0
  %v3754 = vmax.f32 %v3620, 0.0
  %v3755 = vmax.f32 %v3625, 0.0
  %v3756 = vmax.f32 %v3630, 0.0
  %v3757 = vmax.f32 %v3635, 0.0
  %v3758 = vmax.f32 %v3640, 0.0
  %v3759 = vmax.f32 %v3645, 0.0
  %v3760 = vmax.f32 %v3650, 0.0
  %v3761 = vmax.f32 %v3655, 0.0
  %v3762 = vmax.f32 %v3660, 0.0
  %v3763 = vmax.f32 %v3665, 0.0
  %v3764 = vmax.f32 %v3670, 0.0
  %v3765 = vmax.f32 %v3675, 0.0
  %v3766 = vmax.f32 %v3680, 0.0
  %v3767 = vmax.f32 %v3685, 0.0
  %v3768 = vmax.f32 %v3690, 0.0
  %v3769 = vmax.f32 %v3695, 0.0
  %v3770 = vmax.f32 %v3700, 0.0
  %v3771 = vmax.f32 %v3705, 0.0
  %v3772 = vmax.f32 %v3710, 0.0
  %v3773 = vmax.f32 %v3715, 0.0
  %v3774 = vmax.f32 %v3720, 0.0
  %v3775 = vmax.f32 %v3725, 0.0
  %v3776 = vmax.f32 %v3730, 0.0
  %v3777 = vmax.f32 %v3735, 0.0
  %v3778 = vmax.f32 %v3740, 0.0
  %v3779 = vmax.f32 %v3743, %v3761
  %v3780 = vmax.f32 %v3744, %v3762
  %v3781 = vmax.f32 %v3745, %v3763
  %v3782 = vmax.f32 %v3746, %v3764
  %v3783 = vmax.f32 %v3747, %v3765
  %v3784 = vmax.f32 %v3748, %v3766
  %v3785 = vmax.f32 %v3749, %v3767
  %v3786 = vmax.f32 %v3750, %v3768
  %v3787 = vmax.f32 %v3751, %v3769
  %v3788 = vmax.f32 %v3752, %v3770
  %v3789 = vmax.f32 %v3753, %v3771
  %v3790 = vmax.f32 %v3754, %v3772
  %v3791 = vmax.f32 %v3755, %v3773
  %v3792 = vmax.f32 %v3756, %v3774
  %v3793 = vmax.f32 %v3757, %v3775
  %v3794 = vmax.f32 %v3758, %v3776
  %v3795 = vmax.f32 %v3759, %v3777
  %v3796 = vmax.f32 %v3760, %v3778
  %v3797 = vmax.f32 %v3779, %v3788
  %v3798 = vmax.f32 %v3780, %v3789
  %v3799 = vmax.f32 %v3781, %v3790
  %v3800 = vmax.f32 %v3782, %v3791
  %v3801 = vmax.f32 %v3783, %v3792
  %v3802 = vmax.f32 %v3784, %v3793
  %v3803 = vmax.f32 %v3785, %v3794
  %v3804 = vmax.f32 %v3786, %v3795
  %v3805 = vmax.f32 %v3787, %v3796
  %3806 = vst [vmem:[#allocation2 + $0x288] sm:$0xff] %v3797
  %3807 = vst [vmem:[#allocation2 + $0x290] sm:$0xff] %v3798
  %3808 = vst [vmem:[#allocation2 + $0x298] sm:$0xff] %v3799
  %3809 = vst [vmem:[#allocation2 + $0x2a0] sm:$0xff] %v3800
  %3810 = vst [vmem:[#allocation2 + $0x2a8] sm:$0xff] %v3801
  %3811 = vst [vmem:[#allocation2 + $0x2b0] sm:$0xff] %v3802
  %3812 = vst [vmem:[#allocation2 + $0x2b8] sm:$0xff] %v3803
  %3813 = vst [vmem:[#allocation2 + $0x2c0] sm:$0xff] %v3804
  %3814 = vst [vmem:[#allocation2 + $0x2c8] sm:$0xff] %v3805
  %v3815 = vld [vmem:[%s0 + $0x230] sm:$0xff]
  %v3816 = vld [vmem:[%s0 + $0x238] sm:$0xff]
  %v3817 = vld [vmem:[%s0 + $0x240] sm:$0xff]
  %v3818 = vld [vmem:[%s0 + $0x248] sm:$0xff]
  %v3819 = vld [vmem:[%s0 + $0x250] sm:$0xff]
  %v3820 = vld [vmem:[%s0 + $0x258] sm:$0xff]
  %v3821 = vld [vmem:[%s0 + $0x260] sm:$0xff]
  %v3822 = vld [vmem:[%s0 + $0x268] sm:$0xff]
  %v3823 = vld [vmem:[%s0 + $0x270] sm:$0xff]
  %v3824 = vld [vmem:[%s0 + $0x278] sm:$0xff]
  %v3825 = vld [vmem:[%s0 + $0x280] sm:$0xff]
  %v3826 = vld [vmem:[%s0 + $0x288] sm:$0xff]
  %v3827 = vld [vmem:[%s0 + $0x290] sm:$0xff]
  %v3828 = vld [vmem:[%s0 + $0x298] sm:$0xff]
  %v3829 = vld [vmem:[%s0 + $0x2a0] sm:$0xff]
  %v3830 = vld [vmem:[%s0 + $0x2a8] sm:$0xff]
  %v3831 = vld [vmem:[%s0 + $0x2b0] sm:$0xff]
  %v3832 = vld [vmem:[%s0 + $0x2b8] sm:$0xff]
  %v3833 = vld [vmem:[%s0 + $0x2c0] sm:$0xff]
  %v3834 = vld [vmem:[%s0 + $0x2c8] sm:$0xff]
  %v3835 = vld [vmem:[%s0 + $0x2d0] sm:$0xff]
  %3836 = vmatprep.subr.mxu0 0.0
  %3837 = vmatpush1.msra.mxu0 %v3815
  %3838 = vmatprep.subr.mxu0 0.0
  %3839 = vmatpush1.msra.mxu0 %v3816
  %3840 = vmatprep.subr.mxu0 0.0
  %3841 = vmatpush1.msra.mxu0 %v3817
  %3842 = vmatprep.subr.mxu0 0.0
  %3843 = vmatpush1.msra.mxu0 %v3818
  %3844 = vmatprep.subr.mxu0 0.0
  %3845 = vmatpush1.msra.mxu0 %v3819
  %3846 = vmatprep.subr.mxu0 0.0
  %3847 = vmatpush1.msra.mxu0 %v3820
  %3848 = vmatprep.subr.mxu0 0.0
  %3849 = vmatpush1.msra.mxu0 %v3821
  %3850 = vmatprep.subr.mxu0 0.0
  %3851 = vmatpush1.msra.mxu0 %v3822
  %3852 = vmatprep.subr.mxu0 0.0
  %3853 = vmatpush1.msra.mxu0 %v3823
  %3854 = vmatprep.subr.mxu0 0.0
  %3855 = vmatpush1.msra.mxu0 %v3824
  %3856 = vmatprep.subr.mxu0 0.0
  %3857 = vmatpush1.msra.mxu0 %v3825
  %3858 = vmatprep.subr.mxu0 0.0
  %3859 = vmatpush1.msra.mxu0 %v3826
  %3860 = vmatprep.subr.mxu0 0.0
  %3861 = vmatpush1.msra.mxu0 %v3827
  %3862 = vmatprep.subr.mxu0 0.0
  %3863 = vmatpush1.msra.mxu0 %v3828
  %3864 = vmatprep.subr.mxu0 0.0
  %3865 = vmatpush1.msra.mxu0 %v3829
  %3866 = vmatprep.subr.mxu0 0.0
  %3867 = vmatpush1.msra.mxu0 %v3830
  %3868 = vmatprep.subr.mxu0 0.0
  %3869 = vmatpush1.msra.mxu0 %v3831
  %3870 = vmatprep.subr.mxu0 0.0
  %3871 = vmatpush1.msra.mxu0 %v3832
  %3872 = vmatprep.subr.mxu0 0.0
  %3873 = vmatpush1.msra.mxu0 %v3833
  %3874 = vmatprep.subr.mxu0 0.0
  %3875 = vmatpush1.msra.mxu0 %v3834
  %3876 = vmatprep.subr.mxu0 0.0
  %3877 = vmatpush1.msra.mxu0 %v3835
  %3878 = vmatprep.subr.mxu0 0.0
  %3879 = vmatpush1.msra.mxu0 0.0
  %3880 = vmatprep.subr.mxu0 0.0
  %3881 = vmatpush1.msra.mxu0 0.0
  %3882 = vmatprep.subr.mxu0 0.0
  %3883 = vmatpush1.msra.mxu0 0.0
  %3884 = vmatprep.subr.mxu0 0.0
  %3885 = vmatpush1.msra.mxu0 0.0
  %3886 = vmatprep.subr.mxu0 0.0
  %3887 = vmatpush1.msra.mxu0 0.0
  %3888 = vmatprep.subr.mxu0 0.0
  %3889 = vmatpush1.msra.mxu0 0.0
  %3890 = vmatprep.subr.mxu0 0.0
  %3891 = vmatpush1.msra.mxu0 0.0
  %3892 = vmatprep.subr.mxu0 0.0
  %3893 = vmatpush1.msra.mxu0 0.0
  %3894 = vmatprep.subr.mxu0 0.0
  %3895 = vmatpush1.msra.mxu0 0.0
  %3896 = vmatprep.subr.mxu0 0.0
  %3897 = vmatpush1.msra.mxu0 0.0
  %3898 = vmatprep.subr.mxu0 0.0
  %3899 = vmatpush1.msra.mxu0 0.0
  %3900 = vmatprep.mubr.f32.mxu0 %v349
  %3901 = vmatmul.mubr.f32.gmra.mrb[0].mxu0 %v38
  %v3902 = vpop.f32.mrb[0].mxu0
  %v3903 = vadd.f32 %v170, %v3902
  %v3904 = vpop.f32.mrb[0].mxu0
  %3905 = vmatprep.mubr.f32.mxu0 %v352
  %3906 = vmatmul.mubr.f32.gmra.mrb[0].mxu0 %v40
  %v3907 = vpop.f32.mrb[0].mxu0
  %v3908 = vadd.f32 %v175, %v3907
  %v3909 = vpop.f32.mrb[0].mxu0
  %3910 = vmatprep.mubr.f32.mxu0 %v355
  %3911 = vmatmul.mubr.f32.gmra.mrb[0].mxu0 %v42
  %v3912 = vpop.f32.mrb[0].mxu0
  %v3913 = vadd.f32 %v180, %v3912
  %v3914 = vpop.f32.mrb[0].mxu0
  %3915 = vmatprep.mubr.f32.mxu0 %v358
  %3916 = vmatmul.mubr.f32.gmra.mrb[0].mxu0 %v44
  %v3917 = vpop.f32.mrb[0].mxu0
  %v3918 = vadd.f32 %v185, %v3917
  %v3919 = vpop.f32.mrb[0].mxu0
  %3920 = vmatprep.mubr.f32.mxu0 %v361
  %3921 = vmatmul.mubr.f32.gmra.mrb[0].mxu0 %v46
  %v3922 = vpop.f32.mrb[0].mxu0
  %v3923 = vadd.f32 %v190, %v3922
  %v3924 = vpop.f32.mrb[0].mxu0
  %3925 = vmatprep.mubr.f32.mxu0 %v364
  %3926 = vmatmul.mubr.f32.gmra.mrb[0].mxu0 %v48
  %v3927 = vpop.f32.mrb[0].mxu0
  %v3928 = vadd.f32 %v195, %v3927
  %v3929 = vpop.f32.mrb[0].mxu0
  %3930 = vmatprep.mubr.f32.mxu0 %v367
  %3931 = vmatmul.mubr.f32.gmra.mrb[0].mxu0 %v50
  %v3932 = vpop.f32.mrb[0].mxu0
  %v3933 = vadd.f32 %v200, %v3932
  %v3934 = vpop.f32.mrb[0].mxu0
  %3935 = vmatprep.mubr.f32.mxu0 %v370
  %3936 = vmatmul.mubr.f32.gmra.mrb[0].mxu0 %v52
  %v3937 = vpop.f32.mrb[0].mxu0
  %v3938 = vadd.f32 %v205, %v3937
  %v3939 = vpop.f32.mrb[0].mxu0
  %3940 = vmatprep.mubr.f32.mxu0 %v373
  %3941 = vmatmul.mubr.f32.gmra.mrb[0].mxu0 %v54
  %v3942 = vpop.f32.mrb[0].mxu0
  %v3943 = vadd.f32 %v210, %v3942
  %v3944 = vpop.f32.mrb[0].mxu0
  %3945 = vmatprep.mubr.f32.mxu0 %v376
  %3946 = vmatmul.mubr.f32.gmra.mrb[0].mxu0 %v56
  %v3947 = vpop.f32.mrb[0].mxu0
  %v3948 = vadd.f32 %v215, %v3947
  %v3949 = vpop.f32.mrb[0].mxu0
  %3950 = vmatprep.mubr.f32.mxu0 %v379
  %3951 = vmatmul.mubr.f32.gmra.mrb[0].mxu0 %v58
  %v3952 = vpop.f32.mrb[0].mxu0
  %v3953 = vadd.f32 %v220, %v3952
  %v3954 = vpop.f32.mrb[0].mxu0
  %3955 = vmatprep.mubr.f32.mxu0 %v382
  %3956 = vmatmul.mubr.f32.gmra.mrb[0].mxu0 %v60
  %v3957 = vpop.f32.mrb[0].mxu0
  %v3958 = vadd.f32 %v225, %v3957
  %v3959 = vpop.f32.mrb[0].mxu0
  %3960 = vmatprep.mubr.f32.mxu0 %v385
  %3961 = vmatmul.mubr.f32.gmra.mrb[0].mxu0 %v62
  %v3962 = vpop.f32.mrb[0].mxu0
  %v3963 = vadd.f32 %v230, %v3962
  %v3964 = vpop.f32.mrb[0].mxu0
  %3965 = vmatprep.mubr.f32.mxu0 %v388
  %3966 = vmatmul.mubr.f32.gmra.mrb[0].mxu0 %v64
  %v3967 = vpop.f32.mrb[0].mxu0
  %v3968 = vadd.f32 %v235, %v3967
  %v3969 = vpop.f32.mrb[0].mxu0
  %3970 = vmatprep.mubr.f32.mxu0 %v391
  %3971 = vmatmul.mubr.f32.gmra.mrb[0].mxu0 %v66
  %v3972 = vpop.f32.mrb[0].mxu0
  %v3973 = vadd.f32 %v240, %v3972
  %v3974 = vpop.f32.mrb[0].mxu0
  %3975 = vmatprep.mubr.f32.mxu0 %v394
  %3976 = vmatmul.mubr.f32.gmra.mrb[0].mxu0 %v68
  %v3977 = vpop.f32.mrb[0].mxu0
  %v3978 = vadd.f32 %v245, %v3977
  %v3979 = vpop.f32.mrb[0].mxu0
  %3980 = vmatprep.mubr.f32.mxu0 %v397
  %3981 = vmatmul.mubr.f32.gmra.mrb[0].mxu0 %v70
  %v3982 = vpop.f32.mrb[0].mxu0
  %v3983 = vadd.f32 %v250, %v3982
  %v3984 = vpop.f32.mrb[0].mxu0
  %3985 = vmatprep.mubr.f32.mxu0 %v400
  %3986 = vmatmul.mubr.f32.gmra.mrb[0].mxu0 %v72
  %v3987 = vpop.f32.mrb[0].mxu0
  %v3988 = vadd.f32 %v255, %v3987
  %v3989 = vpop.f32.mrb[0].mxu0
  %3990 = vmatprep.mubr.f32.mxu0 %v403
  %3991 = vmatmul.mubr.f32.gmra.mrb[0].mxu0 %v74
  %v3992 = vpop.f32.mrb[0].mxu0
  %v3993 = vadd.f32 %v260, %v3992
  %v3994 = vpop.f32.mrb[0].mxu0
  %3995 = vmatprep.mubr.f32.mxu0 %v406
  %3996 = vmatmul.mubr.f32.gmra.mrb[0].mxu0 %v76
  %v3997 = vpop.f32.mrb[0].mxu0
  %v3998 = vadd.f32 %v265, %v3997
  %v3999 = vpop.f32.mrb[0].mxu0
  %4000 = vmatprep.mubr.f32.mxu0 %v409
  %4001 = vmatmul.mubr.f32.gmra.mrb[0].mxu0 %v78
  %v4002 = vpop.f32.mrb[0].mxu0
  %v4003 = vadd.f32 %v270, %v4002
  %v4004 = vpop.f32.mrb[0].mxu0
  %4005 = vmatprep.mubr.f32.mxu0 %v412
  %4006 = vmatmul.mubr.f32.gmra.mrb[0].mxu0 %v80
  %v4007 = vpop.f32.mrb[0].mxu0
  %v4008 = vadd.f32 %v275, %v4007
  %v4009 = vpop.f32.mrb[0].mxu0
  %4010 = vmatprep.mubr.f32.mxu0 %v415
  %4011 = vmatmul.mubr.f32.gmra.mrb[0].mxu0 %v82
  %v4012 = vpop.f32.mrb[0].mxu0
  %v4013 = vadd.f32 %v280, %v4012
  %v4014 = vpop.f32.mrb[0].mxu0
  %4015 = vmatprep.mubr.f32.mxu0 %v418
  %4016 = vmatmul.mubr.f32.gmra.mrb[0].mxu0 %v84
  %v4017 = vpop.f32.mrb[0].mxu0
  %v4018 = vadd.f32 %v285, %v4017
  %v4019 = vpop.f32.mrb[0].mxu0
  %4020 = vmatprep.mubr.f32.mxu0 %v421
  %4021 = vmatmul.mubr.f32.gmra.mrb[0].mxu0 %v86
  %v4022 = vpop.f32.mrb[0].mxu0
  %v4023 = vadd.f32 %v290, %v4022
  %v4024 = vpop.f32.mrb[0].mxu0
  %4025 = vmatprep.mubr.f32.mxu0 %v424
  %4026 = vmatmul.mubr.f32.gmra.mrb[0].mxu0 %v88
  %v4027 = vpop.f32.mrb[0].mxu0
  %v4028 = vadd.f32 %v295, %v4027
  %v4029 = vpop.f32.mrb[0].mxu0
  %4030 = vmatprep.mubr.f32.mxu0 %v427
  %4031 = vmatmul.mubr.f32.gmra.mrb[0].mxu0 %v90
  %v4032 = vpop.f32.mrb[0].mxu0
  %v4033 = vadd.f32 %v300, %v4032
  %v4034 = vpop.f32.mrb[0].mxu0
  %4035 = vmatprep.mubr.f32.mxu0 %v430
  %4036 = vmatmul.mubr.f32.gmra.mrb[0].mxu0 %v92
  %v4037 = vpop.f32.mrb[0].mxu0
  %v4038 = vadd.f32 %v305, %v4037
  %v4039 = vpop.f32.mrb[0].mxu0
  %4040 = vmatprep.mubr.f32.mxu0 %v433
  %4041 = vmatmul.mubr.f32.gmra.mrb[0].mxu0 %v94
  %v4042 = vpop.f32.mrb[0].mxu0
  %v4043 = vadd.f32 %v310, %v4042
  %v4044 = vpop.f32.mrb[0].mxu0
  %4045 = vmatprep.mubr.f32.mxu0 %v436
  %4046 = vmatmul.mubr.f32.gmra.mrb[0].mxu0 %v96
  %v4047 = vpop.f32.mrb[0].mxu0
  %v4048 = vadd.f32 %v315, %v4047
  %v4049 = vpop.f32.mrb[0].mxu0
  %4050 = vmatprep.mubr.f32.mxu0 %v439
  %4051 = vmatmul.mubr.f32.gmra.mrb[0].mxu0 %v98
  %v4052 = vpop.f32.mrb[0].mxu0
  %v4053 = vadd.f32 %v320, %v4052
  %v4054 = vpop.f32.mrb[0].mxu0
  %4055 = vmatprep.mubr.f32.mxu0 %v442
  %4056 = vmatmul.mubr.f32.gmra.mrb[0].mxu0 %v100
  %v4057 = vpop.f32.mrb[0].mxu0
  %v4058 = vadd.f32 %v325, %v4057
  %v4059 = vpop.f32.mrb[0].mxu0
  %4060 = vmatprep.mubr.f32.mxu0 %v445
  %4061 = vmatmul.mubr.f32.gmra.mrb[0].mxu0 %v102
  %v4062 = vpop.f32.mrb[0].mxu0
  %v4063 = vadd.f32 %v330, %v4062
  %v4064 = vpop.f32.mrb[0].mxu0
  %4065 = vmatprep.mubr.f32.mxu0 %v448
  %4066 = vmatmul.mubr.f32.gmra.mrb[0].mxu0 %v104
  %v4067 = vpop.f32.mrb[0].mxu0
  %v4068 = vadd.f32 %v335, %v4067
  %v4069 = vpop.f32.mrb[0].mxu0
  %4070 = vmatprep.mubr.f32.mxu0 %v451
  %4071 = vmatmul.mubr.f32.gmra.mrb[0].mxu0 %v106
  %v4072 = vpop.f32.mrb[0].mxu0
  %v4073 = vadd.f32 %v340, %v4072
  %v4074 = vpop.f32.mrb[0].mxu0
  %4075 = vmatprep.mubr.f32.mxu0 %v454
  %4076 = vmatmul.mubr.f32.gmra.mrb[0].mxu0 %v108
  %v4077 = vpop.f32.mrb[0].mxu0
  %v4078 = vadd.f32 %v345, %v4077
  %v4079 = vpop.f32.mrb[0].mxu0
  %4080 = vdwg.mxu0
  %v4081 = vmax.f32 %v3903, 0.0
  %v4082 = vmax.f32 %v3908, 0.0
  %v4083 = vmax.f32 %v3913, 0.0
  %v4084 = vmax.f32 %v3918, 0.0
  %v4085 = vmax.f32 %v3923, 0.0
  %v4086 = vmax.f32 %v3928, 0.0
  %v4087 = vmax.f32 %v3933, 0.0
  %v4088 = vmax.f32 %v3938, 0.0
  %v4089 = vmax.f32 %v3943, 0.0
  %v4090 = vmax.f32 %v3948, 0.0
  %v4091 = vmax.f32 %v3953, 0.0
  %v4092 = vmax.f32 %v3958, 0.0
  %v4093 = vmax.f32 %v3963, 0.0
  %v4094 = vmax.f32 %v3968, 0.0
  %v4095 = vmax.f32 %v3973, 0.0
  %v4096 = vmax.f32 %v3978, 0.0
  %v4097 = vmax.f32 %v3983, 0.0
  %v4098 = vmax.f32 %v3988, 0.0
  %v4099 = vmax.f32 %v3993, 0.0
  %v4100 = vmax.f32 %v3998, 0.0
  %v4101 = vmax.f32 %v4003, 0.0
  %v4102 = vmax.f32 %v4008, 0.0
  %v4103 = vmax.f32 %v4013, 0.0
  %v4104 = vmax.f32 %v4018, 0.0
  %v4105 = vmax.f32 %v4023, 0.0
  %v4106 = vmax.f32 %v4028, 0.0
  %v4107 = vmax.f32 %v4033, 0.0
  %v4108 = vmax.f32 %v4038, 0.0
  %v4109 = vmax.f32 %v4043, 0.0
  %v4110 = vmax.f32 %v4048, 0.0
  %v4111 = vmax.f32 %v4053, 0.0
  %v4112 = vmax.f32 %v4058, 0.0
  %v4113 = vmax.f32 %v4063, 0.0
  %v4114 = vmax.f32 %v4068, 0.0
  %v4115 = vmax.f32 %v4073, 0.0
  %v4116 = vmax.f32 %v4078, 0.0
  %v4117 = vmax.f32 %v4081, %v4099
  %v4118 = vmax.f32 %v4082, %v4100
  %v4119 = vmax.f32 %v4083, %v4101
  %v4120 = vmax.f32 %v4084, %v4102
  %v4121 = vmax.f32 %v4085, %v4103
  %v4122 = vmax.f32 %v4086, %v4104
  %v4123 = vmax.f32 %v4087, %v4105
  %v4124 = vmax.f32 %v4088, %v4106
  %v4125 = vmax.f32 %v4089, %v4107
  %v4126 = vmax.f32 %v4090, %v4108
  %v4127 = vmax.f32 %v4091, %v4109
  %v4128 = vmax.f32 %v4092, %v4110
  %v4129 = vmax.f32 %v4093, %v4111
  %v4130 = vmax.f32 %v4094, %v4112
  %v4131 = vmax.f32 %v4095, %v4113
  %v4132 = vmax.f32 %v4096, %v4114
  %v4133 = vmax.f32 %v4097, %v4115
  %v4134 = vmax.f32 %v4098, %v4116
  %v4135 = vmax.f32 %v4117, %v4126
  %v4136 = vmax.f32 %v4118, %v4127
  %v4137 = vmax.f32 %v4119, %v4128
  %v4138 = vmax.f32 %v4120, %v4129
  %v4139 = vmax.f32 %v4121, %v4130
  %v4140 = vmax.f32 %v4122, %v4131
  %v4141 = vmax.f32 %v4123, %v4132
  %v4142 = vmax.f32 %v4124, %v4133
  %v4143 = vmax.f32 %v4125, %v4134
  %4144 = vst [vmem:[#allocation2 + $0x2d0] sm:$0xff] %v4135
  %4145 = vst [vmem:[#allocation2 + $0x2d8] sm:$0xff] %v4136
  %4146 = vst [vmem:[#allocation2 + $0x2e0] sm:$0xff] %v4137
  %4147 = vst [vmem:[#allocation2 + $0x2e8] sm:$0xff] %v4138
  %4148 = vst [vmem:[#allocation2 + $0x2f0] sm:$0xff] %v4139
  %4149 = vst [vmem:[#allocation2 + $0x2f8] sm:$0xff] %v4140
  %4150 = vst [vmem:[#allocation2 + $0x300] sm:$0xff] %v4141
  %4151 = vst [vmem:[#allocation2 + $0x308] sm:$0xff] %v4142
  %4152 = vst [vmem:[#allocation2 + $0x310] sm:$0xff] %v4143
  %v4153 = vld [vmem:[%s0 + $0x268] sm:$0xff]
  %v4154 = vld [vmem:[%s0 + $0x270] sm:$0xff]
  %v4155 = vld [vmem:[%s0 + $0x278] sm:$0xff]
  %v4156 = vld [vmem:[%s0 + $0x280] sm:$0xff]
  %v4157 = vld [vmem:[%s0 + $0x288] sm:$0xff]
  %v4158 = vld [vmem:[%s0 + $0x290] sm:$0xff]
  %v4159 = vld [vmem:[%s0 + $0x298] sm:$0xff]
  %v4160 = vld [vmem:[%s0 + $0x2a0] sm:$0xff]
  %v4161 = vld [vmem:[%s0 + $0x2a8] sm:$0xff]
  %v4162 = vld [vmem:[%s0 + $0x2b0] sm:$0xff]
  %v4163 = vld [vmem:[%s0 + $0x2b8] sm:$0xff]
  %v4164 = vld [vmem:[%s0 + $0x2c0] sm:$0xff]
  %v4165 = vld [vmem:[%s0 + $0x2c8] sm:$0xff]
  %v4166 = vld [vmem:[%s0 + $0x2d0] sm:$0xff]
  %v4167 = vld [vmem:[%s0 + $0x2d8] sm:$0xff]
  %v4168 = vld [vmem:[%s0 + $0x2e0] sm:$0xff]
  %v4169 = vld [vmem:[%s0 + $0x2e8] sm:$0xff]
  %v4170 = vld [vmem:[%s0 + $0x2f0] sm:$0xff]
  %v4171 = vld [vmem:[%s0 + $0x2f8] sm:$0xff]
  %v4172 = vld [vmem:[%s0 + $0x300] sm:$0xff]
  %v4173 = vld [vmem:[%s0 + $0x308] sm:$0xff]
  %4174 = vmatprep.subr.mxu0 0.0
  %4175 = vmatpush1.msra.mxu0 %v4153
  %4176 = vmatprep.subr.mxu0 0.0
  %4177 = vmatpush1.msra.mxu0 %v4154
  %4178 = vmatprep.subr.mxu0 0.0
  %4179 = vmatpush1.msra.mxu0 %v4155
  %4180 = vmatprep.subr.mxu0 0.0
  %4181 = vmatpush1.msra.mxu0 %v4156
  %4182 = vmatprep.subr.mxu0 0.0
  %4183 = vmatpush1.msra.mxu0 %v4157
  %4184 = vmatprep.subr.mxu0 0.0
  %4185 = vmatpush1.msra.mxu0 %v4158
  %4186 = vmatprep.subr.mxu0 0.0
  %4187 = vmatpush1.msra.mxu0 %v4159
  %4188 = vmatprep.subr.mxu0 0.0
  %4189 = vmatpush1.msra.mxu0 %v4160
  %4190 = vmatprep.subr.mxu0 0.0
  %4191 = vmatpush1.msra.mxu0 %v4161
  %4192 = vmatprep.subr.mxu0 0.0
  %4193 = vmatpush1.msra.mxu0 %v4162
  %4194 = vmatprep.subr.mxu0 0.0
  %4195 = vmatpush1.msra.mxu0 %v4163
  %4196 = vmatprep.subr.mxu0 0.0
  %4197 = vmatpush1.msra.mxu0 %v4164
  %4198 = vmatprep.subr.mxu0 0.0
  %4199 = vmatpush1.msra.mxu0 %v4165
  %4200 = vmatprep.subr.mxu0 0.0
  %4201 = vmatpush1.msra.mxu0 %v4166
  %4202 = vmatprep.subr.mxu0 0.0
  %4203 = vmatpush1.msra.mxu0 %v4167
  %4204 = vmatprep.subr.mxu0 0.0
  %4205 = vmatpush1.msra.mxu0 %v4168
  %4206 = vmatprep.subr.mxu0 0.0
  %4207 = vmatpush1.msra.mxu0 %v4169
  %4208 = vmatprep.subr.mxu0 0.0
  %4209 = vmatpush1.msra.mxu0 %v4170
  %4210 = vmatprep.subr.mxu0 0.0
  %4211 = vmatpush1.msra.mxu0 %v4171
  %4212 = vmatprep.subr.mxu0 0.0
  %4213 = vmatpush1.msra.mxu0 %v4172
  %4214 = vmatprep.subr.mxu0 0.0
  %4215 = vmatpush1.msra.mxu0 %v4173
  %4216 = vmatprep.subr.mxu0 0.0
  %4217 = vmatpush1.msra.mxu0 0.0
  %4218 = vmatprep.subr.mxu0 0.0
  %4219 = vmatpush1.msra.mxu0 0.0
  %4220 = vmatprep.subr.mxu0 0.0
  %4221 = vmatpush1.msra.mxu0 0.0
  %4222 = vmatprep.subr.mxu0 0.0
  %4223 = vmatpush1.msra.mxu0 0.0
  %4224 = vmatprep.subr.mxu0 0.0
  %4225 = vmatpush1.msra.mxu0 0.0
  %4226 = vmatprep.subr.mxu0 0.0
  %4227 = vmatpush1.msra.mxu0 0.0
  %4228 = vmatprep.subr.mxu0 0.0
  %4229 = vmatpush1.msra.mxu0 0.0
  %4230 = vmatprep.subr.mxu0 0.0
  %4231 = vmatpush1.msra.mxu0 0.0
  %4232 = vmatprep.subr.mxu0 0.0
  %4233 = vmatpush1.msra.mxu0 0.0
  %4234 = vmatprep.subr.mxu0 0.0
  %4235 = vmatpush1.msra.mxu0 0.0
  %4236 = vmatprep.subr.mxu0 0.0
  %4237 = vmatpush1.msra.mxu0 0.0
  %4238 = vmatprep.mubr.f32.mxu0 %v349
  %4239 = vmatmul.mubr.f32.gmra.mrb[0].mxu0 %v38
  %v4240 = vpop.f32.mrb[0].mxu0
  %v4241 = vadd.f32 %v170, %v4240
  %v4242 = vpop.f32.mrb[0].mxu0
  %4243 = vmatprep.mubr.f32.mxu0 %v352
  %4244 = vmatmul.mubr.f32.gmra.mrb[0].mxu0 %v40
  %v4245 = vpop.f32.mrb[0].mxu0
  %v4246 = vadd.f32 %v175, %v4245
  %v4247 = vpop.f32.mrb[0].mxu0
  %4248 = vmatprep.mubr.f32.mxu0 %v355
  %4249 = vmatmul.mubr.f32.gmra.mrb[0].mxu0 %v42
  %v4250 = vpop.f32.mrb[0].mxu0
  %v4251 = vadd.f32 %v180, %v4250
  %v4252 = vpop.f32.mrb[0].mxu0
  %4253 = vmatprep.mubr.f32.mxu0 %v358
  %4254 = vmatmul.mubr.f32.gmra.mrb[0].mxu0 %v44
  %v4255 = vpop.f32.mrb[0].mxu0
  %v4256 = vadd.f32 %v185, %v4255
  %v4257 = vpop.f32.mrb[0].mxu0
  %4258 = vmatprep.mubr.f32.mxu0 %v361
  %4259 = vmatmul.mubr.f32.gmra.mrb[0].mxu0 %v46
  %v4260 = vpop.f32.mrb[0].mxu0
  %v4261 = vadd.f32 %v190, %v4260
  %v4262 = vpop.f32.mrb[0].mxu0
  %4263 = vmatprep.mubr.f32.mxu0 %v364
  %4264 = vmatmul.mubr.f32.gmra.mrb[0].mxu0 %v48
  %v4265 = vpop.f32.mrb[0].mxu0
  %v4266 = vadd.f32 %v195, %v4265
  %v4267 = vpop.f32.mrb[0].mxu0
  %4268 = vmatprep.mubr.f32.mxu0 %v367
  %4269 = vmatmul.mubr.f32.gmra.mrb[0].mxu0 %v50
  %v4270 = vpop.f32.mrb[0].mxu0
  %v4271 = vadd.f32 %v200, %v4270
  %v4272 = vpop.f32.mrb[0].mxu0
  %4273 = vmatprep.mubr.f32.mxu0 %v370
  %4274 = vmatmul.mubr.f32.gmra.mrb[0].mxu0 %v52
  %v4275 = vpop.f32.mrb[0].mxu0
  %v4276 = vadd.f32 %v205, %v4275
  %v4277 = vpop.f32.mrb[0].mxu0
  %4278 = vmatprep.mubr.f32.mxu0 %v373
  %4279 = vmatmul.mubr.f32.gmra.mrb[0].mxu0 %v54
  %v4280 = vpop.f32.mrb[0].mxu0
  %v4281 = vadd.f32 %v210, %v4280
  %v4282 = vpop.f32.mrb[0].mxu0
  %4283 = vmatprep.mubr.f32.mxu0 %v376
  %4284 = vmatmul.mubr.f32.gmra.mrb[0].mxu0 %v56
  %v4285 = vpop.f32.mrb[0].mxu0
  %v4286 = vadd.f32 %v215, %v4285
  %v4287 = vpop.f32.mrb[0].mxu0
  %4288 = vmatprep.mubr.f32.mxu0 %v379
  %4289 = vmatmul.mubr.f32.gmra.mrb[0].mxu0 %v58
  %v4290 = vpop.f32.mrb[0].mxu0
  %v4291 = vadd.f32 %v220, %v4290
  %v4292 = vpop.f32.mrb[0].mxu0
  %4293 = vmatprep.mubr.f32.mxu0 %v382
  %4294 = vmatmul.mubr.f32.gmra.mrb[0].mxu0 %v60
  %v4295 = vpop.f32.mrb[0].mxu0
  %v4296 = vadd.f32 %v225, %v4295
  %v4297 = vpop.f32.mrb[0].mxu0
  %4298 = vmatprep.mubr.f32.mxu0 %v385
  %4299 = vmatmul.mubr.f32.gmra.mrb[0].mxu0 %v62
  %v4300 = vpop.f32.mrb[0].mxu0
  %v4301 = vadd.f32 %v230, %v4300
  %v4302 = vpop.f32.mrb[0].mxu0
  %4303 = vmatprep.mubr.f32.mxu0 %v388
  %4304 = vmatmul.mubr.f32.gmra.mrb[0].mxu0 %v64
  %v4305 = vpop.f32.mrb[0].mxu0
  %v4306 = vadd.f32 %v235, %v4305
  %v4307 = vpop.f32.mrb[0].mxu0
  %4308 = vmatprep.mubr.f32.mxu0 %v391
  %4309 = vmatmul.mubr.f32.gmra.mrb[0].mxu0 %v66
  %v4310 = vpop.f32.mrb[0].mxu0
  %v4311 = vadd.f32 %v240, %v4310
  %v4312 = vpop.f32.mrb[0].mxu0
  %4313 = vmatprep.mubr.f32.mxu0 %v394
  %4314 = vmatmul.mubr.f32.gmra.mrb[0].mxu0 %v68
  %v4315 = vpop.f32.mrb[0].mxu0
  %v4316 = vadd.f32 %v245, %v4315
  %v4317 = vpop.f32.mrb[0].mxu0
  %4318 = vmatprep.mubr.f32.mxu0 %v397
  %4319 = vmatmul.mubr.f32.gmra.mrb[0].mxu0 %v70
  %v4320 = vpop.f32.mrb[0].mxu0
  %v4321 = vadd.f32 %v250, %v4320
  %v4322 = vpop.f32.mrb[0].mxu0
  %4323 = vmatprep.mubr.f32.mxu0 %v400
  %4324 = vmatmul.mubr.f32.gmra.mrb[0].mxu0 %v72
  %v4325 = vpop.f32.mrb[0].mxu0
  %v4326 = vadd.f32 %v255, %v4325
  %v4327 = vpop.f32.mrb[0].mxu0
  %4328 = vmatprep.mubr.f32.mxu0 %v403
  %4329 = vmatmul.mubr.f32.gmra.mrb[0].mxu0 %v74
  %v4330 = vpop.f32.mrb[0].mxu0
  %v4331 = vadd.f32 %v260, %v4330
  %v4332 = vpop.f32.mrb[0].mxu0
  %4333 = vmatprep.mubr.f32.mxu0 %v406
  %4334 = vmatmul.mubr.f32.gmra.mrb[0].mxu0 %v76
  %v4335 = vpop.f32.mrb[0].mxu0
  %v4336 = vadd.f32 %v265, %v4335
  %v4337 = vpop.f32.mrb[0].mxu0
  %4338 = vmatprep.mubr.f32.mxu0 %v409
  %4339 = vmatmul.mubr.f32.gmra.mrb[0].mxu0 %v78
  %v4340 = vpop.f32.mrb[0].mxu0
  %v4341 = vadd.f32 %v270, %v4340
  %v4342 = vpop.f32.mrb[0].mxu0
  %4343 = vmatprep.mubr.f32.mxu0 %v412
  %4344 = vmatmul.mubr.f32.gmra.mrb[0].mxu0 %v80
  %v4345 = vpop.f32.mrb[0].mxu0
  %v4346 = vadd.f32 %v275, %v4345
  %v4347 = vpop.f32.mrb[0].mxu0
  %4348 = vmatprep.mubr.f32.mxu0 %v415
  %4349 = vmatmul.mubr.f32.gmra.mrb[0].mxu0 %v82
  %v4350 = vpop.f32.mrb[0].mxu0
  %v4351 = vadd.f32 %v280, %v4350
  %v4352 = vpop.f32.mrb[0].mxu0
  %4353 = vmatprep.mubr.f32.mxu0 %v418
  %4354 = vmatmul.mubr.f32.gmra.mrb[0].mxu0 %v84
  %v4355 = vpop.f32.mrb[0].mxu0
  %v4356 = vadd.f32 %v285, %v4355
  %v4357 = vpop.f32.mrb[0].mxu0
  %4358 = vmatprep.mubr.f32.mxu0 %v421
  %4359 = vmatmul.mubr.f32.gmra.mrb[0].mxu0 %v86
  %v4360 = vpop.f32.mrb[0].mxu0
  %v4361 = vadd.f32 %v290, %v4360
  %v4362 = vpop.f32.mrb[0].mxu0
  %4363 = vmatprep.mubr.f32.mxu0 %v424
  %4364 = vmatmul.mubr.f32.gmra.mrb[0].mxu0 %v88
  %v4365 = vpop.f32.mrb[0].mxu0
  %v4366 = vadd.f32 %v295, %v4365
  %v4367 = vpop.f32.mrb[0].mxu0
  %4368 = vmatprep.mubr.f32.mxu0 %v427
  %4369 = vmatmul.mubr.f32.gmra.mrb[0].mxu0 %v90
  %v4370 = vpop.f32.mrb[0].mxu0
  %v4371 = vadd.f32 %v300, %v4370
  %v4372 = vpop.f32.mrb[0].mxu0
  %4373 = vmatprep.mubr.f32.mxu0 %v430
  %4374 = vmatmul.mubr.f32.gmra.mrb[0].mxu0 %v92
  %v4375 = vpop.f32.mrb[0].mxu0
  %v4376 = vadd.f32 %v305, %v4375
  %v4377 = vpop.f32.mrb[0].mxu0
  %4378 = vmatprep.mubr.f32.mxu0 %v433
  %4379 = vmatmul.mubr.f32.gmra.mrb[0].mxu0 %v94
  %v4380 = vpop.f32.mrb[0].mxu0
  %v4381 = vadd.f32 %v310, %v4380
  %v4382 = vpop.f32.mrb[0].mxu0
  %4383 = vmatprep.mubr.f32.mxu0 %v436
  %4384 = vmatmul.mubr.f32.gmra.mrb[0].mxu0 %v96
  %v4385 = vpop.f32.mrb[0].mxu0
  %v4386 = vadd.f32 %v315, %v4385
  %v4387 = vpop.f32.mrb[0].mxu0
  %4388 = vmatprep.mubr.f32.mxu0 %v439
  %4389 = vmatmul.mubr.f32.gmra.mrb[0].mxu0 %v98
  %v4390 = vpop.f32.mrb[0].mxu0
  %v4391 = vadd.f32 %v320, %v4390
  %v4392 = vpop.f32.mrb[0].mxu0
  %4393 = vmatprep.mubr.f32.mxu0 %v442
  %4394 = vmatmul.mubr.f32.gmra.mrb[0].mxu0 %v100
  %v4395 = vpop.f32.mrb[0].mxu0
  %v4396 = vadd.f32 %v325, %v4395
  %v4397 = vpop.f32.mrb[0].mxu0
  %4398 = vmatprep.mubr.f32.mxu0 %v445
  %4399 = vmatmul.mubr.f32.gmra.mrb[0].mxu0 %v102
  %v4400 = vpop.f32.mrb[0].mxu0
  %v4401 = vadd.f32 %v330, %v4400
  %v4402 = vpop.f32.mrb[0].mxu0
  %4403 = vmatprep.mubr.f32.mxu0 %v448
  %4404 = vmatmul.mubr.f32.gmra.mrb[0].mxu0 %v104
  %v4405 = vpop.f32.mrb[0].mxu0
  %v4406 = vadd.f32 %v335, %v4405
  %v4407 = vpop.f32.mrb[0].mxu0
  %4408 = vmatprep.mubr.f32.mxu0 %v451
  %4409 = vmatmul.mubr.f32.gmra.mrb[0].mxu0 %v106
  %v4410 = vpop.f32.mrb[0].mxu0
  %v4411 = vadd.f32 %v340, %v4410
  %v4412 = vpop.f32.mrb[0].mxu0
  %4413 = vmatprep.mubr.f32.mxu0 %v454
  %4414 = vmatmul.mubr.f32.gmra.mrb[0].mxu0 %v108
  %v4415 = vpop.f32.mrb[0].mxu0
  %v4416 = vadd.f32 %v345, %v4415
  %v4417 = vpop.f32.mrb[0].mxu0
  %4418 = vdwg.mxu0
  %v4419 = vmax.f32 %v4241, 0.0
  %v4420 = vmax.f32 %v4246, 0.0
  %v4421 = vmax.f32 %v4251, 0.0
  %v4422 = vmax.f32 %v4256, 0.0
  %v4423 = vmax.f32 %v4261, 0.0
  %v4424 = vmax.f32 %v4266, 0.0
  %v4425 = vmax.f32 %v4271, 0.0
  %v4426 = vmax.f32 %v4276, 0.0
  %v4427 = vmax.f32 %v4281, 0.0
  %v4428 = vmax.f32 %v4286, 0.0
  %v4429 = vmax.f32 %v4291, 0.0
  %v4430 = vmax.f32 %v4296, 0.0
  %v4431 = vmax.f32 %v4301, 0.0
  %v4432 = vmax.f32 %v4306, 0.0
  %v4433 = vmax.f32 %v4311, 0.0
  %v4434 = vmax.f32 %v4316, 0.0
  %v4435 = vmax.f32 %v4321, 0.0
  %v4436 = vmax.f32 %v4326, 0.0
  %v4437 = vmax.f32 %v4331, 0.0
  %v4438 = vmax.f32 %v4336, 0.0
  %v4439 = vmax.f32 %v4341, 0.0
  %v4440 = vmax.f32 %v4346, 0.0
  %v4441 = vmax.f32 %v4351, 0.0
  %v4442 = vmax.f32 %v4356, 0.0
  %v4443 = vmax.f32 %v4361, 0.0
  %v4444 = vmax.f32 %v4366, 0.0
  %v4445 = vmax.f32 %v4371, 0.0
  %v4446 = vmax.f32 %v4376, 0.0
  %v4447 = vmax.f32 %v4381, 0.0
  %v4448 = vmax.f32 %v4386, 0.0
  %v4449 = vmax.f32 %v4391, 0.0
  %v4450 = vmax.f32 %v4396, 0.0
  %v4451 = vmax.f32 %v4401, 0.0
  %v4452 = vmax.f32 %v4406, 0.0
  %v4453 = vmax.f32 %v4411, 0.0
  %v4454 = vmax.f32 %v4416, 0.0
  %v4455 = vmax.f32 %v4419, %v4437
  %v4456 = vmax.f32 %v4420, %v4438
  %v4457 = vmax.f32 %v4421, %v4439
  %v4458 = vmax.f32 %v4422, %v4440
  %v4459 = vmax.f32 %v4423, %v4441
  %v4460 = vmax.f32 %v4424, %v4442
  %v4461 = vmax.f32 %v4425, %v4443
  %v4462 = vmax.f32 %v4426, %v4444
  %v4463 = vmax.f32 %v4427, %v4445
  %v4464 = vmax.f32 %v4428, %v4446
  %v4465 = vmax.f32 %v4429, %v4447
  %v4466 = vmax.f32 %v4430, %v4448
  %v4467 = vmax.f32 %v4431, %v4449
  %v4468 = vmax.f32 %v4432, %v4450
  %v4469 = vmax.f32 %v4433, %v4451
  %v4470 = vmax.f32 %v4434, %v4452
  %v4471 = vmax.f32 %v4435, %v4453
  %v4472 = vmax.f32 %v4436, %v4454
  %v4473 = vmax.f32 %v4455, %v4464
  %v4474 = vmax.f32 %v4456, %v4465
  %v4475 = vmax.f32 %v4457, %v4466
  %v4476 = vmax.f32 %v4458, %v4467
  %v4477 = vmax.f32 %v4459, %v4468
  %v4478 = vmax.f32 %v4460, %v4469
  %v4479 = vmax.f32 %v4461, %v4470
  %v4480 = vmax.f32 %v4462, %v4471
  %v4481 = vmax.f32 %v4463, %v4472
  %4482 = vst [vmem:[#allocation2 + $0x318] sm:$0xff] %v4473
  %4483 = vst [vmem:[#allocation2 + $0x320] sm:$0xff] %v4474
  %4484 = vst [vmem:[#allocation2 + $0x328] sm:$0xff] %v4475
  %4485 = vst [vmem:[#allocation2 + $0x330] sm:$0xff] %v4476
  %4486 = vst [vmem:[#allocation2 + $0x338] sm:$0xff] %v4477
  %4487 = vst [vmem:[#allocation2 + $0x340] sm:$0xff] %v4478
  %4488 = vst [vmem:[#allocation2 + $0x348] sm:$0xff] %v4479
  %4489 = vst [vmem:[#allocation2 + $0x350] sm:$0xff] %v4480
  %4490 = vst [vmem:[#allocation2 + $0x358] sm:$0xff] %v4481
  %v4491 = vld [vmem:[%s3] sm:$0xff]
  %v4492 = vld [vmem:[%s3 + $0x8] sm:$0xff]
  %v4493 = vld [vmem:[%s3 + $0x10] sm:$0xff]
  %v4494 = vld [vmem:[%s3 + $0x18] sm:$0xff]
  %v4495 = vld [vmem:[%s3 + $0x20] sm:$0xff]
  %v4496 = vld [vmem:[%s3 + $0x28] sm:$0xff]
  %v4497 = vld [vmem:[%s3 + $0x30] sm:$0xff]
  %v4498 = vld [vmem:[%s3 + $0x38] sm:$0xff]
  %v4499 = vld [vmem:[%s3 + $0x40] sm:$0xff]
  %v4500 = vld [vmem:[%s3 + $0x48] sm:$0xff]
  %v4501 = vld [vmem:[%s3 + $0x50] sm:$0xff]
  %v4502 = vld [vmem:[%s3 + $0x58] sm:$0xff]
  %v4503 = vld [vmem:[%s3 + $0x60] sm:$0xff]
  %v4504 = vld [vmem:[%s3 + $0x68] sm:$0xff]
  %v4505 = vld [vmem:[%s3 + $0x70] sm:$0xff]
  %v4506 = vld [vmem:[%s3 + $0x78] sm:$0xff]
  %v4507 = vld [vmem:[%s3 + $0x80] sm:$0xff]
  %v4508 = vld [vmem:[%s3 + $0x88] sm:$0xff]
  %v4509 = vld [vmem:[%s3 + $0x90] sm:$0xff]
  %v4510 = vld [vmem:[%s3 + $0x98] sm:$0xff]
  %v4511 = vld [vmem:[%s3 + $0xa0] sm:$0xff]
  %v4512 = vld [vmem:[%s3 + $0xa8] sm:$0xff]
  %v4513 = vld [vmem:[%s3 + $0xb0] sm:$0xff]
  %v4514 = vld [vmem:[%s3 + $0xb8] sm:$0xff]
  %v4515 = vld [vmem:[%s3 + $0xc0] sm:$0xff]
  %v4516 = vld [vmem:[%s3 + $0xc8] sm:$0xff]
  %v4517 = vld [vmem:[%s3 + $0xd0] sm:$0xff]
  %v4518 = vld [vmem:[%s3 + $0xd8] sm:$0xff]
  %v4519 = vld [vmem:[%s3 + $0xe0] sm:$0xff]
  %v4520 = vld [vmem:[%s3 + $0xe8] sm:$0xff]
  %v4521 = vld [vmem:[%s3 + $0xf0] sm:$0xff]
  %v4522 = vld [vmem:[%s3 + $0xf8] sm:$0xff]
  %v4523 = vld [vmem:[%s3 + $0x100] sm:$0xff]
  %v4524 = vld [vmem:[%s3 + $0x108] sm:$0xff]
  %v4525 = vld [vmem:[%s3 + $0x110] sm:$0xff]
  %v4526 = vld [vmem:[%s3 + $0x118] sm:$0xff]
  %v4527 = vld [vmem:[%s3 + $0x120] sm:$0xff]
  %v4528 = vld [vmem:[%s3 + $0x128] sm:$0xff]
  %v4529 = vld [vmem:[%s3 + $0x130] sm:$0xff]
  %v4530 = vld [vmem:[%s3 + $0x138] sm:$0xff]
  %v4531 = vld [vmem:[%s3 + $0x140] sm:$0xff]
  %v4532 = vld [vmem:[%s3 + $0x148] sm:$0xff]
  %v4533 = vld [vmem:[%s3 + $0x150] sm:$0xff]
  %v4534 = vld [vmem:[%s3 + $0x158] sm:$0xff]
  %v4535 = vld [vmem:[%s3 + $0x160] sm:$0xff]
  %v4536 = vld [vmem:[%s3 + $0x168] sm:$0xff]
  %v4537 = vld [vmem:[%s3 + $0x170] sm:$0xff]
  %v4538 = vld [vmem:[%s3 + $0x178] sm:$0xff]
  %v4539 = vld [vmem:[%s3 + $0x180] sm:$0xff]
  %v4540 = vld [vmem:[%s3 + $0x188] sm:$0xff]
  %v4541 = vld [vmem:[%s3 + $0x190] sm:$0xff]
  %v4542 = vld [vmem:[%s3 + $0x198] sm:$0xff]
  %v4543 = vld [vmem:[%s3 + $0x1a0] sm:$0xff]
  %v4544 = vld [vmem:[%s3 + $0x1a8] sm:$0xff]
  %v4545 = vld [vmem:[%s3 + $0x1b0] sm:$0xff]
  %v4546 = vld [vmem:[%s3 + $0x1b8] sm:$0xff]
  %v4547 = vld [vmem:[%s3 + $0x1c0] sm:$0xff]
  %v4548 = vld [vmem:[%s3 + $0x1c8] sm:$0xff]
  %v4549 = vld [vmem:[%s3 + $0x1d0] sm:$0xff]
  %v4550 = vld [vmem:[%s3 + $0x1d8] sm:$0xff]
  %v4551 = vld [vmem:[%s3 + $0x1e0] sm:$0xff]
  %v4552 = vld [vmem:[%s3 + $0x1e8] sm:$0xff]
  %v4553 = vld [vmem:[%s3 + $0x1f0] sm:$0xff]
  %v4554 = vld [vmem:[%s3 + $0x1f8] sm:$0xff]
  %v4555 = vld [vmem:[%s3 + $0x200] sm:$0xff]
  %v4556 = vld [vmem:[%s3 + $0x208] sm:$0xff]
  %v4557 = vld [vmem:[%s3 + $0x210] sm:$0xff]
  %v4558 = vld [vmem:[%s3 + $0x218] sm:$0xff]
  %v4559 = vld [vmem:[%s3 + $0x220] sm:$0xff]
  %v4560 = vld [vmem:[%s3 + $0x228] sm:$0xff]
  %v4561 = vld [vmem:[%s3 + $0x230] sm:$0xff]
  %v4562 = vld [vmem:[%s3 + $0x238] sm:$0xff]
  %v4563 = vld [vmem:[%s3 + $0x240] sm:$0xff]
  %v4564 = vld [vmem:[%s3 + $0x248] sm:$0xff]
  %v4565 = vld [vmem:[%s3 + $0x250] sm:$0xff]
  %v4566 = vld [vmem:[%s3 + $0x258] sm:$0xff]
  %v4567 = vld [vmem:[%s3 + $0x260] sm:$0xff]
  %v4568 = vld [vmem:[%s3 + $0x268] sm:$0xff]
  %v4569 = vld [vmem:[%s3 + $0x270] sm:$0xff]
  %v4570 = vld [vmem:[%s3 + $0x278] sm:$0xff]
  %v4571 = vld [vmem:[%s3 + $0x280] sm:$0xff]
  %v4572 = vld [vmem:[%s3 + $0x288] sm:$0xff]
  %v4573 = vld [vmem:[%s3 + $0x290] sm:$0xff]
  %v4574 = vld [vmem:[%s3 + $0x298] sm:$0xff]
  %v4575 = vld [vmem:[%s3 + $0x2a0] sm:$0xff]
  %v4576 = vld [vmem:[%s3 + $0x2a8] sm:$0xff]
  %v4577 = vld [vmem:[%s3 + $0x2b0] sm:$0xff]
  %v4578 = vld [vmem:[%s3 + $0x2b8] sm:$0xff]
  %v4579 = vld [vmem:[%s3 + $0x2c0] sm:$0xff]
  %v4580 = vld [vmem:[%s3 + $0x2c8] sm:$0xff]
  %v4581 = vld [vmem:[%s3 + $0x2d0] sm:$0xff]
  %v4582 = vld [vmem:[%s3 + $0x2d8] sm:$0xff]
  %v4583 = vld [vmem:[%s3 + $0x2e0] sm:$0xff]
  %v4584 = vld [vmem:[%s3 + $0x2e8] sm:$0xff]
  %v4585 = vld [vmem:[%s3 + $0x2f0] sm:$0xff]
  %v4586 = vld [vmem:[%s3 + $0x2f8] sm:$0xff]
  %v4587 = vld [vmem:[%s3 + $0x300] sm:$0xff]
  %v4588 = vld [vmem:[%s3 + $0x308] sm:$0xff]
  %v4589 = vld [vmem:[%s3 + $0x310] sm:$0xff]
  %v4590 = vld [vmem:[%s3 + $0x318] sm:$0xff]
  %v4591 = vld [vmem:[%s3 + $0x320] sm:$0xff]
  %v4592 = vld [vmem:[%s3 + $0x328] sm:$0xff]
  %v4593 = vld [vmem:[%s3 + $0x330] sm:$0xff]
  %v4594 = vld [vmem:[%s3 + $0x338] sm:$0xff]
  %v4595 = vld [vmem:[%s3 + $0x340] sm:$0xff]
  %v4596 = vld [vmem:[%s3 + $0x348] sm:$0xff]
  %v4597 = vld [vmem:[%s3 + $0x350] sm:$0xff]
  %v4598 = vld [vmem:[%s3 + $0x358] sm:$0xff]
  %v4599 = vld [vmem:[%s3 + $0x360] sm:$0xff]
  %v4600 = vld [vmem:[%s3 + $0x368] sm:$0xff]
  %v4601 = vld [vmem:[%s3 + $0x370] sm:$0xff]
  %v4602 = vld [vmem:[%s3 + $0x378] sm:$0xff]
  %v4603 = vld [vmem:[%s3 + $0x380] sm:$0xff]
  %v4604 = vld [vmem:[%s3 + $0x388] sm:$0xff]
  %v4605 = vld [vmem:[%s3 + $0x390] sm:$0xff]
  %v4606 = vld [vmem:[%s3 + $0x398] sm:$0xff]
  %v4607 = vld [vmem:[%s3 + $0x3a0] sm:$0xff]
  %v4608 = vld [vmem:[%s3 + $0x3a8] sm:$0xff]
  %v4609 = vld [vmem:[%s3 + $0x3b0] sm:$0xff]
  %v4610 = vld [vmem:[%s3 + $0x3b8] sm:$0xff]
  %v4611 = vld [vmem:[%s3 + $0x3c0] sm:$0xff]
  %v4612 = vld [vmem:[%s3 + $0x3c8] sm:$0xff]
  %v4613 = vld [vmem:[%s3 + $0x3d0] sm:$0xff]
  %v4614 = vld [vmem:[%s3 + $0x3d8] sm:$0xff]
  %v4615 = vld [vmem:[%s3 + $0x3e0] sm:$0xff]
  %v4616 = vld [vmem:[%s3 + $0x3e8] sm:$0xff]
  %v4617 = vld [vmem:[%s3 + $0x3f0] sm:$0xff]
  %v4618 = vld [vmem:[%s3 + $0x3f8] sm:$0xff]
  %v4619 = vld [vmem:[%s4] sm:$0xff]
  %v4620 = vld [vmem:[%s4 + $0x8] sm:$0xff]
  %v4621 = vld [vmem:[%s4 + $0x10] sm:$0xff]
  %v4622 = vld [vmem:[%s4 + $0x18] sm:$0xff]
  %v4623 = vld [vmem:[%s4 + $0x20] sm:$0xff]
  %v4624 = vld [vmem:[%s4 + $0x28] sm:$0xff]
  %v4625 = vld [vmem:[%s4 + $0x30] sm:$0xff]
  %v4626 = vld [vmem:[%s4 + $0x38] sm:$0xff]
  %v4627 = vld [vmem:[%s4 + $0x40] sm:$0xff]
  %v4628 = vld [vmem:[%s4 + $0x48] sm:$0xff]
  %v4629 = vld [vmem:[%s4 + $0x50] sm:$0xff]
  %v4630 = vld [vmem:[%s4 + $0x58] sm:$0xff]
  %v4631 = vld [vmem:[%s4 + $0x60] sm:$0xff]
  %v4632 = vld [vmem:[%s4 + $0x68] sm:$0xff]
  %v4633 = vld [vmem:[%s4 + $0x70] sm:$0xff]
  %v4634 = vld [vmem:[%s4 + $0x78] sm:$0xff]
  %v4635 = vld [vmem:[%s4 + $0x80] sm:$0xff]
  %v4636 = vld [vmem:[%s4 + $0x88] sm:$0xff]
  %v4637 = vld [vmem:[%s4 + $0x90] sm:$0xff]
  %v4638 = vld [vmem:[%s4 + $0x98] sm:$0xff]
  %v4639 = vld [vmem:[%s4 + $0xa0] sm:$0xff]
  %v4640 = vld [vmem:[%s4 + $0xa8] sm:$0xff]
  %v4641 = vld [vmem:[%s4 + $0xb0] sm:$0xff]
  %v4642 = vld [vmem:[%s4 + $0xb8] sm:$0xff]
  %v4643 = vld [vmem:[%s4 + $0xc0] sm:$0xff]
  %v4644 = vld [vmem:[%s4 + $0xc8] sm:$0xff]
  %v4645 = vld [vmem:[%s4 + $0xd0] sm:$0xff]
  %v4646 = vld [vmem:[%s4 + $0xd8] sm:$0xff]
  %v4647 = vld [vmem:[%s4 + $0xe0] sm:$0xff]
  %v4648 = vld [vmem:[%s4 + $0xe8] sm:$0xff]
  %v4649 = vld [vmem:[%s4 + $0xf0] sm:$0xff]
  %v4650 = vld [vmem:[%s4 + $0xf8] sm:$0xff]
  %v4651 = vld [vmem:[#allocation2] sm:$0xff]
  %v4652 = vld [vmem:[#allocation2 + $0x8] sm:$0xff]
  %v4653 = vld [vmem:[#allocation2 + $0x10] sm:$0xff]
  %v4654 = vld [vmem:[#allocation2 + $0x18] sm:$0xff]
  %v4655 = vld [vmem:[#allocation2 + $0x20] sm:$0xff]
  %v4656 = vld [vmem:[#allocation2 + $0x28] sm:$0xff]
  %v4657 = vld [vmem:[#allocation2 + $0x30] sm:$0xff]
  %v4658 = vld [vmem:[#allocation2 + $0x38] sm:$0xff]
  %v4659 = vld [vmem:[#allocation2 + $0x40] sm:$0xff]
  %v4660 = vld [vmem:[#allocation2 + $0x48] sm:$0xff]
  %v4661 = vld [vmem:[#allocation2 + $0x50] sm:$0xff]
  %v4662 = vld [vmem:[#allocation2 + $0x58] sm:$0xff]
  %v4663 = vld [vmem:[#allocation2 + $0x60] sm:$0xff]
  %v4664 = vld [vmem:[#allocation2 + $0x68] sm:$0xff]
  %v4665 = vld [vmem:[#allocation2 + $0x70] sm:$0xff]
  %v4666 = vld [vmem:[#allocation2 + $0x78] sm:$0xff]
  %v4667 = vld [vmem:[#allocation2 + $0x80] sm:$0xff]
  %v4668 = vld [vmem:[#allocation2 + $0x88] sm:$0xff]
  %v4669 = vld [vmem:[#allocation2 + $0x90] sm:$0xff]
  %v4670 = vld [vmem:[#allocation2 + $0x98] sm:$0xff]
  %v4671 = vld [vmem:[#allocation2 + $0xa0] sm:$0xff]
  %v4672 = vld [vmem:[#allocation2 + $0xa8] sm:$0xff]
  %v4673 = vld [vmem:[#allocation2 + $0xb0] sm:$0xff]
  %v4674 = vld [vmem:[#allocation2 + $0xb8] sm:$0xff]
  %v4675 = vld [vmem:[#allocation2 + $0xc0] sm:$0xff]
  %v4676 = vld [vmem:[#allocation2 + $0xc8] sm:$0xff]
  %v4677 = vld [vmem:[#allocation2 + $0xd0] sm:$0xff]
  %v4678 = vld [vmem:[#allocation2 + $0xd8] sm:$0xff]
  %v4679 = vld [vmem:[#allocation2 + $0xe0] sm:$0xff]
  %v4680 = vld [vmem:[#allocation2 + $0xe8] sm:$0xff]
  %v4681 = vld [vmem:[#allocation2 + $0xf0] sm:$0xff]
  %v4682 = vld [vmem:[#allocation2 + $0xf8] sm:$0xff]
  %v4683 = vld [vmem:[#allocation2 + $0x100] sm:$0xff]
  %v4684 = vld [vmem:[#allocation2 + $0x108] sm:$0xff]
  %v4685 = vld [vmem:[#allocation2 + $0x110] sm:$0xff]
  %v4686 = vld [vmem:[#allocation2 + $0x118] sm:$0xff]
  %v4687 = vld [vmem:[#allocation2 + $0x120] sm:$0xff]
  %v4688 = vld [vmem:[#allocation2 + $0x128] sm:$0xff]
  %v4689 = vld [vmem:[#allocation2 + $0x130] sm:$0xff]
  %v4690 = vld [vmem:[#allocation2 + $0x138] sm:$0xff]
  %v4691 = vld [vmem:[#allocation2 + $0x140] sm:$0xff]
  %v4692 = vld [vmem:[#allocation2 + $0x148] sm:$0xff]
  %v4693 = vld [vmem:[#allocation2 + $0x150] sm:$0xff]
  %v4694 = vld [vmem:[#allocation2 + $0x158] sm:$0xff]
  %v4695 = vld [vmem:[#allocation2 + $0x160] sm:$0xff]
  %v4696 = vld [vmem:[#allocation2 + $0x168] sm:$0xff]
  %v4697 = vld [vmem:[#allocation2 + $0x170] sm:$0xff]
  %v4698 = vld [vmem:[#allocation2 + $0x178] sm:$0xff]
  %v4699 = vld [vmem:[#allocation2 + $0x180] sm:$0xff]
  %v4700 = vld [vmem:[#allocation2 + $0x188] sm:$0xff]
  %v4701 = vld [vmem:[#allocation2 + $0x190] sm:$0xff]
  %v4702 = vld [vmem:[#allocation2 + $0x198] sm:$0xff]
  %v4703 = vld [vmem:[#allocation2 + $0x1a0] sm:$0xff]
  %v4704 = vld [vmem:[#allocation2 + $0x1a8] sm:$0xff]
  %4706 = vset.pattern.permute.xlu0 0
  %4707 = vperm.xlu0 %4706, %v4619
  %v4708 = vpop.permute.xlu0 %4707
  %4711 = vset.pattern.permute.xlu0 0
  %4712 = vperm.xlu0 %4711, %v4620
  %v4713 = vpop.permute.xlu0 %4712
  %4716 = vset.pattern.permute.xlu0 0
  %4717 = vperm.xlu0 %4716, %v4621
  %v4718 = vpop.permute.xlu0 %4717
  %4721 = vset.pattern.permute.xlu0 0
  %4722 = vperm.xlu0 %4721, %v4622
  %v4723 = vpop.permute.xlu0 %4722
  %4726 = vset.pattern.permute.xlu0 0
  %4727 = vperm.xlu0 %4726, %v4623
  %v4728 = vpop.permute.xlu0 %4727
  %4731 = vset.pattern.permute.xlu0 0
  %4732 = vperm.xlu0 %4731, %v4624
  %v4733 = vpop.permute.xlu0 %4732
  %4736 = vset.pattern.permute.xlu0 0
  %4737 = vperm.xlu0 %4736, %v4625
  %v4738 = vpop.permute.xlu0 %4737
  %4741 = vset.pattern.permute.xlu0 0
  %4742 = vperm.xlu0 %4741, %v4626
  %v4743 = vpop.permute.xlu0 %4742
  %4746 = vset.pattern.permute.xlu0 0
  %4747 = vperm.xlu0 %4746, %v4627
  %v4748 = vpop.permute.xlu0 %4747
  %4751 = vset.pattern.permute.xlu0 0
  %4752 = vperm.xlu0 %4751, %v4628
  %v4753 = vpop.permute.xlu0 %4752
  %4756 = vset.pattern.permute.xlu0 0
  %4757 = vperm.xlu0 %4756, %v4629
  %v4758 = vpop.permute.xlu0 %4757
  %4761 = vset.pattern.permute.xlu0 0
  %4762 = vperm.xlu0 %4761, %v4630
  %v4763 = vpop.permute.xlu0 %4762
  %4766 = vset.pattern.permute.xlu0 0
  %4767 = vperm.xlu0 %4766, %v4631
  %v4768 = vpop.permute.xlu0 %4767
  %4771 = vset.pattern.permute.xlu0 0
  %4772 = vperm.xlu0 %4771, %v4632
  %v4773 = vpop.permute.xlu0 %4772
  %4776 = vset.pattern.permute.xlu0 0
  %4777 = vperm.xlu0 %4776, %v4633
  %v4778 = vpop.permute.xlu0 %4777
  %4781 = vset.pattern.permute.xlu0 0
  %4782 = vperm.xlu0 %4781, %v4634
  %v4783 = vpop.permute.xlu0 %4782
  %4786 = vset.pattern.permute.xlu0 0
  %4787 = vperm.xlu0 %4786, %v4635
  %v4788 = vpop.permute.xlu0 %4787
  %4791 = vset.pattern.permute.xlu0 0
  %4792 = vperm.xlu0 %4791, %v4636
  %v4793 = vpop.permute.xlu0 %4792
  %4796 = vset.pattern.permute.xlu0 0
  %4797 = vperm.xlu0 %4796, %v4637
  %v4798 = vpop.permute.xlu0 %4797
  %4801 = vset.pattern.permute.xlu0 0
  %4802 = vperm.xlu0 %4801, %v4638
  %v4803 = vpop.permute.xlu0 %4802
  %4806 = vset.pattern.permute.xlu0 0
  %4807 = vperm.xlu0 %4806, %v4639
  %v4808 = vpop.permute.xlu0 %4807
  %4811 = vset.pattern.permute.xlu0 0
  %4812 = vperm.xlu0 %4811, %v4640
  %v4813 = vpop.permute.xlu0 %4812
  %4816 = vset.pattern.permute.xlu0 0
  %4817 = vperm.xlu0 %4816, %v4641
  %v4818 = vpop.permute.xlu0 %4817
  %4821 = vset.pattern.permute.xlu0 0
  %4822 = vperm.xlu0 %4821, %v4642
  %v4823 = vpop.permute.xlu0 %4822
  %4826 = vset.pattern.permute.xlu0 0
  %4827 = vperm.xlu0 %4826, %v4643
  %v4828 = vpop.permute.xlu0 %4827
  %4831 = vset.pattern.permute.xlu0 0
  %4832 = vperm.xlu0 %4831, %v4644
  %v4833 = vpop.permute.xlu0 %4832
  %4836 = vset.pattern.permute.xlu0 0
  %4837 = vperm.xlu0 %4836, %v4645
  %v4838 = vpop.permute.xlu0 %4837
  %4841 = vset.pattern.permute.xlu0 0
  %4842 = vperm.xlu0 %4841, %v4646
  %v4843 = vpop.permute.xlu0 %4842
  %4846 = vset.pattern.permute.xlu0 0
  %4847 = vperm.xlu0 %4846, %v4647
  %v4848 = vpop.permute.xlu0 %4847
  %4851 = vset.pattern.permute.xlu0 0
  %4852 = vperm.xlu0 %4851, %v4648
  %v4853 = vpop.permute.xlu0 %4852
  %4856 = vset.pattern.permute.xlu0 0
  %4857 = vperm.xlu0 %4856, %v4649
  %v4858 = vpop.permute.xlu0 %4857
  %4861 = vset.pattern.permute.xlu0 0
  %4862 = vperm.xlu0 %4861, %v4650
  %v4863 = vpop.permute.xlu0 %4862
  %vm4865 = vcmask 392192
  %v4867 = vsel %vm4865, %v4494, 0
  %v4870 = vsel %vm4865, %v4498, 0
  %v4873 = vsel %vm4865, %v4502, 0
  %v4876 = vsel %vm4865, %v4506, 0
  %v4879 = vsel %vm4865, %v4510, 0
  %v4882 = vsel %vm4865, %v4514, 0
  %v4885 = vsel %vm4865, %v4518, 0
  %v4888 = vsel %vm4865, %v4522, 0
  %v4891 = vsel %vm4865, %v4526, 0
  %v4894 = vsel %vm4865, %v4530, 0
  %v4897 = vsel %vm4865, %v4534, 0
  %v4900 = vsel %vm4865, %v4538, 0
  %v4903 = vsel %vm4865, %v4542, 0
  %v4906 = vsel %vm4865, %v4546, 0
  %v4909 = vsel %vm4865, %v4550, 0
  %v4912 = vsel %vm4865, %v4554, 0
  %v4915 = vsel %vm4865, %v4558, 0
  %v4918 = vsel %vm4865, %v4562, 0
  %v4921 = vsel %vm4865, %v4566, 0
  %v4924 = vsel %vm4865, %v4570, 0
  %v4927 = vsel %vm4865, %v4574, 0
  %v4930 = vsel %vm4865, %v4578, 0
  %v4933 = vsel %vm4865, %v4582, 0
  %v4936 = vsel %vm4865, %v4586, 0
  %v4939 = vsel %vm4865, %v4590, 0
  %v4942 = vsel %vm4865, %v4594, 0
  %v4945 = vsel %vm4865, %v4598, 0
  %v4948 = vsel %vm4865, %v4602, 0
  %v4951 = vsel %vm4865, %v4606, 0
  %v4954 = vsel %vm4865, %v4610, 0
  %v4957 = vsel %vm4865, %v4614, 0
  %v4960 = vsel %vm4865, %v4618, 0
  %4962 = vmatprep.subr.mxu0 0.0
  %4963 = vmatpush1.msra.mxu0 %v4651
  %4964 = vmatprep.subr.mxu0 0.0
  %4965 = vmatpush1.msra.mxu0 %v4652
  %4966 = vmatprep.subr.mxu0 0.0
  %4967 = vmatpush1.msra.mxu0 %v4653
  %4968 = vmatprep.subr.mxu0 0.0
  %4969 = vmatpush1.msra.mxu0 %v4654
  %4970 = vmatprep.subr.mxu0 0.0
  %4971 = vmatpush1.msra.mxu0 %v4655
  %4972 = vmatprep.subr.mxu0 0.0
  %4973 = vmatpush1.msra.mxu0 %v4656
  %4974 = vmatprep.subr.mxu0 0.0
  %4975 = vmatpush1.msra.mxu0 %v4657
  %4976 = vmatprep.subr.mxu0 0.0
  %4977 = vmatpush1.msra.mxu0 %v4658
  %4978 = vmatprep.subr.mxu0 0.0
  %4979 = vmatpush1.msra.mxu0 %v4659
  %4980 = vmatprep.subr.mxu0 0.0
  %4981 = vmatpush1.msra.mxu0 %v4660
  %4982 = vmatprep.subr.mxu0 0.0
  %4983 = vmatpush1.msra.mxu0 %v4661
  %4984 = vmatprep.subr.mxu0 0.0
  %4985 = vmatpush1.msra.mxu0 %v4662
  %4986 = vmatprep.subr.mxu0 0.0
  %4987 = vmatpush1.msra.mxu0 %v4663
  %4988 = vmatprep.subr.mxu0 0.0
  %4989 = vmatpush1.msra.mxu0 %v4664
  %4990 = vmatprep.subr.mxu0 0.0
  %4991 = vmatpush1.msra.mxu0 %v4665
  %4992 = vmatprep.subr.mxu0 0.0
  %4993 = vmatpush1.msra.mxu0 %v4666
  %4994 = vmatprep.subr.mxu0 0.0
  %4995 = vmatpush1.msra.mxu0 %v4667
  %4996 = vmatprep.subr.mxu0 0.0
  %4997 = vmatpush1.msra.mxu0 %v4668
  %4998 = vmatprep.subr.mxu0 0.0
  %4999 = vmatpush1.msra.mxu0 %v4669
  %5000 = vmatprep.subr.mxu0 0.0
  %5001 = vmatpush1.msra.mxu0 %v4670
  %5002 = vmatprep.subr.mxu0 0.0
  %5003 = vmatpush1.msra.mxu0 %v4671
  %5004 = vmatprep.subr.mxu0 0.0
  %5005 = vmatpush1.msra.mxu0 %v4672
  %5006 = vmatprep.subr.mxu0 0.0
  %5007 = vmatpush1.msra.mxu0 %v4673
  %5008 = vmatprep.subr.mxu0 0.0
  %5009 = vmatpush1.msra.mxu0 %v4674
  %5010 = vmatprep.subr.mxu0 0.0
  %5011 = vmatpush1.msra.mxu0 %v4675
  %5012 = vmatprep.subr.mxu0 0.0
  %5013 = vmatpush1.msra.mxu0 %v4676
  %5014 = vmatprep.subr.mxu0 0.0
  %5015 = vmatpush1.msra.mxu0 %v4677
  %5016 = vmatprep.subr.mxu0 0.0
  %5017 = vmatpush1.msra.mxu0 %v4678
  %5018 = vmatprep.subr.mxu0 0.0
  %5019 = vmatpush1.msra.mxu0 %v4679
  %5020 = vmatprep.subr.mxu0 0.0
  %5021 = vmatpush1.msra.mxu0 %v4680
  %5022 = vmatprep.subr.mxu0 0.0
  %5023 = vmatpush1.msra.mxu0 %v4681
  %5024 = vmatprep.subr.mxu0 0.0
  %5025 = vmatpush1.msra.mxu0 %v4682
  %5026 = vmatprep.mubr.f32.mxu0 %v4492
  %5027 = vmatmul.mubr.f32.gmra.mrb[0].mxu0 %v4491
  %v5028 = vpop.f32.mrb[0].mxu0
  %v5029 = vadd.f32 %v4708, %v5028
  %v5030 = vpop.f32.mrb[0].mxu0
  %5031 = vmatprep.mubr.f32.mxu0 %v4496
  %5032 = vmatmul.mubr.f32.gmra.mrb[0].mxu0 %v4495
  %v5033 = vpop.f32.mrb[0].mxu0
  %v5034 = vadd.f32 %v4713, %v5033
  %v5035 = vpop.f32.mrb[0].mxu0
  %5036 = vmatprep.mubr.f32.mxu0 %v4500
  %5037 = vmatmul.mubr.f32.gmra.mrb[0].mxu0 %v4499
  %v5038 = vpop.f32.mrb[0].mxu0
  %v5039 = vadd.f32 %v4718, %v5038
  %v5040 = vpop.f32.mrb[0].mxu0
  %5041 = vmatprep.mubr.f32.mxu0 %v4504
  %5042 = vmatmul.mubr.f32.gmra.mrb[0].mxu0 %v4503
  %v5043 = vpop.f32.mrb[0].mxu0
  %v5044 = vadd.f32 %v4723, %v5043
  %v5045 = vpop.f32.mrb[0].mxu0
  %5046 = vmatprep.mubr.f32.mxu0 %v4508
  %5047 = vmatmul.mubr.f32.gmra.mrb[0].mxu0 %v4507
  %v5048 = vpop.f32.mrb[0].mxu0
  %v5049 = vadd.f32 %v4728, %v5048
  %v5050 = vpop.f32.mrb[0].mxu0
  %5051 = vmatprep.mubr.f32.mxu0 %v4512
  %5052 = vmatmul.mubr.f32.gmra.mrb[0].mxu0 %v4511
  %v5053 = vpop.f32.mrb[0].mxu0
  %v5054 = vadd.f32 %v4733, %v5053
  %v5055 = vpop.f32.mrb[0].mxu0
  %5056 = vmatprep.mubr.f32.mxu0 %v4516
  %5057 = vmatmul.mubr.f32.gmra.mrb[0].mxu0 %v4515
  %v5058 = vpop.f32.mrb[0].mxu0
  %v5059 = vadd.f32 %v4738, %v5058
  %v5060 = vpop.f32.mrb[0].mxu0
  %5061 = vmatprep.mubr.f32.mxu0 %v4520
  %5062 = vmatmul.mubr.f32.gmra.mrb[0].mxu0 %v4519
  %v5063 = vpop.f32.mrb[0].mxu0
  %v5064 = vadd.f32 %v4743, %v5063
  %v5065 = vpop.f32.mrb[0].mxu0
  %5066 = vmatprep.mubr.f32.mxu0 %v4524
  %5067 = vmatmul.mubr.f32.gmra.mrb[0].mxu0 %v4523
  %v5068 = vpop.f32.mrb[0].mxu0
  %v5069 = vadd.f32 %v4748, %v5068
  %v5070 = vpop.f32.mrb[0].mxu0
  %5071 = vmatprep.mubr.f32.mxu0 %v4528
  %5072 = vmatmul.mubr.f32.gmra.mrb[0].mxu0 %v4527
  %v5073 = vpop.f32.mrb[0].mxu0
  %v5074 = vadd.f32 %v4753, %v5073
  %v5075 = vpop.f32.mrb[0].mxu0
  %5076 = vmatprep.mubr.f32.mxu0 %v4532
  %5077 = vmatmul.mubr.f32.gmra.mrb[0].mxu0 %v4531
  %v5078 = vpop.f32.mrb[0].mxu0
  %v5079 = vadd.f32 %v4758, %v5078
  %v5080 = vpop.f32.mrb[0].mxu0
  %5081 = vmatprep.mubr.f32.mxu0 %v4536
  %5082 = vmatmul.mubr.f32.gmra.mrb[0].mxu0 %v4535
  %v5083 = vpop.f32.mrb[0].mxu0
  %v5084 = vadd.f32 %v4763, %v5083
  %v5085 = vpop.f32.mrb[0].mxu0
  %5086 = vmatprep.mubr.f32.mxu0 %v4540
  %5087 = vmatmul.mubr.f32.gmra.mrb[0].mxu0 %v4539
  %v5088 = vpop.f32.mrb[0].mxu0
  %v5089 = vadd.f32 %v4768, %v5088
  %v5090 = vpop.f32.mrb[0].mxu0
  %5091 = vmatprep.mubr.f32.mxu0 %v4544
  %5092 = vmatmul.mubr.f32.gmra.mrb[0].mxu0 %v4543
  %v5093 = vpop.f32.mrb[0].mxu0
  %v5094 = vadd.f32 %v4773, %v5093
  %v5095 = vpop.f32.mrb[0].mxu0
  %5096 = vmatprep.mubr.f32.mxu0 %v4548
  %5097 = vmatmul.mubr.f32.gmra.mrb[0].mxu0 %v4547
  %v5098 = vpop.f32.mrb[0].mxu0
  %v5099 = vadd.f32 %v4778, %v5098
  %v5100 = vpop.f32.mrb[0].mxu0
  %5101 = vmatprep.mubr.f32.mxu0 %v4552
  %5102 = vmatmul.mubr.f32.gmra.mrb[0].mxu0 %v4551
  %v5103 = vpop.f32.mrb[0].mxu0
  %v5104 = vadd.f32 %v4783, %v5103
  %v5105 = vpop.f32.mrb[0].mxu0
  %5106 = vmatprep.mubr.f32.mxu0 %v4556
  %5107 = vmatmul.mubr.f32.gmra.mrb[0].mxu0 %v4555
  %v5108 = vpop.f32.mrb[0].mxu0
  %v5109 = vadd.f32 %v4788, %v5108
  %v5110 = vpop.f32.mrb[0].mxu0
  %5111 = vmatprep.mubr.f32.mxu0 %v4560
  %5112 = vmatmul.mubr.f32.gmra.mrb[0].mxu0 %v4559
  %v5113 = vpop.f32.mrb[0].mxu0
  %v5114 = vadd.f32 %v4793, %v5113
  %v5115 = vpop.f32.mrb[0].mxu0
  %5116 = vmatprep.mubr.f32.mxu0 %v4564
  %5117 = vmatmul.mubr.f32.gmra.mrb[0].mxu0 %v4563
  %v5118 = vpop.f32.mrb[0].mxu0
  %v5119 = vadd.f32 %v4798, %v5118
  %v5120 = vpop.f32.mrb[0].mxu0
  %5121 = vmatprep.mubr.f32.mxu0 %v4568
  %5122 = vmatmul.mubr.f32.gmra.mrb[0].mxu0 %v4567
  %v5123 = vpop.f32.mrb[0].mxu0
  %v5124 = vadd.f32 %v4803, %v5123
  %v5125 = vpop.f32.mrb[0].mxu0
  %5126 = vmatprep.mubr.f32.mxu0 %v4572
  %5127 = vmatmul.mubr.f32.gmra.mrb[0].mxu0 %v4571
  %v5128 = vpop.f32.mrb[0].mxu0
  %v5129 = vadd.f32 %v4808, %v5128
  %v5130 = vpop.f32.mrb[0].mxu0
  %5131 = vmatprep.mubr.f32.mxu0 %v4576
  %5132 = vmatmul.mubr.f32.gmra.mrb[0].mxu0 %v4575
  %v5133 = vpop.f32.mrb[0].mxu0
  %v5134 = vadd.f32 %v4813, %v5133
  %v5135 = vpop.f32.mrb[0].mxu0
  %5136 = vmatprep.mubr.f32.mxu0 %v4580
  %5137 = vmatmul.mubr.f32.gmra.mrb[0].mxu0 %v4579
  %v5138 = vpop.f32.mrb[0].mxu0
  %v5139 = vadd.f32 %v4818, %v5138
  %v5140 = vpop.f32.mrb[0].mxu0
  %5141 = vmatprep.mubr.f32.mxu0 %v4584
  %5142 = vmatmul.mubr.f32.gmra.mrb[0].mxu0 %v4583
  %v5143 = vpop.f32.mrb[0].mxu0
  %v5144 = vadd.f32 %v4823, %v5143
  %v5145 = vpop.f32.mrb[0].mxu0
  %5146 = vmatprep.mubr.f32.mxu0 %v4588
  %5147 = vmatmul.mubr.f32.gmra.mrb[0].mxu0 %v4587
  %v5148 = vpop.f32.mrb[0].mxu0
  %v5149 = vadd.f32 %v4828, %v5148
  %v5150 = vpop.f32.mrb[0].mxu0
  %5151 = vmatprep.mubr.f32.mxu0 %v4592
  %5152 = vmatmul.mubr.f32.gmra.mrb[0].mxu0 %v4591
  %v5153 = vpop.f32.mrb[0].mxu0
  %v5154 = vadd.f32 %v4833, %v5153
  %v5155 = vpop.f32.mrb[0].mxu0
  %5156 = vmatprep.mubr.f32.mxu0 %v4596
  %5157 = vmatmul.mubr.f32.gmra.mrb[0].mxu0 %v4595
  %v5158 = vpop.f32.mrb[0].mxu0
  %v5159 = vadd.f32 %v4838, %v5158
  %v5160 = vpop.f32.mrb[0].mxu0
  %5161 = vmatprep.mubr.f32.mxu0 %v4600
  %5162 = vmatmul.mubr.f32.gmra.mrb[0].mxu0 %v4599
  %v5163 = vpop.f32.mrb[0].mxu0
  %v5164 = vadd.f32 %v4843, %v5163
  %v5165 = vpop.f32.mrb[0].mxu0
  %5166 = vmatprep.mubr.f32.mxu0 %v4604
  %5167 = vmatmul.mubr.f32.gmra.mrb[0].mxu0 %v4603
  %v5168 = vpop.f32.mrb[0].mxu0
  %v5169 = vadd.f32 %v4848, %v5168
  %v5170 = vpop.f32.mrb[0].mxu0
  %5171 = vmatprep.mubr.f32.mxu0 %v4608
  %5172 = vmatmul.mubr.f32.gmra.mrb[0].mxu0 %v4607
  %v5173 = vpop.f32.mrb[0].mxu0
  %v5174 = vadd.f32 %v4853, %v5173
  %v5175 = vpop.f32.mrb[0].mxu0
  %5176 = vmatprep.mubr.f32.mxu0 %v4612
  %5177 = vmatmul.mubr.f32.gmra.mrb[0].mxu0 %v4611
  %v5178 = vpop.f32.mrb[0].mxu0
  %v5179 = vadd.f32 %v4858, %v5178
  %v5180 = vpop.f32.mrb[0].mxu0
  %5181 = vmatprep.mubr.f32.mxu0 %v4616
  %5182 = vmatmul.mubr.f32.gmra.mrb[0].mxu0 %v4615
  %v5183 = vpop.f32.mrb[0].mxu0
  %v5184 = vadd.f32 %v4863, %v5183
  %v5185 = vpop.f32.mrb[0].mxu0
  %5186 = vdwg.mxu0
  %5187 = vmatprep.subr.mxu0 0.0
  %5188 = vmatpush1.msra.mxu0 %v4683
  %5189 = vmatprep.subr.mxu0 0.0
  %5190 = vmatpush1.msra.mxu0 %v4684
  %5191 = vmatprep.subr.mxu0 0.0
  %5192 = vmatpush1.msra.mxu0 %v4685
  %5193 = vmatprep.subr.mxu0 0.0
  %5194 = vmatpush1.msra.mxu0 %v4686
  %5195 = vmatprep.subr.mxu0 0.0
  %5196 = vmatpush1.msra.mxu0 %v4687
  %5197 = vmatprep.subr.mxu0 0.0
  %5198 = vmatpush1.msra.mxu0 %v4688
  %5199 = vmatprep.subr.mxu0 0.0
  %5200 = vmatpush1.msra.mxu0 %v4689
  %5201 = vmatprep.subr.mxu0 0.0
  %5202 = vmatpush1.msra.mxu0 %v4690
  %5203 = vmatprep.subr.mxu0 0.0
  %5204 = vmatpush1.msra.mxu0 %v4691
  %5205 = vmatprep.subr.mxu0 0.0
  %5206 = vmatpush1.msra.mxu0 %v4692
  %5207 = vmatprep.subr.mxu0 0.0
  %5208 = vmatpush1.msra.mxu0 %v4693
  %5209 = vmatprep.subr.mxu0 0.0
  %5210 = vmatpush1.msra.mxu0 %v4694
  %5211 = vmatprep.subr.mxu0 0.0
  %5212 = vmatpush1.msra.mxu0 %v4695
  %5213 = vmatprep.subr.mxu0 0.0
  %5214 = vmatpush1.msra.mxu0 %v4696
  %5215 = vmatprep.subr.mxu0 0.0
  %5216 = vmatpush1.msra.mxu0 %v4697
  %5217 = vmatprep.subr.mxu0 0.0
  %5218 = vmatpush1.msra.mxu0 %v4698
  %5219 = vmatprep.subr.mxu0 0.0
  %5220 = vmatpush1.msra.mxu0 %v4699
  %5221 = vmatprep.subr.mxu0 0.0
  %5222 = vmatpush1.msra.mxu0 %v4700
  %5223 = vmatprep.subr.mxu0 0.0
  %5224 = vmatpush1.msra.mxu0 %v4701
  %5225 = vmatprep.subr.mxu0 0.0
  %5226 = vmatpush1.msra.mxu0 %v4702
  %5227 = vmatprep.subr.mxu0 0.0
  %5228 = vmatpush1.msra.mxu0 %v4703
  %5229 = vmatprep.subr.mxu0 0.0
  %5230 = vmatpush1.msra.mxu0 %v4704
  %5231 = vmatprep.subr.mxu0 0.0
  %5232 = vmatpush1.msra.mxu0 0.0
  %5233 = vmatprep.subr.mxu0 0.0
  %5234 = vmatpush1.msra.mxu0 0.0
  %5235 = vmatprep.subr.mxu0 0.0
  %5236 = vmatpush1.msra.mxu0 0.0
  %5237 = vmatprep.subr.mxu0 0.0
  %5238 = vmatpush1.msra.mxu0 0.0
  %5239 = vmatprep.subr.mxu0 0.0
  %5240 = vmatpush1.msra.mxu0 0.0
  %5241 = vmatprep.subr.mxu0 0.0
  %5242 = vmatpush1.msra.mxu0 0.0
  %5243 = vmatprep.subr.mxu0 0.0
  %5244 = vmatpush1.msra.mxu0 0.0
  %5245 = vmatprep.subr.mxu0 0.0
  %5246 = vmatpush1.msra.mxu0 0.0
  %5247 = vmatprep.subr.mxu0 0.0
  %5248 = vmatpush1.msra.mxu0 0.0
  %5249 = vmatprep.subr.mxu0 0.0
  %5250 = vmatpush1.msra.mxu0 0.0
  %5251 = vmatprep.mubr.f32.mxu0 %v4867
  %5252 = vmatmul.mubr.f32.gmra.mrb[0].mxu0 %v4493
  %v5253 = vpop.f32.mrb[0].mxu0
  %v5254 = vadd.f32 %v5029, %v5253
  %v5255 = vpop.f32.mrb[0].mxu0
  %5256 = vmatprep.mubr.f32.mxu0 %v4870
  %5257 = vmatmul.mubr.f32.gmra.mrb[0].mxu0 %v4497
  %v5258 = vpop.f32.mrb[0].mxu0
  %v5259 = vadd.f32 %v5034, %v5258
  %v5260 = vpop.f32.mrb[0].mxu0
  %5261 = vmatprep.mubr.f32.mxu0 %v4873
  %5262 = vmatmul.mubr.f32.gmra.mrb[0].mxu0 %v4501
  %v5263 = vpop.f32.mrb[0].mxu0
  %v5264 = vadd.f32 %v5039, %v5263
  %v5265 = vpop.f32.mrb[0].mxu0
  %5266 = vmatprep.mubr.f32.mxu0 %v4876
  %5267 = vmatmul.mubr.f32.gmra.mrb[0].mxu0 %v4505
  %v5268 = vpop.f32.mrb[0].mxu0
  %v5269 = vadd.f32 %v5044, %v5268
  %v5270 = vpop.f32.mrb[0].mxu0
  %5271 = vmatprep.mubr.f32.mxu0 %v4879
  %5272 = vmatmul.mubr.f32.gmra.mrb[0].mxu0 %v4509
  %v5273 = vpop.f32.mrb[0].mxu0
  %v5274 = vadd.f32 %v5049, %v5273
  %v5275 = vpop.f32.mrb[0].mxu0
  %5276 = vmatprep.mubr.f32.mxu0 %v4882
  %5277 = vmatmul.mubr.f32.gmra.mrb[0].mxu0 %v4513
  %v5278 = vpop.f32.mrb[0].mxu0
  %v5279 = vadd.f32 %v5054, %v5278
  %v5280 = vpop.f32.mrb[0].mxu0
  %5281 = vmatprep.mubr.f32.mxu0 %v4885
  %5282 = vmatmul.mubr.f32.gmra.mrb[0].mxu0 %v4517
  %v5283 = vpop.f32.mrb[0].mxu0
  %v5284 = vadd.f32 %v5059, %v5283
  %v5285 = vpop.f32.mrb[0].mxu0
  %5286 = vmatprep.mubr.f32.mxu0 %v4888
  %5287 = vmatmul.mubr.f32.gmra.mrb[0].mxu0 %v4521
  %v5288 = vpop.f32.mrb[0].mxu0
  %v5289 = vadd.f32 %v5064, %v5288
  %v5290 = vpop.f32.mrb[0].mxu0
  %5291 = vmatprep.mubr.f32.mxu0 %v4891
  %5292 = vmatmul.mubr.f32.gmra.mrb[0].mxu0 %v4525
  %v5293 = vpop.f32.mrb[0].mxu0
  %v5294 = vadd.f32 %v5069, %v5293
  %v5295 = vpop.f32.mrb[0].mxu0
  %5296 = vmatprep.mubr.f32.mxu0 %v4894
  %5297 = vmatmul.mubr.f32.gmra.mrb[0].mxu0 %v4529
  %v5298 = vpop.f32.mrb[0].mxu0
  %v5299 = vadd.f32 %v5074, %v5298
  %v5300 = vpop.f32.mrb[0].mxu0
  %5301 = vmatprep.mubr.f32.mxu0 %v4897
  %5302 = vmatmul.mubr.f32.gmra.mrb[0].mxu0 %v4533
  %v5303 = vpop.f32.mrb[0].mxu0
  %v5304 = vadd.f32 %v5079, %v5303
  %v5305 = vpop.f32.mrb[0].mxu0
  %5306 = vmatprep.mubr.f32.mxu0 %v4900
  %5307 = vmatmul.mubr.f32.gmra.mrb[0].mxu0 %v4537
  %v5308 = vpop.f32.mrb[0].mxu0
  %v5309 = vadd.f32 %v5084, %v5308
  %v5310 = vpop.f32.mrb[0].mxu0
  %5311 = vmatprep.mubr.f32.mxu0 %v4903
  %5312 = vmatmul.mubr.f32.gmra.mrb[0].mxu0 %v4541
  %v5313 = vpop.f32.mrb[0].mxu0
  %v5314 = vadd.f32 %v5089, %v5313
  %v5315 = vpop.f32.mrb[0].mxu0
  %5316 = vmatprep.mubr.f32.mxu0 %v4906
  %5317 = vmatmul.mubr.f32.gmra.mrb[0].mxu0 %v4545
  %v5318 = vpop.f32.mrb[0].mxu0
  %v5319 = vadd.f32 %v5094, %v5318
  %v5320 = vpop.f32.mrb[0].mxu0
  %5321 = vmatprep.mubr.f32.mxu0 %v4909
  %5322 = vmatmul.mubr.f32.gmra.mrb[0].mxu0 %v4549
  %v5323 = vpop.f32.mrb[0].mxu0
  %v5324 = vadd.f32 %v5099, %v5323
  %v5325 = vpop.f32.mrb[0].mxu0
  %5326 = vmatprep.mubr.f32.mxu0 %v4912
  %5327 = vmatmul.mubr.f32.gmra.mrb[0].mxu0 %v4553
  %v5328 = vpop.f32.mrb[0].mxu0
  %v5329 = vadd.f32 %v5104, %v5328
  %v5330 = vpop.f32.mrb[0].mxu0
  %5331 = vmatprep.mubr.f32.mxu0 %v4915
  %5332 = vmatmul.mubr.f32.gmra.mrb[0].mxu0 %v4557
  %v5333 = vpop.f32.mrb[0].mxu0
  %v5334 = vadd.f32 %v5109, %v5333
  %v5335 = vpop.f32.mrb[0].mxu0
  %5336 = vmatprep.mubr.f32.mxu0 %v4918
  %5337 = vmatmul.mubr.f32.gmra.mrb[0].mxu0 %v4561
  %v5338 = vpop.f32.mrb[0].mxu0
  %v5339 = vadd.f32 %v5114, %v5338
  %v5340 = vpop.f32.mrb[0].mxu0
  %5341 = vmatprep.mubr.f32.mxu0 %v4921
  %5342 = vmatmul.mubr.f32.gmra.mrb[0].mxu0 %v4565
  %v5343 = vpop.f32.mrb[0].mxu0
  %v5344 = vadd.f32 %v5119, %v5343
  %v5345 = vpop.f32.mrb[0].mxu0
  %5346 = vmatprep.mubr.f32.mxu0 %v4924
  %5347 = vmatmul.mubr.f32.gmra.mrb[0].mxu0 %v4569
  %v5348 = vpop.f32.mrb[0].mxu0
  %v5349 = vadd.f32 %v5124, %v5348
  %v5350 = vpop.f32.mrb[0].mxu0
  %5351 = vmatprep.mubr.f32.mxu0 %v4927
  %5352 = vmatmul.mubr.f32.gmra.mrb[0].mxu0 %v4573
  %v5353 = vpop.f32.mrb[0].mxu0
  %v5354 = vadd.f32 %v5129, %v5353
  %v5355 = vpop.f32.mrb[0].mxu0
  %5356 = vmatprep.mubr.f32.mxu0 %v4930
  %5357 = vmatmul.mubr.f32.gmra.mrb[0].mxu0 %v4577
  %v5358 = vpop.f32.mrb[0].mxu0
  %v5359 = vadd.f32 %v5134, %v5358
  %v5360 = vpop.f32.mrb[0].mxu0
  %5361 = vmatprep.mubr.f32.mxu0 %v4933
  %5362 = vmatmul.mubr.f32.gmra.mrb[0].mxu0 %v4581
  %v5363 = vpop.f32.mrb[0].mxu0
  %v5364 = vadd.f32 %v5139, %v5363
  %v5365 = vpop.f32.mrb[0].mxu0
  %5366 = vmatprep.mubr.f32.mxu0 %v4936
  %5367 = vmatmul.mubr.f32.gmra.mrb[0].mxu0 %v4585
  %v5368 = vpop.f32.mrb[0].mxu0
  %v5369 = vadd.f32 %v5144, %v5368
  %v5370 = vpop.f32.mrb[0].mxu0
  %5371 = vmatprep.mubr.f32.mxu0 %v4939
  %5372 = vmatmul.mubr.f32.gmra.mrb[0].mxu0 %v4589
  %v5373 = vpop.f32.mrb[0].mxu0
  %v5374 = vadd.f32 %v5149, %v5373
  %v5375 = vpop.f32.mrb[0].mxu0
  %5376 = vmatprep.mubr.f32.mxu0 %v4942
  %5377 = vmatmul.mubr.f32.gmra.mrb[0].mxu0 %v4593
  %v5378 = vpop.f32.mrb[0].mxu0
  %v5379 = vadd.f32 %v5154, %v5378
  %v5380 = vpop.f32.mrb[0].mxu0
  %5381 = vmatprep.mubr.f32.mxu0 %v4945
  %5382 = vmatmul.mubr.f32.gmra.mrb[0].mxu0 %v4597
  %v5383 = vpop.f32.mrb[0].mxu0
  %v5384 = vadd.f32 %v5159, %v5383
  %v5385 = vpop.f32.mrb[0].mxu0
  %5386 = vmatprep.mubr.f32.mxu0 %v4948
  %5387 = vmatmul.mubr.f32.gmra.mrb[0].mxu0 %v4601
  %v5388 = vpop.f32.mrb[0].mxu0
  %v5389 = vadd.f32 %v5164, %v5388
  %v5390 = vpop.f32.mrb[0].mxu0
  %5391 = vmatprep.mubr.f32.mxu0 %v4951
  %5392 = vmatmul.mubr.f32.gmra.mrb[0].mxu0 %v4605
  %v5393 = vpop.f32.mrb[0].mxu0
  %v5394 = vadd.f32 %v5169, %v5393
  %v5395 = vpop.f32.mrb[0].mxu0
  %5396 = vmatprep.mubr.f32.mxu0 %v4954
  %5397 = vmatmul.mubr.f32.gmra.mrb[0].mxu0 %v4609
  %v5398 = vpop.f32.mrb[0].mxu0
  %v5399 = vadd.f32 %v5174, %v5398
  %v5400 = vpop.f32.mrb[0].mxu0
  %5401 = vmatprep.mubr.f32.mxu0 %v4957
  %5402 = vmatmul.mubr.f32.gmra.mrb[0].mxu0 %v4613
  %v5403 = vpop.f32.mrb[0].mxu0
  %v5404 = vadd.f32 %v5179, %v5403
  %v5405 = vpop.f32.mrb[0].mxu0
  %5406 = vmatprep.mubr.f32.mxu0 %v4960
  %5407 = vmatmul.mubr.f32.gmra.mrb[0].mxu0 %v4617
  %v5408 = vpop.f32.mrb[0].mxu0
  %v5409 = vadd.f32 %v5184, %v5408
  %v5410 = vpop.f32.mrb[0].mxu0
  %5411 = vdwg.mxu0
  %v5412 = vmax.f32 %v5254, 0.0
  %v5413 = vmax.f32 %v5259, 0.0
  %v5414 = vmax.f32 %v5264, 0.0
  %v5415 = vmax.f32 %v5269, 0.0
  %v5416 = vmax.f32 %v5274, 0.0
  %v5417 = vmax.f32 %v5279, 0.0
  %v5418 = vmax.f32 %v5284, 0.0
  %v5419 = vmax.f32 %v5289, 0.0
  %v5420 = vmax.f32 %v5294, 0.0
  %v5421 = vmax.f32 %v5299, 0.0
  %v5422 = vmax.f32 %v5304, 0.0
  %v5423 = vmax.f32 %v5309, 0.0
  %v5424 = vmax.f32 %v5314, 0.0
  %v5425 = vmax.f32 %v5319, 0.0
  %v5426 = vmax.f32 %v5324, 0.0
  %v5427 = vmax.f32 %v5329, 0.0
  %v5428 = vmax.f32 %v5334, 0.0
  %v5429 = vmax.f32 %v5339, 0.0
  %v5430 = vmax.f32 %v5344, 0.0
  %v5431 = vmax.f32 %v5349, 0.0
  %v5432 = vmax.f32 %v5354, 0.0
  %v5433 = vmax.f32 %v5359, 0.0
  %v5434 = vmax.f32 %v5364, 0.0
  %v5435 = vmax.f32 %v5369, 0.0
  %v5436 = vmax.f32 %v5374, 0.0
  %v5437 = vmax.f32 %v5379, 0.0
  %v5438 = vmax.f32 %v5384, 0.0
  %v5439 = vmax.f32 %v5389, 0.0
  %v5440 = vmax.f32 %v5394, 0.0
  %v5441 = vmax.f32 %v5399, 0.0
  %v5442 = vmax.f32 %v5404, 0.0
  %v5443 = vmax.f32 %v5409, 0.0
  %v5444 = vmax.f32 %v5412, %v5428
  %v5445 = vmax.f32 %v5413, %v5429
  %v5446 = vmax.f32 %v5414, %v5430
  %v5447 = vmax.f32 %v5415, %v5431
  %v5448 = vmax.f32 %v5416, %v5432
  %v5449 = vmax.f32 %v5417, %v5433
  %v5450 = vmax.f32 %v5418, %v5434
  %v5451 = vmax.f32 %v5419, %v5435
  %v5452 = vmax.f32 %v5420, %v5436
  %v5453 = vmax.f32 %v5421, %v5437
  %v5454 = vmax.f32 %v5422, %v5438
  %v5455 = vmax.f32 %v5423, %v5439
  %v5456 = vmax.f32 %v5424, %v5440
  %v5457 = vmax.f32 %v5425, %v5441
  %v5458 = vmax.f32 %v5426, %v5442
  %v5459 = vmax.f32 %v5427, %v5443
  %v5460 = vmax.f32 %v5444, %v5452
  %v5461 = vmax.f32 %v5445, %v5453
  %v5462 = vmax.f32 %v5446, %v5454
  %v5463 = vmax.f32 %v5447, %v5455
  %v5464 = vmax.f32 %v5448, %v5456
  %v5465 = vmax.f32 %v5449, %v5457
  %v5466 = vmax.f32 %v5450, %v5458
  %v5467 = vmax.f32 %v5451, %v5459
  %v5468 = vld [vmem:[#allocation2 + $0x90] sm:$0xff]
  %v5469 = vld [vmem:[#allocation2 + $0x98] sm:$0xff]
  %v5470 = vld [vmem:[#allocation2 + $0xa0] sm:$0xff]
  %v5471 = vld [vmem:[#allocation2 + $0xa8] sm:$0xff]
  %v5472 = vld [vmem:[#allocation2 + $0xb0] sm:$0xff]
  %v5473 = vld [vmem:[#allocation2 + $0xb8] sm:$0xff]
  %v5474 = vld [vmem:[#allocation2 + $0xc0] sm:$0xff]
  %v5475 = vld [vmem:[#allocation2 + $0xc8] sm:$0xff]
  %v5476 = vld [vmem:[#allocation2 + $0xd0] sm:$0xff]
  %v5477 = vld [vmem:[#allocation2 + $0xd8] sm:$0xff]
  %v5478 = vld [vmem:[#allocation2 + $0xe0] sm:$0xff]
  %v5479 = vld [vmem:[#allocation2 + $0xe8] sm:$0xff]
  %v5480 = vld [vmem:[#allocation2 + $0xf0] sm:$0xff]
  %v5481 = vld [vmem:[#allocation2 + $0xf8] sm:$0xff]
  %v5482 = vld [vmem:[#allocation2 + $0x100] sm:$0xff]
  %v5483 = vld [vmem:[#allocation2 + $0x108] sm:$0xff]
  %v5484 = vld [vmem:[#allocation2 + $0x110] sm:$0xff]
  %v5485 = vld [vmem:[#allocation2 + $0x118] sm:$0xff]
  %v5486 = vld [vmem:[#allocation2 + $0x120] sm:$0xff]
  %v5487 = vld [vmem:[#allocation2 + $0x128] sm:$0xff]
  %v5488 = vld [vmem:[#allocation2 + $0x130] sm:$0xff]
  %v5489 = vld [vmem:[#allocation2 + $0x138] sm:$0xff]
  %v5490 = vld [vmem:[#allocation2 + $0x140] sm:$0xff]
  %v5491 = vld [vmem:[#allocation2 + $0x148] sm:$0xff]
  %v5492 = vld [vmem:[#allocation2 + $0x150] sm:$0xff]
  %v5493 = vld [vmem:[#allocation2 + $0x158] sm:$0xff]
  %v5494 = vld [vmem:[#allocation2 + $0x160] sm:$0xff]
  %v5495 = vld [vmem:[#allocation2 + $0x168] sm:$0xff]
  %v5496 = vld [vmem:[#allocation2 + $0x170] sm:$0xff]
  %v5497 = vld [vmem:[#allocation2 + $0x178] sm:$0xff]
  %v5498 = vld [vmem:[#allocation2 + $0x180] sm:$0xff]
  %v5499 = vld [vmem:[#allocation2 + $0x188] sm:$0xff]
  %v5500 = vld [vmem:[#allocation2 + $0x190] sm:$0xff]
  %v5501 = vld [vmem:[#allocation2 + $0x198] sm:$0xff]
  %v5502 = vld [vmem:[#allocation2 + $0x1a0] sm:$0xff]
  %v5503 = vld [vmem:[#allocation2 + $0x1a8] sm:$0xff]
  %v5504 = vld [vmem:[#allocation2 + $0x1b0] sm:$0xff]
  %v5505 = vld [vmem:[#allocation2 + $0x1b8] sm:$0xff]
  %v5506 = vld [vmem:[#allocation2 + $0x1c0] sm:$0xff]
  %v5507 = vld [vmem:[#allocation2 + $0x1c8] sm:$0xff]
  %v5508 = vld [vmem:[#allocation2 + $0x1d0] sm:$0xff]
  %v5509 = vld [vmem:[#allocation2 + $0x1d8] sm:$0xff]
  %v5510 = vld [vmem:[#allocation2 + $0x1e0] sm:$0xff]
  %v5511 = vld [vmem:[#allocation2 + $0x1e8] sm:$0xff]
  %v5512 = vld [vmem:[#allocation2 + $0x1f0] sm:$0xff]
  %v5513 = vld [vmem:[#allocation2 + $0x1f8] sm:$0xff]
  %v5514 = vld [vmem:[#allocation2 + $0x200] sm:$0xff]
  %v5515 = vld [vmem:[#allocation2 + $0x208] sm:$0xff]
  %v5516 = vld [vmem:[#allocation2 + $0x210] sm:$0xff]
  %v5517 = vld [vmem:[#allocation2 + $0x218] sm:$0xff]
  %v5518 = vld [vmem:[#allocation2 + $0x220] sm:$0xff]
  %v5519 = vld [vmem:[#allocation2 + $0x228] sm:$0xff]
  %v5520 = vld [vmem:[#allocation2 + $0x230] sm:$0xff]
  %v5521 = vld [vmem:[#allocation2 + $0x238] sm:$0xff]
  %5522 = vmatprep.subr.mxu0 0.0
  %5523 = vmatpush1.msra.mxu0 %v5468
  %5524 = vmatprep.subr.mxu0 0.0
  %5525 = vmatpush1.msra.mxu0 %v5469
  %5526 = vmatprep.subr.mxu0 0.0
  %5527 = vmatpush1.msra.mxu0 %v5470
  %5528 = vmatprep.subr.mxu0 0.0
  %5529 = vmatpush1.msra.mxu0 %v5471
  %5530 = vmatprep.subr.mxu0 0.0
  %5531 = vmatpush1.msra.mxu0 %v5472
  %5532 = vmatprep.subr.mxu0 0.0
  %5533 = vmatpush1.msra.mxu0 %v5473
  %5534 = vmatprep.subr.mxu0 0.0
  %5535 = vmatpush1.msra.mxu0 %v5474
  %5536 = vmatprep.subr.mxu0 0.0
  %5537 = vmatpush1.msra.mxu0 %v5475
  %5538 = vmatprep.subr.mxu0 0.0
  %5539 = vmatpush1.msra.mxu0 %v5476
  %5540 = vmatprep.subr.mxu0 0.0
  %5541 = vmatpush1.msra.mxu0 %v5477
  %5542 = vmatprep.subr.mxu0 0.0
  %5543 = vmatpush1.msra.mxu0 %v5478
  %5544 = vmatprep.subr.mxu0 0.0
  %5545 = vmatpush1.msra.mxu0 %v5479
  %5546 = vmatprep.subr.mxu0 0.0
  %5547 = vmatpush1.msra.mxu0 %v5480
  %5548 = vmatprep.subr.mxu0 0.0
  %5549 = vmatpush1.msra.mxu0 %v5481
  %5550 = vmatprep.subr.mxu0 0.0
  %5551 = vmatpush1.msra.mxu0 %v5482
  %5552 = vmatprep.subr.mxu0 0.0
  %5553 = vmatpush1.msra.mxu0 %v5483
  %5554 = vmatprep.subr.mxu0 0.0
  %5555 = vmatpush1.msra.mxu0 %v5484
  %5556 = vmatprep.subr.mxu0 0.0
  %5557 = vmatpush1.msra.mxu0 %v5485
  %5558 = vmatprep.subr.mxu0 0.0
  %5559 = vmatpush1.msra.mxu0 %v5486
  %5560 = vmatprep.subr.mxu0 0.0
  %5561 = vmatpush1.msra.mxu0 %v5487
  %5562 = vmatprep.subr.mxu0 0.0
  %5563 = vmatpush1.msra.mxu0 %v5488
  %5564 = vmatprep.subr.mxu0 0.0
  %5565 = vmatpush1.msra.mxu0 %v5489
  %5566 = vmatprep.subr.mxu0 0.0
  %5567 = vmatpush1.msra.mxu0 %v5490
  %5568 = vmatprep.subr.mxu0 0.0
  %5569 = vmatpush1.msra.mxu0 %v5491
  %5570 = vmatprep.subr.mxu0 0.0
  %5571 = vmatpush1.msra.mxu0 %v5492
  %5572 = vmatprep.subr.mxu0 0.0
  %5573 = vmatpush1.msra.mxu0 %v5493
  %5574 = vmatprep.subr.mxu0 0.0
  %5575 = vmatpush1.msra.mxu0 %v5494
  %5576 = vmatprep.subr.mxu0 0.0
  %5577 = vmatpush1.msra.mxu0 %v5495
  %5578 = vmatprep.subr.mxu0 0.0
  %5579 = vmatpush1.msra.mxu0 %v5496
  %5580 = vmatprep.subr.mxu0 0.0
  %5581 = vmatpush1.msra.mxu0 %v5497
  %5582 = vmatprep.subr.mxu0 0.0
  %5583 = vmatpush1.msra.mxu0 %v5498
  %5584 = vmatprep.subr.mxu0 0.0
  %5585 = vmatpush1.msra.mxu0 %v5499
  %5586 = vmatprep.mubr.f32.mxu0 %v4492
  %5587 = vmatmul.mubr.f32.gmra.mrb[0].mxu0 %v4491
  %v5588 = vpop.f32.mrb[0].mxu0
  %v5589 = vadd.f32 %v4708, %v5588
  %v5590 = vpop.f32.mrb[0].mxu0
  %5591 = vmatprep.mubr.f32.mxu0 %v4496
  %5592 = vmatmul.mubr.f32.gmra.mrb[0].mxu0 %v4495
  %v5593 = vpop.f32.mrb[0].mxu0
  %v5594 = vadd.f32 %v4713, %v5593
  %v5595 = vpop.f32.mrb[0].mxu0
  %5596 = vmatprep.mubr.f32.mxu0 %v4500
  %5597 = vmatmul.mubr.f32.gmra.mrb[0].mxu0 %v4499
  %v5598 = vpop.f32.mrb[0].mxu0
  %v5599 = vadd.f32 %v4718, %v5598
  %v5600 = vpop.f32.mrb[0].mxu0
  %5601 = vmatprep.mubr.f32.mxu0 %v4504
  %5602 = vmatmul.mubr.f32.gmra.mrb[0].mxu0 %v4503
  %v5603 = vpop.f32.mrb[0].mxu0
  %v5604 = vadd.f32 %v4723, %v5603
  %v5605 = vpop.f32.mrb[0].mxu0
  %5606 = vmatprep.mubr.f32.mxu0 %v4508
  %5607 = vmatmul.mubr.f32.gmra.mrb[0].mxu0 %v4507
  %v5608 = vpop.f32.mrb[0].mxu0
  %v5609 = vadd.f32 %v4728, %v5608
  %v5610 = vpop.f32.mrb[0].mxu0
  %5611 = vmatprep.mubr.f32.mxu0 %v4512
  %5612 = vmatmul.mubr.f32.gmra.mrb[0].mxu0 %v4511
  %v5613 = vpop.f32.mrb[0].mxu0
  %v5614 = vadd.f32 %v4733, %v5613
  %v5615 = vpop.f32.mrb[0].mxu0
  %5616 = vmatprep.mubr.f32.mxu0 %v4516
  %5617 = vmatmul.mubr.f32.gmra.mrb[0].mxu0 %v4515
  %v5618 = vpop.f32.mrb[0].mxu0
  %v5619 = vadd.f32 %v4738, %v5618
  %v5620 = vpop.f32.mrb[0].mxu0
  %5621 = vmatprep.mubr.f32.mxu0 %v4520
  %5622 = vmatmul.mubr.f32.gmra.mrb[0].mxu0 %v4519
  %v5623 = vpop.f32.mrb[0].mxu0
  %v5624 = vadd.f32 %v4743, %v5623
  %v5625 = vpop.f32.mrb[0].mxu0
  %5626 = vmatprep.mubr.f32.mxu0 %v4524
  %5627 = vmatmul.mubr.f32.gmra.mrb[0].mxu0 %v4523
  %v5628 = vpop.f32.mrb[0].mxu0
  %v5629 = vadd.f32 %v4748, %v5628
  %v5630 = vpop.f32.mrb[0].mxu0
  %5631 = vmatprep.mubr.f32.mxu0 %v4528
  %5632 = vmatmul.mubr.f32.gmra.mrb[0].mxu0 %v4527
  %v5633 = vpop.f32.mrb[0].mxu0
  %v5634 = vadd.f32 %v4753, %v5633
  %v5635 = vpop.f32.mrb[0].mxu0
  %5636 = vmatprep.mubr.f32.mxu0 %v4532
  %5637 = vmatmul.mubr.f32.gmra.mrb[0].mxu0 %v4531
  %v5638 = vpop.f32.mrb[0].mxu0
  %v5639 = vadd.f32 %v4758, %v5638
  %v5640 = vpop.f32.mrb[0].mxu0
  %5641 = vmatprep.mubr.f32.mxu0 %v4536
  %5642 = vmatmul.mubr.f32.gmra.mrb[0].mxu0 %v4535
  %v5643 = vpop.f32.mrb[0].mxu0
  %v5644 = vadd.f32 %v4763, %v5643
  %v5645 = vpop.f32.mrb[0].mxu0
  %5646 = vmatprep.mubr.f32.mxu0 %v4540
  %5647 = vmatmul.mubr.f32.gmra.mrb[0].mxu0 %v4539
  %v5648 = vpop.f32.mrb[0].mxu0
  %v5649 = vadd.f32 %v4768, %v5648
  %v5650 = vpop.f32.mrb[0].mxu0
  %5651 = vmatprep.mubr.f32.mxu0 %v4544
  %5652 = vmatmul.mubr.f32.gmra.mrb[0].mxu0 %v4543
  %v5653 = vpop.f32.mrb[0].mxu0
  %v5654 = vadd.f32 %v4773, %v5653
  %v5655 = vpop.f32.mrb[0].mxu0
  %5656 = vmatprep.mubr.f32.mxu0 %v4548
  %5657 = vmatmul.mubr.f32.gmra.mrb[0].mxu0 %v4547
  %v5658 = vpop.f32.mrb[0].mxu0
  %v5659 = vadd.f32 %v4778, %v5658
  %v5660 = vpop.f32.mrb[0].mxu0
  %5661 = vmatprep.mubr.f32.mxu0 %v4552
  %5662 = vmatmul.mubr.f32.gmra.mrb[0].mxu0 %v4551
  %v5663 = vpop.f32.mrb[0].mxu0
  %v5664 = vadd.f32 %v4783, %v5663
  %v5665 = vpop.f32.mrb[0].mxu0
  %5666 = vmatprep.mubr.f32.mxu0 %v4556
  %5667 = vmatmul.mubr.f32.gmra.mrb[0].mxu0 %v4555
  %v5668 = vpop.f32.mrb[0].mxu0
  %v5669 = vadd.f32 %v4788, %v5668
  %v5670 = vpop.f32.mrb[0].mxu0
  %5671 = vmatprep.mubr.f32.mxu0 %v4560
  %5672 = vmatmul.mubr.f32.gmra.mrb[0].mxu0 %v4559
  %v5673 = vpop.f32.mrb[0].mxu0
  %v5674 = vadd.f32 %v4793, %v5673
  %v5675 = vpop.f32.mrb[0].mxu0
  %5676 = vmatprep.mubr.f32.mxu0 %v4564
  %5677 = vmatmul.mubr.f32.gmra.mrb[0].mxu0 %v4563
  %v5678 = vpop.f32.mrb[0].mxu0
  %v5679 = vadd.f32 %v4798, %v5678
  %v5680 = vpop.f32.mrb[0].mxu0
  %5681 = vmatprep.mubr.f32.mxu0 %v4568
  %5682 = vmatmul.mubr.f32.gmra.mrb[0].mxu0 %v4567
  %v5683 = vpop.f32.mrb[0].mxu0
  %v5684 = vadd.f32 %v4803, %v5683
  %v5685 = vpop.f32.mrb[0].mxu0
  %5686 = vmatprep.mubr.f32.mxu0 %v4572
  %5687 = vmatmul.mubr.f32.gmra.mrb[0].mxu0 %v4571
  %v5688 = vpop.f32.mrb[0].mxu0
  %v5689 = vadd.f32 %v4808, %v5688
  %v5690 = vpop.f32.mrb[0].mxu0
  %5691 = vmatprep.mubr.f32.mxu0 %v4576
  %5692 = vmatmul.mubr.f32.gmra.mrb[0].mxu0 %v4575
  %v5693 = vpop.f32.mrb[0].mxu0
  %v5694 = vadd.f32 %v4813, %v5693
  %v5695 = vpop.f32.mrb[0].mxu0
  %5696 = vmatprep.mubr.f32.mxu0 %v4580
  %5697 = vmatmul.mubr.f32.gmra.mrb[0].mxu0 %v4579
  %v5698 = vpop.f32.mrb[0].mxu0
  %v5699 = vadd.f32 %v4818, %v5698
  %v5700 = vpop.f32.mrb[0].mxu0
  %5701 = vmatprep.mubr.f32.mxu0 %v4584
  %5702 = vmatmul.mubr.f32.gmra.mrb[0].mxu0 %v4583
  %v5703 = vpop.f32.mrb[0].mxu0
  %v5704 = vadd.f32 %v4823, %v5703
  %v5705 = vpop.f32.mrb[0].mxu0
  %5706 = vmatprep.mubr.f32.mxu0 %v4588
  %5707 = vmatmul.mubr.f32.gmra.mrb[0].mxu0 %v4587
  %v5708 = vpop.f32.mrb[0].mxu0
  %v5709 = vadd.f32 %v4828, %v5708
  %v5710 = vpop.f32.mrb[0].mxu0
  %5711 = vmatprep.mubr.f32.mxu0 %v4592
  %5712 = vmatmul.mubr.f32.gmra.mrb[0].mxu0 %v4591
  %v5713 = vpop.f32.mrb[0].mxu0
  %v5714 = vadd.f32 %v4833, %v5713
  %v5715 = vpop.f32.mrb[0].mxu0
  %5716 = vmatprep.mubr.f32.mxu0 %v4596
  %5717 = vmatmul.mubr.f32.gmra.mrb[0].mxu0 %v4595
  %v5718 = vpop.f32.mrb[0].mxu0
  %v5719 = vadd.f32 %v4838, %v5718
  %v5720 = vpop.f32.mrb[0].mxu0
  %5721 = vmatprep.mubr.f32.mxu0 %v4600
  %5722 = vmatmul.mubr.f32.gmra.mrb[0].mxu0 %v4599
  %v5723 = vpop.f32.mrb[0].mxu0
  %v5724 = vadd.f32 %v4843, %v5723
  %v5725 = vpop.f32.mrb[0].mxu0
  %5726 = vmatprep.mubr.f32.mxu0 %v4604
  %5727 = vmatmul.mubr.f32.gmra.mrb[0].mxu0 %v4603
  %v5728 = vpop.f32.mrb[0].mxu0
  %v5729 = vadd.f32 %v4848, %v5728
  %v5730 = vpop.f32.mrb[0].mxu0
  %5731 = vmatprep.mubr.f32.mxu0 %v4608
  %5732 = vmatmul.mubr.f32.gmra.mrb[0].mxu0 %v4607
  %v5733 = vpop.f32.mrb[0].mxu0
  %v5734 = vadd.f32 %v4853, %v5733
  %v5735 = vpop.f32.mrb[0].mxu0
  %5736 = vmatprep.mubr.f32.mxu0 %v4612
  %5737 = vmatmul.mubr.f32.gmra.mrb[0].mxu0 %v4611
  %v5738 = vpop.f32.mrb[0].mxu0
  %v5739 = vadd.f32 %v4858, %v5738
  %v5740 = vpop.f32.mrb[0].mxu0
  %5741 = vmatprep.mubr.f32.mxu0 %v4616
  %5742 = vmatmul.mubr.f32.gmra.mrb[0].mxu0 %v4615
  %v5743 = vpop.f32.mrb[0].mxu0
  %v5744 = vadd.f32 %v4863, %v5743
  %v5745 = vpop.f32.mrb[0].mxu0
  %5746 = vdwg.mxu0
  %5747 = vmatprep.subr.mxu0 0.0
  %5748 = vmatpush1.msra.mxu0 %v5500
  %5749 = vmatprep.subr.mxu0 0.0
  %5750 = vmatpush1.msra.mxu0 %v5501
  %5751 = vmatprep.subr.mxu0 0.0
  %5752 = vmatpush1.msra.mxu0 %v5502
  %5753 = vmatprep.subr.mxu0 0.0
  %5754 = vmatpush1.msra.mxu0 %v5503
  %5755 = vmatprep.subr.mxu0 0.0
  %5756 = vmatpush1.msra.mxu0 %v5504
  %5757 = vmatprep.subr.mxu0 0.0
  %5758 = vmatpush1.msra.mxu0 %v5505
  %5759 = vmatprep.subr.mxu0 0.0
  %5760 = vmatpush1.msra.mxu0 %v5506
  %5761 = vmatprep.subr.mxu0 0.0
  %5762 = vmatpush1.msra.mxu0 %v5507
  %5763 = vmatprep.subr.mxu0 0.0
  %5764 = vmatpush1.msra.mxu0 %v5508
  %5765 = vmatprep.subr.mxu0 0.0
  %5766 = vmatpush1.msra.mxu0 %v5509
  %5767 = vmatprep.subr.mxu0 0.0
  %5768 = vmatpush1.msra.mxu0 %v5510
  %5769 = vmatprep.subr.mxu0 0.0
  %5770 = vmatpush1.msra.mxu0 %v5511
  %5771 = vmatprep.subr.mxu0 0.0
  %5772 = vmatpush1.msra.mxu0 %v5512
  %5773 = vmatprep.subr.mxu0 0.0
  %5774 = vmatpush1.msra.mxu0 %v5513
  %5775 = vmatprep.subr.mxu0 0.0
  %5776 = vmatpush1.msra.mxu0 %v5514
  %5777 = vmatprep.subr.mxu0 0.0
  %5778 = vmatpush1.msra.mxu0 %v5515
  %5779 = vmatprep.subr.mxu0 0.0
  %5780 = vmatpush1.msra.mxu0 %v5516
  %5781 = vmatprep.subr.mxu0 0.0
  %5782 = vmatpush1.msra.mxu0 %v5517
  %5783 = vmatprep.subr.mxu0 0.0
  %5784 = vmatpush1.msra.mxu0 %v5518
  %5785 = vmatprep.subr.mxu0 0.0
  %5786 = vmatpush1.msra.mxu0 %v5519
  %5787 = vmatprep.subr.mxu0 0.0
  %5788 = vmatpush1.msra.mxu0 %v5520
  %5789 = vmatprep.subr.mxu0 0.0
  %5790 = vmatpush1.msra.mxu0 %v5521
  %5791 = vmatprep.subr.mxu0 0.0
  %5792 = vmatpush1.msra.mxu0 0.0
  %5793 = vmatprep.subr.mxu0 0.0
  %5794 = vmatpush1.msra.mxu0 0.0
  %5795 = vmatprep.subr.mxu0 0.0
  %5796 = vmatpush1.msra.mxu0 0.0
  %5797 = vmatprep.subr.mxu0 0.0
  %5798 = vmatpush1.msra.mxu0 0.0
  %5799 = vmatprep.subr.mxu0 0.0
  %5800 = vmatpush1.msra.mxu0 0.0
  %5801 = vmatprep.subr.mxu0 0.0
  %5802 = vmatpush1.msra.mxu0 0.0
  %5803 = vmatprep.subr.mxu0 0.0
  %5804 = vmatpush1.msra.mxu0 0.0
  %5805 = vmatprep.subr.mxu0 0.0
  %5806 = vmatpush1.msra.mxu0 0.0
  %5807 = vmatprep.subr.mxu0 0.0
  %5808 = vmatpush1.msra.mxu0 0.0
  %5809 = vmatprep.subr.mxu0 0.0
  %5810 = vmatpush1.msra.mxu0 0.0
  %5811 = vmatprep.mubr.f32.mxu0 %v4867
  %5812 = vmatmul.mubr.f32.gmra.mrb[0].mxu0 %v4493
  %v5813 = vpop.f32.mrb[0].mxu0
  %v5814 = vadd.f32 %v5589, %v5813
  %v5815 = vpop.f32.mrb[0].mxu0
  %5816 = vmatprep.mubr.f32.mxu0 %v4870
  %5817 = vmatmul.mubr.f32.gmra.mrb[0].mxu0 %v4497
  %v5818 = vpop.f32.mrb[0].mxu0
  %v5819 = vadd.f32 %v5594, %v5818
  %v5820 = vpop.f32.mrb[0].mxu0
  %5821 = vmatprep.mubr.f32.mxu0 %v4873
  %5822 = vmatmul.mubr.f32.gmra.mrb[0].mxu0 %v4501
  %v5823 = vpop.f32.mrb[0].mxu0
  %v5824 = vadd.f32 %v5599, %v5823
  %v5825 = vpop.f32.mrb[0].mxu0
  %5826 = vmatprep.mubr.f32.mxu0 %v4876
  %5827 = vmatmul.mubr.f32.gmra.mrb[0].mxu0 %v4505
  %v5828 = vpop.f32.mrb[0].mxu0
  %v5829 = vadd.f32 %v5604, %v5828
  %v5830 = vpop.f32.mrb[0].mxu0
  %5831 = vmatprep.mubr.f32.mxu0 %v4879
  %5832 = vmatmul.mubr.f32.gmra.mrb[0].mxu0 %v4509
  %v5833 = vpop.f32.mrb[0].mxu0
  %v5834 = vadd.f32 %v5609, %v5833
  %v5835 = vpop.f32.mrb[0].mxu0
  %5836 = vmatprep.mubr.f32.mxu0 %v4882
  %5837 = vmatmul.mubr.f32.gmra.mrb[0].mxu0 %v4513
  %v5838 = vpop.f32.mrb[0].mxu0
  %v5839 = vadd.f32 %v5614, %v5838
  %v5840 = vpop.f32.mrb[0].mxu0
  %5841 = vmatprep.mubr.f32.mxu0 %v4885
  %5842 = vmatmul.mubr.f32.gmra.mrb[0].mxu0 %v4517
  %v5843 = vpop.f32.mrb[0].mxu0
  %v5844 = vadd.f32 %v5619, %v5843
  %v5845 = vpop.f32.mrb[0].mxu0
  %5846 = vmatprep.mubr.f32.mxu0 %v4888
  %5847 = vmatmul.mubr.f32.gmra.mrb[0].mxu0 %v4521
  %v5848 = vpop.f32.mrb[0].mxu0
  %v5849 = vadd.f32 %v5624, %v5848
  %v5850 = vpop.f32.mrb[0].mxu0
  %5851 = vmatprep.mubr.f32.mxu0 %v4891
  %5852 = vmatmul.mubr.f32.gmra.mrb[0].mxu0 %v4525
  %v5853 = vpop.f32.mrb[0].mxu0
  %v5854 = vadd.f32 %v5629, %v5853
  %v5855 = vpop.f32.mrb[0].mxu0
  %5856 = vmatprep.mubr.f32.mxu0 %v4894
  %5857 = vmatmul.mubr.f32.gmra.mrb[0].mxu0 %v4529
  %v5858 = vpop.f32.mrb[0].mxu0
  %v5859 = vadd.f32 %v5634, %v5858
  %v5860 = vpop.f32.mrb[0].mxu0
  %5861 = vmatprep.mubr.f32.mxu0 %v4897
  %5862 = vmatmul.mubr.f32.gmra.mrb[0].mxu0 %v4533
  %v5863 = vpop.f32.mrb[0].mxu0
  %v5864 = vadd.f32 %v5639, %v5863
  %v5865 = vpop.f32.mrb[0].mxu0
  %5866 = vmatprep.mubr.f32.mxu0 %v4900
  %5867 = vmatmul.mubr.f32.gmra.mrb[0].mxu0 %v4537
  %v5868 = vpop.f32.mrb[0].mxu0
  %v5869 = vadd.f32 %v5644, %v5868
  %v5870 = vpop.f32.mrb[0].mxu0
  %5871 = vmatprep.mubr.f32.mxu0 %v4903
  %5872 = vmatmul.mubr.f32.gmra.mrb[0].mxu0 %v4541
  %v5873 = vpop.f32.mrb[0].mxu0
  %v5874 = vadd.f32 %v5649, %v5873
  %v5875 = vpop.f32.mrb[0].mxu0
  %5876 = vmatprep.mubr.f32.mxu0 %v4906
  %5877 = vmatmul.mubr.f32.gmra.mrb[0].mxu0 %v4545
  %v5878 = vpop.f32.mrb[0].mxu0
  %v5879 = vadd.f32 %v5654, %v5878
  %v5880 = vpop.f32.mrb[0].mxu0
  %5881 = vmatprep.mubr.f32.mxu0 %v4909
  %5882 = vmatmul.mubr.f32.gmra.mrb[0].mxu0 %v4549
  %v5883 = vpop.f32.mrb[0].mxu0
  %v5884 = vadd.f32 %v5659, %v5883
  %v5885 = vpop.f32.mrb[0].mxu0
  %5886 = vmatprep.mubr.f32.mxu0 %v4912
  %5887 = vmatmul.mubr.f32.gmra.mrb[0].mxu0 %v4553
  %v5888 = vpop.f32.mrb[0].mxu0
  %v5889 = vadd.f32 %v5664, %v5888
  %v5890 = vpop.f32.mrb[0].mxu0
  %5891 = vmatprep.mubr.f32.mxu0 %v4915
  %5892 = vmatmul.mubr.f32.gmra.mrb[0].mxu0 %v4557
  %v5893 = vpop.f32.mrb[0].mxu0
  %v5894 = vadd.f32 %v5669, %v5893
  %v5895 = vpop.f32.mrb[0].mxu0
  %5896 = vmatprep.mubr.f32.mxu0 %v4918
  %5897 = vmatmul.mubr.f32.gmra.mrb[0].mxu0 %v4561
  %v5898 = vpop.f32.mrb[0].mxu0
  %v5899 = vadd.f32 %v5674, %v5898
  %v5900 = vpop.f32.mrb[0].mxu0
  %5901 = vmatprep.mubr.f32.mxu0 %v4921
  %5902 = vmatmul.mubr.f32.gmra.mrb[0].mxu0 %v4565
  %v5903 = vpop.f32.mrb[0].mxu0
  %v5904 = vadd.f32 %v5679, %v5903
  %v5905 = vpop.f32.mrb[0].mxu0
  %5906 = vmatprep.mubr.f32.mxu0 %v4924
  %5907 = vmatmul.mubr.f32.gmra.mrb[0].mxu0 %v4569
  %v5908 = vpop.f32.mrb[0].mxu0
  %v5909 = vadd.f32 %v5684, %v5908
  %v5910 = vpop.f32.mrb[0].mxu0
  %5911 = vmatprep.mubr.f32.mxu0 %v4927
  %5912 = vmatmul.mubr.f32.gmra.mrb[0].mxu0 %v4573
  %v5913 = vpop.f32.mrb[0].mxu0
  %v5914 = vadd.f32 %v5689, %v5913
  %v5915 = vpop.f32.mrb[0].mxu0
  %5916 = vmatprep.mubr.f32.mxu0 %v4930
  %5917 = vmatmul.mubr.f32.gmra.mrb[0].mxu0 %v4577
  %v5918 = vpop.f32.mrb[0].mxu0
  %v5919 = vadd.f32 %v5694, %v5918
  %v5920 = vpop.f32.mrb[0].mxu0
  %5921 = vmatprep.mubr.f32.mxu0 %v4933
  %5922 = vmatmul.mubr.f32.gmra.mrb[0].mxu0 %v4581
  %v5923 = vpop.f32.mrb[0].mxu0
  %v5924 = vadd.f32 %v5699, %v5923
  %v5925 = vpop.f32.mrb[0].mxu0
  %5926 = vmatprep.mubr.f32.mxu0 %v4936
  %5927 = vmatmul.mubr.f32.gmra.mrb[0].mxu0 %v4585
  %v5928 = vpop.f32.mrb[0].mxu0
  %v5929 = vadd.f32 %v5704, %v5928
  %v5930 = vpop.f32.mrb[0].mxu0
  %5931 = vmatprep.mubr.f32.mxu0 %v4939
  %5932 = vmatmul.mubr.f32.gmra.mrb[0].mxu0 %v4589
  %v5933 = vpop.f32.mrb[0].mxu0
  %v5934 = vadd.f32 %v5709, %v5933
  %v5935 = vpop.f32.mrb[0].mxu0
  %5936 = vmatprep.mubr.f32.mxu0 %v4942
  %5937 = vmatmul.mubr.f32.gmra.mrb[0].mxu0 %v4593
  %v5938 = vpop.f32.mrb[0].mxu0
  %v5939 = vadd.f32 %v5714, %v5938
  %v5940 = vpop.f32.mrb[0].mxu0
  %5941 = vmatprep.mubr.f32.mxu0 %v4945
  %5942 = vmatmul.mubr.f32.gmra.mrb[0].mxu0 %v4597
  %v5943 = vpop.f32.mrb[0].mxu0
  %v5944 = vadd.f32 %v5719, %v5943
  %v5945 = vpop.f32.mrb[0].mxu0
  %5946 = vmatprep.mubr.f32.mxu0 %v4948
  %5947 = vmatmul.mubr.f32.gmra.mrb[0].mxu0 %v4601
  %v5948 = vpop.f32.mrb[0].mxu0
  %v5949 = vadd.f32 %v5724, %v5948
  %v5950 = vpop.f32.mrb[0].mxu0
  %5951 = vmatprep.mubr.f32.mxu0 %v4951
  %5952 = vmatmul.mubr.f32.gmra.mrb[0].mxu0 %v4605
  %v5953 = vpop.f32.mrb[0].mxu0
  %v5954 = vadd.f32 %v5729, %v5953
  %v5955 = vpop.f32.mrb[0].mxu0
  %5956 = vmatprep.mubr.f32.mxu0 %v4954
  %5957 = vmatmul.mubr.f32.gmra.mrb[0].mxu0 %v4609
  %v5958 = vpop.f32.mrb[0].mxu0
  %v5959 = vadd.f32 %v5734, %v5958
  %v5960 = vpop.f32.mrb[0].mxu0
  %5961 = vmatprep.mubr.f32.mxu0 %v4957
  %5962 = vmatmul.mubr.f32.gmra.mrb[0].mxu0 %v4613
  %v5963 = vpop.f32.mrb[0].mxu0
  %v5964 = vadd.f32 %v5739, %v5963
  %v5965 = vpop.f32.mrb[0].mxu0
  %5966 = vmatprep.mubr.f32.mxu0 %v4960
  %5967 = vmatmul.mubr.f32.gmra.mrb[0].mxu0 %v4617
  %v5968 = vpop.f32.mrb[0].mxu0
  %v5969 = vadd.f32 %v5744, %v5968
  %v5970 = vpop.f32.mrb[0].mxu0
  %5971 = vdwg.mxu0
  %v5972 = vmax.f32 %v5814, 0.0
  %v5973 = vmax.f32 %v5819, 0.0
  %v5974 = vmax.f32 %v5824, 0.0
  %v5975 = vmax.f32 %v5829, 0.0
  %v5976 = vmax.f32 %v5834, 0.0
  %v5977 = vmax.f32 %v5839, 0.0
  %v5978 = vmax.f32 %v5844, 0.0
  %v5979 = vmax.f32 %v5849, 0.0
  %v5980 = vmax.f32 %v5854, 0.0
  %v5981 = vmax.f32 %v5859, 0.0
  %v5982 = vmax.f32 %v5864, 0.0
  %v5983 = vmax.f32 %v5869, 0.0
  %v5984 = vmax.f32 %v5874, 0.0
  %v5985 = vmax.f32 %v5879, 0.0
  %v5986 = vmax.f32 %v5884, 0.0
  %v5987 = vmax.f32 %v5889, 0.0
  %v5988 = vmax.f32 %v5894, 0.0
  %v5989 = vmax.f32 %v5899, 0.0
  %v5990 = vmax.f32 %v5904, 0.0
  %v5991 = vmax.f32 %v5909, 0.0
  %v5992 = vmax.f32 %v5914, 0.0
  %v5993 = vmax.f32 %v5919, 0.0
  %v5994 = vmax.f32 %v5924, 0.0
  %v5995 = vmax.f32 %v5929, 0.0
  %v5996 = vmax.f32 %v5934, 0.0
  %v5997 = vmax.f32 %v5939, 0.0
  %v5998 = vmax.f32 %v5944, 0.0
  %v5999 = vmax.f32 %v5949, 0.0
  %v6000 = vmax.f32 %v5954, 0.0
  %v6001 = vmax.f32 %v5959, 0.0
  %v6002 = vmax.f32 %v5964, 0.0
  %v6003 = vmax.f32 %v5969, 0.0
  %v6004 = vmax.f32 %v5972, %v5988
  %v6005 = vmax.f32 %v5973, %v5989
  %v6006 = vmax.f32 %v5974, %v5990
  %v6007 = vmax.f32 %v5975, %v5991
  %v6008 = vmax.f32 %v5976, %v5992
  %v6009 = vmax.f32 %v5977, %v5993
  %v6010 = vmax.f32 %v5978, %v5994
  %v6011 = vmax.f32 %v5979, %v5995
  %v6012 = vmax.f32 %v5980, %v5996
  %v6013 = vmax.f32 %v5981, %v5997
  %v6014 = vmax.f32 %v5982, %v5998
  %v6015 = vmax.f32 %v5983, %v5999
  %v6016 = vmax.f32 %v5984, %v6000
  %v6017 = vmax.f32 %v5985, %v6001
  %v6018 = vmax.f32 %v5986, %v6002
  %v6019 = vmax.f32 %v5987, %v6003
  %v6020 = vmax.f32 %v6004, %v6012
  %v6021 = vmax.f32 %v6005, %v6013
  %v6022 = vmax.f32 %v6006, %v6014
  %v6023 = vmax.f32 %v6007, %v6015
  %v6024 = vmax.f32 %v6008, %v6016
  %v6025 = vmax.f32 %v6009, %v6017
  %v6026 = vmax.f32 %v6010, %v6018
  %v6027 = vmax.f32 %v6011, %v6019
  %v6028 = vld [vmem:[#allocation2 + $0x120] sm:$0xff]
  %v6029 = vld [vmem:[#allocation2 + $0x128] sm:$0xff]
  %v6030 = vld [vmem:[#allocation2 + $0x130] sm:$0xff]
  %v6031 = vld [vmem:[#allocation2 + $0x138] sm:$0xff]
  %v6032 = vld [vmem:[#allocation2 + $0x140] sm:$0xff]
  %v6033 = vld [vmem:[#allocation2 + $0x148] sm:$0xff]
  %v6034 = vld [vmem:[#allocation2 + $0x150] sm:$0xff]
  %v6035 = vld [vmem:[#allocation2 + $0x158] sm:$0xff]
  %v6036 = vld [vmem:[#allocation2 + $0x160] sm:$0xff]
  %v6037 = vld [vmem:[#allocation2 + $0x168] sm:$0xff]
  %v6038 = vld [vmem:[#allocation2 + $0x170] sm:$0xff]
  %v6039 = vld [vmem:[#allocation2 + $0x178] sm:$0xff]
  %v6040 = vld [vmem:[#allocation2 + $0x180] sm:$0xff]
  %v6041 = vld [vmem:[#allocation2 + $0x188] sm:$0xff]
  %v6042 = vld [vmem:[#allocation2 + $0x190] sm:$0xff]
  %v6043 = vld [vmem:[#allocation2 + $0x198] sm:$0xff]
  %v6044 = vld [vmem:[#allocation2 + $0x1a0] sm:$0xff]
  %v6045 = vld [vmem:[#allocation2 + $0x1a8] sm:$0xff]
  %v6046 = vld [vmem:[#allocation2 + $0x1b0] sm:$0xff]
  %v6047 = vld [vmem:[#allocation2 + $0x1b8] sm:$0xff]
  %v6048 = vld [vmem:[#allocation2 + $0x1c0] sm:$0xff]
  %v6049 = vld [vmem:[#allocation2 + $0x1c8] sm:$0xff]
  %v6050 = vld [vmem:[#allocation2 + $0x1d0] sm:$0xff]
  %v6051 = vld [vmem:[#allocation2 + $0x1d8] sm:$0xff]
  %v6052 = vld [vmem:[#allocation2 + $0x1e0] sm:$0xff]
  %v6053 = vld [vmem:[#allocation2 + $0x1e8] sm:$0xff]
  %v6054 = vld [vmem:[#allocation2 + $0x1f0] sm:$0xff]
  %v6055 = vld [vmem:[#allocation2 + $0x1f8] sm:$0xff]
  %v6056 = vld [vmem:[#allocation2 + $0x200] sm:$0xff]
  %v6057 = vld [vmem:[#allocation2 + $0x208] sm:$0xff]
  %v6058 = vld [vmem:[#allocation2 + $0x210] sm:$0xff]
  %v6059 = vld [vmem:[#allocation2 + $0x218] sm:$0xff]
  %v6060 = vld [vmem:[#allocation2 + $0x220] sm:$0xff]
  %v6061 = vld [vmem:[#allocation2 + $0x228] sm:$0xff]
  %v6062 = vld [vmem:[#allocation2 + $0x230] sm:$0xff]
  %v6063 = vld [vmem:[#allocation2 + $0x238] sm:$0xff]
  %v6064 = vld [vmem:[#allocation2 + $0x240] sm:$0xff]
  %v6065 = vld [vmem:[#allocation2 + $0x248] sm:$0xff]
  %v6066 = vld [vmem:[#allocation2 + $0x250] sm:$0xff]
  %v6067 = vld [vmem:[#allocation2 + $0x258] sm:$0xff]
  %v6068 = vld [vmem:[#allocation2 + $0x260] sm:$0xff]
  %v6069 = vld [vmem:[#allocation2 + $0x268] sm:$0xff]
  %v6070 = vld [vmem:[#allocation2 + $0x270] sm:$0xff]
  %v6071 = vld [vmem:[#allocation2 + $0x278] sm:$0xff]
  %v6072 = vld [vmem:[#allocation2 + $0x280] sm:$0xff]
  %v6073 = vld [vmem:[#allocation2 + $0x288] sm:$0xff]
  %v6074 = vld [vmem:[#allocation2 + $0x290] sm:$0xff]
  %v6075 = vld [vmem:[#allocation2 + $0x298] sm:$0xff]
  %v6076 = vld [vmem:[#allocation2 + $0x2a0] sm:$0xff]
  %v6077 = vld [vmem:[#allocation2 + $0x2a8] sm:$0xff]
  %v6078 = vld [vmem:[#allocation2 + $0x2b0] sm:$0xff]
  %v6079 = vld [vmem:[#allocation2 + $0x2b8] sm:$0xff]
  %v6080 = vld [vmem:[#allocation2 + $0x2c0] sm:$0xff]
  %v6081 = vld [vmem:[#allocation2 + $0x2c8] sm:$0xff]
  %6082 = vmatprep.subr.mxu0 0.0
  %6083 = vmatpush1.msra.mxu0 %v6028
  %6084 = vmatprep.subr.mxu0 0.0
  %6085 = vmatpush1.msra.mxu0 %v6029
  %6086 = vmatprep.subr.mxu0 0.0
  %6087 = vmatpush1.msra.mxu0 %v6030
  %6088 = vmatprep.subr.mxu0 0.0
  %6089 = vmatpush1.msra.mxu0 %v6031
  %6090 = vmatprep.subr.mxu0 0.0
  %6091 = vmatpush1.msra.mxu0 %v6032
  %6092 = vmatprep.subr.mxu0 0.0
  %6093 = vmatpush1.msra.mxu0 %v6033
  %6094 = vmatprep.subr.mxu0 0.0
  %6095 = vmatpush1.msra.mxu0 %v6034
  %6096 = vmatprep.subr.mxu0 0.0
  %6097 = vmatpush1.msra.mxu0 %v6035
  %6098 = vmatprep.subr.mxu0 0.0
  %6099 = vmatpush1.msra.mxu0 %v6036
  %6100 = vmatprep.subr.mxu0 0.0
  %6101 = vmatpush1.msra.mxu0 %v6037
  %6102 = vmatprep.subr.mxu0 0.0
  %6103 = vmatpush1.msra.mxu0 %v6038
  %6104 = vmatprep.subr.mxu0 0.0
  %6105 = vmatpush1.msra.mxu0 %v6039
  %6106 = vmatprep.subr.mxu0 0.0
  %6107 = vmatpush1.msra.mxu0 %v6040
  %6108 = vmatprep.subr.mxu0 0.0
  %6109 = vmatpush1.msra.mxu0 %v6041
  %6110 = vmatprep.subr.mxu0 0.0
  %6111 = vmatpush1.msra.mxu0 %v6042
  %6112 = vmatprep.subr.mxu0 0.0
  %6113 = vmatpush1.msra.mxu0 %v6043
  %6114 = vmatprep.subr.mxu0 0.0
  %6115 = vmatpush1.msra.mxu0 %v6044
  %6116 = vmatprep.subr.mxu0 0.0
  %6117 = vmatpush1.msra.mxu0 %v6045
  %6118 = vmatprep.subr.mxu0 0.0
  %6119 = vmatpush1.msra.mxu0 %v6046
  %6120 = vmatprep.subr.mxu0 0.0
  %6121 = vmatpush1.msra.mxu0 %v6047
  %6122 = vmatprep.subr.mxu0 0.0
  %6123 = vmatpush1.msra.mxu0 %v6048
  %6124 = vmatprep.subr.mxu0 0.0
  %6125 = vmatpush1.msra.mxu0 %v6049
  %6126 = vmatprep.subr.mxu0 0.0
  %6127 = vmatpush1.msra.mxu0 %v6050
  %6128 = vmatprep.subr.mxu0 0.0
  %6129 = vmatpush1.msra.mxu0 %v6051
  %6130 = vmatprep.subr.mxu0 0.0
  %6131 = vmatpush1.msra.mxu0 %v6052
  %6132 = vmatprep.subr.mxu0 0.0
  %6133 = vmatpush1.msra.mxu0 %v6053
  %6134 = vmatprep.subr.mxu0 0.0
  %6135 = vmatpush1.msra.mxu0 %v6054
  %6136 = vmatprep.subr.mxu0 0.0
  %6137 = vmatpush1.msra.mxu0 %v6055
  %6138 = vmatprep.subr.mxu0 0.0
  %6139 = vmatpush1.msra.mxu0 %v6056
  %6140 = vmatprep.subr.mxu0 0.0
  %6141 = vmatpush1.msra.mxu0 %v6057
  %6142 = vmatprep.subr.mxu0 0.0
  %6143 = vmatpush1.msra.mxu0 %v6058
  %6144 = vmatprep.subr.mxu0 0.0
  %6145 = vmatpush1.msra.mxu0 %v6059
  %6146 = vmatprep.mubr.f32.mxu0 %v4492
  %6147 = vmatmul.mubr.f32.gmra.mrb[0].mxu0 %v4491
  %v6148 = vpop.f32.mrb[0].mxu0
  %v6149 = vadd.f32 %v4708, %v6148
  %v6150 = vpop.f32.mrb[0].mxu0
  %6151 = vmatprep.mubr.f32.mxu0 %v4496
  %6152 = vmatmul.mubr.f32.gmra.mrb[0].mxu0 %v4495
  %v6153 = vpop.f32.mrb[0].mxu0
  %v6154 = vadd.f32 %v4713, %v6153
  %v6155 = vpop.f32.mrb[0].mxu0
  %6156 = vmatprep.mubr.f32.mxu0 %v4500
  %6157 = vmatmul.mubr.f32.gmra.mrb[0].mxu0 %v4499
  %v6158 = vpop.f32.mrb[0].mxu0
  %v6159 = vadd.f32 %v4718, %v6158
  %v6160 = vpop.f32.mrb[0].mxu0
  %6161 = vmatprep.mubr.f32.mxu0 %v4504
  %6162 = vmatmul.mubr.f32.gmra.mrb[0].mxu0 %v4503
  %v6163 = vpop.f32.mrb[0].mxu0
  %v6164 = vadd.f32 %v4723, %v6163
  %v6165 = vpop.f32.mrb[0].mxu0
  %6166 = vmatprep.mubr.f32.mxu0 %v4508
  %6167 = vmatmul.mubr.f32.gmra.mrb[0].mxu0 %v4507
  %v6168 = vpop.f32.mrb[0].mxu0
  %v6169 = vadd.f32 %v4728, %v6168
  %v6170 = vpop.f32.mrb[0].mxu0
  %6171 = vmatprep.mubr.f32.mxu0 %v4512
  %6172 = vmatmul.mubr.f32.gmra.mrb[0].mxu0 %v4511
  %v6173 = vpop.f32.mrb[0].mxu0
  %v6174 = vadd.f32 %v4733, %v6173
  %v6175 = vpop.f32.mrb[0].mxu0
  %6176 = vmatprep.mubr.f32.mxu0 %v4516
  %6177 = vmatmul.mubr.f32.gmra.mrb[0].mxu0 %v4515
  %v6178 = vpop.f32.mrb[0].mxu0
  %v6179 = vadd.f32 %v4738, %v6178
  %v6180 = vpop.f32.mrb[0].mxu0
  %6181 = vmatprep.mubr.f32.mxu0 %v4520
  %6182 = vmatmul.mubr.f32.gmra.mrb[0].mxu0 %v4519
  %v6183 = vpop.f32.mrb[0].mxu0
  %v6184 = vadd.f32 %v4743, %v6183
  %v6185 = vpop.f32.mrb[0].mxu0
  %6186 = vmatprep.mubr.f32.mxu0 %v4524
  %6187 = vmatmul.mubr.f32.gmra.mrb[0].mxu0 %v4523
  %v6188 = vpop.f32.mrb[0].mxu0
  %v6189 = vadd.f32 %v4748, %v6188
  %v6190 = vpop.f32.mrb[0].mxu0
  %6191 = vmatprep.mubr.f32.mxu0 %v4528
  %6192 = vmatmul.mubr.f32.gmra.mrb[0].mxu0 %v4527
  %v6193 = vpop.f32.mrb[0].mxu0
  %v6194 = vadd.f32 %v4753, %v6193
  %v6195 = vpop.f32.mrb[0].mxu0
  %6196 = vmatprep.mubr.f32.mxu0 %v4532
  %6197 = vmatmul.mubr.f32.gmra.mrb[0].mxu0 %v4531
  %v6198 = vpop.f32.mrb[0].mxu0
  %v6199 = vadd.f32 %v4758, %v6198
  %v6200 = vpop.f32.mrb[0].mxu0
  %6201 = vmatprep.mubr.f32.mxu0 %v4536
  %6202 = vmatmul.mubr.f32.gmra.mrb[0].mxu0 %v4535
  %v6203 = vpop.f32.mrb[0].mxu0
  %v6204 = vadd.f32 %v4763, %v6203
  %v6205 = vpop.f32.mrb[0].mxu0
  %6206 = vmatprep.mubr.f32.mxu0 %v4540
  %6207 = vmatmul.mubr.f32.gmra.mrb[0].mxu0 %v4539
  %v6208 = vpop.f32.mrb[0].mxu0
  %v6209 = vadd.f32 %v4768, %v6208
  %v6210 = vpop.f32.mrb[0].mxu0
  %6211 = vmatprep.mubr.f32.mxu0 %v4544
  %6212 = vmatmul.mubr.f32.gmra.mrb[0].mxu0 %v4543
  %v6213 = vpop.f32.mrb[0].mxu0
  %v6214 = vadd.f32 %v4773, %v6213
  %v6215 = vpop.f32.mrb[0].mxu0
  %6216 = vmatprep.mubr.f32.mxu0 %v4548
  %6217 = vmatmul.mubr.f32.gmra.mrb[0].mxu0 %v4547
  %v6218 = vpop.f32.mrb[0].mxu0
  %v6219 = vadd.f32 %v4778, %v6218
  %v6220 = vpop.f32.mrb[0].mxu0
  %6221 = vmatprep.mubr.f32.mxu0 %v4552
  %6222 = vmatmul.mubr.f32.gmra.mrb[0].mxu0 %v4551
  %v6223 = vpop.f32.mrb[0].mxu0
  %v6224 = vadd.f32 %v4783, %v6223
  %v6225 = vpop.f32.mrb[0].mxu0
  %6226 = vmatprep.mubr.f32.mxu0 %v4556
  %6227 = vmatmul.mubr.f32.gmra.mrb[0].mxu0 %v4555
  %v6228 = vpop.f32.mrb[0].mxu0
  %v6229 = vadd.f32 %v4788, %v6228
  %v6230 = vpop.f32.mrb[0].mxu0
  %6231 = vmatprep.mubr.f32.mxu0 %v4560
  %6232 = vmatmul.mubr.f32.gmra.mrb[0].mxu0 %v4559
  %v6233 = vpop.f32.mrb[0].mxu0
  %v6234 = vadd.f32 %v4793, %v6233
  %v6235 = vpop.f32.mrb[0].mxu0
  %6236 = vmatprep.mubr.f32.mxu0 %v4564
  %6237 = vmatmul.mubr.f32.gmra.mrb[0].mxu0 %v4563
  %v6238 = vpop.f32.mrb[0].mxu0
  %v6239 = vadd.f32 %v4798, %v6238
  %v6240 = vpop.f32.mrb[0].mxu0
  %6241 = vmatprep.mubr.f32.mxu0 %v4568
  %6242 = vmatmul.mubr.f32.gmra.mrb[0].mxu0 %v4567
  %v6243 = vpop.f32.mrb[0].mxu0
  %v6244 = vadd.f32 %v4803, %v6243
  %v6245 = vpop.f32.mrb[0].mxu0
  %6246 = vmatprep.mubr.f32.mxu0 %v4572
  %6247 = vmatmul.mubr.f32.gmra.mrb[0].mxu0 %v4571
  %v6248 = vpop.f32.mrb[0].mxu0
  %v6249 = vadd.f32 %v4808, %v6248
  %v6250 = vpop.f32.mrb[0].mxu0
  %6251 = vmatprep.mubr.f32.mxu0 %v4576
  %6252 = vmatmul.mubr.f32.gmra.mrb[0].mxu0 %v4575
  %v6253 = vpop.f32.mrb[0].mxu0
  %v6254 = vadd.f32 %v4813, %v6253
  %v6255 = vpop.f32.mrb[0].mxu0
  %6256 = vmatprep.mubr.f32.mxu0 %v4580
  %6257 = vmatmul.mubr.f32.gmra.mrb[0].mxu0 %v4579
  %v6258 = vpop.f32.mrb[0].mxu0
  %v6259 = vadd.f32 %v4818, %v6258
  %v6260 = vpop.f32.mrb[0].mxu0
  %6261 = vmatprep.mubr.f32.mxu0 %v4584
  %6262 = vmatmul.mubr.f32.gmra.mrb[0].mxu0 %v4583
  %v6263 = vpop.f32.mrb[0].mxu0
  %v6264 = vadd.f32 %v4823, %v6263
  %v6265 = vpop.f32.mrb[0].mxu0
  %6266 = vmatprep.mubr.f32.mxu0 %v4588
  %6267 = vmatmul.mubr.f32.gmra.mrb[0].mxu0 %v4587
  %v6268 = vpop.f32.mrb[0].mxu0
  %v6269 = vadd.f32 %v4828, %v6268
  %v6270 = vpop.f32.mrb[0].mxu0
  %6271 = vmatprep.mubr.f32.mxu0 %v4592
  %6272 = vmatmul.mubr.f32.gmra.mrb[0].mxu0 %v4591
  %v6273 = vpop.f32.mrb[0].mxu0
  %v6274 = vadd.f32 %v4833, %v6273
  %v6275 = vpop.f32.mrb[0].mxu0
  %6276 = vmatprep.mubr.f32.mxu0 %v4596
  %6277 = vmatmul.mubr.f32.gmra.mrb[0].mxu0 %v4595
  %v6278 = vpop.f32.mrb[0].mxu0
  %v6279 = vadd.f32 %v4838, %v6278
  %v6280 = vpop.f32.mrb[0].mxu0
  %6281 = vmatprep.mubr.f32.mxu0 %v4600
  %6282 = vmatmul.mubr.f32.gmra.mrb[0].mxu0 %v4599
  %v6283 = vpop.f32.mrb[0].mxu0
  %v6284 = vadd.f32 %v4843, %v6283
  %v6285 = vpop.f32.mrb[0].mxu0
  %6286 = vmatprep.mubr.f32.mxu0 %v4604
  %6287 = vmatmul.mubr.f32.gmra.mrb[0].mxu0 %v4603
  %v6288 = vpop.f32.mrb[0].mxu0
  %v6289 = vadd.f32 %v4848, %v6288
  %v6290 = vpop.f32.mrb[0].mxu0
  %6291 = vmatprep.mubr.f32.mxu0 %v4608
  %6292 = vmatmul.mubr.f32.gmra.mrb[0].mxu0 %v4607
  %v6293 = vpop.f32.mrb[0].mxu0
  %v6294 = vadd.f32 %v4853, %v6293
  %v6295 = vpop.f32.mrb[0].mxu0
  %6296 = vmatprep.mubr.f32.mxu0 %v4612
  %6297 = vmatmul.mubr.f32.gmra.mrb[0].mxu0 %v4611
  %v6298 = vpop.f32.mrb[0].mxu0
  %v6299 = vadd.f32 %v4858, %v6298
  %v6300 = vpop.f32.mrb[0].mxu0
  %6301 = vmatprep.mubr.f32.mxu0 %v4616
  %6302 = vmatmul.mubr.f32.gmra.mrb[0].mxu0 %v4615
  %v6303 = vpop.f32.mrb[0].mxu0
  %v6304 = vadd.f32 %v4863, %v6303
  %v6305 = vpop.f32.mrb[0].mxu0
  %6306 = vdwg.mxu0
  %6307 = vmatprep.subr.mxu0 0.0
  %6308 = vmatpush1.msra.mxu0 %v6060
  %6309 = vmatprep.subr.mxu0 0.0
  %6310 = vmatpush1.msra.mxu0 %v6061
  %6311 = vmatprep.subr.mxu0 0.0
  %6312 = vmatpush1.msra.mxu0 %v6062
  %6313 = vmatprep.subr.mxu0 0.0
  %6314 = vmatpush1.msra.mxu0 %v6063
  %6315 = vmatprep.subr.mxu0 0.0
  %6316 = vmatpush1.msra.mxu0 %v6064
  %6317 = vmatprep.subr.mxu0 0.0
  %6318 = vmatpush1.msra.mxu0 %v6065
  %6319 = vmatprep.subr.mxu0 0.0
  %6320 = vmatpush1.msra.mxu0 %v6066
  %6321 = vmatprep.subr.mxu0 0.0
  %6322 = vmatpush1.msra.mxu0 %v6067
  %6323 = vmatprep.subr.mxu0 0.0
  %6324 = vmatpush1.msra.mxu0 %v6068
  %6325 = vmatprep.subr.mxu0 0.0
  %6326 = vmatpush1.msra.mxu0 %v6069
  %6327 = vmatprep.subr.mxu0 0.0
  %6328 = vmatpush1.msra.mxu0 %v6070
  %6329 = vmatprep.subr.mxu0 0.0
  %6330 = vmatpush1.msra.mxu0 %v6071
  %6331 = vmatprep.subr.mxu0 0.0
  %6332 = vmatpush1.msra.mxu0 %v6072
  %6333 = vmatprep.subr.mxu0 0.0
  %6334 = vmatpush1.msra.mxu0 %v6073
  %6335 = vmatprep.subr.mxu0 0.0
  %6336 = vmatpush1.msra.mxu0 %v6074
  %6337 = vmatprep.subr.mxu0 0.0
  %6338 = vmatpush1.msra.mxu0 %v6075
  %6339 = vmatprep.subr.mxu0 0.0
  %6340 = vmatpush1.msra.mxu0 %v6076
  %6341 = vmatprep.subr.mxu0 0.0
  %6342 = vmatpush1.msra.mxu0 %v6077
  %6343 = vmatprep.subr.mxu0 0.0
  %6344 = vmatpush1.msra.mxu0 %v6078
  %6345 = vmatprep.subr.mxu0 0.0
  %6346 = vmatpush1.msra.mxu0 %v6079
  %6347 = vmatprep.subr.mxu0 0.0
  %6348 = vmatpush1.msra.mxu0 %v6080
  %6349 = vmatprep.subr.mxu0 0.0
  %6350 = vmatpush1.msra.mxu0 %v6081
  %6351 = vmatprep.subr.mxu0 0.0
  %6352 = vmatpush1.msra.mxu0 0.0
  %6353 = vmatprep.subr.mxu0 0.0
  %6354 = vmatpush1.msra.mxu0 0.0
  %6355 = vmatprep.subr.mxu0 0.0
  %6356 = vmatpush1.msra.mxu0 0.0
  %6357 = vmatprep.subr.mxu0 0.0
  %6358 = vmatpush1.msra.mxu0 0.0
  %6359 = vmatprep.subr.mxu0 0.0
  %6360 = vmatpush1.msra.mxu0 0.0
  %6361 = vmatprep.subr.mxu0 0.0
  %6362 = vmatpush1.msra.mxu0 0.0
  %6363 = vmatprep.subr.mxu0 0.0
  %6364 = vmatpush1.msra.mxu0 0.0
  %6365 = vmatprep.subr.mxu0 0.0
  %6366 = vmatpush1.msra.mxu0 0.0
  %6367 = vmatprep.subr.mxu0 0.0
  %6368 = vmatpush1.msra.mxu0 0.0
  %6369 = vmatprep.subr.mxu0 0.0
  %6370 = vmatpush1.msra.mxu0 0.0
  %6371 = vmatprep.mubr.f32.mxu0 %v4867
  %6372 = vmatmul.mubr.f32.gmra.mrb[0].mxu0 %v4493
  %v6373 = vpop.f32.mrb[0].mxu0
  %v6374 = vadd.f32 %v6149, %v6373
  %v6375 = vpop.f32.mrb[0].mxu0
  %6376 = vmatprep.mubr.f32.mxu0 %v4870
  %6377 = vmatmul.mubr.f32.gmra.mrb[0].mxu0 %v4497
  %v6378 = vpop.f32.mrb[0].mxu0
  %v6379 = vadd.f32 %v6154, %v6378
  %v6380 = vpop.f32.mrb[0].mxu0
  %6381 = vmatprep.mubr.f32.mxu0 %v4873
  %6382 = vmatmul.mubr.f32.gmra.mrb[0].mxu0 %v4501
  %v6383 = vpop.f32.mrb[0].mxu0
  %v6384 = vadd.f32 %v6159, %v6383
  %v6385 = vpop.f32.mrb[0].mxu0
  %6386 = vmatprep.mubr.f32.mxu0 %v4876
  %6387 = vmatmul.mubr.f32.gmra.mrb[0].mxu0 %v4505
  %v6388 = vpop.f32.mrb[0].mxu0
  %v6389 = vadd.f32 %v6164, %v6388
  %v6390 = vpop.f32.mrb[0].mxu0
  %6391 = vmatprep.mubr.f32.mxu0 %v4879
  %6392 = vmatmul.mubr.f32.gmra.mrb[0].mxu0 %v4509
  %v6393 = vpop.f32.mrb[0].mxu0
  %v6394 = vadd.f32 %v6169, %v6393
  %v6395 = vpop.f32.mrb[0].mxu0
  %6396 = vmatprep.mubr.f32.mxu0 %v4882
  %6397 = vmatmul.mubr.f32.gmra.mrb[0].mxu0 %v4513
  %v6398 = vpop.f32.mrb[0].mxu0
  %v6399 = vadd.f32 %v6174, %v6398
  %v6400 = vpop.f32.mrb[0].mxu0
  %6401 = vmatprep.mubr.f32.mxu0 %v4885
  %6402 = vmatmul.mubr.f32.gmra.mrb[0].mxu0 %v4517
  %v6403 = vpop.f32.mrb[0].mxu0
  %v6404 = vadd.f32 %v6179, %v6403
  %v6405 = vpop.f32.mrb[0].mxu0
  %6406 = vmatprep.mubr.f32.mxu0 %v4888
  %6407 = vmatmul.mubr.f32.gmra.mrb[0].mxu0 %v4521
  %v6408 = vpop.f32.mrb[0].mxu0
  %v6409 = vadd.f32 %v6184, %v6408
  %v6410 = vpop.f32.mrb[0].mxu0
  %6411 = vmatprep.mubr.f32.mxu0 %v4891
  %6412 = vmatmul.mubr.f32.gmra.mrb[0].mxu0 %v4525
  %v6413 = vpop.f32.mrb[0].mxu0
  %v6414 = vadd.f32 %v6189, %v6413
  %v6415 = vpop.f32.mrb[0].mxu0
  %6416 = vmatprep.mubr.f32.mxu0 %v4894
  %6417 = vmatmul.mubr.f32.gmra.mrb[0].mxu0 %v4529
  %v6418 = vpop.f32.mrb[0].mxu0
  %v6419 = vadd.f32 %v6194, %v6418
  %v6420 = vpop.f32.mrb[0].mxu0
  %6421 = vmatprep.mubr.f32.mxu0 %v4897
  %6422 = vmatmul.mubr.f32.gmra.mrb[0].mxu0 %v4533
  %v6423 = vpop.f32.mrb[0].mxu0
  %v6424 = vadd.f32 %v6199, %v6423
  %v6425 = vpop.f32.mrb[0].mxu0
  %6426 = vmatprep.mubr.f32.mxu0 %v4900
  %6427 = vmatmul.mubr.f32.gmra.mrb[0].mxu0 %v4537
  %v6428 = vpop.f32.mrb[0].mxu0
  %v6429 = vadd.f32 %v6204, %v6428
  %v6430 = vpop.f32.mrb[0].mxu0
  %6431 = vmatprep.mubr.f32.mxu0 %v4903
  %6432 = vmatmul.mubr.f32.gmra.mrb[0].mxu0 %v4541
  %v6433 = vpop.f32.mrb[0].mxu0
  %v6434 = vadd.f32 %v6209, %v6433
  %v6435 = vpop.f32.mrb[0].mxu0
  %6436 = vmatprep.mubr.f32.mxu0 %v4906
  %6437 = vmatmul.mubr.f32.gmra.mrb[0].mxu0 %v4545
  %v6438 = vpop.f32.mrb[0].mxu0
  %v6439 = vadd.f32 %v6214, %v6438
  %v6440 = vpop.f32.mrb[0].mxu0
  %6441 = vmatprep.mubr.f32.mxu0 %v4909
  %6442 = vmatmul.mubr.f32.gmra.mrb[0].mxu0 %v4549
  %v6443 = vpop.f32.mrb[0].mxu0
  %v6444 = vadd.f32 %v6219, %v6443
  %v6445 = vpop.f32.mrb[0].mxu0
  %6446 = vmatprep.mubr.f32.mxu0 %v4912
  %6447 = vmatmul.mubr.f32.gmra.mrb[0].mxu0 %v4553
  %v6448 = vpop.f32.mrb[0].mxu0
  %v6449 = vadd.f32 %v6224, %v6448
  %v6450 = vpop.f32.mrb[0].mxu0
  %6451 = vmatprep.mubr.f32.mxu0 %v4915
  %6452 = vmatmul.mubr.f32.gmra.mrb[0].mxu0 %v4557
  %v6453 = vpop.f32.mrb[0].mxu0
  %v6454 = vadd.f32 %v6229, %v6453
  %v6455 = vpop.f32.mrb[0].mxu0
  %6456 = vmatprep.mubr.f32.mxu0 %v4918
  %6457 = vmatmul.mubr.f32.gmra.mrb[0].mxu0 %v4561
  %v6458 = vpop.f32.mrb[0].mxu0
  %v6459 = vadd.f32 %v6234, %v6458
  %v6460 = vpop.f32.mrb[0].mxu0
  %6461 = vmatprep.mubr.f32.mxu0 %v4921
  %6462 = vmatmul.mubr.f32.gmra.mrb[0].mxu0 %v4565
  %v6463 = vpop.f32.mrb[0].mxu0
  %v6464 = vadd.f32 %v6239, %v6463
  %v6465 = vpop.f32.mrb[0].mxu0
  %6466 = vmatprep.mubr.f32.mxu0 %v4924
  %6467 = vmatmul.mubr.f32.gmra.mrb[0].mxu0 %v4569
  %v6468 = vpop.f32.mrb[0].mxu0
  %v6469 = vadd.f32 %v6244, %v6468
  %v6470 = vpop.f32.mrb[0].mxu0
  %6471 = vmatprep.mubr.f32.mxu0 %v4927
  %6472 = vmatmul.mubr.f32.gmra.mrb[0].mxu0 %v4573
  %v6473 = vpop.f32.mrb[0].mxu0
  %v6474 = vadd.f32 %v6249, %v6473
  %v6475 = vpop.f32.mrb[0].mxu0
  %6476 = vmatprep.mubr.f32.mxu0 %v4930
  %6477 = vmatmul.mubr.f32.gmra.mrb[0].mxu0 %v4577
  %v6478 = vpop.f32.mrb[0].mxu0
  %v6479 = vadd.f32 %v6254, %v6478
  %v6480 = vpop.f32.mrb[0].mxu0
  %6481 = vmatprep.mubr.f32.mxu0 %v4933
  %6482 = vmatmul.mubr.f32.gmra.mrb[0].mxu0 %v4581
  %v6483 = vpop.f32.mrb[0].mxu0
  %v6484 = vadd.f32 %v6259, %v6483
  %v6485 = vpop.f32.mrb[0].mxu0
  %6486 = vmatprep.mubr.f32.mxu0 %v4936
  %6487 = vmatmul.mubr.f32.gmra.mrb[0].mxu0 %v4585
  %v6488 = vpop.f32.mrb[0].mxu0
  %v6489 = vadd.f32 %v6264, %v6488
  %v6490 = vpop.f32.mrb[0].mxu0
  %6491 = vmatprep.mubr.f32.mxu0 %v4939
  %6492 = vmatmul.mubr.f32.gmra.mrb[0].mxu0 %v4589
  %v6493 = vpop.f32.mrb[0].mxu0
  %v6494 = vadd.f32 %v6269, %v6493
  %v6495 = vpop.f32.mrb[0].mxu0
  %6496 = vmatprep.mubr.f32.mxu0 %v4942
  %6497 = vmatmul.mubr.f32.gmra.mrb[0].mxu0 %v4593
  %v6498 = vpop.f32.mrb[0].mxu0
  %v6499 = vadd.f32 %v6274, %v6498
  %v6500 = vpop.f32.mrb[0].mxu0
  %6501 = vmatprep.mubr.f32.mxu0 %v4945
  %6502 = vmatmul.mubr.f32.gmra.mrb[0].mxu0 %v4597
  %v6503 = vpop.f32.mrb[0].mxu0
  %v6504 = vadd.f32 %v6279, %v6503
  %v6505 = vpop.f32.mrb[0].mxu0
  %6506 = vmatprep.mubr.f32.mxu0 %v4948
  %6507 = vmatmul.mubr.f32.gmra.mrb[0].mxu0 %v4601
  %v6508 = vpop.f32.mrb[0].mxu0
  %v6509 = vadd.f32 %v6284, %v6508
  %v6510 = vpop.f32.mrb[0].mxu0
  %6511 = vmatprep.mubr.f32.mxu0 %v4951
  %6512 = vmatmul.mubr.f32.gmra.mrb[0].mxu0 %v4605
  %v6513 = vpop.f32.mrb[0].mxu0
  %v6514 = vadd.f32 %v6289, %v6513
  %v6515 = vpop.f32.mrb[0].mxu0
  %6516 = vmatprep.mubr.f32.mxu0 %v4954
  %6517 = vmatmul.mubr.f32.gmra.mrb[0].mxu0 %v4609
  %v6518 = vpop.f32.mrb[0].mxu0
  %v6519 = vadd.f32 %v6294, %v6518
  %v6520 = vpop.f32.mrb[0].mxu0
  %6521 = vmatprep.mubr.f32.mxu0 %v4957
  %6522 = vmatmul.mubr.f32.gmra.mrb[0].mxu0 %v4613
  %v6523 = vpop.f32.mrb[0].mxu0
  %v6524 = vadd.f32 %v6299, %v6523
  %v6525 = vpop.f32.mrb[0].mxu0
  %6526 = vmatprep.mubr.f32.mxu0 %v4960
  %6527 = vmatmul.mubr.f32.gmra.mrb[0].mxu0 %v4617
  %v6528 = vpop.f32.mrb[0].mxu0
  %v6529 = vadd.f32 %v6304, %v6528
  %v6530 = vpop.f32.mrb[0].mxu0
  %6531 = vdwg.mxu0
  %v6532 = vmax.f32 %v6374, 0.0
  %v6533 = vmax.f32 %v6379, 0.0
  %v6534 = vmax.f32 %v6384, 0.0
  %v6535 = vmax.f32 %v6389, 0.0
  %v6536 = vmax.f32 %v6394, 0.0
  %v6537 = vmax.f32 %v6399, 0.0
  %v6538 = vmax.f32 %v6404, 0.0
  %v6539 = vmax.f32 %v6409, 0.0
  %v6540 = vmax.f32 %v6414, 0.0
  %v6541 = vmax.f32 %v6419, 0.0
  %v6542 = vmax.f32 %v6424, 0.0
  %v6543 = vmax.f32 %v6429, 0.0
  %v6544 = vmax.f32 %v6434, 0.0
  %v6545 = vmax.f32 %v6439, 0.0
  %v6546 = vmax.f32 %v6444, 0.0
  %v6547 = vmax.f32 %v6449, 0.0
  %v6548 = vmax.f32 %v6454, 0.0
  %v6549 = vmax.f32 %v6459, 0.0
  %v6550 = vmax.f32 %v6464, 0.0
  %v6551 = vmax.f32 %v6469, 0.0
  %v6552 = vmax.f32 %v6474, 0.0
  %v6553 = vmax.f32 %v6479, 0.0
  %v6554 = vmax.f32 %v6484, 0.0
  %v6555 = vmax.f32 %v6489, 0.0
  %v6556 = vmax.f32 %v6494, 0.0
  %v6557 = vmax.f32 %v6499, 0.0
  %v6558 = vmax.f32 %v6504, 0.0
  %v6559 = vmax.f32 %v6509, 0.0
  %v6560 = vmax.f32 %v6514, 0.0
  %v6561 = vmax.f32 %v6519, 0.0
  %v6562 = vmax.f32 %v6524, 0.0
  %v6563 = vmax.f32 %v6529, 0.0
  %v6564 = vmax.f32 %v6532, %v6548
  %v6565 = vmax.f32 %v6533, %v6549
  %v6566 = vmax.f32 %v6534, %v6550
  %v6567 = vmax.f32 %v6535, %v6551
  %v6568 = vmax.f32 %v6536, %v6552
  %v6569 = vmax.f32 %v6537, %v6553
  %v6570 = vmax.f32 %v6538, %v6554
  %v6571 = vmax.f32 %v6539, %v6555
  %v6572 = vmax.f32 %v6540, %v6556
  %v6573 = vmax.f32 %v6541, %v6557
  %v6574 = vmax.f32 %v6542, %v6558
  %v6575 = vmax.f32 %v6543, %v6559
  %v6576 = vmax.f32 %v6544, %v6560
  %v6577 = vmax.f32 %v6545, %v6561
  %v6578 = vmax.f32 %v6546, %v6562
  %v6579 = vmax.f32 %v6547, %v6563
  %v6580 = vmax.f32 %v6564, %v6572
  %v6581 = vmax.f32 %v6565, %v6573
  %v6582 = vmax.f32 %v6566, %v6574
  %v6583 = vmax.f32 %v6567, %v6575
  %v6584 = vmax.f32 %v6568, %v6576
  %v6585 = vmax.f32 %v6569, %v6577
  %v6586 = vmax.f32 %v6570, %v6578
  %v6587 = vmax.f32 %v6571, %v6579
  %v6588 = vld [vmem:[#allocation2 + $0x1b0] sm:$0xff]
  %v6589 = vld [vmem:[#allocation2 + $0x1b8] sm:$0xff]
  %v6590 = vld [vmem:[#allocation2 + $0x1c0] sm:$0xff]
  %v6591 = vld [vmem:[#allocation2 + $0x1c8] sm:$0xff]
  %v6592 = vld [vmem:[#allocation2 + $0x1d0] sm:$0xff]
  %v6593 = vld [vmem:[#allocation2 + $0x1d8] sm:$0xff]
  %v6594 = vld [vmem:[#allocation2 + $0x1e0] sm:$0xff]
  %v6595 = vld [vmem:[#allocation2 + $0x1e8] sm:$0xff]
  %v6596 = vld [vmem:[#allocation2 + $0x1f0] sm:$0xff]
  %v6597 = vld [vmem:[#allocation2 + $0x1f8] sm:$0xff]
  %v6598 = vld [vmem:[#allocation2 + $0x200] sm:$0xff]
  %v6599 = vld [vmem:[#allocation2 + $0x208] sm:$0xff]
  %v6600 = vld [vmem:[#allocation2 + $0x210] sm:$0xff]
  %v6601 = vld [vmem:[#allocation2 + $0x218] sm:$0xff]
  %v6602 = vld [vmem:[#allocation2 + $0x220] sm:$0xff]
  %v6603 = vld [vmem:[#allocation2 + $0x228] sm:$0xff]
  %v6604 = vld [vmem:[#allocation2 + $0x230] sm:$0xff]
  %v6605 = vld [vmem:[#allocation2 + $0x238] sm:$0xff]
  %v6606 = vld [vmem:[#allocation2 + $0x240] sm:$0xff]
  %v6607 = vld [vmem:[#allocation2 + $0x248] sm:$0xff]
  %v6608 = vld [vmem:[#allocation2 + $0x250] sm:$0xff]
  %v6609 = vld [vmem:[#allocation2 + $0x258] sm:$0xff]
  %v6610 = vld [vmem:[#allocation2 + $0x260] sm:$0xff]
  %v6611 = vld [vmem:[#allocation2 + $0x268] sm:$0xff]
  %v6612 = vld [vmem:[#allocation2 + $0x270] sm:$0xff]
  %v6613 = vld [vmem:[#allocation2 + $0x278] sm:$0xff]
  %v6614 = vld [vmem:[#allocation2 + $0x280] sm:$0xff]
  %v6615 = vld [vmem:[#allocation2 + $0x288] sm:$0xff]
  %v6616 = vld [vmem:[#allocation2 + $0x290] sm:$0xff]
  %v6617 = vld [vmem:[#allocation2 + $0x298] sm:$0xff]
  %v6618 = vld [vmem:[#allocation2 + $0x2a0] sm:$0xff]
  %v6619 = vld [vmem:[#allocation2 + $0x2a8] sm:$0xff]
  %v6620 = vld [vmem:[#allocation2 + $0x2b0] sm:$0xff]
  %v6621 = vld [vmem:[#allocation2 + $0x2b8] sm:$0xff]
  %v6622 = vld [vmem:[#allocation2 + $0x2c0] sm:$0xff]
  %v6623 = vld [vmem:[#allocation2 + $0x2c8] sm:$0xff]
  %v6624 = vld [vmem:[#allocation2 + $0x2d0] sm:$0xff]
  %v6625 = vld [vmem:[#allocation2 + $0x2d8] sm:$0xff]
  %v6626 = vld [vmem:[#allocation2 + $0x2e0] sm:$0xff]
  %v6627 = vld [vmem:[#allocation2 + $0x2e8] sm:$0xff]
  %v6628 = vld [vmem:[#allocation2 + $0x2f0] sm:$0xff]
  %v6629 = vld [vmem:[#allocation2 + $0x2f8] sm:$0xff]
  %v6630 = vld [vmem:[#allocation2 + $0x300] sm:$0xff]
  %v6631 = vld [vmem:[#allocation2 + $0x308] sm:$0xff]
  %v6632 = vld [vmem:[#allocation2 + $0x310] sm:$0xff]
  %v6633 = vld [vmem:[#allocation2 + $0x318] sm:$0xff]
  %v6634 = vld [vmem:[#allocation2 + $0x320] sm:$0xff]
  %v6635 = vld [vmem:[#allocation2 + $0x328] sm:$0xff]
  %v6636 = vld [vmem:[#allocation2 + $0x330] sm:$0xff]
  %v6637 = vld [vmem:[#allocation2 + $0x338] sm:$0xff]
  %v6638 = vld [vmem:[#allocation2 + $0x340] sm:$0xff]
  %v6639 = vld [vmem:[#allocation2 + $0x348] sm:$0xff]
  %v6640 = vld [vmem:[#allocation2 + $0x350] sm:$0xff]
  %v6641 = vld [vmem:[#allocation2 + $0x358] sm:$0xff]
  %6642 = vmatprep.subr.mxu0 0.0
  %6643 = vmatpush1.msra.mxu0 %v6588
  %6644 = vmatprep.subr.mxu0 0.0
  %6645 = vmatpush1.msra.mxu0 %v6589
  %6646 = vmatprep.subr.mxu0 0.0
  %6647 = vmatpush1.msra.mxu0 %v6590
  %6648 = vmatprep.subr.mxu0 0.0
  %6649 = vmatpush1.msra.mxu0 %v6591
  %6650 = vmatprep.subr.mxu0 0.0
  %6651 = vmatpush1.msra.mxu0 %v6592
  %6652 = vmatprep.subr.mxu0 0.0
  %6653 = vmatpush1.msra.mxu0 %v6593
  %6654 = vmatprep.subr.mxu0 0.0
  %6655 = vmatpush1.msra.mxu0 %v6594
  %6656 = vmatprep.subr.mxu0 0.0
  %6657 = vmatpush1.msra.mxu0 %v6595
  %6658 = vmatprep.subr.mxu0 0.0
  %6659 = vmatpush1.msra.mxu0 %v6596
  %6660 = vmatprep.subr.mxu0 0.0
  %6661 = vmatpush1.msra.mxu0 %v6597
  %6662 = vmatprep.subr.mxu0 0.0
  %6663 = vmatpush1.msra.mxu0 %v6598
  %6664 = vmatprep.subr.mxu0 0.0
  %6665 = vmatpush1.msra.mxu0 %v6599
  %6666 = vmatprep.subr.mxu0 0.0
  %6667 = vmatpush1.msra.mxu0 %v6600
  %6668 = vmatprep.subr.mxu0 0.0
  %6669 = vmatpush1.msra.mxu0 %v6601
  %6670 = vmatprep.subr.mxu0 0.0
  %6671 = vmatpush1.msra.mxu0 %v6602
  %6672 = vmatprep.subr.mxu0 0.0
  %6673 = vmatpush1.msra.mxu0 %v6603
  %6674 = vmatprep.subr.mxu0 0.0
  %6675 = vmatpush1.msra.mxu0 %v6604
  %6676 = vmatprep.subr.mxu0 0.0
  %6677 = vmatpush1.msra.mxu0 %v6605
  %6678 = vmatprep.subr.mxu0 0.0
  %6679 = vmatpush1.msra.mxu0 %v6606
  %6680 = vmatprep.subr.mxu0 0.0
  %6681 = vmatpush1.msra.mxu0 %v6607
  %6682 = vmatprep.subr.mxu0 0.0
  %6683 = vmatpush1.msra.mxu0 %v6608
  %6684 = vmatprep.subr.mxu0 0.0
  %6685 = vmatpush1.msra.mxu0 %v6609
  %6686 = vmatprep.subr.mxu0 0.0
  %6687 = vmatpush1.msra.mxu0 %v6610
  %6688 = vmatprep.subr.mxu0 0.0
  %6689 = vmatpush1.msra.mxu0 %v6611
  %6690 = vmatprep.subr.mxu0 0.0
  %6691 = vmatpush1.msra.mxu0 %v6612
  %6692 = vmatprep.subr.mxu0 0.0
  %6693 = vmatpush1.msra.mxu0 %v6613
  %6694 = vmatprep.subr.mxu0 0.0
  %6695 = vmatpush1.msra.mxu0 %v6614
  %6696 = vmatprep.subr.mxu0 0.0
  %6697 = vmatpush1.msra.mxu0 %v6615
  %6698 = vmatprep.subr.mxu0 0.0
  %6699 = vmatpush1.msra.mxu0 %v6616
  %6700 = vmatprep.subr.mxu0 0.0
  %6701 = vmatpush1.msra.mxu0 %v6617
  %6702 = vmatprep.subr.mxu0 0.0
  %6703 = vmatpush1.msra.mxu0 %v6618
  %6704 = vmatprep.subr.mxu0 0.0
  %6705 = vmatpush1.msra.mxu0 %v6619
  %6706 = vmatprep.mubr.f32.mxu0 %v4492
  %6707 = vmatmul.mubr.f32.gmra.mrb[0].mxu0 %v4491
  %v6708 = vpop.f32.mrb[0].mxu0
  %v6709 = vadd.f32 %v4708, %v6708
  %v6710 = vpop.f32.mrb[0].mxu0
  %6711 = vmatprep.mubr.f32.mxu0 %v4496
  %6712 = vmatmul.mubr.f32.gmra.mrb[0].mxu0 %v4495
  %v6713 = vpop.f32.mrb[0].mxu0
  %v6714 = vadd.f32 %v4713, %v6713
  %v6715 = vpop.f32.mrb[0].mxu0
  %6716 = vmatprep.mubr.f32.mxu0 %v4500
  %6717 = vmatmul.mubr.f32.gmra.mrb[0].mxu0 %v4499
  %v6718 = vpop.f32.mrb[0].mxu0
  %v6719 = vadd.f32 %v4718, %v6718
  %v6720 = vpop.f32.mrb[0].mxu0
  %6721 = vmatprep.mubr.f32.mxu0 %v4504
  %6722 = vmatmul.mubr.f32.gmra.mrb[0].mxu0 %v4503
  %v6723 = vpop.f32.mrb[0].mxu0
  %v6724 = vadd.f32 %v4723, %v6723
  %v6725 = vpop.f32.mrb[0].mxu0
  %6726 = vmatprep.mubr.f32.mxu0 %v4508
  %6727 = vmatmul.mubr.f32.gmra.mrb[0].mxu0 %v4507
  %v6728 = vpop.f32.mrb[0].mxu0
  %v6729 = vadd.f32 %v4728, %v6728
  %v6730 = vpop.f32.mrb[0].mxu0
  %6731 = vmatprep.mubr.f32.mxu0 %v4512
  %6732 = vmatmul.mubr.f32.gmra.mrb[0].mxu0 %v4511
  %v6733 = vpop.f32.mrb[0].mxu0
  %v6734 = vadd.f32 %v4733, %v6733
  %v6735 = vpop.f32.mrb[0].mxu0
  %6736 = vmatprep.mubr.f32.mxu0 %v4516
  %6737 = vmatmul.mubr.f32.gmra.mrb[0].mxu0 %v4515
  %v6738 = vpop.f32.mrb[0].mxu0
  %v6739 = vadd.f32 %v4738, %v6738
  %v6740 = vpop.f32.mrb[0].mxu0
  %6741 = vmatprep.mubr.f32.mxu0 %v4520
  %6742 = vmatmul.mubr.f32.gmra.mrb[0].mxu0 %v4519
  %v6743 = vpop.f32.mrb[0].mxu0
  %v6744 = vadd.f32 %v4743, %v6743
  %v6745 = vpop.f32.mrb[0].mxu0
  %6746 = vmatprep.mubr.f32.mxu0 %v4524
  %6747 = vmatmul.mubr.f32.gmra.mrb[0].mxu0 %v4523
  %v6748 = vpop.f32.mrb[0].mxu0
  %v6749 = vadd.f32 %v4748, %v6748
  %v6750 = vpop.f32.mrb[0].mxu0
  %6751 = vmatprep.mubr.f32.mxu0 %v4528
  %6752 = vmatmul.mubr.f32.gmra.mrb[0].mxu0 %v4527
  %v6753 = vpop.f32.mrb[0].mxu0
  %v6754 = vadd.f32 %v4753, %v6753
  %v6755 = vpop.f32.mrb[0].mxu0
  %6756 = vmatprep.mubr.f32.mxu0 %v4532
  %6757 = vmatmul.mubr.f32.gmra.mrb[0].mxu0 %v4531
  %v6758 = vpop.f32.mrb[0].mxu0
  %v6759 = vadd.f32 %v4758, %v6758
  %v6760 = vpop.f32.mrb[0].mxu0
  %6761 = vmatprep.mubr.f32.mxu0 %v4536
  %6762 = vmatmul.mubr.f32.gmra.mrb[0].mxu0 %v4535
  %v6763 = vpop.f32.mrb[0].mxu0
  %v6764 = vadd.f32 %v4763, %v6763
  %v6765 = vpop.f32.mrb[0].mxu0
  %6766 = vmatprep.mubr.f32.mxu0 %v4540
  %6767 = vmatmul.mubr.f32.gmra.mrb[0].mxu0 %v4539
  %v6768 = vpop.f32.mrb[0].mxu0
  %v6769 = vadd.f32 %v4768, %v6768
  %v6770 = vpop.f32.mrb[0].mxu0
  %6771 = vmatprep.mubr.f32.mxu0 %v4544
  %6772 = vmatmul.mubr.f32.gmra.mrb[0].mxu0 %v4543
  %v6773 = vpop.f32.mrb[0].mxu0
  %v6774 = vadd.f32 %v4773, %v6773
  %v6775 = vpop.f32.mrb[0].mxu0
  %6776 = vmatprep.mubr.f32.mxu0 %v4548
  %6777 = vmatmul.mubr.f32.gmra.mrb[0].mxu0 %v4547
  %v6778 = vpop.f32.mrb[0].mxu0
  %v6779 = vadd.f32 %v4778, %v6778
  %v6780 = vpop.f32.mrb[0].mxu0
  %6781 = vmatprep.mubr.f32.mxu0 %v4552
  %6782 = vmatmul.mubr.f32.gmra.mrb[0].mxu0 %v4551
  %v6783 = vpop.f32.mrb[0].mxu0
  %v6784 = vadd.f32 %v4783, %v6783
  %v6785 = vpop.f32.mrb[0].mxu0
  %6786 = vmatprep.mubr.f32.mxu0 %v4556
  %6787 = vmatmul.mubr.f32.gmra.mrb[0].mxu0 %v4555
  %v6788 = vpop.f32.mrb[0].mxu0
  %v6789 = vadd.f32 %v4788, %v6788
  %v6790 = vpop.f32.mrb[0].mxu0
  %6791 = vmatprep.mubr.f32.mxu0 %v4560
  %6792 = vmatmul.mubr.f32.gmra.mrb[0].mxu0 %v4559
  %v6793 = vpop.f32.mrb[0].mxu0
  %v6794 = vadd.f32 %v4793, %v6793
  %v6795 = vpop.f32.mrb[0].mxu0
  %6796 = vmatprep.mubr.f32.mxu0 %v4564
  %6797 = vmatmul.mubr.f32.gmra.mrb[0].mxu0 %v4563
  %v6798 = vpop.f32.mrb[0].mxu0
  %v6799 = vadd.f32 %v4798, %v6798
  %v6800 = vpop.f32.mrb[0].mxu0
  %6801 = vmatprep.mubr.f32.mxu0 %v4568
  %6802 = vmatmul.mubr.f32.gmra.mrb[0].mxu0 %v4567
  %v6803 = vpop.f32.mrb[0].mxu0
  %v6804 = vadd.f32 %v4803, %v6803
  %v6805 = vpop.f32.mrb[0].mxu0
  %6806 = vmatprep.mubr.f32.mxu0 %v4572
  %6807 = vmatmul.mubr.f32.gmra.mrb[0].mxu0 %v4571
  %v6808 = vpop.f32.mrb[0].mxu0
  %v6809 = vadd.f32 %v4808, %v6808
  %v6810 = vpop.f32.mrb[0].mxu0
  %6811 = vmatprep.mubr.f32.mxu0 %v4576
  %6812 = vmatmul.mubr.f32.gmra.mrb[0].mxu0 %v4575
  %v6813 = vpop.f32.mrb[0].mxu0
  %v6814 = vadd.f32 %v4813, %v6813
  %v6815 = vpop.f32.mrb[0].mxu0
  %6816 = vmatprep.mubr.f32.mxu0 %v4580
  %6817 = vmatmul.mubr.f32.gmra.mrb[0].mxu0 %v4579
  %v6818 = vpop.f32.mrb[0].mxu0
  %v6819 = vadd.f32 %v4818, %v6818
  %v6820 = vpop.f32.mrb[0].mxu0
  %6821 = vmatprep.mubr.f32.mxu0 %v4584
  %6822 = vmatmul.mubr.f32.gmra.mrb[0].mxu0 %v4583
  %v6823 = vpop.f32.mrb[0].mxu0
  %v6824 = vadd.f32 %v4823, %v6823
  %v6825 = vpop.f32.mrb[0].mxu0
  %6826 = vmatprep.mubr.f32.mxu0 %v4588
  %6827 = vmatmul.mubr.f32.gmra.mrb[0].mxu0 %v4587
  %v6828 = vpop.f32.mrb[0].mxu0
  %v6829 = vadd.f32 %v4828, %v6828
  %v6830 = vpop.f32.mrb[0].mxu0
  %6831 = vmatprep.mubr.f32.mxu0 %v4592
  %6832 = vmatmul.mubr.f32.gmra.mrb[0].mxu0 %v4591
  %v6833 = vpop.f32.mrb[0].mxu0
  %v6834 = vadd.f32 %v4833, %v6833
  %v6835 = vpop.f32.mrb[0].mxu0
  %6836 = vmatprep.mubr.f32.mxu0 %v4596
  %6837 = vmatmul.mubr.f32.gmra.mrb[0].mxu0 %v4595
  %v6838 = vpop.f32.mrb[0].mxu0
  %v6839 = vadd.f32 %v4838, %v6838
  %v6840 = vpop.f32.mrb[0].mxu0
  %6841 = vmatprep.mubr.f32.mxu0 %v4600
  %6842 = vmatmul.mubr.f32.gmra.mrb[0].mxu0 %v4599
  %v6843 = vpop.f32.mrb[0].mxu0
  %v6844 = vadd.f32 %v4843, %v6843
  %v6845 = vpop.f32.mrb[0].mxu0
  %6846 = vmatprep.mubr.f32.mxu0 %v4604
  %6847 = vmatmul.mubr.f32.gmra.mrb[0].mxu0 %v4603
  %v6848 = vpop.f32.mrb[0].mxu0
  %v6849 = vadd.f32 %v4848, %v6848
  %v6850 = vpop.f32.mrb[0].mxu0
  %6851 = vmatprep.mubr.f32.mxu0 %v4608
  %6852 = vmatmul.mubr.f32.gmra.mrb[0].mxu0 %v4607
  %v6853 = vpop.f32.mrb[0].mxu0
  %v6854 = vadd.f32 %v4853, %v6853
  %v6855 = vpop.f32.mrb[0].mxu0
  %6856 = vmatprep.mubr.f32.mxu0 %v4612
  %6857 = vmatmul.mubr.f32.gmra.mrb[0].mxu0 %v4611
  %v6858 = vpop.f32.mrb[0].mxu0
  %v6859 = vadd.f32 %v4858, %v6858
  %v6860 = vpop.f32.mrb[0].mxu0
  %6861 = vmatprep.mubr.f32.mxu0 %v4616
  %6862 = vmatmul.mubr.f32.gmra.mrb[0].mxu0 %v4615
  %v6863 = vpop.f32.mrb[0].mxu0
  %v6864 = vadd.f32 %v4863, %v6863
  %v6865 = vpop.f32.mrb[0].mxu0
  %6866 = vdwg.mxu0
  %6867 = vmatprep.subr.mxu0 0.0
  %6868 = vmatpush1.msra.mxu0 %v6620
  %6869 = vmatprep.subr.mxu0 0.0
  %6870 = vmatpush1.msra.mxu0 %v6621
  %6871 = vmatprep.subr.mxu0 0.0
  %6872 = vmatpush1.msra.mxu0 %v6622
  %6873 = vmatprep.subr.mxu0 0.0
  %6874 = vmatpush1.msra.mxu0 %v6623
  %6875 = vmatprep.subr.mxu0 0.0
  %6876 = vmatpush1.msra.mxu0 %v6624
  %6877 = vmatprep.subr.mxu0 0.0
  %6878 = vmatpush1.msra.mxu0 %v6625
  %6879 = vmatprep.subr.mxu0 0.0
  %6880 = vmatpush1.msra.mxu0 %v6626
  %6881 = vmatprep.subr.mxu0 0.0
  %6882 = vmatpush1.msra.mxu0 %v6627
  %6883 = vmatprep.subr.mxu0 0.0
  %6884 = vmatpush1.msra.mxu0 %v6628
  %6885 = vmatprep.subr.mxu0 0.0
  %6886 = vmatpush1.msra.mxu0 %v6629
  %6887 = vmatprep.subr.mxu0 0.0
  %6888 = vmatpush1.msra.mxu0 %v6630
  %6889 = vmatprep.subr.mxu0 0.0
  %6890 = vmatpush1.msra.mxu0 %v6631
  %6891 = vmatprep.subr.mxu0 0.0
  %6892 = vmatpush1.msra.mxu0 %v6632
  %6893 = vmatprep.subr.mxu0 0.0
  %6894 = vmatpush1.msra.mxu0 %v6633
  %6895 = vmatprep.subr.mxu0 0.0
  %6896 = vmatpush1.msra.mxu0 %v6634
  %6897 = vmatprep.subr.mxu0 0.0
  %6898 = vmatpush1.msra.mxu0 %v6635
  %6899 = vmatprep.subr.mxu0 0.0
  %6900 = vmatpush1.msra.mxu0 %v6636
  %6901 = vmatprep.subr.mxu0 0.0
  %6902 = vmatpush1.msra.mxu0 %v6637
  %6903 = vmatprep.subr.mxu0 0.0
  %6904 = vmatpush1.msra.mxu0 %v6638
  %6905 = vmatprep.subr.mxu0 0.0
  %6906 = vmatpush1.msra.mxu0 %v6639
  %6907 = vmatprep.subr.mxu0 0.0
  %6908 = vmatpush1.msra.mxu0 %v6640
  %6909 = vmatprep.subr.mxu0 0.0
  %6910 = vmatpush1.msra.mxu0 %v6641
  %6911 = vmatprep.subr.mxu0 0.0
  %6912 = vmatpush1.msra.mxu0 0.0
  %6913 = vmatprep.subr.mxu0 0.0
  %6914 = vmatpush1.msra.mxu0 0.0
  %6915 = vmatprep.subr.mxu0 0.0
  %6916 = vmatpush1.msra.mxu0 0.0
  %6917 = vmatprep.subr.mxu0 0.0
  %6918 = vmatpush1.msra.mxu0 0.0
  %6919 = vmatprep.subr.mxu0 0.0
  %6920 = vmatpush1.msra.mxu0 0.0
  %6921 = vmatprep.subr.mxu0 0.0
  %6922 = vmatpush1.msra.mxu0 0.0
  %6923 = vmatprep.subr.mxu0 0.0
  %6924 = vmatpush1.msra.mxu0 0.0
  %6925 = vmatprep.subr.mxu0 0.0
  %6926 = vmatpush1.msra.mxu0 0.0
  %6927 = vmatprep.subr.mxu0 0.0
  %6928 = vmatpush1.msra.mxu0 0.0
  %6929 = vmatprep.subr.mxu0 0.0
  %6930 = vmatpush1.msra.mxu0 0.0
  %6931 = vmatprep.mubr.f32.mxu0 %v4867
  %6932 = vmatmul.mubr.f32.gmra.mrb[0].mxu0 %v4493
  %v6933 = vpop.f32.mrb[0].mxu0
  %v6934 = vadd.f32 %v6709, %v6933
  %v6935 = vpop.f32.mrb[0].mxu0
  %6936 = vmatprep.mubr.f32.mxu0 %v4870
  %6937 = vmatmul.mubr.f32.gmra.mrb[0].mxu0 %v4497
  %v6938 = vpop.f32.mrb[0].mxu0
  %v6939 = vadd.f32 %v6714, %v6938
  %v6940 = vpop.f32.mrb[0].mxu0
  %6941 = vmatprep.mubr.f32.mxu0 %v4873
  %6942 = vmatmul.mubr.f32.gmra.mrb[0].mxu0 %v4501
  %v6943 = vpop.f32.mrb[0].mxu0
  %v6944 = vadd.f32 %v6719, %v6943
  %v6945 = vpop.f32.mrb[0].mxu0
  %6946 = vmatprep.mubr.f32.mxu0 %v4876
  %6947 = vmatmul.mubr.f32.gmra.mrb[0].mxu0 %v4505
  %v6948 = vpop.f32.mrb[0].mxu0
  %v6949 = vadd.f32 %v6724, %v6948
  %v6950 = vpop.f32.mrb[0].mxu0
  %6951 = vmatprep.mubr.f32.mxu0 %v4879
  %6952 = vmatmul.mubr.f32.gmra.mrb[0].mxu0 %v4509
  %v6953 = vpop.f32.mrb[0].mxu0
  %v6954 = vadd.f32 %v6729, %v6953
  %v6955 = vpop.f32.mrb[0].mxu0
  %6956 = vmatprep.mubr.f32.mxu0 %v4882
  %6957 = vmatmul.mubr.f32.gmra.mrb[0].mxu0 %v4513
  %v6958 = vpop.f32.mrb[0].mxu0
  %v6959 = vadd.f32 %v6734, %v6958
  %v6960 = vpop.f32.mrb[0].mxu0
  %6961 = vmatprep.mubr.f32.mxu0 %v4885
  %6962 = vmatmul.mubr.f32.gmra.mrb[0].mxu0 %v4517
  %v6963 = vpop.f32.mrb[0].mxu0
  %v6964 = vadd.f32 %v6739, %v6963
  %v6965 = vpop.f32.mrb[0].mxu0
  %6966 = vmatprep.mubr.f32.mxu0 %v4888
  %6967 = vmatmul.mubr.f32.gmra.mrb[0].mxu0 %v4521
  %v6968 = vpop.f32.mrb[0].mxu0
  %v6969 = vadd.f32 %v6744, %v6968
  %v6970 = vpop.f32.mrb[0].mxu0
  %6971 = vmatprep.mubr.f32.mxu0 %v4891
  %6972 = vmatmul.mubr.f32.gmra.mrb[0].mxu0 %v4525
  %v6973 = vpop.f32.mrb[0].mxu0
  %v6974 = vadd.f32 %v6749, %v6973
  %v6975 = vpop.f32.mrb[0].mxu0
  %6976 = vmatprep.mubr.f32.mxu0 %v4894
  %6977 = vmatmul.mubr.f32.gmra.mrb[0].mxu0 %v4529
  %v6978 = vpop.f32.mrb[0].mxu0
  %v6979 = vadd.f32 %v6754, %v6978
  %v6980 = vpop.f32.mrb[0].mxu0
  %6981 = vmatprep.mubr.f32.mxu0 %v4897
  %6982 = vmatmul.mubr.f32.gmra.mrb[0].mxu0 %v4533
  %v6983 = vpop.f32.mrb[0].mxu0
  %v6984 = vadd.f32 %v6759, %v6983
  %v6985 = vpop.f32.mrb[0].mxu0
  %6986 = vmatprep.mubr.f32.mxu0 %v4900
  %6987 = vmatmul.mubr.f32.gmra.mrb[0].mxu0 %v4537
  %v6988 = vpop.f32.mrb[0].mxu0
  %v6989 = vadd.f32 %v6764, %v6988
  %v6990 = vpop.f32.mrb[0].mxu0
  %6991 = vmatprep.mubr.f32.mxu0 %v4903
  %6992 = vmatmul.mubr.f32.gmra.mrb[0].mxu0 %v4541
  %v6993 = vpop.f32.mrb[0].mxu0
  %v6994 = vadd.f32 %v6769, %v6993
  %v6995 = vpop.f32.mrb[0].mxu0
  %6996 = vmatprep.mubr.f32.mxu0 %v4906
  %6997 = vmatmul.mubr.f32.gmra.mrb[0].mxu0 %v4545
  %v6998 = vpop.f32.mrb[0].mxu0
  %v6999 = vadd.f32 %v6774, %v6998
  %v7000 = vpop.f32.mrb[0].mxu0
  %7001 = vmatprep.mubr.f32.mxu0 %v4909
  %7002 = vmatmul.mubr.f32.gmra.mrb[0].mxu0 %v4549
  %v7003 = vpop.f32.mrb[0].mxu0
  %v7004 = vadd.f32 %v6779, %v7003
  %v7005 = vpop.f32.mrb[0].mxu0
  %7006 = vmatprep.mubr.f32.mxu0 %v4912
  %7007 = vmatmul.mubr.f32.gmra.mrb[0].mxu0 %v4553
  %v7008 = vpop.f32.mrb[0].mxu0
  %v7009 = vadd.f32 %v6784, %v7008
  %v7010 = vpop.f32.mrb[0].mxu0
  %7011 = vmatprep.mubr.f32.mxu0 %v4915
  %7012 = vmatmul.mubr.f32.gmra.mrb[0].mxu0 %v4557
  %v7013 = vpop.f32.mrb[0].mxu0
  %v7014 = vadd.f32 %v6789, %v7013
  %v7015 = vpop.f32.mrb[0].mxu0
  %7016 = vmatprep.mubr.f32.mxu0 %v4918
  %7017 = vmatmul.mubr.f32.gmra.mrb[0].mxu0 %v4561
  %v7018 = vpop.f32.mrb[0].mxu0
  %v7019 = vadd.f32 %v6794, %v7018
  %v7020 = vpop.f32.mrb[0].mxu0
  %7021 = vmatprep.mubr.f32.mxu0 %v4921
  %7022 = vmatmul.mubr.f32.gmra.mrb[0].mxu0 %v4565
  %v7023 = vpop.f32.mrb[0].mxu0
  %v7024 = vadd.f32 %v6799, %v7023
  %v7025 = vpop.f32.mrb[0].mxu0
  %7026 = vmatprep.mubr.f32.mxu0 %v4924
  %7027 = vmatmul.mubr.f32.gmra.mrb[0].mxu0 %v4569
  %v7028 = vpop.f32.mrb[0].mxu0
  %v7029 = vadd.f32 %v6804, %v7028
  %v7030 = vpop.f32.mrb[0].mxu0
  %7031 = vmatprep.mubr.f32.mxu0 %v4927
  %7032 = vmatmul.mubr.f32.gmra.mrb[0].mxu0 %v4573
  %v7033 = vpop.f32.mrb[0].mxu0
  %v7034 = vadd.f32 %v6809, %v7033
  %v7035 = vpop.f32.mrb[0].mxu0
  %7036 = vmatprep.mubr.f32.mxu0 %v4930
  %7037 = vmatmul.mubr.f32.gmra.mrb[0].mxu0 %v4577
  %v7038 = vpop.f32.mrb[0].mxu0
  %v7039 = vadd.f32 %v6814, %v7038
  %v7040 = vpop.f32.mrb[0].mxu0
  %7041 = vmatprep.mubr.f32.mxu0 %v4933
  %7042 = vmatmul.mubr.f32.gmra.mrb[0].mxu0 %v4581
  %v7043 = vpop.f32.mrb[0].mxu0
  %v7044 = vadd.f32 %v6819, %v7043
  %v7045 = vpop.f32.mrb[0].mxu0
  %7046 = vmatprep.mubr.f32.mxu0 %v4936
  %7047 = vmatmul.mubr.f32.gmra.mrb[0].mxu0 %v4585
  %v7048 = vpop.f32.mrb[0].mxu0
  %v7049 = vadd.f32 %v6824, %v7048
  %v7050 = vpop.f32.mrb[0].mxu0
  %7051 = vmatprep.mubr.f32.mxu0 %v4939
  %7052 = vmatmul.mubr.f32.gmra.mrb[0].mxu0 %v4589
  %v7053 = vpop.f32.mrb[0].mxu0
  %v7054 = vadd.f32 %v6829, %v7053
  %v7055 = vpop.f32.mrb[0].mxu0
  %7056 = vmatprep.mubr.f32.mxu0 %v4942
  %7057 = vmatmul.mubr.f32.gmra.mrb[0].mxu0 %v4593
  %v7058 = vpop.f32.mrb[0].mxu0
  %v7059 = vadd.f32 %v6834, %v7058
  %v7060 = vpop.f32.mrb[0].mxu0
  %7061 = vmatprep.mubr.f32.mxu0 %v4945
  %7062 = vmatmul.mubr.f32.gmra.mrb[0].mxu0 %v4597
  %v7063 = vpop.f32.mrb[0].mxu0
  %v7064 = vadd.f32 %v6839, %v7063
  %v7065 = vpop.f32.mrb[0].mxu0
  %7066 = vmatprep.mubr.f32.mxu0 %v4948
  %7067 = vmatmul.mubr.f32.gmra.mrb[0].mxu0 %v4601
  %v7068 = vpop.f32.mrb[0].mxu0
  %v7069 = vadd.f32 %v6844, %v7068
  %v7070 = vpop.f32.mrb[0].mxu0
  %7071 = vmatprep.mubr.f32.mxu0 %v4951
  %7072 = vmatmul.mubr.f32.gmra.mrb[0].mxu0 %v4605
  %v7073 = vpop.f32.mrb[0].mxu0
  %v7074 = vadd.f32 %v6849, %v7073
  %v7075 = vpop.f32.mrb[0].mxu0
  %7076 = vmatprep.mubr.f32.mxu0 %v4954
  %7077 = vmatmul.mubr.f32.gmra.mrb[0].mxu0 %v4609
  %v7078 = vpop.f32.mrb[0].mxu0
  %v7079 = vadd.f32 %v6854, %v7078
  %v7080 = vpop.f32.mrb[0].mxu0
  %7081 = vmatprep.mubr.f32.mxu0 %v4957
  %7082 = vmatmul.mubr.f32.gmra.mrb[0].mxu0 %v4613
  %v7083 = vpop.f32.mrb[0].mxu0
  %v7084 = vadd.f32 %v6859, %v7083
  %v7085 = vpop.f32.mrb[0].mxu0
  %7086 = vmatprep.mubr.f32.mxu0 %v4960
  %7087 = vmatmul.mubr.f32.gmra.mrb[0].mxu0 %v4617
  %v7088 = vpop.f32.mrb[0].mxu0
  %v7089 = vadd.f32 %v6864, %v7088
  %v7090 = vpop.f32.mrb[0].mxu0
  %7091 = vdwg.mxu0
  %v7092 = vmax.f32 %v6934, 0.0
  %v7093 = vmax.f32 %v6939, 0.0
  %v7094 = vmax.f32 %v6944, 0.0
  %v7095 = vmax.f32 %v6949, 0.0
  %v7096 = vmax.f32 %v6954, 0.0
  %v7097 = vmax.f32 %v6959, 0.0
  %v7098 = vmax.f32 %v6964, 0.0
  %v7099 = vmax.f32 %v6969, 0.0
  %v7100 = vmax.f32 %v6974, 0.0
  %v7101 = vmax.f32 %v6979, 0.0
  %v7102 = vmax.f32 %v6984, 0.0
  %v7103 = vmax.f32 %v6989, 0.0
  %v7104 = vmax.f32 %v6994, 0.0
  %v7105 = vmax.f32 %v6999, 0.0
  %v7106 = vmax.f32 %v7004, 0.0
  %v7107 = vmax.f32 %v7009, 0.0
  %v7108 = vmax.f32 %v7014, 0.0
  %v7109 = vmax.f32 %v7019, 0.0
  %v7110 = vmax.f32 %v7024, 0.0
  %v7111 = vmax.f32 %v7029, 0.0
  %v7112 = vmax.f32 %v7034, 0.0
  %v7113 = vmax.f32 %v7039, 0.0
  %v7114 = vmax.f32 %v7044, 0.0
  %v7115 = vmax.f32 %v7049, 0.0
  %v7116 = vmax.f32 %v7054, 0.0
  %v7117 = vmax.f32 %v7059, 0.0
  %v7118 = vmax.f32 %v7064, 0.0
  %v7119 = vmax.f32 %v7069, 0.0
  %v7120 = vmax.f32 %v7074, 0.0
  %v7121 = vmax.f32 %v7079, 0.0
  %v7122 = vmax.f32 %v7084, 0.0
  %v7123 = vmax.f32 %v7089, 0.0
  %v7124 = vmax.f32 %v7092, %v7108
  %v7125 = vmax.f32 %v7093, %v7109
  %v7126 = vmax.f32 %v7094, %v7110
  %v7127 = vmax.f32 %v7095, %v7111
  %v7128 = vmax.f32 %v7096, %v7112
  %v7129 = vmax.f32 %v7097, %v7113
  %v7130 = vmax.f32 %v7098, %v7114
  %v7131 = vmax.f32 %v7099, %v7115
  %v7132 = vmax.f32 %v7100, %v7116
  %v7133 = vmax.f32 %v7101, %v7117
  %v7134 = vmax.f32 %v7102, %v7118
  %v7135 = vmax.f32 %v7103, %v7119
  %v7136 = vmax.f32 %v7104, %v7120
  %v7137 = vmax.f32 %v7105, %v7121
  %v7138 = vmax.f32 %v7106, %v7122
  %v7139 = vmax.f32 %v7107, %v7123
  %v7140 = vmax.f32 %v7124, %v7132
  %v7141 = vmax.f32 %v7125, %v7133
  %v7142 = vmax.f32 %v7126, %v7134
  %v7143 = vmax.f32 %v7127, %v7135
  %v7144 = vmax.f32 %v7128, %v7136
  %v7145 = vmax.f32 %v7129, %v7137
  %v7146 = vmax.f32 %v7130, %v7138
  %v7147 = vmax.f32 %v7131, %v7139
  %v7148 = vld [vmem:[%s5] sm:$0xff]
  %v7149 = vld [vmem:[%s5 + $0x8] sm:$0xff]
  %v7150 = vld [vmem:[%s5 + $0x10] sm:$0xff]
  %v7151 = vld [vmem:[%s5 + $0x18] sm:$0xff]
  %v7152 = vld [vmem:[%s5 + $0x20] sm:$0xff]
  %v7153 = vld [vmem:[%s5 + $0x28] sm:$0xff]
  %v7154 = vld [vmem:[%s5 + $0x30] sm:$0xff]
  %v7155 = vld [vmem:[%s5 + $0x38] sm:$0xff]
  %v7156 = vld [vmem:[%s5 + $0x40] sm:$0xff]
  %v7157 = vld [vmem:[%s5 + $0x48] sm:$0xff]
  %v7158 = vld [vmem:[%s5 + $0x50] sm:$0xff]
  %v7159 = vld [vmem:[%s5 + $0x58] sm:$0xff]
  %v7160 = vld [vmem:[%s5 + $0x60] sm:$0xff]
  %v7161 = vld [vmem:[%s5 + $0x68] sm:$0xff]
  %v7162 = vld [vmem:[%s5 + $0x70] sm:$0xff]
  %v7163 = vld [vmem:[%s5 + $0x78] sm:$0xff]
  %v7164 = vld [vmem:[%s5 + $0x80] sm:$0xff]
  %v7165 = vld [vmem:[%s5 + $0x88] sm:$0xff]
  %v7166 = vld [vmem:[%s5 + $0x90] sm:$0xff]
  %v7167 = vld [vmem:[%s5 + $0x98] sm:$0xff]
  %v7168 = vld [vmem:[%s5 + $0xa0] sm:$0xff]
  %v7169 = vld [vmem:[%s5 + $0xa8] sm:$0xff]
  %v7170 = vld [vmem:[%s5 + $0xb0] sm:$0xff]
  %v7171 = vld [vmem:[%s5 + $0xb8] sm:$0xff]
  %v7172 = vld [vmem:[%s5 + $0xc0] sm:$0xff]
  %v7173 = vld [vmem:[%s5 + $0xc8] sm:$0xff]
  %v7174 = vld [vmem:[%s5 + $0xd0] sm:$0xff]
  %v7175 = vld [vmem:[%s5 + $0xd8] sm:$0xff]
  %v7176 = vld [vmem:[%s5 + $0xe0] sm:$0xff]
  %v7177 = vld [vmem:[%s5 + $0xe8] sm:$0xff]
  %v7178 = vld [vmem:[%s6] sm:$0xff]
  %v7179 = vld [vmem:[%s6 + $0x8] sm:$0xff]
  %v7180 = vld [vmem:[%s6 + $0x10] sm:$0xff]
  %v7181 = vld [vmem:[%s6 + $0x18] sm:$0xff]
  %v7182 = vld [vmem:[%s6 + $0x20] sm:$0xff]
  %v7183 = vld [vmem:[%s6 + $0x28] sm:$0xff]
  %v7184 = vld [vmem:[%s6 + $0x30] sm:$0xff]
  %v7185 = vld [vmem:[%s6 + $0x38] sm:$0xff]
  %v7186 = vld [vmem:[%s6 + $0x40] sm:$0xff]
  %v7187 = vld [vmem:[%s6 + $0x48] sm:$0xff]
  %v7188 = vld [vmem:[%s6 + $0x50] sm:$0xff]
  %v7189 = vld [vmem:[%s6 + $0x58] sm:$0xff]
  %v7190 = vld [vmem:[%s6 + $0x60] sm:$0xff]
  %v7191 = vld [vmem:[%s6 + $0x68] sm:$0xff]
  %v7192 = vld [vmem:[%s6 + $0x70] sm:$0xff]
  %7194 = vset.pattern.permute.xlu0 0
  %7195 = vperm.xlu0 %7194, %v7178
  %v7196 = vpop.permute.xlu0 %7195
  %7199 = vset.pattern.permute.xlu0 0
  %7200 = vperm.xlu0 %7199, %v7179
  %v7201 = vpop.permute.xlu0 %7200
  %7204 = vset.pattern.permute.xlu0 0
  %7205 = vperm.xlu0 %7204, %v7180
  %v7206 = vpop.permute.xlu0 %7205
  %7209 = vset.pattern.permute.xlu0 0
  %7210 = vperm.xlu0 %7209, %v7181
  %v7211 = vpop.permute.xlu0 %7210
  %7214 = vset.pattern.permute.xlu0 0
  %7215 = vperm.xlu0 %7214, %v7182
  %v7216 = vpop.permute.xlu0 %7215
  %7219 = vset.pattern.permute.xlu0 0
  %7220 = vperm.xlu0 %7219, %v7183
  %v7221 = vpop.permute.xlu0 %7220
  %7224 = vset.pattern.permute.xlu0 0
  %7225 = vperm.xlu0 %7224, %v7184
  %v7226 = vpop.permute.xlu0 %7225
  %7229 = vset.pattern.permute.xlu0 0
  %7230 = vperm.xlu0 %7229, %v7185
  %v7231 = vpop.permute.xlu0 %7230
  %7234 = vset.pattern.permute.xlu0 0
  %7235 = vperm.xlu0 %7234, %v7186
  %v7236 = vpop.permute.xlu0 %7235
  %7239 = vset.pattern.permute.xlu0 0
  %7240 = vperm.xlu0 %7239, %v7187
  %v7241 = vpop.permute.xlu0 %7240
  %7244 = vset.pattern.permute.xlu0 0
  %7245 = vperm.xlu0 %7244, %v7188
  %v7246 = vpop.permute.xlu0 %7245
  %7249 = vset.pattern.permute.xlu0 0
  %7250 = vperm.xlu0 %7249, %v7189
  %v7251 = vpop.permute.xlu0 %7250
  %7254 = vset.pattern.permute.xlu0 0
  %7255 = vperm.xlu0 %7254, %v7190
  %v7256 = vpop.permute.xlu0 %7255
  %7259 = vset.pattern.permute.xlu0 0
  %7260 = vperm.xlu0 %7259, %v7191
  %v7261 = vpop.permute.xlu0 %7260
  %7264 = vset.pattern.permute.xlu0 0
  %7265 = vperm.xlu0 %7264, %v7192
  %v7266 = vpop.permute.xlu0 %7265
  %7268 = vmatprep.subr.mxu0 0.0
  %7269 = vmatpush1.msra.mxu0 %v5460
  %7270 = vmatprep.subr.mxu0 0.0
  %7271 = vmatpush1.msra.mxu0 %v5461
  %7272 = vmatprep.subr.mxu0 0.0
  %7273 = vmatpush1.msra.mxu0 %v5462
  %7274 = vmatprep.subr.mxu0 0.0
  %7275 = vmatpush1.msra.mxu0 %v5463
  %7276 = vmatprep.subr.mxu0 0.0
  %7277 = vmatpush1.msra.mxu0 %v5464
  %7278 = vmatprep.subr.mxu0 0.0
  %7279 = vmatpush1.msra.mxu0 %v5465
  %7280 = vmatprep.subr.mxu0 0.0
  %7281 = vmatpush1.msra.mxu0 %v5466
  %7282 = vmatprep.subr.mxu0 0.0
  %7283 = vmatpush1.msra.mxu0 %v5467
  %7284 = vmatprep.subr.mxu0 0.0
  %7285 = vmatpush1.msra.mxu0 %v6020
  %7286 = vmatprep.subr.mxu0 0.0
  %7287 = vmatpush1.msra.mxu0 %v6021
  %7288 = vmatprep.subr.mxu0 0.0
  %7289 = vmatpush1.msra.mxu0 %v6022
  %7290 = vmatprep.subr.mxu0 0.0
  %7291 = vmatpush1.msra.mxu0 %v6023
  %7292 = vmatprep.subr.mxu0 0.0
  %7293 = vmatpush1.msra.mxu0 %v6024
  %7294 = vmatprep.subr.mxu0 0.0
  %7295 = vmatpush1.msra.mxu0 %v6025
  %7296 = vmatprep.subr.mxu0 0.0
  %7297 = vmatpush1.msra.mxu0 %v6026
  %7298 = vmatprep.subr.mxu0 0.0
  %7299 = vmatpush1.msra.mxu0 %v6027
  %7300 = vmatprep.subr.mxu0 0.0
  %7301 = vmatpush1.msra.mxu0 %v6580
  %7302 = vmatprep.subr.mxu0 0.0
  %7303 = vmatpush1.msra.mxu0 %v6581
  %7304 = vmatprep.subr.mxu0 0.0
  %7305 = vmatpush1.msra.mxu0 %v6582
  %7306 = vmatprep.subr.mxu0 0.0
  %7307 = vmatpush1.msra.mxu0 %v6583
  %7308 = vmatprep.subr.mxu0 0.0
  %7309 = vmatpush1.msra.mxu0 %v6584
  %7310 = vmatprep.subr.mxu0 0.0
  %7311 = vmatpush1.msra.mxu0 %v6585
  %7312 = vmatprep.subr.mxu0 0.0
  %7313 = vmatpush1.msra.mxu0 %v6586
  %7314 = vmatprep.subr.mxu0 0.0
  %7315 = vmatpush1.msra.mxu0 %v6587
  %7316 = vmatprep.subr.mxu0 0.0
  %7317 = vmatpush1.msra.mxu0 %v7140
  %7318 = vmatprep.subr.mxu0 0.0
  %7319 = vmatpush1.msra.mxu0 %v7141
  %7320 = vmatprep.subr.mxu0 0.0
  %7321 = vmatpush1.msra.mxu0 %v7142
  %7322 = vmatprep.subr.mxu0 0.0
  %7323 = vmatpush1.msra.mxu0 %v7143
  %7324 = vmatprep.subr.mxu0 0.0
  %7325 = vmatpush1.msra.mxu0 %v7144
  %7326 = vmatprep.subr.mxu0 0.0
  %7327 = vmatpush1.msra.mxu0 %v7145
  %7328 = vmatprep.subr.mxu0 0.0
  %7329 = vmatpush1.msra.mxu0 %v7146
  %7330 = vmatprep.subr.mxu0 0.0
  %7331 = vmatpush1.msra.mxu0 %v7147
  %7332 = vmatprep.mubr.f32.mxu0 %v7149
  %7333 = vmatmul.mubr.f32.gmra.mrb[0].mxu0 %v7148
  %v7334 = vpop.f32.mrb[0].mxu0
  %v7335 = vadd.f32 %v7196, %v7334
  %v7336 = vpop.f32.mrb[0].mxu0
  %7337 = vmatprep.mubr.f32.mxu0 %v7151
  %7338 = vmatmul.mubr.f32.gmra.mrb[0].mxu0 %v7150
  %v7339 = vpop.f32.mrb[0].mxu0
  %v7340 = vadd.f32 %v7201, %v7339
  %v7341 = vpop.f32.mrb[0].mxu0
  %7342 = vmatprep.mubr.f32.mxu0 %v7153
  %7343 = vmatmul.mubr.f32.gmra.mrb[0].mxu0 %v7152
  %v7344 = vpop.f32.mrb[0].mxu0
  %v7345 = vadd.f32 %v7206, %v7344
  %v7346 = vpop.f32.mrb[0].mxu0
  %7347 = vmatprep.mubr.f32.mxu0 %v7155
  %7348 = vmatmul.mubr.f32.gmra.mrb[0].mxu0 %v7154
  %v7349 = vpop.f32.mrb[0].mxu0
  %v7350 = vadd.f32 %v7211, %v7349
  %v7351 = vpop.f32.mrb[0].mxu0
  %7352 = vmatprep.mubr.f32.mxu0 %v7157
  %7353 = vmatmul.mubr.f32.gmra.mrb[0].mxu0 %v7156
  %v7354 = vpop.f32.mrb[0].mxu0
  %v7355 = vadd.f32 %v7216, %v7354
  %v7356 = vpop.f32.mrb[0].mxu0
  %7357 = vmatprep.mubr.f32.mxu0 %v7159
  %7358 = vmatmul.mubr.f32.gmra.mrb[0].mxu0 %v7158
  %v7359 = vpop.f32.mrb[0].mxu0
  %v7360 = vadd.f32 %v7221, %v7359
  %v7361 = vpop.f32.mrb[0].mxu0
  %7362 = vmatprep.mubr.f32.mxu0 %v7161
  %7363 = vmatmul.mubr.f32.gmra.mrb[0].mxu0 %v7160
  %v7364 = vpop.f32.mrb[0].mxu0
  %v7365 = vadd.f32 %v7226, %v7364
  %v7366 = vpop.f32.mrb[0].mxu0
  %7367 = vmatprep.mubr.f32.mxu0 %v7163
  %7368 = vmatmul.mubr.f32.gmra.mrb[0].mxu0 %v7162
  %v7369 = vpop.f32.mrb[0].mxu0
  %v7370 = vadd.f32 %v7231, %v7369
  %v7371 = vpop.f32.mrb[0].mxu0
  %7372 = vmatprep.mubr.f32.mxu0 %v7165
  %7373 = vmatmul.mubr.f32.gmra.mrb[0].mxu0 %v7164
  %v7374 = vpop.f32.mrb[0].mxu0
  %v7375 = vadd.f32 %v7236, %v7374
  %v7376 = vpop.f32.mrb[0].mxu0
  %7377 = vmatprep.mubr.f32.mxu0 %v7167
  %7378 = vmatmul.mubr.f32.gmra.mrb[0].mxu0 %v7166
  %v7379 = vpop.f32.mrb[0].mxu0
  %v7380 = vadd.f32 %v7241, %v7379
  %v7381 = vpop.f32.mrb[0].mxu0
  %7382 = vmatprep.mubr.f32.mxu0 %v7169
  %7383 = vmatmul.mubr.f32.gmra.mrb[0].mxu0 %v7168
  %v7384 = vpop.f32.mrb[0].mxu0
  %v7385 = vadd.f32 %v7246, %v7384
  %v7386 = vpop.f32.mrb[0].mxu0
  %7387 = vmatprep.mubr.f32.mxu0 %v7171
  %7388 = vmatmul.mubr.f32.gmra.mrb[0].mxu0 %v7170
  %v7389 = vpop.f32.mrb[0].mxu0
  %v7390 = vadd.f32 %v7251, %v7389
  %v7391 = vpop.f32.mrb[0].mxu0
  %7392 = vmatprep.mubr.f32.mxu0 %v7173
  %7393 = vmatmul.mubr.f32.gmra.mrb[0].mxu0 %v7172
  %v7394 = vpop.f32.mrb[0].mxu0
  %v7395 = vadd.f32 %v7256, %v7394
  %v7396 = vpop.f32.mrb[0].mxu0
  %7397 = vmatprep.mubr.f32.mxu0 %v7175
  %7398 = vmatmul.mubr.f32.gmra.mrb[0].mxu0 %v7174
  %v7399 = vpop.f32.mrb[0].mxu0
  %v7400 = vadd.f32 %v7261, %v7399
  %v7401 = vpop.f32.mrb[0].mxu0
  %7402 = vmatprep.mubr.f32.mxu0 %v7177
  %7403 = vmatmul.mubr.f32.gmra.mrb[0].mxu0 %v7176
  %v7404 = vpop.f32.mrb[0].mxu0
  %v7405 = vadd.f32 %v7266, %v7404
  %v7406 = vpop.f32.mrb[0].mxu0
  %7407 = vdwg.mxu0
  %v7408 = vmax.f32 %v7335, 0.0
  %v7409 = vmax.f32 %v7340, 0.0
  %v7410 = vmax.f32 %v7345, 0.0
  %v7411 = vmax.f32 %v7350, 0.0
  %v7412 = vmax.f32 %v7355, 0.0
  %v7413 = vmax.f32 %v7360, 0.0
  %v7414 = vmax.f32 %v7365, 0.0
  %v7415 = vmax.f32 %v7370, 0.0
  %v7416 = vmax.f32 %v7375, 0.0
  %v7417 = vmax.f32 %v7380, 0.0
  %v7418 = vmax.f32 %v7385, 0.0
  %v7419 = vmax.f32 %v7390, 0.0
  %v7420 = vmax.f32 %v7395, 0.0
  %v7421 = vmax.f32 %v7400, 0.0
  %v7422 = vmax.f32 %v7405, 0.0
  %v7423 = vld [vmem:[%s7] sm:$0xff]
  %v7424 = vld [vmem:[%s7 + $0x8] sm:$0xff]
  %v7425 = vld [vmem:[%s7 + $0x10] sm:$0xff]
  %v7426 = vld [vmem:[%s7 + $0x18] sm:$0xff]
  %v7427 = vld [vmem:[%s7 + $0x20] sm:$0xff]
  %v7428 = vld [vmem:[%s7 + $0x28] sm:$0xff]
  %v7429 = vld [vmem:[%s7 + $0x30] sm:$0xff]
  %v7430 = vld [vmem:[%s7 + $0x38] sm:$0xff]
  %v7431 = vld [vmem:[%s7 + $0x40] sm:$0xff]
  %v7432 = vld [vmem:[%s7 + $0x48] sm:$0xff]
  %v7433 = vld [vmem:[%s7 + $0x50] sm:$0xf]
  %v7434 = vld [vmem:[%s8] sm:$0xff]
  %v7435 = vld [vmem:[%s8 + $0x8] sm:$0xff]
  %v7436 = vld [vmem:[%s8 + $0x10] sm:$0xff]
  %v7437 = vld [vmem:[%s8 + $0x18] sm:$0xff]
  %v7438 = vld [vmem:[%s8 + $0x20] sm:$0xff]
  %v7439 = vld [vmem:[%s8 + $0x28] sm:$0xff]
  %v7440 = vld [vmem:[%s8 + $0x30] sm:$0xff]
  %v7441 = vld [vmem:[%s8 + $0x38] sm:$0xff]
  %v7442 = vld [vmem:[%s8 + $0x40] sm:$0xff]
  %v7443 = vld [vmem:[%s8 + $0x48] sm:$0xff]
  %v7444 = vld [vmem:[%s8 + $0x50] sm:$0xf]
  %7446 = vset.pattern.permute.xlu0 0
  %7447 = vperm.xlu0 %7446, %v7434
  %v7448 = vpop.permute.xlu0 %7447
  %7451 = vset.pattern.permute.xlu0 0
  %7452 = vperm.xlu0 %7451, %v7435
  %v7453 = vpop.permute.xlu0 %7452
  %7456 = vset.pattern.permute.xlu0 0
  %7457 = vperm.xlu0 %7456, %v7436
  %v7458 = vpop.permute.xlu0 %7457
  %7461 = vset.pattern.permute.xlu0 0
  %7462 = vperm.xlu0 %7461, %v7437
  %v7463 = vpop.permute.xlu0 %7462
  %7466 = vset.pattern.permute.xlu0 0
  %7467 = vperm.xlu0 %7466, %v7438
  %v7468 = vpop.permute.xlu0 %7467
  %7471 = vset.pattern.permute.xlu0 0
  %7472 = vperm.xlu0 %7471, %v7439
  %v7473 = vpop.permute.xlu0 %7472
  %7476 = vset.pattern.permute.xlu0 0
  %7477 = vperm.xlu0 %7476, %v7440
  %v7478 = vpop.permute.xlu0 %7477
  %7481 = vset.pattern.permute.xlu0 0
  %7482 = vperm.xlu0 %7481, %v7441
  %v7483 = vpop.permute.xlu0 %7482
  %7486 = vset.pattern.permute.xlu0 0
  %7487 = vperm.xlu0 %7486, %v7442
  %v7488 = vpop.permute.xlu0 %7487
  %7491 = vset.pattern.permute.xlu0 0
  %7492 = vperm.xlu0 %7491, %v7443
  %v7493 = vpop.permute.xlu0 %7492
  %7496 = vset.pattern.permute.xlu0 0
  %7497 = vperm.xlu0 %7496, %v7444
  %v7498 = vpop.permute.xlu0 %7497
  %vm7500 = vcmask 982016
  %v7502 = vsel %vm7500, %v7423, 0
  %v7505 = vsel %vm7500, %v7424, 0
  %v7508 = vsel %vm7500, %v7425, 0
  %v7511 = vsel %vm7500, %v7426, 0
  %v7514 = vsel %vm7500, %v7427, 0
  %v7517 = vsel %vm7500, %v7428, 0
  %v7520 = vsel %vm7500, %v7429, 0
  %v7523 = vsel %vm7500, %v7430, 0
  %v7526 = vsel %vm7500, %v7431, 0
  %v7529 = vsel %vm7500, %v7432, 0
  %v7532 = vsel %vm7500, %v7433, 0
  %7534 = vmatprep.subr.mxu0 0.0
  %7535 = vmatpush1.msra.mxu0 %v7408
  %7536 = vmatprep.subr.mxu0 0.0
  %7537 = vmatpush1.msra.mxu0 %v7409
  %7538 = vmatprep.subr.mxu0 0.0
  %7539 = vmatpush1.msra.mxu0 %v7410
  %7540 = vmatprep.subr.mxu0 0.0
  %7541 = vmatpush1.msra.mxu0 %v7411
  %7542 = vmatprep.subr.mxu0 0.0
  %7543 = vmatpush1.msra.mxu0 %v7412
  %7544 = vmatprep.subr.mxu0 0.0
  %7545 = vmatpush1.msra.mxu0 %v7413
  %7546 = vmatprep.subr.mxu0 0.0
  %7547 = vmatpush1.msra.mxu0 %v7414
  %7548 = vmatprep.subr.mxu0 0.0
  %7549 = vmatpush1.msra.mxu0 %v7415
  %7550 = vmatprep.subr.mxu0 0.0
  %7551 = vmatpush1.msra.mxu0 %v7416
  %7552 = vmatprep.subr.mxu0 0.0
  %7553 = vmatpush1.msra.mxu0 %v7417
  %7554 = vmatprep.subr.mxu0 0.0
  %7555 = vmatpush1.msra.mxu0 %v7418
  %7556 = vmatprep.subr.mxu0 0.0
  %7557 = vmatpush1.msra.mxu0 %v7419
  %7558 = vmatprep.subr.mxu0 0.0
  %7559 = vmatpush1.msra.mxu0 %v7420
  %7560 = vmatprep.subr.mxu0 0.0
  %7561 = vmatpush1.msra.mxu0 %v7421
  %7562 = vmatprep.subr.mxu0 0.0
  %7563 = vmatpush1.msra.mxu0 %v7422
  %7564 = vmatprep.subr.mxu0 0.0
  %7565 = vmatpush1.msra.mxu0 0.0
  %7566 = vmatprep.subr.mxu0 0.0
  %7567 = vmatpush1.msra.mxu0 0.0
  %7568 = vmatprep.subr.mxu0 0.0
  %7569 = vmatpush1.msra.mxu0 0.0
  %7570 = vmatprep.subr.mxu0 0.0
  %7571 = vmatpush1.msra.mxu0 0.0
  %7572 = vmatprep.subr.mxu0 0.0
  %7573 = vmatpush1.msra.mxu0 0.0
  %7574 = vmatprep.subr.mxu0 0.0
  %7575 = vmatpush1.msra.mxu0 0.0
  %7576 = vmatprep.subr.mxu0 0.0
  %7577 = vmatpush1.msra.mxu0 0.0
  %7578 = vmatprep.subr.mxu0 0.0
  %7579 = vmatpush1.msra.mxu0 0.0
  %7580 = vmatprep.subr.mxu0 0.0
  %7581 = vmatpush1.msra.mxu0 0.0
  %7582 = vmatprep.subr.mxu0 0.0
  %7583 = vmatpush1.msra.mxu0 0.0
  %7584 = vmatprep.subr.mxu0 0.0
  %7585 = vmatpush1.msra.mxu0 0.0
  %7586 = vmatprep.subr.mxu0 0.0
  %7587 = vmatpush1.msra.mxu0 0.0
  %7588 = vmatprep.subr.mxu0 0.0
  %7589 = vmatpush1.msra.mxu0 0.0
  %7590 = vmatprep.subr.mxu0 0.0
  %7591 = vmatpush1.msra.mxu0 0.0
  %7592 = vmatprep.subr.mxu0 0.0
  %7593 = vmatpush1.msra.mxu0 0.0
  %7594 = vmatprep.subr.mxu0 0.0
  %7595 = vmatpush1.msra.mxu0 0.0
  %7596 = vmatprep.subr.mxu0 0.0
  %7597 = vmatpush1.msra.mxu0 0.0
  %7598 = vmatprep.mubr.f32.mxu0 0.0
  %7599 = vmatmul.mubr.f32.gmra.mrb[0].mxu0 %v7502
  %v7600 = vpop.f32.mrb[0].mxu0
  %v7601 = vadd.f32 %v7448, %v7600
  %v7602 = vpop.f32.mrb[0].mxu0
  %7603 = vmatprep.mubr.f32.mxu0 0.0
  %7604 = vmatmul.mubr.f32.gmra.mrb[0].mxu0 %v7505
  %v7605 = vpop.f32.mrb[0].mxu0
  %v7606 = vadd.f32 %v7453, %v7605
  %v7607 = vpop.f32.mrb[0].mxu0
  %7608 = vmatprep.mubr.f32.mxu0 0.0
  %7609 = vmatmul.mubr.f32.gmra.mrb[0].mxu0 %v7508
  %v7610 = vpop.f32.mrb[0].mxu0
  %v7611 = vadd.f32 %v7458, %v7610
  %v7612 = vpop.f32.mrb[0].mxu0
  %7613 = vmatprep.mubr.f32.mxu0 0.0
  %7614 = vmatmul.mubr.f32.gmra.mrb[0].mxu0 %v7511
  %v7615 = vpop.f32.mrb[0].mxu0
  %v7616 = vadd.f32 %v7463, %v7615
  %v7617 = vpop.f32.mrb[0].mxu0
  %7618 = vmatprep.mubr.f32.mxu0 0.0
  %7619 = vmatmul.mubr.f32.gmra.mrb[0].mxu0 %v7514
  %v7620 = vpop.f32.mrb[0].mxu0
  %v7621 = vadd.f32 %v7468, %v7620
  %v7622 = vpop.f32.mrb[0].mxu0
  %7623 = vmatprep.mubr.f32.mxu0 0.0
  %7624 = vmatmul.mubr.f32.gmra.mrb[0].mxu0 %v7517
  %v7625 = vpop.f32.mrb[0].mxu0
  %v7626 = vadd.f32 %v7473, %v7625
  %v7627 = vpop.f32.mrb[0].mxu0
  %7628 = vmatprep.mubr.f32.mxu0 0.0
  %7629 = vmatmul.mubr.f32.gmra.mrb[0].mxu0 %v7520
  %v7630 = vpop.f32.mrb[0].mxu0
  %v7631 = vadd.f32 %v7478, %v7630
  %v7632 = vpop.f32.mrb[0].mxu0
  %7633 = vmatprep.mubr.f32.mxu0 0.0
  %7634 = vmatmul.mubr.f32.gmra.mrb[0].mxu0 %v7523
  %v7635 = vpop.f32.mrb[0].mxu0
  %v7636 = vadd.f32 %v7483, %v7635
  %v7637 = vpop.f32.mrb[0].mxu0
  %7638 = vmatprep.mubr.f32.mxu0 0.0
  %7639 = vmatmul.mubr.f32.gmra.mrb[0].mxu0 %v7526
  %v7640 = vpop.f32.mrb[0].mxu0
  %v7641 = vadd.f32 %v7488, %v7640
  %v7642 = vpop.f32.mrb[0].mxu0
  %7643 = vmatprep.mubr.f32.mxu0 0.0
  %7644 = vmatmul.mubr.f32.gmra.mrb[0].mxu0 %v7529
  %v7645 = vpop.f32.mrb[0].mxu0
  %v7646 = vadd.f32 %v7493, %v7645
  %v7647 = vpop.f32.mrb[0].mxu0
  %7648 = vmatprep.mubr.f32.mxu0 0.0
  %7649 = vmatmul.mubr.f32.gmra.mrb[0].mxu0 %v7532
  %v7650 = vpop.f32.mrb[0].mxu0
  %v7651 = vadd.f32 %v7498, %v7650
  %v7652 = vpop.f32.mrb[0].mxu0
  %7653 = vdwg.mxu0
  %v7654 = vmax.f32 %v7601, 0.0
  %v7655 = vmax.f32 %v7606, 0.0
  %v7656 = vmax.f32 %v7611, 0.0
  %v7657 = vmax.f32 %v7616, 0.0
  %v7658 = vmax.f32 %v7621, 0.0
  %v7659 = vmax.f32 %v7626, 0.0
  %v7660 = vmax.f32 %v7631, 0.0
  %v7661 = vmax.f32 %v7636, 0.0
  %v7662 = vmax.f32 %v7641, 0.0
  %v7663 = vmax.f32 %v7646, 0.0
  %v7664 = vmax.f32 %v7651, 0.0
  %v7665 = vld [vmem:[%s9] sm:$0xff]
  %v7666 = vld [vmem:[%s9 + $0x8] sm:$0x3]
  %v7667 = vld [vmem:[%s10] sm:$0xff]
  %v7668 = vld [vmem:[%s10 + $0x8] sm:$0x3]
  %7670 = vset.pattern.permute.xlu0 0
  %7671 = vperm.xlu0 %7670, %v7667
  %v7672 = vpop.permute.xlu0 %7671
  %7675 = vset.pattern.permute.xlu0 0
  %7676 = vperm.xlu0 %7675, %v7668
  %v7677 = vpop.permute.xlu0 %7676
  %vm7679 = vcmask 687104
  %v7681 = vsel %vm7679, %v7665, 0
  %v7684 = vsel %vm7679, %v7666, 0
  %vm7686 = vcmask 1043456
  %v7688 = vsel %vm7686, %v7664, 0
  %7690 = vmatprep.subr.mxu0 0.0
  %7691 = vmatpush1.msra.mxu0 %v7654
  %7692 = vmatprep.subr.mxu0 0.0
  %7693 = vmatpush1.msra.mxu0 %v7655
  %7694 = vmatprep.subr.mxu0 0.0
  %7695 = vmatpush1.msra.mxu0 %v7656
  %7696 = vmatprep.subr.mxu0 0.0
  %7697 = vmatpush1.msra.mxu0 %v7657
  %7698 = vmatprep.subr.mxu0 0.0
  %7699 = vmatpush1.msra.mxu0 %v7658
  %7700 = vmatprep.subr.mxu0 0.0
  %7701 = vmatpush1.msra.mxu0 %v7659
  %7702 = vmatprep.subr.mxu0 0.0
  %7703 = vmatpush1.msra.mxu0 %v7660
  %7704 = vmatprep.subr.mxu0 0.0
  %7705 = vmatpush1.msra.mxu0 %v7661
  %7706 = vmatprep.subr.mxu0 0.0
  %7707 = vmatpush1.msra.mxu0 %v7662
  %7708 = vmatprep.subr.mxu0 0.0
  %7709 = vmatpush1.msra.mxu0 %v7663
  %7710 = vmatprep.subr.mxu0 0.0
  %7711 = vmatpush1.msra.mxu0 %v7688
  %7712 = vmatprep.subr.mxu0 0.0
  %7713 = vmatpush1.msra.mxu0 0.0
  %7714 = vmatprep.subr.mxu0 0.0
  %7715 = vmatpush1.msra.mxu0 0.0
  %7716 = vmatprep.subr.mxu0 0.0
  %7717 = vmatpush1.msra.mxu0 0.0
  %7718 = vmatprep.subr.mxu0 0.0
  %7719 = vmatpush1.msra.mxu0 0.0
  %7720 = vmatprep.subr.mxu0 0.0
  %7721 = vmatpush1.msra.mxu0 0.0
  %7722 = vmatprep.subr.mxu0 0.0
  %7723 = vmatpush1.msra.mxu0 0.0
  %7724 = vmatprep.subr.mxu0 0.0
  %7725 = vmatpush1.msra.mxu0 0.0
  %7726 = vmatprep.subr.mxu0 0.0
  %7727 = vmatpush1.msra.mxu0 0.0
  %7728 = vmatprep.subr.mxu0 0.0
  %7729 = vmatpush1.msra.mxu0 0.0
  %7730 = vmatprep.subr.mxu0 0.0
  %7731 = vmatpush1.msra.mxu0 0.0
  %7732 = vmatprep.subr.mxu0 0.0
  %7733 = vmatpush1.msra.mxu0 0.0
  %7734 = vmatprep.subr.mxu0 0.0
  %7735 = vmatpush1.msra.mxu0 0.0
  %7736 = vmatprep.subr.mxu0 0.0
  %7737 = vmatpush1.msra.mxu0 0.0
  %7738 = vmatprep.subr.mxu0 0.0
  %7739 = vmatpush1.msra.mxu0 0.0
  %7740 = vmatprep.subr.mxu0 0.0
  %7741 = vmatpush1.msra.mxu0 0.0
  %7742 = vmatprep.subr.mxu0 0.0
  %7743 = vmatpush1.msra.mxu0 0.0
  %7744 = vmatprep.subr.mxu0 0.0
  %7745 = vmatpush1.msra.mxu0 0.0
  %7746 = vmatprep.subr.mxu0 0.0
  %7747 = vmatpush1.msra.mxu0 0.0
  %7748 = vmatprep.subr.mxu0 0.0
  %7749 = vmatpush1.msra.mxu0 0.0
  %7750 = vmatprep.subr.mxu0 0.0
  %7751 = vmatpush1.msra.mxu0 0.0
  %7752 = vmatprep.subr.mxu0 0.0
  %7753 = vmatpush1.msra.mxu0 0.0
  %7754 = vmatprep.mubr.f32.mxu0 0.0
  %7755 = vmatmul.mubr.f32.gmra.mrb[0].mxu0 %v7681
  %v7756 = vpop.f32.mrb[0].mxu0
  %v7757 = vadd.f32 %v7672, %v7756
  %v7758 = vpop.f32.mrb[0].mxu0
  %7759 = vmatprep.mubr.f32.mxu0 0.0
  %7760 = vmatmul.mubr.f32.gmra.mrb[0].mxu0 %v7684
  %v7761 = vpop.f32.mrb[0].mxu0
  %v7762 = vadd.f32 %v7677, %v7761
  %v7763 = vpop.f32.mrb[0].mxu0
  %7764 = vdwg.mxu0
  %7765 = vst [vmem:[%s11] sm:$0xff] %v7757
  %7766 = vst [vmem:[%s11 + $0x8] sm:$0x3] %v7762
  // Predicated region
  $region46: #{lenet5_forward.1} parent=0 // pred_check
    _
  $region47: #{lenet5_forward.1} parent=0 // pred_check_branch
    %7768 = sbr.rel (0) target = $region49
  $region48: #{lenet5_forward.1} parent=0 // pred_region
    _
  $region49: #{lenet5_forward.1} parent=0 // pred_fallthru
    _
  // Predicated region
  $region50: #{lenet5_forward.1} parent=0 // pred_check
    _
  $region51: #{lenet5_forward.1} parent=0 // pred_check_branch
    %7770 = sbr.rel (0) target = $region53
  $region52: #{lenet5_forward.1} parent=0 // pred_region
    _
  $region53: #{lenet5_forward.1} parent=0 // pred_fallthru
    _

</llo_original>
